<compile_context>
chip_gen: v5e
topology: v5e:2x2
jax: 0.10.0
libtpu: 0.0.40
codegen_flags: <defaults>
</compile_context>

<pallas_src>
import functools

import numpy as np

import jax
import jax.numpy as jnp
from jax.experimental import pallas as pl
from jax.experimental.pallas import tpu as pltpu

BN_EPS = 1e-5
C_PAD = 8        # conv channels padded to 8 lanes-per-pixel for every layer
HID_PAD = 512    # fc hidden 500 -> 512
OUT_PAD = 128    # fc output 5 -> 128

_VMEM = pl.BlockSpec(memory_space=pltpu.MemorySpace.VMEM)
_ANY = pl.BlockSpec(memory_space=pl.ANY)


# ------------------------------ fused kernel -------------------------------- #

def _make_fused_kernel(pb, h, w):
    """pb = samples per branch; two branches are batched -> 2*pb samples."""
    n_b = 2 * pb                 # total samples
    n_rows = n_b * h             # rows of the lane-packed conv slab
    wc = w * C_PAD               # lane width of every conv activation slab
    inv_cnt = 1.0 / float(pb * h * w)   # BatchNorm divisor per branch (N*H*W)

    def kernel(x_ref, s_ref, m0_ref, m1_ref, m2_ref,
               cb0_ref, cb1_ref, cb2_ref,
               g0_ref, bt0_ref, g1_ref, bt1_ref, g2_ref, bt2_ref,
               sel_ref, selt_ref, b2r_ref, r2b_ref, rsel_ref,
               w1_hbm, fb1_ref, w2_hbm, fb2_ref, w3_hbm, fb3_ref,
               out_ref,
               w1_v, w2_v, w3_v, dma_sem):

        # Kick off the FC-weight DMAs (HBM -> VMEM scratch) immediately so they
        # overlap the entire conv stack; we only wait right before each matmul.
        cp1 = pltpu.make_async_copy(w1_hbm, w1_v, dma_sem.at[0])
        cp2 = pltpu.make_async_copy(w2_hbm, w2_v, dma_sem.at[1])
        cp3 = pltpu.make_async_copy(w3_hbm, w3_v, dma_sem.at[2])
        cp1.start()
        cp2.start()
        cp3.start()

        def conv_relu_bn(x, m_ref, cb_ref, g_ref, bt_ref):
            # ReflectionPad + 3x3 conv == sum over dy of (row-select) @ (banded W).
            acc = jnp.dot(jnp.dot(s_ref[0], x, preferred_element_type=jnp.float32),
                          m_ref[0], preferred_element_type=jnp.float32)
            for dy in (1, 2):
                xs = jnp.dot(s_ref[dy], x, preferred_element_type=jnp.float32)
                acc = acc + jnp.dot(xs, m_ref[dy], preferred_element_type=jnp.float32)

            acc = jnp.maximum(acc + cb_ref[...], 0.0)        # bias + ReLU (before BN)

            # Training-mode BatchNorm, stats computed per siamese branch, all on
            # the MXU (single-pass sum / sum-of-squares; clamped for safety).
            b2r = b2r_ref[...]                               # (2, n_rows)
            sums = jnp.dot(b2r, acc, preferred_element_type=jnp.float32)        # (2, wc)
            sumsq = jnp.dot(b2r, acc * acc, preferred_element_type=jnp.float32)  # (2, wc)
            mean = jnp.dot(sums, sel_ref[...], preferred_element_type=jnp.float32) * inv_cnt
            ex2 = jnp.dot(sumsq, sel_ref[...], preferred_element_type=jnp.float32) * inv_cnt
            var = jnp.maximum(ex2 - mean * mean, 0.0)        # (2, C_PAD)
            scl = g_ref[...] * jax.lax.rsqrt(var + BN_EPS)   # (2, C_PAD)
            sft = bt_ref[...] - mean * scl
            # Broadcast per-(branch, channel) scale/shift back to (rows, lanes).
            scl_rows = jnp.dot(r2b_ref[...],
                               jnp.dot(scl, selt_ref[...], preferred_element_type=jnp.float32),
                               preferred_element_type=jnp.float32)
            sft_rows = jnp.dot(r2b_ref[...],
                               jnp.dot(sft, selt_ref[...], preferred_element_type=jnp.float32),
                               preferred_element_type=jnp.float32)
            return acc * scl_rows + sft_rows                 # (n_rows, wc)

        y = conv_relu_bn(x_ref[...], m0_ref, cb0_ref, g0_ref, bt0_ref)
        y = conv_relu_bn(y, m1_ref, cb1_ref, g1_ref, bt1_ref)
        y = conv_relu_bn(y, m2_ref, cb2_ref, g2_ref, bt2_ref)   # (n_rows, wc)

        # fc1: contract the lane-packed slab against the (H, W*C, 512) weight
        # stack; the (4, n_rows) row selector replaces any in-kernel relayout.
        cp1.wait()                                            # overlapped with conv
        fcdt = w1_v.dtype
        y0 = jnp.dot(rsel_ref[0], y, preferred_element_type=jnp.float32)        # (n_b, wc)
        a = jnp.dot(y0.astype(fcdt), w1_v[0], preferred_element_type=jnp.float32)
        for hh in range(1, h):
            yh = jnp.dot(rsel_ref[hh], y, preferred_element_type=jnp.float32)
            a = a + jnp.dot(yh.astype(fcdt), w1_v[hh], preferred_element_type=jnp.float32)
        a = jnp.maximum(a + fb1_ref[...], 0.0)                # (n_b, 512)

        cp2.wait()
        a = jnp.dot(a.astype(fcdt), w2_v[...], preferred_element_type=jnp.float32) + fb2_ref[...]
        a = jnp.maximum(a, 0.0)

        cp3.wait()
        out_ref[...] = jnp.dot(a.astype(fcdt), w3_v[...],
                               preferred_element_type=jnp.float32) + fb3_ref[...]

    return kernel


def _fused_forward(x_slab, p, pb, h, w):
    n_b = 2 * pb
    n_rows = n_b * h
    wc = w * C_PAD

    kernel = _make_fused_kernel(pb, h, w)

    args = [x_slab, p["S"], p["M0"], p["M1"], p["M2"],
            p["cb0"], p["cb1"], p["cb2"],
            p["g0"], p["bt0"], p["g1"], p["bt1"], p["g2"], p["bt2"],
            p["sel"], p["selt"], p["b2r"], p["r2b"], p["rsel"],
            p["fc_w1"], p["fc_b1"], p["fc_w2"], p["fc_b2"], p["fc_w3"], p["fc_b3"]]
    in_specs = [_VMEM] * 19 + [_ANY, _VMEM, _ANY, _VMEM, _ANY, _VMEM]

    # Advisory cost estimate.
    flops = 0
    for k_in in (x_slab.shape[1], wc, wc):                       # conv stack
        flops += 3 * (2 * n_rows * n_rows * k_in + 2 * n_rows * k_in * wc)
    flops += 3 * (2 * (2 * 2 * n_rows * wc) + 4 * (2 * 2 * wc * C_PAD)
                  + 2 * (2 * n_rows * 2 * wc))                   # BN matmuls
    flops += h * (2 * n_b * n_rows * wc + 2 * n_b * wc * HID_PAD)  # fc1
    flops += 2 * n_b * HID_PAD * HID_PAD + 2 * n_b * HID_PAD * OUT_PAD
    bytes_accessed = sum(int(a.size) * jnp.dtype(a.dtype).itemsize for a in args)
    bytes_accessed += n_b * OUT_PAD * 4

    return pl.pallas_call(
        kernel,
        out_shape=jax.ShapeDtypeStruct((n_b, OUT_PAD), jnp.float32),
        in_specs=in_specs,
        out_specs=_VMEM,
        scratch_shapes=[
            pltpu.VMEM(p["fc_w1"].shape, p["fc_w1"].dtype),
            pltpu.VMEM(p["fc_w2"].shape, p["fc_w2"].dtype),
            pltpu.VMEM(p["fc_w3"].shape, p["fc_w3"].dtype),
            pltpu.SemaphoreType.DMA((3,)),
        ],
        cost_estimate=pl.CostEstimate(flops=int(flops), transcendentals=64,
                                      bytes_accessed=int(bytes_accessed)),
    )(*args)


# ------------------------------- init / params ------------------------------ #

def _reflect(i, n):
    if i < 0:
        return -i
    if i >= n:
        return 2 * n - 2 - i
    return i


def init_params(key, pb=2, h=16, w=16, num_classes=5, fc_dtype=jnp.bfloat16):
    """Returns (kernel params, raw params for the pure-JAX reference)."""
    n_b = 2 * pb
    n_rows = n_b * h
    conv_shapes = [(1, 4), (4, 8), (8, 8)]

    p = {}
    raw = {"conv": [], "fc": []}

    # ---- constant 0/1 index matrices (built once on host) ----
    S = np.zeros((3, n_rows, n_rows), np.float32)        # row select + row reflection
    for dy in range(3):
        for b in range(n_b):
            for i in range(h):
                S[dy, b * h + i, b * h + _reflect(i + dy - 1, h)] = 1.0
    Rsel = np.zeros((h, n_b, n_rows), np.float32)        # fc1 per-image-row selector
    for i in range(h):
        for b in range(n_b):
            Rsel[i, b, b * h + i] = 1.0
    Sel = np.zeros((w * C_PAD, C_PAD), np.float32)       # pool lanes -> channels
    for ww in range(w):
        for c in range(C_PAD):
            Sel[ww * C_PAD + c, c] = 1.0
    B2R = np.zeros((2, n_rows), np.float32)              # branch-sum selector
    B2R[0, :pb * h] = 1.0
    B2R[1, pb * h:] = 1.0

    p["S"] = jnp.asarray(S)
    p["rsel"] = jnp.asarray(Rsel)
    p["sel"] = jnp.asarray(Sel)
    p["selt"] = jnp.asarray(Sel.T.copy())
    p["b2r"] = jnp.asarray(B2R)
    p["r2b"] = jnp.asarray(B2R.T.copy())

    # ---- conv layers: banded (W*cin, W*C_PAD) weights with column reflection
    #      and the 3 dx taps folded in; bias lane-packed; gamma/beta padded ----
    for li, (cin, cout) in enumerate(conv_shapes):
        key, kw_, kb_ = jax.random.split(key, 3)
        bound = 1.0 / np.sqrt(cin * 9.0)
        Wl = np.asarray(jax.random.uniform(kw_, (3, 3, cin, cout), jnp.float32,
                                           -bound, bound))          # (ky, kx, ci, co)
        bl = np.asarray(jax.random.uniform(kb_, (cout,), jnp.float32, -bound, bound))
        raw["conv"].append((jnp.asarray(Wl), jnp.asarray(bl)))

        cin_p = cin if li == 0 else C_PAD     # layer 0 consumes the raw 1-channel input
        M = np.zeros((3, w * cin_p, w * C_PAD), np.float32)
        for dy in range(3):
            for w_out in range(w):
                for dx in range(3):
                    w_src = _reflect(w_out + dx - 1, w)
                    M[dy,
                      w_src * cin_p: w_src * cin_p + cin,
                      w_out * C_PAD: w_out * C_PAD + cout] += Wl[dy, dx]

        cb = np.tile(np.concatenate([bl, np.zeros(C_PAD - cout, np.float32)]), w)
        g = np.zeros((1, C_PAD), np.float32)
        g[0, :cout] = 1.0                      # BatchNorm2d default affine (gamma=1)
        bt = np.zeros((1, C_PAD), np.float32)  # beta = 0; padded channels stay exactly 0

        p[f"M{li}"] = jnp.asarray(M)
        p[f"cb{li}"] = jnp.asarray(cb.reshape(1, w * C_PAD))
        p[f"g{li}"] = jnp.asarray(g)
        p[f"bt{li}"] = jnp.asarray(bt)

    # ---- FC head: (8*h*w -> 500 -> 500 -> num_classes), lane padded ----
    c_last = conv_shapes[-1][1]                 # 8 (== C_PAD)
    d_in = c_last * h * w
    key, k1, kb1, k2, kb2, k3, kb3 = jax.random.split(key, 7)

    def lin_init(kk, kb, din, dout):
        bound = 1.0 / np.sqrt(float(din))
        Wf = np.asarray(jax.random.uniform(kk, (din, dout), jnp.float32, -bound, bound))
        bf = np.asarray(jax.random.uniform(kb, (dout,), jnp.float32, -bound, bound))
        return Wf, bf

    w1, b1 = lin_init(k1, kb1, d_in, 500)
    w2, b2 = lin_init(k2, kb2, 500, 500)
    w3, b3 = lin_init(k3, kb3, 500, num_classes)
    raw["fc"] = [(jnp.asarray(w1), jnp.asarray(b1)),
                 (jnp.asarray(w2), jnp.asarray(b2)),
                 (jnp.asarray(w3), jnp.asarray(b3))]

    # fc1: one-time row permutation from PyTorch NCHW flatten order (c*H*W + i*W + j)
    # to the kernel's lane-packed (i, j, c) order, reshaped to (H, W*C, 512) so fc1
    # is an accumulation of H matmuls over the conv slab (no relayout on the hot path).
    w1p = w1.reshape(c_last, h, w, 500).transpose(1, 2, 0, 3).reshape(h, w * c_last, 500)
    w1k = np.zeros((h, w * C_PAD, HID_PAD), np.float32)
    w1k[:, :, :500] = w1p
    w2k = np.zeros((HID_PAD, HID_PAD), np.float32)
    w2k[:500, :500] = w2
    w3k = np.zeros((HID_PAD, OUT_PAD), np.float32)
    w3k[:500, :num_classes] = w3
    fb1 = np.zeros((1, HID_PAD), np.float32); fb1[0, :500] = b1
    fb2 = np.zeros((1, HID_PAD), np.float32); fb2[0, :500] = b2
    fb3 = np.zeros((1, OUT_PAD), np.float32); fb3[0, :num_classes] = b3

    # FC weights stored in bf16 by default (halves the dominant HBM traffic);
    # pass fc_dtype=jnp.float32 for exact-f32 matching of the PyTorch reference.
    p["fc_w1"] = jnp.asarray(w1k).astype(fc_dtype)
    p["fc_w2"] = jnp.asarray(w2k).astype(fc_dtype)
    p["fc_w3"] = jnp.asarray(w3k).astype(fc_dtype)
    p["fc_b1"] = jnp.asarray(fb1)
    p["fc_b2"] = jnp.asarray(fb2)
    p["fc_b3"] = jnp.asarray(fb3)
    return p, raw


# --------------------------------- forward ---------------------------------- #

@functools.partial(jax.jit, static_argnames=("num_classes",))
def siamese_forward(input1, input2, params, num_classes=5):
    assert input1.shape == input2.shape and input1.shape[1] == 1
    n1, _, h, w = input1.shape
    # Batch both siamese branches: weights are loaded once, ONE pallas_call total.
    x = jnp.concatenate([input1, input2], axis=0).astype(jnp.float32)   # (2*n1, 1, h, w)
    x_slab = x.reshape(2 * n1 * h, w)        # lane-packed (rows=(b,h), lanes=(w,c=1)); free
    logits = _fused_forward(x_slab, params, n1, h, w)                   # (2*n1, OUT_PAD)
    logits = logits[:, :num_classes]
    return logits[:n1], logits[n1:]


# --------------------------- pure-JAX f32 reference -------------------------- #

def reference_forward(x1, x2, raw):
    hi = jax.lax.Precision.HIGHEST

    def forward_once(x):
        a = x.astype(jnp.float32)
        for Wl, bl in raw["conv"]:
            ap = jnp.pad(a, ((0, 0), (0, 0), (1, 1), (1, 1)), mode="reflect")
            z = jax.lax.conv_general_dilated(
                ap, Wl, window_strides=(1, 1), padding="VALID",
                dimension_numbers=("NCHW", "HWIO", "NCHW"), precision=hi)
            z = jnp.maximum(z + bl.reshape(1, -1, 1, 1), 0.0)
            mean = jnp.mean(z, axis=(0, 2, 3), keepdims=True)
            var = jnp.mean((z - mean) ** 2, axis=(0, 2, 3), keepdims=True)
            a = (z - mean) * jax.lax.rsqrt(var + BN_EPS)      # gamma=1, beta=0
        flat = a.reshape(a.shape[0], -1)                      # NCHW flatten
        (w1, b1), (w2, b2), (w3, b3) = raw["fc"]
        h1 = jnp.maximum(jnp.dot(flat, w1, precision=hi) + b1, 0.0)
        h2 = jnp.maximum(jnp.dot(h1, w2, precision=hi) + b2, 0.0)
        return jnp.dot(h2, w3, precision=hi) + b3

    return forward_once(x1), forward_once(x2)


# ----------------------------------- main ------------------------------------ #

if __name__ == "__main__":
    key = jax.random.PRNGKey(0)
    k1, k2 = jax.random.split(key)
    # PyTorch NCHW convention: (batch=2, channels=1, 16, 16) per branch.
    input1 = jax.random.normal(k1, (2, 1, 16, 16), jnp.float32)
    input2 = jax.random.normal(k2, (2, 1, 16, 16), jnp.float32)

    params, raw = init_params(jax.random.PRNGKey(42), pb=2, h=16, w=16,
                              num_classes=5, fc_dtype=jnp.bfloat16)

    out1, out2 = siamese_forward(input1, input2, params)
    jax.block_until_ready((out1, out2))

    assert out1.shape == (2, 5) and out2.shape == (2, 5)
    assert out1.dtype == jnp.float32 and out2.dtype == jnp.float32
    assert bool(jnp.all(jnp.isfinite(out1))) and bool(jnp.all(jnp.isfinite(out2)))

    # Cross-check against a pure-JAX f32 reference (tolerance covers the bf16
    # FC weights; structural/index bugs would show up as O(1) errors).
    ref1, ref2 = reference_forward(input1, input2, raw)
    np.testing.assert_allclose(np.asarray(out1), np.asarray(ref1), rtol=0.1, atol=0.1)
    np.testing.assert_allclose(np.asarray(out2), np.asarray(ref2), rtol=0.1, atol=0.1)

    print("KERNEL_OK")
</pallas_src>

<mosaic_0001>
module attributes {stable_mosaic.version = 11 : i64} {
  func.func @kernel(%arg0: memref<64x16xf32, #tpu.memory_space<vmem>>, %arg1: memref<3x64x64xf32, #tpu.memory_space<vmem>>, %arg2: memref<3x16x128xf32, #tpu.memory_space<vmem>>, %arg3: memref<3x128x128xf32, #tpu.memory_space<vmem>>, %arg4: memref<3x128x128xf32, #tpu.memory_space<vmem>>, %arg5: memref<1x128xf32, #tpu.memory_space<vmem>>, %arg6: memref<1x128xf32, #tpu.memory_space<vmem>>, %arg7: memref<1x128xf32, #tpu.memory_space<vmem>>, %arg8: memref<1x8xf32, #tpu.memory_space<vmem>>, %arg9: memref<1x8xf32, #tpu.memory_space<vmem>>, %arg10: memref<1x8xf32, #tpu.memory_space<vmem>>, %arg11: memref<1x8xf32, #tpu.memory_space<vmem>>, %arg12: memref<1x8xf32, #tpu.memory_space<vmem>>, %arg13: memref<1x8xf32, #tpu.memory_space<vmem>>, %arg14: memref<128x8xf32, #tpu.memory_space<vmem>>, %arg15: memref<8x128xf32, #tpu.memory_space<vmem>>, %arg16: memref<2x64xf32, #tpu.memory_space<vmem>>, %arg17: memref<64x2xf32, #tpu.memory_space<vmem>>, %arg18: memref<16x4x64xf32, #tpu.memory_space<vmem>>, %arg19: memref<16x128x512xbf16, #tpu.memory_space<any>>, %arg20: memref<1x512xf32, #tpu.memory_space<vmem>>, %arg21: memref<512x512xbf16, #tpu.memory_space<any>>, %arg22: memref<1x512xf32, #tpu.memory_space<vmem>>, %arg23: memref<512x128xbf16, #tpu.memory_space<any>>, %arg24: memref<1x128xf32, #tpu.memory_space<vmem>>, %arg25: memref<4x128xf32, #tpu.memory_space<vmem>>, %arg26: memref<16x128x512xbf16, #tpu.memory_space<vmem>>, %arg27: memref<512x512xbf16, #tpu.memory_space<vmem>>, %arg28: memref<512x128xbf16, #tpu.memory_space<vmem>>, %arg29: memref<3x!tpu.dma_semaphore, #tpu.memory_space<semaphore_mem>>) attributes {dimension_semantics = [], scalar_prefetch = 0 : i64, scratch_operands = 4 : i64, tpu.core_type = #tpu.core_type<tc>} {
    %c0_i32 = arith.constant 0 : i32
    %0 = tpu.memref_slice %arg29[%c0_i32] : memref<3x!tpu.dma_semaphore, #tpu.memory_space<semaphore_mem>> -> memref<1x!tpu.dma_semaphore, #tpu.memory_space<semaphore_mem>>
    %1 = tpu.memref_squeeze %0 : memref<1x!tpu.dma_semaphore, #tpu.memory_space<semaphore_mem>> -> memref<!tpu.dma_semaphore, #tpu.memory_space<semaphore_mem>>
    tpu.enqueue_dma source(%arg19 : memref<16x128x512xbf16, #tpu.memory_space<any>>) target(%arg26 : memref<16x128x512xbf16, #tpu.memory_space<vmem>>) target_semaphore(%1 : memref<!tpu.dma_semaphore, #tpu.memory_space<semaphore_mem>>)
    %c1_i32 = arith.constant 1 : i32
    %2 = tpu.memref_slice %arg29[%c1_i32] : memref<3x!tpu.dma_semaphore, #tpu.memory_space<semaphore_mem>> -> memref<1x!tpu.dma_semaphore, #tpu.memory_space<semaphore_mem>>
    %3 = tpu.memref_squeeze %2 : memref<1x!tpu.dma_semaphore, #tpu.memory_space<semaphore_mem>> -> memref<!tpu.dma_semaphore, #tpu.memory_space<semaphore_mem>>
    tpu.enqueue_dma source(%arg21 : memref<512x512xbf16, #tpu.memory_space<any>>) target(%arg27 : memref<512x512xbf16, #tpu.memory_space<vmem>>) target_semaphore(%3 : memref<!tpu.dma_semaphore, #tpu.memory_space<semaphore_mem>>)
    %c2_i32 = arith.constant 2 : i32
    %4 = tpu.memref_slice %arg29[%c2_i32] : memref<3x!tpu.dma_semaphore, #tpu.memory_space<semaphore_mem>> -> memref<1x!tpu.dma_semaphore, #tpu.memory_space<semaphore_mem>>
    %5 = tpu.memref_squeeze %4 : memref<1x!tpu.dma_semaphore, #tpu.memory_space<semaphore_mem>> -> memref<!tpu.dma_semaphore, #tpu.memory_space<semaphore_mem>>
    tpu.enqueue_dma source(%arg23 : memref<512x128xbf16, #tpu.memory_space<any>>) target(%arg28 : memref<512x128xbf16, #tpu.memory_space<vmem>>) target_semaphore(%5 : memref<!tpu.dma_semaphore, #tpu.memory_space<semaphore_mem>>)
    %c0 = arith.constant 0 : index
    %c0_0 = arith.constant 0 : index
    %6 = vector.load %arg0[%c0, %c0_0] : memref<64x16xf32, #tpu.memory_space<vmem>>, vector<64x16xf32>
    %c0_1 = arith.constant 0 : index
    %c0_2 = arith.constant 0 : index
    %c0_3 = arith.constant 0 : index
    %7 = vector.load %arg1[%c0_1, %c0_2, %c0_3] : memref<3x64x64xf32, #tpu.memory_space<vmem>>, vector<1x64x64xf32>
    %8 = vector.shape_cast %7 : vector<1x64x64xf32> to vector<64x64xf32>
    %cst = arith.constant dense<0.000000e+00> : vector<64x16xf32>
    %9 = tpu.matmul %8, %6, %cst {dimension_numbers = #tpu.dot_dimension_numbers<[1], [0], [0], [1], [0, 0, 1, 1], [], []>} : vector<64x64xf32>, vector<64x16xf32>, vector<64x16xf32> -> vector<64x16xf32>
    %c0_4 = arith.constant 0 : index
    %c0_5 = arith.constant 0 : index
    %c0_6 = arith.constant 0 : index
    %10 = vector.load %arg2[%c0_4, %c0_5, %c0_6] : memref<3x16x128xf32, #tpu.memory_space<vmem>>, vector<1x16x128xf32>
    %11 = vector.shape_cast %10 : vector<1x16x128xf32> to vector<16x128xf32>
    %cst_7 = arith.constant dense<0.000000e+00> : vector<64x128xf32>
    %12 = tpu.matmul %9, %11, %cst_7 {dimension_numbers = #tpu.dot_dimension_numbers<[1], [0], [0], [1], [0, 0, 1, 1], [], []>} : vector<64x16xf32>, vector<16x128xf32>, vector<64x128xf32> -> vector<64x128xf32>
    %c1 = arith.constant 1 : index
    %c0_8 = arith.constant 0 : index
    %c0_9 = arith.constant 0 : index
    %13 = vector.load %arg1[%c1, %c0_8, %c0_9] : memref<3x64x64xf32, #tpu.memory_space<vmem>>, vector<1x64x64xf32>
    %14 = vector.shape_cast %13 : vector<1x64x64xf32> to vector<64x64xf32>
    %cst_10 = arith.constant dense<0.000000e+00> : vector<64x16xf32>
    %15 = tpu.matmul %14, %6, %cst_10 {dimension_numbers = #tpu.dot_dimension_numbers<[1], [0], [0], [1], [0, 0, 1, 1], [], []>} : vector<64x64xf32>, vector<64x16xf32>, vector<64x16xf32> -> vector<64x16xf32>
    %c1_11 = arith.constant 1 : index
    %c0_12 = arith.constant 0 : index
    %c0_13 = arith.constant 0 : index
    %16 = vector.load %arg2[%c1_11, %c0_12, %c0_13] : memref<3x16x128xf32, #tpu.memory_space<vmem>>, vector<1x16x128xf32>
    %17 = vector.shape_cast %16 : vector<1x16x128xf32> to vector<16x128xf32>
    %cst_14 = arith.constant dense<0.000000e+00> : vector<64x128xf32>
    %18 = tpu.matmul %15, %17, %cst_14 {dimension_numbers = #tpu.dot_dimension_numbers<[1], [0], [0], [1], [0, 0, 1, 1], [], []>} : vector<64x16xf32>, vector<16x128xf32>, vector<64x128xf32> -> vector<64x128xf32>
    %19 = arith.addf %12, %18 : vector<64x128xf32>
    %c2 = arith.constant 2 : index
    %c0_15 = arith.constant 0 : index
    %c0_16 = arith.constant 0 : index
    %20 = vector.load %arg1[%c2, %c0_15, %c0_16] : memref<3x64x64xf32, #tpu.memory_space<vmem>>, vector<1x64x64xf32>
    %21 = vector.shape_cast %20 : vector<1x64x64xf32> to vector<64x64xf32>
    %cst_17 = arith.constant dense<0.000000e+00> : vector<64x16xf32>
    %22 = tpu.matmul %21, %6, %cst_17 {dimension_numbers = #tpu.dot_dimension_numbers<[1], [0], [0], [1], [0, 0, 1, 1], [], []>} : vector<64x64xf32>, vector<64x16xf32>, vector<64x16xf32> -> vector<64x16xf32>
    %c2_18 = arith.constant 2 : index
    %c0_19 = arith.constant 0 : index
    %c0_20 = arith.constant 0 : index
    %23 = vector.load %arg2[%c2_18, %c0_19, %c0_20] : memref<3x16x128xf32, #tpu.memory_space<vmem>>, vector<1x16x128xf32>
    %24 = vector.shape_cast %23 : vector<1x16x128xf32> to vector<16x128xf32>
    %cst_21 = arith.constant dense<0.000000e+00> : vector<64x128xf32>
    %25 = tpu.matmul %22, %24, %cst_21 {dimension_numbers = #tpu.dot_dimension_numbers<[1], [0], [0], [1], [0, 0, 1, 1], [], []>} : vector<64x16xf32>, vector<16x128xf32>, vector<64x128xf32> -> vector<64x128xf32>
    %26 = arith.addf %19, %25 : vector<64x128xf32>
    %c0_22 = arith.constant 0 : index
    %c0_23 = arith.constant 0 : index
    %27 = vector.load %arg5[%c0_22, %c0_23] : memref<1x128xf32, #tpu.memory_space<vmem>>, vector<1x128xf32>
    %28 = vector.broadcast %27 : vector<1x128xf32> to vector<64x128xf32>
    %29 = arith.addf %26, %28 : vector<64x128xf32>
    %cst_24 = arith.constant 0.000000e+00 : f32
    %30 = vector.broadcast %cst_24 : f32 to vector<64x128xf32>
    %31 = arith.maximumf %29, %30 : vector<64x128xf32>
    %c0_25 = arith.constant 0 : index
    %c0_26 = arith.constant 0 : index
    %32 = vector.load %arg16[%c0_25, %c0_26] : memref<2x64xf32, #tpu.memory_space<vmem>>, vector<2x64xf32>
    %cst_27 = arith.constant dense<0.000000e+00> : vector<2x128xf32>
    %33 = tpu.matmul %32, %31, %cst_27 {dimension_numbers = #tpu.dot_dimension_numbers<[1], [0], [0], [1], [0, 0, 1, 1], [], []>} : vector<2x64xf32>, vector<64x128xf32>, vector<2x128xf32> -> vector<2x128xf32>
    %34 = arith.mulf %31, %31 : vector<64x128xf32>
    %cst_28 = arith.constant dense<0.000000e+00> : vector<2x128xf32>
    %35 = tpu.matmul %32, %34, %cst_28 {dimension_numbers = #tpu.dot_dimension_numbers<[1], [0], [0], [1], [0, 0, 1, 1], [], []>} : vector<2x64xf32>, vector<64x128xf32>, vector<2x128xf32> -> vector<2x128xf32>
    %c0_29 = arith.constant 0 : index
    %c0_30 = arith.constant 0 : index
    %36 = vector.load %arg14[%c0_29, %c0_30] : memref<128x8xf32, #tpu.memory_space<vmem>>, vector<128x8xf32>
    %cst_31 = arith.constant dense<0.000000e+00> : vector<2x8xf32>
    %37 = tpu.matmul %33, %36, %cst_31 {dimension_numbers = #tpu.dot_dimension_numbers<[1], [0], [0], [1], [0, 0, 1, 1], [], []>} : vector<2x128xf32>, vector<128x8xf32>, vector<2x8xf32> -> vector<2x8xf32>
    %cst_32 = arith.constant 0.001953125 : f32
    %38 = vector.broadcast %cst_32 : f32 to vector<2x8xf32>
    %39 = arith.mulf %37, %38 : vector<2x8xf32>
    %c0_33 = arith.constant 0 : index
    %c0_34 = arith.constant 0 : index
    %40 = vector.load %arg14[%c0_33, %c0_34] : memref<128x8xf32, #tpu.memory_space<vmem>>, vector<128x8xf32>
    %cst_35 = arith.constant dense<0.000000e+00> : vector<2x8xf32>
    %41 = tpu.matmul %35, %40, %cst_35 {dimension_numbers = #tpu.dot_dimension_numbers<[1], [0], [0], [1], [0, 0, 1, 1], [], []>} : vector<2x128xf32>, vector<128x8xf32>, vector<2x8xf32> -> vector<2x8xf32>
    %cst_36 = arith.constant 0.001953125 : f32
    %42 = vector.broadcast %cst_36 : f32 to vector<2x8xf32>
    %43 = arith.mulf %41, %42 : vector<2x8xf32>
    %44 = arith.mulf %39, %39 : vector<2x8xf32>
    %45 = arith.subf %43, %44 : vector<2x8xf32>
    %cst_37 = arith.constant 0.000000e+00 : f32
    %46 = vector.broadcast %cst_37 : f32 to vector<2x8xf32>
    %47 = arith.maximumf %45, %46 : vector<2x8xf32>
    %c0_38 = arith.constant 0 : index
    %c0_39 = arith.constant 0 : index
    %48 = vector.load %arg8[%c0_38, %c0_39] : memref<1x8xf32, #tpu.memory_space<vmem>>, vector<1x8xf32>
    %cst_40 = arith.constant 9.99999974E-6 : f32
    %49 = vector.broadcast %cst_40 : f32 to vector<2x8xf32>
    %50 = arith.addf %47, %49 : vector<2x8xf32>
    %51 = math.rsqrt %50 : vector<2x8xf32>
    %52 = vector.broadcast %48 : vector<1x8xf32> to vector<2x8xf32>
    %53 = arith.mulf %52, %51 : vector<2x8xf32>
    %c0_41 = arith.constant 0 : index
    %c0_42 = arith.constant 0 : index
    %54 = vector.load %arg9[%c0_41, %c0_42] : memref<1x8xf32, #tpu.memory_space<vmem>>, vector<1x8xf32>
    %55 = arith.mulf %39, %53 : vector<2x8xf32>
    %56 = vector.broadcast %54 : vector<1x8xf32> to vector<2x8xf32>
    %57 = arith.subf %56, %55 : vector<2x8xf32>
    %c0_43 = arith.constant 0 : index
    %c0_44 = arith.constant 0 : index
    %58 = vector.load %arg17[%c0_43, %c0_44] : memref<64x2xf32, #tpu.memory_space<vmem>>, vector<64x2xf32>
    %c0_45 = arith.constant 0 : index
    %c0_46 = arith.constant 0 : index
    %59 = vector.load %arg15[%c0_45, %c0_46] : memref<8x128xf32, #tpu.memory_space<vmem>>, vector<8x128xf32>
    %cst_47 = arith.constant dense<0.000000e+00> : vector<2x128xf32>
    %60 = tpu.matmul %53, %59, %cst_47 {dimension_numbers = #tpu.dot_dimension_numbers<[1], [0], [0], [1], [0, 0, 1, 1], [], []>} : vector<2x8xf32>, vector<8x128xf32>, vector<2x128xf32> -> vector<2x128xf32>
    %cst_48 = arith.constant dense<0.000000e+00> : vector<64x128xf32>
    %61 = tpu.matmul %58, %60, %cst_48 {dimension_numbers = #tpu.dot_dimension_numbers<[1], [0], [0], [1], [0, 0, 1, 1], [], []>} : vector<64x2xf32>, vector<2x128xf32>, vector<64x128xf32> -> vector<64x128xf32>
    %c0_49 = arith.constant 0 : index
    %c0_50 = arith.constant 0 : index
    %62 = vector.load %arg17[%c0_49, %c0_50] : memref<64x2xf32, #tpu.memory_space<vmem>>, vector<64x2xf32>
    %c0_51 = arith.constant 0 : index
    %c0_52 = arith.constant 0 : index
    %63 = vector.load %arg15[%c0_51, %c0_52] : memref<8x128xf32, #tpu.memory_space<vmem>>, vector<8x128xf32>
    %cst_53 = arith.constant dense<0.000000e+00> : vector<2x128xf32>
    %64 = tpu.matmul %57, %63, %cst_53 {dimension_numbers = #tpu.dot_dimension_numbers<[1], [0], [0], [1], [0, 0, 1, 1], [], []>} : vector<2x8xf32>, vector<8x128xf32>, vector<2x128xf32> -> vector<2x128xf32>
    %cst_54 = arith.constant dense<0.000000e+00> : vector<64x128xf32>
    %65 = tpu.matmul %62, %64, %cst_54 {dimension_numbers = #tpu.dot_dimension_numbers<[1], [0], [0], [1], [0, 0, 1, 1], [], []>} : vector<64x2xf32>, vector<2x128xf32>, vector<64x128xf32> -> vector<64x128xf32>
    %66 = arith.mulf %31, %61 : vector<64x128xf32>
    %67 = arith.addf %66, %65 : vector<64x128xf32>
    %c0_55 = arith.constant 0 : index
    %c0_56 = arith.constant 0 : index
    %c0_57 = arith.constant 0 : index
    %68 = vector.load %arg1[%c0_55, %c0_56, %c0_57] : memref<3x64x64xf32, #tpu.memory_space<vmem>>, vector<1x64x64xf32>
    %69 = vector.shape_cast %68 : vector<1x64x64xf32> to vector<64x64xf32>
    %cst_58 = arith.constant dense<0.000000e+00> : vector<64x128xf32>
    %70 = tpu.matmul %69, %67, %cst_58 {dimension_numbers = #tpu.dot_dimension_numbers<[1], [0], [0], [1], [0, 0, 1, 1], [], []>} : vector<64x64xf32>, vector<64x128xf32>, vector<64x128xf32> -> vector<64x128xf32>
    %c0_59 = arith.constant 0 : index
    %c0_60 = arith.constant 0 : index
    %c0_61 = arith.constant 0 : index
    %71 = vector.load %arg3[%c0_59, %c0_60, %c0_61] : memref<3x128x128xf32, #tpu.memory_space<vmem>>, vector<1x128x128xf32>
    %72 = vector.shape_cast %71 : vector<1x128x128xf32> to vector<128x128xf32>
    %cst_62 = arith.constant dense<0.000000e+00> : vector<64x128xf32>
    %73 = tpu.matmul %70, %72, %cst_62 {dimension_numbers = #tpu.dot_dimension_numbers<[1], [0], [0], [1], [0, 0, 1, 1], [], []>} : vector<64x128xf32>, vector<128x128xf32>, vector<64x128xf32> -> vector<64x128xf32>
    %c1_63 = arith.constant 1 : index
    %c0_64 = arith.constant 0 : index
    %c0_65 = arith.constant 0 : index
    %74 = vector.load %arg1[%c1_63, %c0_64, %c0_65] : memref<3x64x64xf32, #tpu.memory_space<vmem>>, vector<1x64x64xf32>
    %75 = vector.shape_cast %74 : vector<1x64x64xf32> to vector<64x64xf32>
    %cst_66 = arith.constant dense<0.000000e+00> : vector<64x128xf32>
    %76 = tpu.matmul %75, %67, %cst_66 {dimension_numbers = #tpu.dot_dimension_numbers<[1], [0], [0], [1], [0, 0, 1, 1], [], []>} : vector<64x64xf32>, vector<64x128xf32>, vector<64x128xf32> -> vector<64x128xf32>
    %c1_67 = arith.constant 1 : index
    %c0_68 = arith.constant 0 : index
    %c0_69 = arith.constant 0 : index
    %77 = vector.load %arg3[%c1_67, %c0_68, %c0_69] : memref<3x128x128xf32, #tpu.memory_space<vmem>>, vector<1x128x128xf32>
    %78 = vector.shape_cast %77 : vector<1x128x128xf32> to vector<128x128xf32>
    %cst_70 = arith.constant dense<0.000000e+00> : vector<64x128xf32>
    %79 = tpu.matmul %76, %78, %cst_70 {dimension_numbers = #tpu.dot_dimension_numbers<[1], [0], [0], [1], [0, 0, 1, 1], [], []>} : vector<64x128xf32>, vector<128x128xf32>, vector<64x128xf32> -> vector<64x128xf32>
    %80 = arith.addf %73, %79 : vector<64x128xf32>
    %c2_71 = arith.constant 2 : index
    %c0_72 = arith.constant 0 : index
    %c0_73 = arith.constant 0 : index
    %81 = vector.load %arg1[%c2_71, %c0_72, %c0_73] : memref<3x64x64xf32, #tpu.memory_space<vmem>>, vector<1x64x64xf32>
    %82 = vector.shape_cast %81 : vector<1x64x64xf32> to vector<64x64xf32>
    %cst_74 = arith.constant dense<0.000000e+00> : vector<64x128xf32>
    %83 = tpu.matmul %82, %67, %cst_74 {dimension_numbers = #tpu.dot_dimension_numbers<[1], [0], [0], [1], [0, 0, 1, 1], [], []>} : vector<64x64xf32>, vector<64x128xf32>, vector<64x128xf32> -> vector<64x128xf32>
    %c2_75 = arith.constant 2 : index
    %c0_76 = arith.constant 0 : index
    %c0_77 = arith.constant 0 : index
    %84 = vector.load %arg3[%c2_75, %c0_76, %c0_77] : memref<3x128x128xf32, #tpu.memory_space<vmem>>, vector<1x128x128xf32>
    %85 = vector.shape_cast %84 : vector<1x128x128xf32> to vector<128x128xf32>
    %cst_78 = arith.constant dense<0.000000e+00> : vector<64x128xf32>
    %86 = tpu.matmul %83, %85, %cst_78 {dimension_numbers = #tpu.dot_dimension_numbers<[1], [0], [0], [1], [0, 0, 1, 1], [], []>} : vector<64x128xf32>, vector<128x128xf32>, vector<64x128xf32> -> vector<64x128xf32>
    %87 = arith.addf %80, %86 : vector<64x128xf32>
    %c0_79 = arith.constant 0 : index
    %c0_80 = arith.constant 0 : index
    %88 = vector.load %arg6[%c0_79, %c0_80] : memref<1x128xf32, #tpu.memory_space<vmem>>, vector<1x128xf32>
    %89 = vector.broadcast %88 : vector<1x128xf32> to vector<64x128xf32>
    %90 = arith.addf %87, %89 : vector<64x128xf32>
    %cst_81 = arith.constant 0.000000e+00 : f32
    %91 = vector.broadcast %cst_81 : f32 to vector<64x128xf32>
    %92 = arith.maximumf %90, %91 : vector<64x128xf32>
    %c0_82 = arith.constant 0 : index
    %c0_83 = arith.constant 0 : index
    %93 = vector.load %arg16[%c0_82, %c0_83] : memref<2x64xf32, #tpu.memory_space<vmem>>, vector<2x64xf32>
    %cst_84 = arith.constant dense<0.000000e+00> : vector<2x128xf32>
    %94 = tpu.matmul %93, %92, %cst_84 {dimension_numbers = #tpu.dot_dimension_numbers<[1], [0], [0], [1], [0, 0, 1, 1], [], []>} : vector<2x64xf32>, vector<64x128xf32>, vector<2x128xf32> -> vector<2x128xf32>
    %95 = arith.mulf %92, %92 : vector<64x128xf32>
    %cst_85 = arith.constant dense<0.000000e+00> : vector<2x128xf32>
    %96 = tpu.matmul %93, %95, %cst_85 {dimension_numbers = #tpu.dot_dimension_numbers<[1], [0], [0], [1], [0, 0, 1, 1], [], []>} : vector<2x64xf32>, vector<64x128xf32>, vector<2x128xf32> -> vector<2x128xf32>
    %c0_86 = arith.constant 0 : index
    %c0_87 = arith.constant 0 : index
    %97 = vector.load %arg14[%c0_86, %c0_87] : memref<128x8xf32, #tpu.memory_space<vmem>>, vector<128x8xf32>
    %cst_88 = arith.constant dense<0.000000e+00> : vector<2x8xf32>
    %98 = tpu.matmul %94, %97, %cst_88 {dimension_numbers = #tpu.dot_dimension_numbers<[1], [0], [0], [1], [0, 0, 1, 1], [], []>} : vector<2x128xf32>, vector<128x8xf32>, vector<2x8xf32> -> vector<2x8xf32>
    %cst_89 = arith.constant 0.001953125 : f32
    %99 = vector.broadcast %cst_89 : f32 to vector<2x8xf32>
    %100 = arith.mulf %98, %99 : vector<2x8xf32>
    %c0_90 = arith.constant 0 : index
    %c0_91 = arith.constant 0 : index
    %101 = vector.load %arg14[%c0_90, %c0_91] : memref<128x8xf32, #tpu.memory_space<vmem>>, vector<128x8xf32>
    %cst_92 = arith.constant dense<0.000000e+00> : vector<2x8xf32>
    %102 = tpu.matmul %96, %101, %cst_92 {dimension_numbers = #tpu.dot_dimension_numbers<[1], [0], [0], [1], [0, 0, 1, 1], [], []>} : vector<2x128xf32>, vector<128x8xf32>, vector<2x8xf32> -> vector<2x8xf32>
    %cst_93 = arith.constant 0.001953125 : f32
    %103 = vector.broadcast %cst_93 : f32 to vector<2x8xf32>
    %104 = arith.mulf %102, %103 : vector<2x8xf32>
    %105 = arith.mulf %100, %100 : vector<2x8xf32>
    %106 = arith.subf %104, %105 : vector<2x8xf32>
    %cst_94 = arith.constant 0.000000e+00 : f32
    %107 = vector.broadcast %cst_94 : f32 to vector<2x8xf32>
    %108 = arith.maximumf %106, %107 : vector<2x8xf32>
    %c0_95 = arith.constant 0 : index
    %c0_96 = arith.constant 0 : index
    %109 = vector.load %arg10[%c0_95, %c0_96] : memref<1x8xf32, #tpu.memory_space<vmem>>, vector<1x8xf32>
    %cst_97 = arith.constant 9.99999974E-6 : f32
    %110 = vector.broadcast %cst_97 : f32 to vector<2x8xf32>
    %111 = arith.addf %108, %110 : vector<2x8xf32>
    %112 = math.rsqrt %111 : vector<2x8xf32>
    %113 = vector.broadcast %109 : vector<1x8xf32> to vector<2x8xf32>
    %114 = arith.mulf %113, %112 : vector<2x8xf32>
    %c0_98 = arith.constant 0 : index
    %c0_99 = arith.constant 0 : index
    %115 = vector.load %arg11[%c0_98, %c0_99] : memref<1x8xf32, #tpu.memory_space<vmem>>, vector<1x8xf32>
    %116 = arith.mulf %100, %114 : vector<2x8xf32>
    %117 = vector.broadcast %115 : vector<1x8xf32> to vector<2x8xf32>
    %118 = arith.subf %117, %116 : vector<2x8xf32>
    %c0_100 = arith.constant 0 : index
    %c0_101 = arith.constant 0 : index
    %119 = vector.load %arg17[%c0_100, %c0_101] : memref<64x2xf32, #tpu.memory_space<vmem>>, vector<64x2xf32>
    %c0_102 = arith.constant 0 : index
    %c0_103 = arith.constant 0 : index
    %120 = vector.load %arg15[%c0_102, %c0_103] : memref<8x128xf32, #tpu.memory_space<vmem>>, vector<8x128xf32>
    %cst_104 = arith.constant dense<0.000000e+00> : vector<2x128xf32>
    %121 = tpu.matmul %114, %120, %cst_104 {dimension_numbers = #tpu.dot_dimension_numbers<[1], [0], [0], [1], [0, 0, 1, 1], [], []>} : vector<2x8xf32>, vector<8x128xf32>, vector<2x128xf32> -> vector<2x128xf32>
    %cst_105 = arith.constant dense<0.000000e+00> : vector<64x128xf32>
    %122 = tpu.matmul %119, %121, %cst_105 {dimension_numbers = #tpu.dot_dimension_numbers<[1], [0], [0], [1], [0, 0, 1, 1], [], []>} : vector<64x2xf32>, vector<2x128xf32>, vector<64x128xf32> -> vector<64x128xf32>
    %c0_106 = arith.constant 0 : index
    %c0_107 = arith.constant 0 : index
    %123 = vector.load %arg17[%c0_106, %c0_107] : memref<64x2xf32, #tpu.memory_space<vmem>>, vector<64x2xf32>
    %c0_108 = arith.constant 0 : index
    %c0_109 = arith.constant 0 : index
    %124 = vector.load %arg15[%c0_108, %c0_109] : memref<8x128xf32, #tpu.memory_space<vmem>>, vector<8x128xf32>
    %cst_110 = arith.constant dense<0.000000e+00> : vector<2x128xf32>
    %125 = tpu.matmul %118, %124, %cst_110 {dimension_numbers = #tpu.dot_dimension_numbers<[1], [0], [0], [1], [0, 0, 1, 1], [], []>} : vector<2x8xf32>, vector<8x128xf32>, vector<2x128xf32> -> vector<2x128xf32>
    %cst_111 = arith.constant dense<0.000000e+00> : vector<64x128xf32>
    %126 = tpu.matmul %123, %125, %cst_111 {dimension_numbers = #tpu.dot_dimension_numbers<[1], [0], [0], [1], [0, 0, 1, 1], [], []>} : vector<64x2xf32>, vector<2x128xf32>, vector<64x128xf32> -> vector<64x128xf32>
    %127 = arith.mulf %92, %122 : vector<64x128xf32>
    %128 = arith.addf %127, %126 : vector<64x128xf32>
    %c0_112 = arith.constant 0 : index
    %c0_113 = arith.constant 0 : index
    %c0_114 = arith.constant 0 : index
    %129 = vector.load %arg1[%c0_112, %c0_113, %c0_114] : memref<3x64x64xf32, #tpu.memory_space<vmem>>, vector<1x64x64xf32>
    %130 = vector.shape_cast %129 : vector<1x64x64xf32> to vector<64x64xf32>
    %cst_115 = arith.constant dense<0.000000e+00> : vector<64x128xf32>
    %131 = tpu.matmul %130, %128, %cst_115 {dimension_numbers = #tpu.dot_dimension_numbers<[1], [0], [0], [1], [0, 0, 1, 1], [], []>} : vector<64x64xf32>, vector<64x128xf32>, vector<64x128xf32> -> vector<64x128xf32>
    %c0_116 = arith.constant 0 : index
    %c0_117 = arith.constant 0 : index
    %c0_118 = arith.constant 0 : index
    %132 = vector.load %arg4[%c0_116, %c0_117, %c0_118] : memref<3x128x128xf32, #tpu.memory_space<vmem>>, vector<1x128x128xf32>
    %133 = vector.shape_cast %132 : vector<1x128x128xf32> to vector<128x128xf32>
    %cst_119 = arith.constant dense<0.000000e+00> : vector<64x128xf32>
    %134 = tpu.matmul %131, %133, %cst_119 {dimension_numbers = #tpu.dot_dimension_numbers<[1], [0], [0], [1], [0, 0, 1, 1], [], []>} : vector<64x128xf32>, vector<128x128xf32>, vector<64x128xf32> -> vector<64x128xf32>
    %c1_120 = arith.constant 1 : index
    %c0_121 = arith.constant 0 : index
    %c0_122 = arith.constant 0 : index
    %135 = vector.load %arg1[%c1_120, %c0_121, %c0_122] : memref<3x64x64xf32, #tpu.memory_space<vmem>>, vector<1x64x64xf32>
    %136 = vector.shape_cast %135 : vector<1x64x64xf32> to vector<64x64xf32>
    %cst_123 = arith.constant dense<0.000000e+00> : vector<64x128xf32>
    %137 = tpu.matmul %136, %128, %cst_123 {dimension_numbers = #tpu.dot_dimension_numbers<[1], [0], [0], [1], [0, 0, 1, 1], [], []>} : vector<64x64xf32>, vector<64x128xf32>, vector<64x128xf32> -> vector<64x128xf32>
    %c1_124 = arith.constant 1 : index
    %c0_125 = arith.constant 0 : index
    %c0_126 = arith.constant 0 : index
    %138 = vector.load %arg4[%c1_124, %c0_125, %c0_126] : memref<3x128x128xf32, #tpu.memory_space<vmem>>, vector<1x128x128xf32>
    %139 = vector.shape_cast %138 : vector<1x128x128xf32> to vector<128x128xf32>
    %cst_127 = arith.constant dense<0.000000e+00> : vector<64x128xf32>
    %140 = tpu.matmul %137, %139, %cst_127 {dimension_numbers = #tpu.dot_dimension_numbers<[1], [0], [0], [1], [0, 0, 1, 1], [], []>} : vector<64x128xf32>, vector<128x128xf32>, vector<64x128xf32> -> vector<64x128xf32>
    %141 = arith.addf %134, %140 : vector<64x128xf32>
    %c2_128 = arith.constant 2 : index
    %c0_129 = arith.constant 0 : index
    %c0_130 = arith.constant 0 : index
    %142 = vector.load %arg1[%c2_128, %c0_129, %c0_130] : memref<3x64x64xf32, #tpu.memory_space<vmem>>, vector<1x64x64xf32>
    %143 = vector.shape_cast %142 : vector<1x64x64xf32> to vector<64x64xf32>
    %cst_131 = arith.constant dense<0.000000e+00> : vector<64x128xf32>
    %144 = tpu.matmul %143, %128, %cst_131 {dimension_numbers = #tpu.dot_dimension_numbers<[1], [0], [0], [1], [0, 0, 1, 1], [], []>} : vector<64x64xf32>, vector<64x128xf32>, vector<64x128xf32> -> vector<64x128xf32>
    %c2_132 = arith.constant 2 : index
    %c0_133 = arith.constant 0 : index
    %c0_134 = arith.constant 0 : index
    %145 = vector.load %arg4[%c2_132, %c0_133, %c0_134] : memref<3x128x128xf32, #tpu.memory_space<vmem>>, vector<1x128x128xf32>
    %146 = vector.shape_cast %145 : vector<1x128x128xf32> to vector<128x128xf32>
    %cst_135 = arith.constant dense<0.000000e+00> : vector<64x128xf32>
    %147 = tpu.matmul %144, %146, %cst_135 {dimension_numbers = #tpu.dot_dimension_numbers<[1], [0], [0], [1], [0, 0, 1, 1], [], []>} : vector<64x128xf32>, vector<128x128xf32>, vector<64x128xf32> -> vector<64x128xf32>
    %148 = arith.addf %141, %147 : vector<64x128xf32>
    %c0_136 = arith.constant 0 : index
    %c0_137 = arith.constant 0 : index
    %149 = vector.load %arg7[%c0_136, %c0_137] : memref<1x128xf32, #tpu.memory_space<vmem>>, vector<1x128xf32>
    %150 = vector.broadcast %149 : vector<1x128xf32> to vector<64x128xf32>
    %151 = arith.addf %148, %150 : vector<64x128xf32>
    %cst_138 = arith.constant 0.000000e+00 : f32
    %152 = vector.broadcast %cst_138 : f32 to vector<64x128xf32>
    %153 = arith.maximumf %151, %152 : vector<64x128xf32>
    %c0_139 = arith.constant 0 : index
    %c0_140 = arith.constant 0 : index
    %154 = vector.load %arg16[%c0_139, %c0_140] : memref<2x64xf32, #tpu.memory_space<vmem>>, vector<2x64xf32>
    %cst_141 = arith.constant dense<0.000000e+00> : vector<2x128xf32>
    %155 = tpu.matmul %154, %153, %cst_141 {dimension_numbers = #tpu.dot_dimension_numbers<[1], [0], [0], [1], [0, 0, 1, 1], [], []>} : vector<2x64xf32>, vector<64x128xf32>, vector<2x128xf32> -> vector<2x128xf32>
    %156 = arith.mulf %153, %153 : vector<64x128xf32>
    %cst_142 = arith.constant dense<0.000000e+00> : vector<2x128xf32>
    %157 = tpu.matmul %154, %156, %cst_142 {dimension_numbers = #tpu.dot_dimension_numbers<[1], [0], [0], [1], [0, 0, 1, 1], [], []>} : vector<2x64xf32>, vector<64x128xf32>, vector<2x128xf32> -> vector<2x128xf32>
    %c0_143 = arith.constant 0 : index
    %c0_144 = arith.constant 0 : index
    %158 = vector.load %arg14[%c0_143, %c0_144] : memref<128x8xf32, #tpu.memory_space<vmem>>, vector<128x8xf32>
    %cst_145 = arith.constant dense<0.000000e+00> : vector<2x8xf32>
    %159 = tpu.matmul %155, %158, %cst_145 {dimension_numbers = #tpu.dot_dimension_numbers<[1], [0], [0], [1], [0, 0, 1, 1], [], []>} : vector<2x128xf32>, vector<128x8xf32>, vector<2x8xf32> -> vector<2x8xf32>
    %cst_146 = arith.constant 0.001953125 : f32
    %160 = vector.broadcast %cst_146 : f32 to vector<2x8xf32>
    %161 = arith.mulf %159, %160 : vector<2x8xf32>
    %c0_147 = arith.constant 0 : index
    %c0_148 = arith.constant 0 : index
    %162 = vector.load %arg14[%c0_147, %c0_148] : memref<128x8xf32, #tpu.memory_space<vmem>>, vector<128x8xf32>
    %cst_149 = arith.constant dense<0.000000e+00> : vector<2x8xf32>
    %163 = tpu.matmul %157, %162, %cst_149 {dimension_numbers = #tpu.dot_dimension_numbers<[1], [0], [0], [1], [0, 0, 1, 1], [], []>} : vector<2x128xf32>, vector<128x8xf32>, vector<2x8xf32> -> vector<2x8xf32>
    %cst_150 = arith.constant 0.001953125 : f32
    %164 = vector.broadcast %cst_150 : f32 to vector<2x8xf32>
    %165 = arith.mulf %163, %164 : vector<2x8xf32>
    %166 = arith.mulf %161, %161 : vector<2x8xf32>
    %167 = arith.subf %165, %166 : vector<2x8xf32>
    %cst_151 = arith.constant 0.000000e+00 : f32
    %168 = vector.broadcast %cst_151 : f32 to vector<2x8xf32>
    %169 = arith.maximumf %167, %168 : vector<2x8xf32>
    %c0_152 = arith.constant 0 : index
    %c0_153 = arith.constant 0 : index
    %170 = vector.load %arg12[%c0_152, %c0_153] : memref<1x8xf32, #tpu.memory_space<vmem>>, vector<1x8xf32>
    %cst_154 = arith.constant 9.99999974E-6 : f32
    %171 = vector.broadcast %cst_154 : f32 to vector<2x8xf32>
    %172 = arith.addf %169, %171 : vector<2x8xf32>
    %173 = math.rsqrt %172 : vector<2x8xf32>
    %174 = vector.broadcast %170 : vector<1x8xf32> to vector<2x8xf32>
    %175 = arith.mulf %174, %173 : vector<2x8xf32>
    %c0_155 = arith.constant 0 : index
    %c0_156 = arith.constant 0 : index
    %176 = vector.load %arg13[%c0_155, %c0_156] : memref<1x8xf32, #tpu.memory_space<vmem>>, vector<1x8xf32>
    %177 = arith.mulf %161, %175 : vector<2x8xf32>
    %178 = vector.broadcast %176 : vector<1x8xf32> to vector<2x8xf32>
    %179 = arith.subf %178, %177 : vector<2x8xf32>
    %c0_157 = arith.constant 0 : index
    %c0_158 = arith.constant 0 : index
    %180 = vector.load %arg17[%c0_157, %c0_158] : memref<64x2xf32, #tpu.memory_space<vmem>>, vector<64x2xf32>
    %c0_159 = arith.constant 0 : index
    %c0_160 = arith.constant 0 : index
    %181 = vector.load %arg15[%c0_159, %c0_160] : memref<8x128xf32, #tpu.memory_space<vmem>>, vector<8x128xf32>
    %cst_161 = arith.constant dense<0.000000e+00> : vector<2x128xf32>
    %182 = tpu.matmul %175, %181, %cst_161 {dimension_numbers = #tpu.dot_dimension_numbers<[1], [0], [0], [1], [0, 0, 1, 1], [], []>} : vector<2x8xf32>, vector<8x128xf32>, vector<2x128xf32> -> vector<2x128xf32>
    %cst_162 = arith.constant dense<0.000000e+00> : vector<64x128xf32>
    %183 = tpu.matmul %180, %182, %cst_162 {dimension_numbers = #tpu.dot_dimension_numbers<[1], [0], [0], [1], [0, 0, 1, 1], [], []>} : vector<64x2xf32>, vector<2x128xf32>, vector<64x128xf32> -> vector<64x128xf32>
    %c0_163 = arith.constant 0 : index
    %c0_164 = arith.constant 0 : index
    %184 = vector.load %arg17[%c0_163, %c0_164] : memref<64x2xf32, #tpu.memory_space<vmem>>, vector<64x2xf32>
    %c0_165 = arith.constant 0 : index
    %c0_166 = arith.constant 0 : index
    %185 = vector.load %arg15[%c0_165, %c0_166] : memref<8x128xf32, #tpu.memory_space<vmem>>, vector<8x128xf32>
    %cst_167 = arith.constant dense<0.000000e+00> : vector<2x128xf32>
    %186 = tpu.matmul %179, %185, %cst_167 {dimension_numbers = #tpu.dot_dimension_numbers<[1], [0], [0], [1], [0, 0, 1, 1], [], []>} : vector<2x8xf32>, vector<8x128xf32>, vector<2x128xf32> -> vector<2x128xf32>
    %cst_168 = arith.constant dense<0.000000e+00> : vector<64x128xf32>
    %187 = tpu.matmul %184, %186, %cst_168 {dimension_numbers = #tpu.dot_dimension_numbers<[1], [0], [0], [1], [0, 0, 1, 1], [], []>} : vector<64x2xf32>, vector<2x128xf32>, vector<64x128xf32> -> vector<64x128xf32>
    %188 = arith.mulf %153, %183 : vector<64x128xf32>
    %189 = arith.addf %188, %187 : vector<64x128xf32>
    %c0_i32_169 = arith.constant 0 : i32
    %190 = tpu.memref_slice %arg29[%c0_i32_169] : memref<3x!tpu.dma_semaphore, #tpu.memory_space<semaphore_mem>> -> memref<1x!tpu.dma_semaphore, #tpu.memory_space<semaphore_mem>>
    %191 = tpu.memref_squeeze %190 : memref<1x!tpu.dma_semaphore, #tpu.memory_space<semaphore_mem>> -> memref<!tpu.dma_semaphore, #tpu.memory_space<semaphore_mem>>
    tpu.wait_dma2 semaphore(%191 : memref<!tpu.dma_semaphore, #tpu.memory_space<semaphore_mem>>) src(%arg19 : memref<16x128x512xbf16, #tpu.memory_space<any>>) dst(%arg26 : memref<16x128x512xbf16, #tpu.memory_space<vmem>>)
    %c0_170 = arith.constant 0 : index
    %c0_171 = arith.constant 0 : index
    %c0_172 = arith.constant 0 : index
    %192 = vector.load %arg18[%c0_170, %c0_171, %c0_172] : memref<16x4x64xf32, #tpu.memory_space<vmem>>, vector<1x4x64xf32>
    %193 = vector.shape_cast %192 : vector<1x4x64xf32> to vector<4x64xf32>
    %cst_173 = arith.constant dense<0.000000e+00> : vector<4x128xf32>
    %194 = tpu.matmul %193, %189, %cst_173 {dimension_numbers = #tpu.dot_dimension_numbers<[1], [0], [0], [1], [0, 0, 1, 1], [], []>} : vector<4x64xf32>, vector<64x128xf32>, vector<4x128xf32> -> vector<4x128xf32>
    %195 = arith.truncf %194 : vector<4x128xf32> to vector<4x128xbf16>
    %c0_174 = arith.constant 0 : index
    %c0_175 = arith.constant 0 : index
    %c0_176 = arith.constant 0 : index
    %196 = vector.load %arg26[%c0_174, %c0_175, %c0_176] : memref<16x128x512xbf16, #tpu.memory_space<vmem>>, vector<1x128x512xbf16>
    %197 = vector.shape_cast %196 : vector<1x128x512xbf16> to vector<128x512xbf16>
    %cst_177 = arith.constant dense<0.000000e+00> : vector<4x512xf32>
    %198 = tpu.matmul %195, %197, %cst_177 {dimension_numbers = #tpu.dot_dimension_numbers<[1], [0], [0], [1], [0, 0, 1, 1], [], []>} : vector<4x128xbf16>, vector<128x512xbf16>, vector<4x512xf32> -> vector<4x512xf32>
    %c1_178 = arith.constant 1 : index
    %c0_179 = arith.constant 0 : index
    %c0_180 = arith.constant 0 : index
    %199 = vector.load %arg18[%c1_178, %c0_179, %c0_180] : memref<16x4x64xf32, #tpu.memory_space<vmem>>, vector<1x4x64xf32>
    %200 = vector.shape_cast %199 : vector<1x4x64xf32> to vector<4x64xf32>
    %cst_181 = arith.constant dense<0.000000e+00> : vector<4x128xf32>
    %201 = tpu.matmul %200, %189, %cst_181 {dimension_numbers = #tpu.dot_dimension_numbers<[1], [0], [0], [1], [0, 0, 1, 1], [], []>} : vector<4x64xf32>, vector<64x128xf32>, vector<4x128xf32> -> vector<4x128xf32>
    %202 = arith.truncf %201 : vector<4x128xf32> to vector<4x128xbf16>
    %c1_182 = arith.constant 1 : index
    %c0_183 = arith.constant 0 : index
    %c0_184 = arith.constant 0 : index
    %203 = vector.load %arg26[%c1_182, %c0_183, %c0_184] : memref<16x128x512xbf16, #tpu.memory_space<vmem>>, vector<1x128x512xbf16>
    %204 = vector.shape_cast %203 : vector<1x128x512xbf16> to vector<128x512xbf16>
    %cst_185 = arith.constant dense<0.000000e+00> : vector<4x512xf32>
    %205 = tpu.matmul %202, %204, %cst_185 {dimension_numbers = #tpu.dot_dimension_numbers<[1], [0], [0], [1], [0, 0, 1, 1], [], []>} : vector<4x128xbf16>, vector<128x512xbf16>, vector<4x512xf32> -> vector<4x512xf32>
    %206 = arith.addf %198, %205 : vector<4x512xf32>
    %c2_186 = arith.constant 2 : index
    %c0_187 = arith.constant 0 : index
    %c0_188 = arith.constant 0 : index
    %207 = vector.load %arg18[%c2_186, %c0_187, %c0_188] : memref<16x4x64xf32, #tpu.memory_space<vmem>>, vector<1x4x64xf32>
    %208 = vector.shape_cast %207 : vector<1x4x64xf32> to vector<4x64xf32>
    %cst_189 = arith.constant dense<0.000000e+00> : vector<4x128xf32>
    %209 = tpu.matmul %208, %189, %cst_189 {dimension_numbers = #tpu.dot_dimension_numbers<[1], [0], [0], [1], [0, 0, 1, 1], [], []>} : vector<4x64xf32>, vector<64x128xf32>, vector<4x128xf32> -> vector<4x128xf32>
    %210 = arith.truncf %209 : vector<4x128xf32> to vector<4x128xbf16>
    %c2_190 = arith.constant 2 : index
    %c0_191 = arith.constant 0 : index
    %c0_192 = arith.constant 0 : index
    %211 = vector.load %arg26[%c2_190, %c0_191, %c0_192] : memref<16x128x512xbf16, #tpu.memory_space<vmem>>, vector<1x128x512xbf16>
    %212 = vector.shape_cast %211 : vector<1x128x512xbf16> to vector<128x512xbf16>
    %cst_193 = arith.constant dense<0.000000e+00> : vector<4x512xf32>
    %213 = tpu.matmul %210, %212, %cst_193 {dimension_numbers = #tpu.dot_dimension_numbers<[1], [0], [0], [1], [0, 0, 1, 1], [], []>} : vector<4x128xbf16>, vector<128x512xbf16>, vector<4x512xf32> -> vector<4x512xf32>
    %214 = arith.addf %206, %213 : vector<4x512xf32>
    %c3 = arith.constant 3 : index
    %c0_194 = arith.constant 0 : index
    %c0_195 = arith.constant 0 : index
    %215 = vector.load %arg18[%c3, %c0_194, %c0_195] : memref<16x4x64xf32, #tpu.memory_space<vmem>>, vector<1x4x64xf32>
    %216 = vector.shape_cast %215 : vector<1x4x64xf32> to vector<4x64xf32>
    %cst_196 = arith.constant dense<0.000000e+00> : vector<4x128xf32>
    %217 = tpu.matmul %216, %189, %cst_196 {dimension_numbers = #tpu.dot_dimension_numbers<[1], [0], [0], [1], [0, 0, 1, 1], [], []>} : vector<4x64xf32>, vector<64x128xf32>, vector<4x128xf32> -> vector<4x128xf32>
    %218 = arith.truncf %217 : vector<4x128xf32> to vector<4x128xbf16>
    %c3_197 = arith.constant 3 : index
    %c0_198 = arith.constant 0 : index
    %c0_199 = arith.constant 0 : index
    %219 = vector.load %arg26[%c3_197, %c0_198, %c0_199] : memref<16x128x512xbf16, #tpu.memory_space<vmem>>, vector<1x128x512xbf16>
    %220 = vector.shape_cast %219 : vector<1x128x512xbf16> to vector<128x512xbf16>
    %cst_200 = arith.constant dense<0.000000e+00> : vector<4x512xf32>
    %221 = tpu.matmul %218, %220, %cst_200 {dimension_numbers = #tpu.dot_dimension_numbers<[1], [0], [0], [1], [0, 0, 1, 1], [], []>} : vector<4x128xbf16>, vector<128x512xbf16>, vector<4x512xf32> -> vector<4x512xf32>
    %222 = arith.addf %214, %221 : vector<4x512xf32>
    %c4 = arith.constant 4 : index
    %c0_201 = arith.constant 0 : index
    %c0_202 = arith.constant 0 : index
    %223 = vector.load %arg18[%c4, %c0_201, %c0_202] : memref<16x4x64xf32, #tpu.memory_space<vmem>>, vector<1x4x64xf32>
    %224 = vector.shape_cast %223 : vector<1x4x64xf32> to vector<4x64xf32>
    %cst_203 = arith.constant dense<0.000000e+00> : vector<4x128xf32>
    %225 = tpu.matmul %224, %189, %cst_203 {dimension_numbers = #tpu.dot_dimension_numbers<[1], [0], [0], [1], [0, 0, 1, 1], [], []>} : vector<4x64xf32>, vector<64x128xf32>, vector<4x128xf32> -> vector<4x128xf32>
    %226 = arith.truncf %225 : vector<4x128xf32> to vector<4x128xbf16>
    %c4_204 = arith.constant 4 : index
    %c0_205 = arith.constant 0 : index
    %c0_206 = arith.constant 0 : index
    %227 = vector.load %arg26[%c4_204, %c0_205, %c0_206] : memref<16x128x512xbf16, #tpu.memory_space<vmem>>, vector<1x128x512xbf16>
    %228 = vector.shape_cast %227 : vector<1x128x512xbf16> to vector<128x512xbf16>
    %cst_207 = arith.constant dense<0.000000e+00> : vector<4x512xf32>
    %229 = tpu.matmul %226, %228, %cst_207 {dimension_numbers = #tpu.dot_dimension_numbers<[1], [0], [0], [1], [0, 0, 1, 1], [], []>} : vector<4x128xbf16>, vector<128x512xbf16>, vector<4x512xf32> -> vector<4x512xf32>
    %230 = arith.addf %222, %229 : vector<4x512xf32>
    %c5 = arith.constant 5 : index
    %c0_208 = arith.constant 0 : index
    %c0_209 = arith.constant 0 : index
    %231 = vector.load %arg18[%c5, %c0_208, %c0_209] : memref<16x4x64xf32, #tpu.memory_space<vmem>>, vector<1x4x64xf32>
    %232 = vector.shape_cast %231 : vector<1x4x64xf32> to vector<4x64xf32>
    %cst_210 = arith.constant dense<0.000000e+00> : vector<4x128xf32>
    %233 = tpu.matmul %232, %189, %cst_210 {dimension_numbers = #tpu.dot_dimension_numbers<[1], [0], [0], [1], [0, 0, 1, 1], [], []>} : vector<4x64xf32>, vector<64x128xf32>, vector<4x128xf32> -> vector<4x128xf32>
    %234 = arith.truncf %233 : vector<4x128xf32> to vector<4x128xbf16>
    %c5_211 = arith.constant 5 : index
    %c0_212 = arith.constant 0 : index
    %c0_213 = arith.constant 0 : index
    %235 = vector.load %arg26[%c5_211, %c0_212, %c0_213] : memref<16x128x512xbf16, #tpu.memory_space<vmem>>, vector<1x128x512xbf16>
    %236 = vector.shape_cast %235 : vector<1x128x512xbf16> to vector<128x512xbf16>
    %cst_214 = arith.constant dense<0.000000e+00> : vector<4x512xf32>
    %237 = tpu.matmul %234, %236, %cst_214 {dimension_numbers = #tpu.dot_dimension_numbers<[1], [0], [0], [1], [0, 0, 1, 1], [], []>} : vector<4x128xbf16>, vector<128x512xbf16>, vector<4x512xf32> -> vector<4x512xf32>
    %238 = arith.addf %230, %237 : vector<4x512xf32>
    %c6 = arith.constant 6 : index
    %c0_215 = arith.constant 0 : index
    %c0_216 = arith.constant 0 : index
    %239 = vector.load %arg18[%c6, %c0_215, %c0_216] : memref<16x4x64xf32, #tpu.memory_space<vmem>>, vector<1x4x64xf32>
    %240 = vector.shape_cast %239 : vector<1x4x64xf32> to vector<4x64xf32>
    %cst_217 = arith.constant dense<0.000000e+00> : vector<4x128xf32>
    %241 = tpu.matmul %240, %189, %cst_217 {dimension_numbers = #tpu.dot_dimension_numbers<[1], [0], [0], [1], [0, 0, 1, 1], [], []>} : vector<4x64xf32>, vector<64x128xf32>, vector<4x128xf32> -> vector<4x128xf32>
    %242 = arith.truncf %241 : vector<4x128xf32> to vector<4x128xbf16>
    %c6_218 = arith.constant 6 : index
    %c0_219 = arith.constant 0 : index
    %c0_220 = arith.constant 0 : index
    %243 = vector.load %arg26[%c6_218, %c0_219, %c0_220] : memref<16x128x512xbf16, #tpu.memory_space<vmem>>, vector<1x128x512xbf16>
    %244 = vector.shape_cast %243 : vector<1x128x512xbf16> to vector<128x512xbf16>
    %cst_221 = arith.constant dense<0.000000e+00> : vector<4x512xf32>
    %245 = tpu.matmul %242, %244, %cst_221 {dimension_numbers = #tpu.dot_dimension_numbers<[1], [0], [0], [1], [0, 0, 1, 1], [], []>} : vector<4x128xbf16>, vector<128x512xbf16>, vector<4x512xf32> -> vector<4x512xf32>
    %246 = arith.addf %238, %245 : vector<4x512xf32>
    %c7 = arith.constant 7 : index
    %c0_222 = arith.constant 0 : index
    %c0_223 = arith.constant 0 : index
    %247 = vector.load %arg18[%c7, %c0_222, %c0_223] : memref<16x4x64xf32, #tpu.memory_space<vmem>>, vector<1x4x64xf32>
    %248 = vector.shape_cast %247 : vector<1x4x64xf32> to vector<4x64xf32>
    %cst_224 = arith.constant dense<0.000000e+00> : vector<4x128xf32>
    %249 = tpu.matmul %248, %189, %cst_224 {dimension_numbers = #tpu.dot_dimension_numbers<[1], [0], [0], [1], [0, 0, 1, 1], [], []>} : vector<4x64xf32>, vector<64x128xf32>, vector<4x128xf32> -> vector<4x128xf32>
    %250 = arith.truncf %249 : vector<4x128xf32> to vector<4x128xbf16>
    %c7_225 = arith.constant 7 : index
    %c0_226 = arith.constant 0 : index
    %c0_227 = arith.constant 0 : index
    %251 = vector.load %arg26[%c7_225, %c0_226, %c0_227] : memref<16x128x512xbf16, #tpu.memory_space<vmem>>, vector<1x128x512xbf16>
    %252 = vector.shape_cast %251 : vector<1x128x512xbf16> to vector<128x512xbf16>
    %cst_228 = arith.constant dense<0.000000e+00> : vector<4x512xf32>
    %253 = tpu.matmul %250, %252, %cst_228 {dimension_numbers = #tpu.dot_dimension_numbers<[1], [0], [0], [1], [0, 0, 1, 1], [], []>} : vector<4x128xbf16>, vector<128x512xbf16>, vector<4x512xf32> -> vector<4x512xf32>
    %254 = arith.addf %246, %253 : vector<4x512xf32>
    %c8 = arith.constant 8 : index
    %c0_229 = arith.constant 0 : index
    %c0_230 = arith.constant 0 : index
    %255 = vector.load %arg18[%c8, %c0_229, %c0_230] : memref<16x4x64xf32, #tpu.memory_space<vmem>>, vector<1x4x64xf32>
    %256 = vector.shape_cast %255 : vector<1x4x64xf32> to vector<4x64xf32>
    %cst_231 = arith.constant dense<0.000000e+00> : vector<4x128xf32>
    %257 = tpu.matmul %256, %189, %cst_231 {dimension_numbers = #tpu.dot_dimension_numbers<[1], [0], [0], [1], [0, 0, 1, 1], [], []>} : vector<4x64xf32>, vector<64x128xf32>, vector<4x128xf32> -> vector<4x128xf32>
    %258 = arith.truncf %257 : vector<4x128xf32> to vector<4x128xbf16>
    %c8_232 = arith.constant 8 : index
    %c0_233 = arith.constant 0 : index
    %c0_234 = arith.constant 0 : index
    %259 = vector.load %arg26[%c8_232, %c0_233, %c0_234] : memref<16x128x512xbf16, #tpu.memory_space<vmem>>, vector<1x128x512xbf16>
    %260 = vector.shape_cast %259 : vector<1x128x512xbf16> to vector<128x512xbf16>
    %cst_235 = arith.constant dense<0.000000e+00> : vector<4x512xf32>
    %261 = tpu.matmul %258, %260, %cst_235 {dimension_numbers = #tpu.dot_dimension_numbers<[1], [0], [0], [1], [0, 0, 1, 1], [], []>} : vector<4x128xbf16>, vector<128x512xbf16>, vector<4x512xf32> -> vector<4x512xf32>
    %262 = arith.addf %254, %261 : vector<4x512xf32>
    %c9 = arith.constant 9 : index
    %c0_236 = arith.constant 0 : index
    %c0_237 = arith.constant 0 : index
    %263 = vector.load %arg18[%c9, %c0_236, %c0_237] : memref<16x4x64xf32, #tpu.memory_space<vmem>>, vector<1x4x64xf32>
    %264 = vector.shape_cast %263 : vector<1x4x64xf32> to vector<4x64xf32>
    %cst_238 = arith.constant dense<0.000000e+00> : vector<4x128xf32>
    %265 = tpu.matmul %264, %189, %cst_238 {dimension_numbers = #tpu.dot_dimension_numbers<[1], [0], [0], [1], [0, 0, 1, 1], [], []>} : vector<4x64xf32>, vector<64x128xf32>, vector<4x128xf32> -> vector<4x128xf32>
    %266 = arith.truncf %265 : vector<4x128xf32> to vector<4x128xbf16>
    %c9_239 = arith.constant 9 : index
    %c0_240 = arith.constant 0 : index
    %c0_241 = arith.constant 0 : index
    %267 = vector.load %arg26[%c9_239, %c0_240, %c0_241] : memref<16x128x512xbf16, #tpu.memory_space<vmem>>, vector<1x128x512xbf16>
    %268 = vector.shape_cast %267 : vector<1x128x512xbf16> to vector<128x512xbf16>
    %cst_242 = arith.constant dense<0.000000e+00> : vector<4x512xf32>
    %269 = tpu.matmul %266, %268, %cst_242 {dimension_numbers = #tpu.dot_dimension_numbers<[1], [0], [0], [1], [0, 0, 1, 1], [], []>} : vector<4x128xbf16>, vector<128x512xbf16>, vector<4x512xf32> -> vector<4x512xf32>
    %270 = arith.addf %262, %269 : vector<4x512xf32>
    %c10 = arith.constant 10 : index
    %c0_243 = arith.constant 0 : index
    %c0_244 = arith.constant 0 : index
    %271 = vector.load %arg18[%c10, %c0_243, %c0_244] : memref<16x4x64xf32, #tpu.memory_space<vmem>>, vector<1x4x64xf32>
    %272 = vector.shape_cast %271 : vector<1x4x64xf32> to vector<4x64xf32>
    %cst_245 = arith.constant dense<0.000000e+00> : vector<4x128xf32>
    %273 = tpu.matmul %272, %189, %cst_245 {dimension_numbers = #tpu.dot_dimension_numbers<[1], [0], [0], [1], [0, 0, 1, 1], [], []>} : vector<4x64xf32>, vector<64x128xf32>, vector<4x128xf32> -> vector<4x128xf32>
    %274 = arith.truncf %273 : vector<4x128xf32> to vector<4x128xbf16>
    %c10_246 = arith.constant 10 : index
    %c0_247 = arith.constant 0 : index
    %c0_248 = arith.constant 0 : index
    %275 = vector.load %arg26[%c10_246, %c0_247, %c0_248] : memref<16x128x512xbf16, #tpu.memory_space<vmem>>, vector<1x128x512xbf16>
    %276 = vector.shape_cast %275 : vector<1x128x512xbf16> to vector<128x512xbf16>
    %cst_249 = arith.constant dense<0.000000e+00> : vector<4x512xf32>
    %277 = tpu.matmul %274, %276, %cst_249 {dimension_numbers = #tpu.dot_dimension_numbers<[1], [0], [0], [1], [0, 0, 1, 1], [], []>} : vector<4x128xbf16>, vector<128x512xbf16>, vector<4x512xf32> -> vector<4x512xf32>
    %278 = arith.addf %270, %277 : vector<4x512xf32>
    %c11 = arith.constant 11 : index
    %c0_250 = arith.constant 0 : index
    %c0_251 = arith.constant 0 : index
    %279 = vector.load %arg18[%c11, %c0_250, %c0_251] : memref<16x4x64xf32, #tpu.memory_space<vmem>>, vector<1x4x64xf32>
    %280 = vector.shape_cast %279 : vector<1x4x64xf32> to vector<4x64xf32>
    %cst_252 = arith.constant dense<0.000000e+00> : vector<4x128xf32>
    %281 = tpu.matmul %280, %189, %cst_252 {dimension_numbers = #tpu.dot_dimension_numbers<[1], [0], [0], [1], [0, 0, 1, 1], [], []>} : vector<4x64xf32>, vector<64x128xf32>, vector<4x128xf32> -> vector<4x128xf32>
    %282 = arith.truncf %281 : vector<4x128xf32> to vector<4x128xbf16>
    %c11_253 = arith.constant 11 : index
    %c0_254 = arith.constant 0 : index
    %c0_255 = arith.constant 0 : index
    %283 = vector.load %arg26[%c11_253, %c0_254, %c0_255] : memref<16x128x512xbf16, #tpu.memory_space<vmem>>, vector<1x128x512xbf16>
    %284 = vector.shape_cast %283 : vector<1x128x512xbf16> to vector<128x512xbf16>
    %cst_256 = arith.constant dense<0.000000e+00> : vector<4x512xf32>
    %285 = tpu.matmul %282, %284, %cst_256 {dimension_numbers = #tpu.dot_dimension_numbers<[1], [0], [0], [1], [0, 0, 1, 1], [], []>} : vector<4x128xbf16>, vector<128x512xbf16>, vector<4x512xf32> -> vector<4x512xf32>
    %286 = arith.addf %278, %285 : vector<4x512xf32>
    %c12 = arith.constant 12 : index
    %c0_257 = arith.constant 0 : index
    %c0_258 = arith.constant 0 : index
    %287 = vector.load %arg18[%c12, %c0_257, %c0_258] : memref<16x4x64xf32, #tpu.memory_space<vmem>>, vector<1x4x64xf32>
    %288 = vector.shape_cast %287 : vector<1x4x64xf32> to vector<4x64xf32>
    %cst_259 = arith.constant dense<0.000000e+00> : vector<4x128xf32>
    %289 = tpu.matmul %288, %189, %cst_259 {dimension_numbers = #tpu.dot_dimension_numbers<[1], [0], [0], [1], [0, 0, 1, 1], [], []>} : vector<4x64xf32>, vector<64x128xf32>, vector<4x128xf32> -> vector<4x128xf32>
    %290 = arith.truncf %289 : vector<4x128xf32> to vector<4x128xbf16>
    %c12_260 = arith.constant 12 : index
    %c0_261 = arith.constant 0 : index
    %c0_262 = arith.constant 0 : index
    %291 = vector.load %arg26[%c12_260, %c0_261, %c0_262] : memref<16x128x512xbf16, #tpu.memory_space<vmem>>, vector<1x128x512xbf16>
    %292 = vector.shape_cast %291 : vector<1x128x512xbf16> to vector<128x512xbf16>
    %cst_263 = arith.constant dense<0.000000e+00> : vector<4x512xf32>
    %293 = tpu.matmul %290, %292, %cst_263 {dimension_numbers = #tpu.dot_dimension_numbers<[1], [0], [0], [1], [0, 0, 1, 1], [], []>} : vector<4x128xbf16>, vector<128x512xbf16>, vector<4x512xf32> -> vector<4x512xf32>
    %294 = arith.addf %286, %293 : vector<4x512xf32>
    %c13 = arith.constant 13 : index
    %c0_264 = arith.constant 0 : index
    %c0_265 = arith.constant 0 : index
    %295 = vector.load %arg18[%c13, %c0_264, %c0_265] : memref<16x4x64xf32, #tpu.memory_space<vmem>>, vector<1x4x64xf32>
    %296 = vector.shape_cast %295 : vector<1x4x64xf32> to vector<4x64xf32>
    %cst_266 = arith.constant dense<0.000000e+00> : vector<4x128xf32>
    %297 = tpu.matmul %296, %189, %cst_266 {dimension_numbers = #tpu.dot_dimension_numbers<[1], [0], [0], [1], [0, 0, 1, 1], [], []>} : vector<4x64xf32>, vector<64x128xf32>, vector<4x128xf32> -> vector<4x128xf32>
    %298 = arith.truncf %297 : vector<4x128xf32> to vector<4x128xbf16>
    %c13_267 = arith.constant 13 : index
    %c0_268 = arith.constant 0 : index
    %c0_269 = arith.constant 0 : index
    %299 = vector.load %arg26[%c13_267, %c0_268, %c0_269] : memref<16x128x512xbf16, #tpu.memory_space<vmem>>, vector<1x128x512xbf16>
    %300 = vector.shape_cast %299 : vector<1x128x512xbf16> to vector<128x512xbf16>
    %cst_270 = arith.constant dense<0.000000e+00> : vector<4x512xf32>
    %301 = tpu.matmul %298, %300, %cst_270 {dimension_numbers = #tpu.dot_dimension_numbers<[1], [0], [0], [1], [0, 0, 1, 1], [], []>} : vector<4x128xbf16>, vector<128x512xbf16>, vector<4x512xf32> -> vector<4x512xf32>
    %302 = arith.addf %294, %301 : vector<4x512xf32>
    %c14 = arith.constant 14 : index
    %c0_271 = arith.constant 0 : index
    %c0_272 = arith.constant 0 : index
    %303 = vector.load %arg18[%c14, %c0_271, %c0_272] : memref<16x4x64xf32, #tpu.memory_space<vmem>>, vector<1x4x64xf32>
    %304 = vector.shape_cast %303 : vector<1x4x64xf32> to vector<4x64xf32>
    %cst_273 = arith.constant dense<0.000000e+00> : vector<4x128xf32>
    %305 = tpu.matmul %304, %189, %cst_273 {dimension_numbers = #tpu.dot_dimension_numbers<[1], [0], [0], [1], [0, 0, 1, 1], [], []>} : vector<4x64xf32>, vector<64x128xf32>, vector<4x128xf32> -> vector<4x128xf32>
    %306 = arith.truncf %305 : vector<4x128xf32> to vector<4x128xbf16>
    %c14_274 = arith.constant 14 : index
    %c0_275 = arith.constant 0 : index
    %c0_276 = arith.constant 0 : index
    %307 = vector.load %arg26[%c14_274, %c0_275, %c0_276] : memref<16x128x512xbf16, #tpu.memory_space<vmem>>, vector<1x128x512xbf16>
    %308 = vector.shape_cast %307 : vector<1x128x512xbf16> to vector<128x512xbf16>
    %cst_277 = arith.constant dense<0.000000e+00> : vector<4x512xf32>
    %309 = tpu.matmul %306, %308, %cst_277 {dimension_numbers = #tpu.dot_dimension_numbers<[1], [0], [0], [1], [0, 0, 1, 1], [], []>} : vector<4x128xbf16>, vector<128x512xbf16>, vector<4x512xf32> -> vector<4x512xf32>
    %310 = arith.addf %302, %309 : vector<4x512xf32>
    %c15 = arith.constant 15 : index
    %c0_278 = arith.constant 0 : index
    %c0_279 = arith.constant 0 : index
    %311 = vector.load %arg18[%c15, %c0_278, %c0_279] : memref<16x4x64xf32, #tpu.memory_space<vmem>>, vector<1x4x64xf32>
    %312 = vector.shape_cast %311 : vector<1x4x64xf32> to vector<4x64xf32>
    %cst_280 = arith.constant dense<0.000000e+00> : vector<4x128xf32>
    %313 = tpu.matmul %312, %189, %cst_280 {dimension_numbers = #tpu.dot_dimension_numbers<[1], [0], [0], [1], [0, 0, 1, 1], [], []>} : vector<4x64xf32>, vector<64x128xf32>, vector<4x128xf32> -> vector<4x128xf32>
    %314 = arith.truncf %313 : vector<4x128xf32> to vector<4x128xbf16>
    %c15_281 = arith.constant 15 : index
    %c0_282 = arith.constant 0 : index
    %c0_283 = arith.constant 0 : index
    %315 = vector.load %arg26[%c15_281, %c0_282, %c0_283] : memref<16x128x512xbf16, #tpu.memory_space<vmem>>, vector<1x128x512xbf16>
    %316 = vector.shape_cast %315 : vector<1x128x512xbf16> to vector<128x512xbf16>
    %cst_284 = arith.constant dense<0.000000e+00> : vector<4x512xf32>
    %317 = tpu.matmul %314, %316, %cst_284 {dimension_numbers = #tpu.dot_dimension_numbers<[1], [0], [0], [1], [0, 0, 1, 1], [], []>} : vector<4x128xbf16>, vector<128x512xbf16>, vector<4x512xf32> -> vector<4x512xf32>
    %318 = arith.addf %310, %317 : vector<4x512xf32>
    %c0_285 = arith.constant 0 : index
    %c0_286 = arith.constant 0 : index
    %319 = vector.load %arg20[%c0_285, %c0_286] : memref<1x512xf32, #tpu.memory_space<vmem>>, vector<1x512xf32>
    %320 = vector.broadcast %319 : vector<1x512xf32> to vector<4x512xf32>
    %321 = arith.addf %318, %320 : vector<4x512xf32>
    %cst_287 = arith.constant 0.000000e+00 : f32
    %322 = vector.broadcast %cst_287 : f32 to vector<4x512xf32>
    %323 = arith.maximumf %321, %322 : vector<4x512xf32>
    %c1_i32_288 = arith.constant 1 : i32
    %324 = tpu.memref_slice %arg29[%c1_i32_288] : memref<3x!tpu.dma_semaphore, #tpu.memory_space<semaphore_mem>> -> memref<1x!tpu.dma_semaphore, #tpu.memory_space<semaphore_mem>>
    %325 = tpu.memref_squeeze %324 : memref<1x!tpu.dma_semaphore, #tpu.memory_space<semaphore_mem>> -> memref<!tpu.dma_semaphore, #tpu.memory_space<semaphore_mem>>
    tpu.wait_dma2 semaphore(%325 : memref<!tpu.dma_semaphore, #tpu.memory_space<semaphore_mem>>) src(%arg21 : memref<512x512xbf16, #tpu.memory_space<any>>) dst(%arg27 : memref<512x512xbf16, #tpu.memory_space<vmem>>)
    %326 = arith.truncf %323 : vector<4x512xf32> to vector<4x512xbf16>
    %c0_289 = arith.constant 0 : index
    %c0_290 = arith.constant 0 : index
    %327 = vector.load %arg27[%c0_289, %c0_290] : memref<512x512xbf16, #tpu.memory_space<vmem>>, vector<512x512xbf16>
    %cst_291 = arith.constant dense<0.000000e+00> : vector<4x512xf32>
    %328 = tpu.matmul %326, %327, %cst_291 {dimension_numbers = #tpu.dot_dimension_numbers<[1], [0], [0], [1], [0, 0, 1, 1], [], []>} : vector<4x512xbf16>, vector<512x512xbf16>, vector<4x512xf32> -> vector<4x512xf32>
    %c0_292 = arith.constant 0 : index
    %c0_293 = arith.constant 0 : index
    %329 = vector.load %arg22[%c0_292, %c0_293] : memref<1x512xf32, #tpu.memory_space<vmem>>, vector<1x512xf32>
    %330 = vector.broadcast %329 : vector<1x512xf32> to vector<4x512xf32>
    %331 = arith.addf %328, %330 : vector<4x512xf32>
    %cst_294 = arith.constant 0.000000e+00 : f32
    %332 = vector.broadcast %cst_294 : f32 to vector<4x512xf32>
    %333 = arith.maximumf %331, %332 : vector<4x512xf32>
    %c2_i32_295 = arith.constant 2 : i32
    %334 = tpu.memref_slice %arg29[%c2_i32_295] : memref<3x!tpu.dma_semaphore, #tpu.memory_space<semaphore_mem>> -> memref<1x!tpu.dma_semaphore, #tpu.memory_space<semaphore_mem>>
    %335 = tpu.memref_squeeze %334 : memref<1x!tpu.dma_semaphore, #tpu.memory_space<semaphore_mem>> -> memref<!tpu.dma_semaphore, #tpu.memory_space<semaphore_mem>>
    tpu.wait_dma2 semaphore(%335 : memref<!tpu.dma_semaphore, #tpu.memory_space<semaphore_mem>>) src(%arg23 : memref<512x128xbf16, #tpu.memory_space<any>>) dst(%arg28 : memref<512x128xbf16, #tpu.memory_space<vmem>>)
    %336 = arith.truncf %333 : vector<4x512xf32> to vector<4x512xbf16>
    %c0_296 = arith.constant 0 : index
    %c0_297 = arith.constant 0 : index
    %337 = vector.load %arg28[%c0_296, %c0_297] : memref<512x128xbf16, #tpu.memory_space<vmem>>, vector<512x128xbf16>
    %cst_298 = arith.constant dense<0.000000e+00> : vector<4x128xf32>
    %338 = tpu.matmul %336, %337, %cst_298 {dimension_numbers = #tpu.dot_dimension_numbers<[1], [0], [0], [1], [0, 0, 1, 1], [], []>} : vector<4x512xbf16>, vector<512x128xbf16>, vector<4x128xf32> -> vector<4x128xf32>
    %c0_299 = arith.constant 0 : index
    %c0_300 = arith.constant 0 : index
    %339 = vector.load %arg24[%c0_299, %c0_300] : memref<1x128xf32, #tpu.memory_space<vmem>>, vector<1x128xf32>
    %340 = vector.broadcast %339 : vector<1x128xf32> to vector<4x128xf32>
    %341 = arith.addf %338, %340 : vector<4x128xf32>
    %c0_301 = arith.constant 0 : index
    %c0_302 = arith.constant 0 : index
    %342 = vector.load %arg25[%c0_301, %c0_302] : memref<4x128xf32, #tpu.memory_space<vmem>>, vector<4x128xf32>
    tpu.vector_store %arg25[%c0_301, %c0_302], %341 {strides = array<i32>} : memref<4x128xf32, #tpu.memory_space<vmem>>, vector<4x128xf32>,
    return
  }
}

</mosaic_0001>

<llo_original>
// kernel: siamese_forward.1
$region0: #{siamese_forward.1}
  #allocation0 [shape = 'u32[]', space=smem, size = 0x4, offset = 0x4, fixed_abs, tag = 'smem constant byte address 0x4 - core index']
  #allocation1 [shape = 'u32[72,128]{1,0:T(1,128)}', space=vmem, size = 0x9000, scoped, tag = 'internal scratch']
  #allocation2 [shape = 'bf16[16,128,512]{2,1,0:T(8,128)(2,1)}', space=vmem, size = 0x200000, scoped, tag = 'scratch operand']
  #allocation3 [shape = 'bf16[512,512]{1,0:T(8,128)(2,1)}', space=vmem, size = 0x80000, scoped, tag = 'scratch operand']
  #allocation4 [shape = 'bf16[512,128]{1,0:T(8,128)(2,1)}', space=vmem, size = 0x20000, scoped, tag = 'scratch operand']
  #allocation5 [shape = 's32[3]{0}', space=sflag, size = 0xc, scoped, tag = 'scratch operand']
  #allocation35 [shape = 's32[]', space=sflag, size = 0x4, offset = 0, fixed_abs, tag = 'sflag constant byte address 0x0 - dummy sync flag']
  #allocation36 [shape = 's32[]', space=sflag, size = 0x4, offset = 0, fixed_abs, tag = 'sflag constant byte address 0x0 - dummy sync flag']
  #allocation37 [shape = 'u32[]', space=smem, size = 0x4, offset = 0x44, fixed_abs, tag = 'smem constant byte address 0x44 - assertion arg 0']
  #allocation38 [shape = 'u32[]', space=smem, size = 0x4, offset = 0x48, fixed_abs, tag = 'smem constant byte address 0x48 - assertion arg 1']
  #allocation39 [shape = 's32[]', space=sflag, size = 0x4, offset = 0, fixed_abs, tag = 'sflag constant byte address 0x0 - dummy sync flag']
  #allocation40 [shape = 's32[]', space=sflag, size = 0x4, offset = 0, fixed_abs, tag = 'sflag constant byte address 0x0 - dummy sync flag']
  #allocation41 [shape = 's32[]', space=sflag, size = 0x4, offset = 0, fixed_abs, tag = 'sflag constant byte address 0x0 - dummy sync flag']
  #allocation42 [shape = 's32[]', space=sflag, size = 0x4, offset = 0, fixed_abs, tag = 'sflag constant byte address 0x0 - dummy sync flag']
  %s0 = inlined_call_operand.vmem [shape: f32[64,16], index: 0, kind: input, shape index: {}]
  %s1 = inlined_call_operand.hbm [shape: f32[3,64,64], index: 1, kind: input, shape index: {}]
  %s2 = inlined_call_operand.hbm [shape: f32[3,16,128], index: 2, kind: input, shape index: {}]
  %s3 = inlined_call_operand.hbm [shape: f32[3,128,128], index: 3, kind: input, shape index: {}]
  %s4 = inlined_call_operand.hbm [shape: f32[3,128,128], index: 4, kind: input, shape index: {}]
  %s5 = inlined_call_operand.hbm [shape: f32[1,128], index: 5, kind: input, shape index: {}]
  %s6 = inlined_call_operand.hbm [shape: f32[1,128], index: 6, kind: input, shape index: {}]
  %s7 = inlined_call_operand.hbm [shape: f32[1,128], index: 7, kind: input, shape index: {}]
  %s8 = inlined_call_operand.hbm [shape: f32[1,8], index: 8, kind: input, shape index: {}]
  %s9 = inlined_call_operand.hbm [shape: f32[1,8], index: 9, kind: input, shape index: {}]
  %s10 = inlined_call_operand.hbm [shape: f32[1,8], index: 10, kind: input, shape index: {}]
  %s11 = inlined_call_operand.hbm [shape: f32[1,8], index: 11, kind: input, shape index: {}]
  %s12 = inlined_call_operand.hbm [shape: f32[1,8], index: 12, kind: input, shape index: {}]
  %s13 = inlined_call_operand.hbm [shape: f32[1,8], index: 13, kind: input, shape index: {}]
  %s14 = inlined_call_operand.vmem [shape: f32[128,8], index: 14, kind: input, shape index: {}]
  %s15 = inlined_call_operand.hbm [shape: f32[8,128], index: 15, kind: input, shape index: {}]
  %s16 = inlined_call_operand.hbm [shape: f32[2,64], index: 16, kind: input, shape index: {}]
  %s17 = inlined_call_operand.vmem [shape: f32[64,2], index: 17, kind: input, shape index: {}]
  %s18 = inlined_call_operand.hbm [shape: f32[16,4,64], index: 18, kind: input, shape index: {}]
  %s19 = inlined_call_operand.hbm [shape: bf16[16,128,512], index: 19, kind: input, shape index: {}]
  %s20 = inlined_call_operand.hbm [shape: f32[1,512], index: 20, kind: input, shape index: {}]
  %s21 = inlined_call_operand.hbm [shape: bf16[512,512], index: 21, kind: input, shape index: {}]
  %s22 = inlined_call_operand.hbm [shape: f32[1,512], index: 22, kind: input, shape index: {}]
  %s23 = inlined_call_operand.hbm [shape: bf16[512,128], index: 23, kind: input, shape index: {}]
  %s24 = inlined_call_operand.hbm [shape: f32[1,128], index: 24, kind: input, shape index: {}]
  %s25 = inlined_call_operand.vmem [shape: f32[4,128], index: 25, kind: output, shape index: {}]
  %s26 = sld [smem:[#allocation0]]
  $region186: #{siamese_forward.1} parent=0
    _
  %s28 = ssub.s32 1, %s26
  %s29 = scalar_select 0, %s28, %s26
  $region1: #{siamese_forward.1} parent=0
    #allocation6 [shape = 'u8[98304]{0}', space=vmem, size = 0x18000, scoped, tag = 'input window, operand 1, single buffered']
    #allocation7 [shape = 's32[1]{0}', space=sflag, size = 0x4, scoped, tag = 'scoped memory for siamese_forward.1']
    #allocation8 [shape = 'u8[24576]{0}', space=vmem, size = 0x6000, scoped, tag = 'input window, operand 2, single buffered']
    #allocation9 [shape = 's32[1]{0}', space=sflag, size = 0x4, scoped, tag = 'scoped memory for siamese_forward.1']
    #allocation10 [shape = 'u8[196608]{0}', space=vmem, size = 0x30000, scoped, tag = 'input window, operand 3, single buffered']
    #allocation11 [shape = 'u8[196608]{0}', space=vmem, size = 0x30000, scoped, tag = 'input window, operand 4, single buffered']
    #allocation12 [shape = 's32[1]{0}', space=sflag, size = 0x4, scoped, tag = 'scoped memory for siamese_forward.1']
    #allocation13 [shape = 'u8[512]{0}', space=vmem, size = 0x400, scoped, tag = 'input window, operand 5, single buffered']
    #allocation14 [shape = 'u8[512]{0}', space=vmem, size = 0x400, scoped, tag = 'input window, operand 6, single buffered']
    #allocation15 [shape = 's32[1]{0}', space=sflag, size = 0x4, scoped, tag = 'scoped memory for siamese_forward.1']
    #allocation16 [shape = 'u8[512]{0}', space=vmem, size = 0x400, scoped, tag = 'input window, operand 7, single buffered']
    #allocation17 [shape = 'u8[512]{0}', space=vmem, size = 0x400, scoped, tag = 'input window, operand 8, single buffered']
    #allocation18 [shape = 's32[1]{0}', space=sflag, size = 0x4, scoped, tag = 'scoped memory for siamese_forward.1']
    #allocation19 [shape = 'u8[512]{0}', space=vmem, size = 0x400, scoped, tag = 'input window, operand 9, single buffered']
    #allocation20 [shape = 'u8[512]{0}', space=vmem, size = 0x400, scoped, tag = 'input window, operand 10, single buffered']
    #allocation21 [shape = 's32[1]{0}', space=sflag, size = 0x4, scoped, tag = 'scoped memory for siamese_forward.1']
    #allocation22 [shape = 'u8[512]{0}', space=vmem, size = 0x400, scoped, tag = 'input window, operand 11, single buffered']
    #allocation23 [shape = 'u8[512]{0}', space=vmem, size = 0x400, scoped, tag = 'input window, operand 12, single buffered']
    #allocation24 [shape = 's32[1]{0}', space=sflag, size = 0x4, scoped, tag = 'scoped memory for siamese_forward.1']
    #allocation25 [shape = 'u8[512]{0}', space=vmem, size = 0x400, scoped, tag = 'input window, operand 13, single buffered']
    #allocation26 [shape = 'u8[4096]{0}', space=vmem, size = 0x1000, scoped, tag = 'input window, operand 15, single buffered']
    #allocation27 [shape = 's32[1]{0}', space=sflag, size = 0x4, scoped, tag = 'scoped memory for siamese_forward.1']
    #allocation28 [shape = 'u8[1024]{0}', space=vmem, size = 0x400, scoped, tag = 'input window, operand 16, single buffered']
    #allocation29 [shape = 'u8[32768]{0}', space=vmem, size = 0x8000, scoped, tag = 'input window, operand 18, single buffered']
    #allocation30 [shape = 's32[1]{0}', space=sflag, size = 0x4, scoped, tag = 'scoped memory for siamese_forward.1']
    #allocation31 [shape = 'u8[2048]{0}', space=vmem, size = 0x800, scoped, tag = 'input window, operand 20, single buffered']
    #allocation32 [shape = 'u8[2048]{0}', space=vmem, size = 0x800, scoped, tag = 'input window, operand 22, single buffered']
    #allocation33 [shape = 's32[1]{0}', space=sflag, size = 0x4, scoped, tag = 'scoped memory for siamese_forward.1']
    #allocation34 [shape = 'u8[512]{0}', space=vmem, size = 0x400, scoped, tag = 'input window, operand 24, single buffered']
    %30 = vsyncpa [#allocation7], 0
    %31 = vsyncpa [#allocation9], 0
    %32 = vsyncpa [#allocation12], 0
    %33 = vsyncpa [#allocation15], 0
    %34 = vsyncpa [#allocation18], 0
    %35 = vsyncpa [#allocation21], 0
    %36 = vsyncpa [#allocation24], 0
    %37 = vsyncpa [#allocation27], 0
    %38 = vsyncpa [#allocation30], 0
    %39 = vsyncpa [#allocation33], 0
    // Predicated region
    $region2: #{siamese_forward.1} parent=1 // pred_check
      _
    $region3: #{siamese_forward.1} parent=1 // pred_check_branch
      %41 = sbr.rel (0) target = $region5
    $region4: #{siamese_forward.1} parent=1 // pred_region
      _
    $region5: #{siamese_forward.1} parent=1 // pred_fallthru
      _
    // Predicated region
    $region6: #{siamese_forward.1} parent=1 // pred_check
      _
    $region7: #{siamese_forward.1} parent=1 // pred_check_branch
      %43 = sbr.rel (0) target = $region9
    $region8: #{siamese_forward.1} parent=1 // pred_region
      %45 = vsyncadd [#allocation7], 0
      %s46 = sshll.u32 %s1, 4
      %s47 = int_to_ptr.hbm [resolvable:$true] %s46
      %s48 = sshll.u32 [#allocation6], 4
      %s49 = int_to_ptr.vmem [resolvable:$true] %s48
      %54 = dma.hbm_to_vmem [thread:$0]  %s47, 3072, %s49, [#allocation7], 128, 128, 8
    $region9: #{siamese_forward.1} parent=1 // pred_fallthru
      _
    // Predicated region
    $region10: #{siamese_forward.1} parent=1 // pred_check
      _
    $region11: #{siamese_forward.1} parent=1 // pred_check_branch
      %56 = sbr.rel (0) target = $region13
    $region12: #{siamese_forward.1} parent=1 // pred_region
      %58 = vsyncadd [#allocation9], 0
      %s59 = sshll.u32 %s2, 4
      %s60 = int_to_ptr.hbm [resolvable:$true] %s59
      %s61 = sshll.u32 [#allocation8], 4
      %s62 = int_to_ptr.vmem [resolvable:$true] %s61
      %67 = dma.hbm_to_vmem [thread:$0]  %s60, 768, %s62, [#allocation9], 128, 128, 8
    $region13: #{siamese_forward.1} parent=1 // pred_fallthru
      _
    // Predicated region
    $region14: #{siamese_forward.1} parent=1 // pred_check
      _
    $region15: #{siamese_forward.1} parent=1 // pred_check_branch
      %69 = sbr.rel (0) target = $region17
    $region16: #{siamese_forward.1} parent=1 // pred_region
      %71 = vsyncadd [#allocation9], 0
      %s72 = sshll.u32 %s3, 4
      %s73 = int_to_ptr.hbm [resolvable:$true] %s72
      %s74 = sshll.u32 [#allocation10], 4
      %s75 = int_to_ptr.vmem [resolvable:$true] %s74
      %80 = dma.hbm_to_vmem [thread:$0]  %s73, 6144, %s75, [#allocation9], 128, 128, 8
    $region17: #{siamese_forward.1} parent=1 // pred_fallthru
      _
    // Predicated region
    $region18: #{siamese_forward.1} parent=1 // pred_check
      _
    $region19: #{siamese_forward.1} parent=1 // pred_check_branch
      %82 = sbr.rel (0) target = $region21
    $region20: #{siamese_forward.1} parent=1 // pred_region
      %84 = vsyncadd [#allocation12], 0
      %s85 = sshll.u32 %s4, 4
      %s86 = int_to_ptr.hbm [resolvable:$true] %s85
      %s87 = sshll.u32 [#allocation11], 4
      %s88 = int_to_ptr.vmem [resolvable:$true] %s87
      %93 = dma.hbm_to_vmem [thread:$0]  %s86, 6144, %s88, [#allocation12], 128, 128, 8
    $region21: #{siamese_forward.1} parent=1 // pred_fallthru
      _
    // Predicated region
    $region22: #{siamese_forward.1} parent=1 // pred_check
      _
    $region23: #{siamese_forward.1} parent=1 // pred_check_branch
      %95 = sbr.rel (0) target = $region25
    $region24: #{siamese_forward.1} parent=1 // pred_region
      %97 = vsyncadd [#allocation12], 0
      %s99 = sshll.u32 %s5, 4
      %s100 = int_to_ptr.hbm [resolvable:$true] %s99
      %s101 = sshll.u32 [#allocation13], 4
      %s102 = int_to_ptr.vmem [resolvable:$true] %s101
      %104 = dma.hbm_to_vmem [thread:$0]  %s100, 16, %s102, [#allocation12]
    $region25: #{siamese_forward.1} parent=1 // pred_fallthru
      _
    // Predicated region
    $region26: #{siamese_forward.1} parent=1 // pred_check
      _
    $region27: #{siamese_forward.1} parent=1 // pred_check_branch
      %106 = sbr.rel (0) target = $region29
    $region28: #{siamese_forward.1} parent=1 // pred_region
      %108 = vsyncadd [#allocation15], 0
      %s110 = sshll.u32 %s6, 4
      %s111 = int_to_ptr.hbm [resolvable:$true] %s110
      %s112 = sshll.u32 [#allocation14], 4
      %s113 = int_to_ptr.vmem [resolvable:$true] %s112
      %115 = dma.hbm_to_vmem [thread:$0]  %s111, 16, %s113, [#allocation15]
    $region29: #{siamese_forward.1} parent=1 // pred_fallthru
      _
    // Predicated region
    $region30: #{siamese_forward.1} parent=1 // pred_check
      _
    $region31: #{siamese_forward.1} parent=1 // pred_check_branch
      %117 = sbr.rel (0) target = $region33
    $region32: #{siamese_forward.1} parent=1 // pred_region
      %119 = vsyncadd [#allocation15], 0
      %s121 = sshll.u32 %s7, 4
      %s122 = int_to_ptr.hbm [resolvable:$true] %s121
      %s123 = sshll.u32 [#allocation16], 4
      %s124 = int_to_ptr.vmem [resolvable:$true] %s123
      %126 = dma.hbm_to_vmem [thread:$0]  %s122, 16, %s124, [#allocation15]
    $region33: #{siamese_forward.1} parent=1 // pred_fallthru
      _
    // Predicated region
    $region34: #{siamese_forward.1} parent=1 // pred_check
      _
    $region35: #{siamese_forward.1} parent=1 // pred_check_branch
      %128 = sbr.rel (0) target = $region37
    $region36: #{siamese_forward.1} parent=1 // pred_region
      %130 = vsyncadd [#allocation18], 0
      %s132 = sshll.u32 %s8, 4
      %s133 = int_to_ptr.hbm [resolvable:$true] %s132
      %s134 = sshll.u32 [#allocation17], 4
      %s135 = int_to_ptr.vmem [resolvable:$true] %s134
      %137 = dma.hbm_to_vmem [thread:$0]  %s133, 16, %s135, [#allocation18]
    $region37: #{siamese_forward.1} parent=1 // pred_fallthru
      _
    // Predicated region
    $region38: #{siamese_forward.1} parent=1 // pred_check
      _
    $region39: #{siamese_forward.1} parent=1 // pred_check_branch
      %139 = sbr.rel (0) target = $region41
    $region40: #{siamese_forward.1} parent=1 // pred_region
      %141 = vsyncadd [#allocation18], 0
      %s143 = sshll.u32 %s9, 4
      %s144 = int_to_ptr.hbm [resolvable:$true] %s143
      %s145 = sshll.u32 [#allocation19], 4
      %s146 = int_to_ptr.vmem [resolvable:$true] %s145
      %148 = dma.hbm_to_vmem [thread:$0]  %s144, 16, %s146, [#allocation18]
    $region41: #{siamese_forward.1} parent=1 // pred_fallthru
      _
    // Predicated region
    $region42: #{siamese_forward.1} parent=1 // pred_check
      _
    $region43: #{siamese_forward.1} parent=1 // pred_check_branch
      %150 = sbr.rel (0) target = $region45
    $region44: #{siamese_forward.1} parent=1 // pred_region
      %152 = vsyncadd [#allocation21], 0
      %s154 = sshll.u32 %s10, 4
      %s155 = int_to_ptr.hbm [resolvable:$true] %s154
      %s156 = sshll.u32 [#allocation20], 4
      %s157 = int_to_ptr.vmem [resolvable:$true] %s156
      %159 = dma.hbm_to_vmem [thread:$0]  %s155, 16, %s157, [#allocation21]
    $region45: #{siamese_forward.1} parent=1 // pred_fallthru
      _
    // Predicated region
    $region46: #{siamese_forward.1} parent=1 // pred_check
      _
    $region47: #{siamese_forward.1} parent=1 // pred_check_branch
      %161 = sbr.rel (0) target = $region49
    $region48: #{siamese_forward.1} parent=1 // pred_region
      %163 = vsyncadd [#allocation21], 0
      %s165 = sshll.u32 %s11, 4
      %s166 = int_to_ptr.hbm [resolvable:$true] %s165
      %s167 = sshll.u32 [#allocation22], 4
      %s168 = int_to_ptr.vmem [resolvable:$true] %s167
      %170 = dma.hbm_to_vmem [thread:$0]  %s166, 16, %s168, [#allocation21]
    $region49: #{siamese_forward.1} parent=1 // pred_fallthru
      _
    // Predicated region
    $region50: #{siamese_forward.1} parent=1 // pred_check
      _
    $region51: #{siamese_forward.1} parent=1 // pred_check_branch
      %172 = sbr.rel (0) target = $region53
    $region52: #{siamese_forward.1} parent=1 // pred_region
      %174 = vsyncadd [#allocation24], 0
      %s176 = sshll.u32 %s12, 4
      %s177 = int_to_ptr.hbm [resolvable:$true] %s176
      %s178 = sshll.u32 [#allocation23], 4
      %s179 = int_to_ptr.vmem [resolvable:$true] %s178
      %181 = dma.hbm_to_vmem [thread:$0]  %s177, 16, %s179, [#allocation24]
    $region53: #{siamese_forward.1} parent=1 // pred_fallthru
      _
    // Predicated region
    $region54: #{siamese_forward.1} parent=1 // pred_check
      _
    $region55: #{siamese_forward.1} parent=1 // pred_check_branch
      %183 = sbr.rel (0) target = $region57
    $region56: #{siamese_forward.1} parent=1 // pred_region
      %185 = vsyncadd [#allocation24], 0
      %s187 = sshll.u32 %s13, 4
      %s188 = int_to_ptr.hbm [resolvable:$true] %s187
      %s189 = sshll.u32 [#allocation25], 4
      %s190 = int_to_ptr.vmem [resolvable:$true] %s189
      %192 = dma.hbm_to_vmem [thread:$0]  %s188, 16, %s190, [#allocation24]
    $region57: #{siamese_forward.1} parent=1 // pred_fallthru
      _
    // Predicated region
    $region58: #{siamese_forward.1} parent=1 // pred_check
      _
    $region59: #{siamese_forward.1} parent=1 // pred_check_branch
      %194 = sbr.rel (0) target = $region61
    $region60: #{siamese_forward.1} parent=1 // pred_region
      _
    $region61: #{siamese_forward.1} parent=1 // pred_fallthru
      _
    // Predicated region
    $region62: #{siamese_forward.1} parent=1 // pred_check
      _
    $region63: #{siamese_forward.1} parent=1 // pred_check_branch
      %196 = sbr.rel (0) target = $region65
    $region64: #{siamese_forward.1} parent=1 // pred_region
      %198 = vsyncadd [#allocation27], 0
      %s200 = sshll.u32 %s15, 4
      %s201 = int_to_ptr.hbm [resolvable:$true] %s200
      %s202 = sshll.u32 [#allocation26], 4
      %s203 = int_to_ptr.vmem [resolvable:$true] %s202
      %205 = dma.hbm_to_vmem [thread:$0]  %s201, 128, %s203, [#allocation27]
    $region65: #{siamese_forward.1} parent=1 // pred_fallthru
      _
    // Predicated region
    $region66: #{siamese_forward.1} parent=1 // pred_check
      _
    $region67: #{siamese_forward.1} parent=1 // pred_check_branch
      %207 = sbr.rel (0) target = $region69
    $region68: #{siamese_forward.1} parent=1 // pred_region
      %209 = vsyncadd [#allocation27], 0
      %s211 = sshll.u32 %s16, 4
      %s212 = int_to_ptr.hbm [resolvable:$true] %s211
      %s213 = sshll.u32 [#allocation28], 4
      %s214 = int_to_ptr.vmem [resolvable:$true] %s213
      %216 = dma.hbm_to_vmem [thread:$0]  %s212, 32, %s214, [#allocation27]
    $region69: #{siamese_forward.1} parent=1 // pred_fallthru
      _
    // Predicated region
    $region70: #{siamese_forward.1} parent=1 // pred_check
      _
    $region71: #{siamese_forward.1} parent=1 // pred_check_branch
      %218 = sbr.rel (0) target = $region73
    $region72: #{siamese_forward.1} parent=1 // pred_region
      _
    $region73: #{siamese_forward.1} parent=1 // pred_fallthru
      _
    // Predicated region
    $region74: #{siamese_forward.1} parent=1 // pred_check
      _
    $region75: #{siamese_forward.1} parent=1 // pred_check_branch
      %220 = sbr.rel (0) target = $region77
    $region76: #{siamese_forward.1} parent=1 // pred_region
      %222 = vsyncadd [#allocation30], 0
      %s223 = sshll.u32 %s18, 4
      %s224 = int_to_ptr.hbm [resolvable:$true] %s223
      %s225 = sshll.u32 [#allocation29], 4
      %s226 = int_to_ptr.vmem [resolvable:$true] %s225
      %231 = dma.hbm_to_vmem [thread:$0]  %s224, 1024, %s226, [#allocation30], 64, 64, 4
    $region77: #{siamese_forward.1} parent=1 // pred_fallthru
      _
    // Predicated region
    $region78: #{siamese_forward.1} parent=1 // pred_check
      _
    $region79: #{siamese_forward.1} parent=1 // pred_check_branch
      %233 = sbr.rel (0) target = $region81
    $region80: #{siamese_forward.1} parent=1 // pred_region
      %235 = vsyncadd [#allocation30], 0
      %s237 = sshll.u32 %s20, 4
      %s238 = int_to_ptr.hbm [resolvable:$true] %s237
      %s239 = sshll.u32 [#allocation31], 4
      %s240 = int_to_ptr.vmem [resolvable:$true] %s239
      %242 = dma.hbm_to_vmem [thread:$0]  %s238, 64, %s240, [#allocation30]
    $region81: #{siamese_forward.1} parent=1 // pred_fallthru
      _
    // Predicated region
    $region82: #{siamese_forward.1} parent=1 // pred_check
      _
    $region83: #{siamese_forward.1} parent=1 // pred_check_branch
      %244 = sbr.rel (0) target = $region85
    $region84: #{siamese_forward.1} parent=1 // pred_region
      %246 = vsyncadd [#allocation33], 0
      %s248 = sshll.u32 %s22, 4
      %s249 = int_to_ptr.hbm [resolvable:$true] %s248
      %s250 = sshll.u32 [#allocation32], 4
      %s251 = int_to_ptr.vmem [resolvable:$true] %s250
      %253 = dma.hbm_to_vmem [thread:$0]  %s249, 64, %s251, [#allocation33]
    $region85: #{siamese_forward.1} parent=1 // pred_fallthru
      _
    // Predicated region
    $region86: #{siamese_forward.1} parent=1 // pred_check
      _
    $region87: #{siamese_forward.1} parent=1 // pred_check_branch
      %255 = sbr.rel (0) target = $region89
    $region88: #{siamese_forward.1} parent=1 // pred_region
      %257 = vsyncadd [#allocation33], 0
      %s259 = sshll.u32 %s24, 4
      %s260 = int_to_ptr.hbm [resolvable:$true] %s259
      %s261 = sshll.u32 [#allocation34], 4
      %s262 = int_to_ptr.vmem [resolvable:$true] %s261
      %264 = dma.hbm_to_vmem [thread:$0]  %s260, 16, %s262, [#allocation33]
    $region89: #{siamese_forward.1} parent=1 // pred_fallthru
      _
    // Predicated region
    $region90: #{siamese_forward.1} parent=1 // pred_check
      _
    $region91: #{siamese_forward.1} parent=1 // pred_check_branch
      %266 = sbr.rel (0) target = $region93
    $region92: #{siamese_forward.1} parent=1 // pred_region
      %268 = dma.done [#allocation7], 3072
    $region93: #{siamese_forward.1} parent=1 // pred_fallthru
      _
    // Predicated region
    $region94: #{siamese_forward.1} parent=1 // pred_check
      _
    $region95: #{siamese_forward.1} parent=1 // pred_check_branch
      %270 = sbr.rel (0) target = $region97
    $region96: #{siamese_forward.1} parent=1 // pred_region
      %272 = dma.done [#allocation9], 768
    $region97: #{siamese_forward.1} parent=1 // pred_fallthru
      _
    // Predicated region
    $region98: #{siamese_forward.1} parent=1 // pred_check
      _
    $region99: #{siamese_forward.1} parent=1 // pred_check_branch
      %274 = sbr.rel (0) target = $region101
    $region100: #{siamese_forward.1} parent=1 // pred_region
      %276 = dma.done [#allocation9], 6144
    $region101: #{siamese_forward.1} parent=1 // pred_fallthru
      _
    // Predicated region
    $region102: #{siamese_forward.1} parent=1 // pred_check
      _
    $region103: #{siamese_forward.1} parent=1 // pred_check_branch
      %278 = sbr.rel (0) target = $region105
    $region104: #{siamese_forward.1} parent=1 // pred_region
      %280 = dma.done [#allocation12], 6144
    $region105: #{siamese_forward.1} parent=1 // pred_fallthru
      _
    // Predicated region
    $region106: #{siamese_forward.1} parent=1 // pred_check
      _
    $region107: #{siamese_forward.1} parent=1 // pred_check_branch
      %282 = sbr.rel (0) target = $region109
    $region108: #{siamese_forward.1} parent=1 // pred_region
      %284 = dma.done [#allocation12], 16
    $region109: #{siamese_forward.1} parent=1 // pred_fallthru
      _
    // Predicated region
    $region110: #{siamese_forward.1} parent=1 // pred_check
      _
    $region111: #{siamese_forward.1} parent=1 // pred_check_branch
      %286 = sbr.rel (0) target = $region113
    $region112: #{siamese_forward.1} parent=1 // pred_region
      %288 = dma.done [#allocation15], 16
    $region113: #{siamese_forward.1} parent=1 // pred_fallthru
      _
    // Predicated region
    $region114: #{siamese_forward.1} parent=1 // pred_check
      _
    $region115: #{siamese_forward.1} parent=1 // pred_check_branch
      %290 = sbr.rel (0) target = $region117
    $region116: #{siamese_forward.1} parent=1 // pred_region
      %292 = dma.done [#allocation15], 16
    $region117: #{siamese_forward.1} parent=1 // pred_fallthru
      _
    // Predicated region
    $region118: #{siamese_forward.1} parent=1 // pred_check
      _
    $region119: #{siamese_forward.1} parent=1 // pred_check_branch
      %294 = sbr.rel (0) target = $region121
    $region120: #{siamese_forward.1} parent=1 // pred_region
      %296 = dma.done [#allocation18], 16
    $region121: #{siamese_forward.1} parent=1 // pred_fallthru
      _
    // Predicated region
    $region122: #{siamese_forward.1} parent=1 // pred_check
      _
    $region123: #{siamese_forward.1} parent=1 // pred_check_branch
      %298 = sbr.rel (0) target = $region125
    $region124: #{siamese_forward.1} parent=1 // pred_region
      %300 = dma.done [#allocation18], 16
    $region125: #{siamese_forward.1} parent=1 // pred_fallthru
      _
    // Predicated region
    $region126: #{siamese_forward.1} parent=1 // pred_check
      _
    $region127: #{siamese_forward.1} parent=1 // pred_check_branch
      %302 = sbr.rel (0) target = $region129
    $region128: #{siamese_forward.1} parent=1 // pred_region
      %304 = dma.done [#allocation21], 16
    $region129: #{siamese_forward.1} parent=1 // pred_fallthru
      _
    // Predicated region
    $region130: #{siamese_forward.1} parent=1 // pred_check
      _
    $region131: #{siamese_forward.1} parent=1 // pred_check_branch
      %306 = sbr.rel (0) target = $region133
    $region132: #{siamese_forward.1} parent=1 // pred_region
      %308 = dma.done [#allocation21], 16
    $region133: #{siamese_forward.1} parent=1 // pred_fallthru
      _
    // Predicated region
    $region134: #{siamese_forward.1} parent=1 // pred_check
      _
    $region135: #{siamese_forward.1} parent=1 // pred_check_branch
      %310 = sbr.rel (0) target = $region137
    $region136: #{siamese_forward.1} parent=1 // pred_region
      %312 = dma.done [#allocation24], 16
    $region137: #{siamese_forward.1} parent=1 // pred_fallthru
      _
    // Predicated region
    $region138: #{siamese_forward.1} parent=1 // pred_check
      _
    $region139: #{siamese_forward.1} parent=1 // pred_check_branch
      %314 = sbr.rel (0) target = $region141
    $region140: #{siamese_forward.1} parent=1 // pred_region
      %316 = dma.done [#allocation24], 16
    $region141: #{siamese_forward.1} parent=1 // pred_fallthru
      _
    // Predicated region
    $region142: #{siamese_forward.1} parent=1 // pred_check
      _
    $region143: #{siamese_forward.1} parent=1 // pred_check_branch
      %318 = sbr.rel (0) target = $region145
    $region144: #{siamese_forward.1} parent=1 // pred_region
      %320 = dma.done [#allocation27], 128
    $region145: #{siamese_forward.1} parent=1 // pred_fallthru
      _
    // Predicated region
    $region146: #{siamese_forward.1} parent=1 // pred_check
      _
    $region147: #{siamese_forward.1} parent=1 // pred_check_branch
      %322 = sbr.rel (0) target = $region149
    $region148: #{siamese_forward.1} parent=1 // pred_region
      %324 = dma.done [#allocation27], 32
    $region149: #{siamese_forward.1} parent=1 // pred_fallthru
      _
    // Predicated region
    $region150: #{siamese_forward.1} parent=1 // pred_check
      _
    $region151: #{siamese_forward.1} parent=1 // pred_check_branch
      %326 = sbr.rel (0) target = $region153
    $region152: #{siamese_forward.1} parent=1 // pred_region
      %328 = dma.done [#allocation30], 1024
    $region153: #{siamese_forward.1} parent=1 // pred_fallthru
      _
    // Predicated region
    $region154: #{siamese_forward.1} parent=1 // pred_check
      _
    $region155: #{siamese_forward.1} parent=1 // pred_check_branch
      %330 = sbr.rel (0) target = $region157
    $region156: #{siamese_forward.1} parent=1 // pred_region
      %332 = dma.done [#allocation30], 64
    $region157: #{siamese_forward.1} parent=1 // pred_fallthru
      _
    // Predicated region
    $region158: #{siamese_forward.1} parent=1 // pred_check
      _
    $region159: #{siamese_forward.1} parent=1 // pred_check_branch
      %334 = sbr.rel (0) target = $region161
    $region160: #{siamese_forward.1} parent=1 // pred_region
      %336 = dma.done [#allocation33], 64
    $region161: #{siamese_forward.1} parent=1 // pred_fallthru
      _
    // Predicated region
    $region162: #{siamese_forward.1} parent=1 // pred_check
      _
    $region163: #{siamese_forward.1} parent=1 // pred_check_branch
      %338 = sbr.rel (0) target = $region165
    $region164: #{siamese_forward.1} parent=1 // pred_region
      %340 = dma.done [#allocation33], 16
    $region165: #{siamese_forward.1} parent=1 // pred_fallthru
      _
    // Predicated region
    $region166: #{siamese_forward.1} parent=1 // pred_check
      _
    $region167: #{siamese_forward.1} parent=1 // pred_check_branch
      %342 = sbr.rel target = $region169
    $region168: #{siamese_forward.1} parent=1 // pred_region
      %343 = sst [smem:[#allocation37]] [#allocation36]
      %344 = sst [smem:[#allocation38]] [#allocation35]
    $region169: #{siamese_forward.1} parent=1 // pred_fallthru
      _
    %346 = shalt.err (0)
    %s348 = sshll.u32 %s19, 4
    %s349 = int_to_ptr.hbm [resolvable:$true] %s348
    %s350 = sshll.u32 [#allocation2], 4
    %s351 = int_to_ptr.vmem [resolvable:$true] %s350
    %353 = dma.hbm_to_vmem [thread:$0]  %s349, 65536, %s351, [#allocation5]
    %s354 = scalar_lea.sflag [#allocation5], 1
    // Predicated region
    $region170: #{siamese_forward.1} parent=1 // pred_check
      _
    $region171: #{siamese_forward.1} parent=1 // pred_check_branch
      %356 = sbr.rel target = $region173
    $region172: #{siamese_forward.1} parent=1 // pred_region
      %357 = sst [smem:[#allocation37]] [#allocation40]
      %358 = sst [smem:[#allocation38]] [#allocation39]
    $region173: #{siamese_forward.1} parent=1 // pred_fallthru
      _
    %360 = shalt.err (0)
    %s362 = sshll.u32 %s21, 4
    %s363 = int_to_ptr.hbm [resolvable:$true] %s362
    %s364 = sshll.u32 [#allocation3], 4
    %s365 = int_to_ptr.vmem [resolvable:$true] %s364
    %367 = dma.hbm_to_vmem [thread:$0]  %s363, 16384, %s365, %s354
    %s368 = scalar_lea.sflag [#allocation5], 2
    // Predicated region
    $region174: #{siamese_forward.1} parent=1 // pred_check
      _
    $region175: #{siamese_forward.1} parent=1 // pred_check_branch
      %370 = sbr.rel target = $region177
    $region176: #{siamese_forward.1} parent=1 // pred_region
      %371 = sst [smem:[#allocation37]] [#allocation42]
      %372 = sst [smem:[#allocation38]] [#allocation41]
    $region177: #{siamese_forward.1} parent=1 // pred_fallthru
      _
    %374 = shalt.err (0)
    %s376 = sshll.u32 %s23, 4
    %s377 = int_to_ptr.hbm [resolvable:$true] %s376
    %s378 = sshll.u32 [#allocation4], 4
    %s379 = int_to_ptr.vmem [resolvable:$true] %s378
    %381 = dma.hbm_to_vmem [thread:$0]  %s377, 4096, %s379, %s368
    %v382 = vld [vmem:[%s0] sm:$0xff]
    %v383 = vld [vmem:[%s0 + $0x8] sm:$0xff]
    %v384 = vld [vmem:[%s0 + $0x10] sm:$0xff]
    %v385 = vld [vmem:[%s0 + $0x18] sm:$0xff]
    %v386 = vld [vmem:[%s0 + $0x20] sm:$0xff]
    %v387 = vld [vmem:[%s0 + $0x28] sm:$0xff]
    %v388 = vld [vmem:[%s0 + $0x30] sm:$0xff]
    %v389 = vld [vmem:[%s0 + $0x38] sm:$0xff]
    %v390 = vld [vmem:[#allocation6] sm:$0xff]
    %v391 = vld [vmem:[#allocation6 + $0x8] sm:$0xff]
    %v392 = vld [vmem:[#allocation6 + $0x10] sm:$0xff]
    %v393 = vld [vmem:[#allocation6 + $0x18] sm:$0xff]
    %v394 = vld [vmem:[#allocation6 + $0x20] sm:$0xff]
    %v395 = vld [vmem:[#allocation6 + $0x28] sm:$0xff]
    %v396 = vld [vmem:[#allocation6 + $0x30] sm:$0xff]
    %v397 = vld [vmem:[#allocation6 + $0x38] sm:$0xff]
    %vm398 = vcmask 523264
    %v400 = vsel %vm398, %v390, 0
    %v403 = vsel %vm398, %v391, 0
    %v406 = vsel %vm398, %v392, 0
    %v409 = vsel %vm398, %v393, 0
    %v412 = vsel %vm398, %v394, 0
    %v415 = vsel %vm398, %v395, 0
    %v418 = vsel %vm398, %v396, 0
    %v421 = vsel %vm398, %v397, 0
    %423 = vmatpush.msra.mxu0 0.0
    %424 = vmatpush.msra.mxu0 0.0
    %425 = vmatpush.msra.mxu0 0.0
    %426 = vmatpush.msra.mxu0 0.0
    %427 = vmatpush.msra.mxu0 0.0
    %428 = vmatpush.msra.mxu0 0.0
    %429 = vmatpush.msra.mxu0 0.0
    %430 = vmatpush.msra.mxu0 0.0
    %431 = vmatpush.msra.mxu0 %v389
    %432 = vmatpush.msra.mxu0 %v388
    %433 = vmatpush.msra.mxu0 %v387
    %434 = vmatpush.msra.mxu0 %v386
    %435 = vmatpush.msra.mxu0 %v385
    %436 = vmatpush.msra.mxu0 %v384
    %437 = vmatpush.msra.mxu0 %v383
    %438 = vmatpush.msra.mxu0 %v382
    %439 = vmatmul.f32.gmra.mxu0 %v400
    %v440 = vpop.f32.mrf.mxu0
    %v441 = vadd.f32 0.0, %v440
    %442 = vmatmul.f32.gmra.mxu0 %v403
    %v443 = vpop.f32.mrf.mxu0
    %v444 = vadd.f32 0.0, %v443
    %445 = vmatmul.f32.gmra.mxu0 %v406
    %v446 = vpop.f32.mrf.mxu0
    %v447 = vadd.f32 0.0, %v446
    %448 = vmatmul.f32.gmra.mxu0 %v409
    %v449 = vpop.f32.mrf.mxu0
    %v450 = vadd.f32 0.0, %v449
    %451 = vmatmul.f32.gmra.mxu0 %v412
    %v452 = vpop.f32.mrf.mxu0
    %v453 = vadd.f32 0.0, %v452
    %454 = vmatmul.f32.gmra.mxu0 %v415
    %v455 = vpop.f32.mrf.mxu0
    %v456 = vadd.f32 0.0, %v455
    %457 = vmatmul.f32.gmra.mxu0 %v418
    %v458 = vpop.f32.mrf.mxu0
    %v459 = vadd.f32 0.0, %v458
    %460 = vmatmul.f32.gmra.mxu0 %v421
    %v461 = vpop.f32.mrf.mxu0
    %v462 = vadd.f32 0.0, %v461
    %463 = vdwg.mxu0
    %v464 = vld [vmem:[#allocation8] sm:$0xff]
    %v465 = vld [vmem:[#allocation8 + $0x8] sm:$0xff]
    %s466 = scalar_lea.vmem [#allocation6], 64
    %v467 = vld [vmem:[%s466] sm:$0xff]
    %v468 = vld [vmem:[%s466 + $0x8] sm:$0xff]
    %v469 = vld [vmem:[%s466 + $0x10] sm:$0xff]
    %v470 = vld [vmem:[%s466 + $0x18] sm:$0xff]
    %v471 = vld [vmem:[%s466 + $0x20] sm:$0xff]
    %v472 = vld [vmem:[%s466 + $0x28] sm:$0xff]
    %v473 = vld [vmem:[%s466 + $0x30] sm:$0xff]
    %v474 = vld [vmem:[%s466 + $0x38] sm:$0xff]
    %v476 = vsel %vm398, %v467, 0
    %v479 = vsel %vm398, %v468, 0
    %v482 = vsel %vm398, %v469, 0
    %v485 = vsel %vm398, %v470, 0
    %v488 = vsel %vm398, %v471, 0
    %v491 = vsel %vm398, %v472, 0
    %v494 = vsel %vm398, %v473, 0
    %v497 = vsel %vm398, %v474, 0
    %499 = vmatpush.msra.mxu0 0.0
    %500 = vmatpush.msra.mxu0 0.0
    %501 = vmatpush.msra.mxu0 0.0
    %502 = vmatpush.msra.mxu0 0.0
    %503 = vmatpush.msra.mxu0 0.0
    %504 = vmatpush.msra.mxu0 0.0
    %505 = vmatpush.msra.mxu0 0.0
    %506 = vmatpush.msra.mxu0 0.0
    %507 = vmatpush.msra.mxu0 %v389
    %508 = vmatpush.msra.mxu0 %v388
    %509 = vmatpush.msra.mxu0 %v387
    %510 = vmatpush.msra.mxu0 %v386
    %511 = vmatpush.msra.mxu0 %v385
    %512 = vmatpush.msra.mxu0 %v384
    %513 = vmatpush.msra.mxu0 %v383
    %514 = vmatpush.msra.mxu0 %v382
    %515 = vmatmul.f32.gmra.mxu0 %v476
    %v516 = vpop.f32.mrf.mxu0
    %v517 = vadd.f32 0.0, %v516
    %518 = vmatmul.f32.gmra.mxu0 %v479
    %v519 = vpop.f32.mrf.mxu0
    %v520 = vadd.f32 0.0, %v519
    %521 = vmatmul.f32.gmra.mxu0 %v482
    %v522 = vpop.f32.mrf.mxu0
    %v523 = vadd.f32 0.0, %v522
    %524 = vmatmul.f32.gmra.mxu0 %v485
    %v525 = vpop.f32.mrf.mxu0
    %v526 = vadd.f32 0.0, %v525
    %527 = vmatmul.f32.gmra.mxu0 %v488
    %v528 = vpop.f32.mrf.mxu0
    %v529 = vadd.f32 0.0, %v528
    %530 = vmatmul.f32.gmra.mxu0 %v491
    %v531 = vpop.f32.mrf.mxu0
    %v532 = vadd.f32 0.0, %v531
    %533 = vmatmul.f32.gmra.mxu0 %v494
    %v534 = vpop.f32.mrf.mxu0
    %v535 = vadd.f32 0.0, %v534
    %536 = vmatmul.f32.gmra.mxu0 %v497
    %v537 = vpop.f32.mrf.mxu0
    %v538 = vadd.f32 0.0, %v537
    %539 = vdwg.mxu0
    %s540 = scalar_lea.vmem [#allocation8], 16
    %v541 = vld [vmem:[%s540] sm:$0xff]
    %v542 = vld [vmem:[%s540 + $0x8] sm:$0xff]
    %vm543 = vcmask 130048
    %v545 = vsel %vm543, %v517, 0
    %v548 = vsel %vm543, %v520, 0
    %v551 = vsel %vm543, %v523, 0
    %v554 = vsel %vm543, %v526, 0
    %v557 = vsel %vm543, %v529, 0
    %v560 = vsel %vm543, %v532, 0
    %v563 = vsel %vm543, %v535, 0
    %v566 = vsel %vm543, %v538, 0
    %568 = vmatpush.msra.mxu0 0.0
    %569 = vmatpush.msra.mxu0 0.0
    %570 = vmatpush.msra.mxu0 0.0
    %571 = vmatpush.msra.mxu0 0.0
    %572 = vmatpush.msra.mxu0 0.0
    %573 = vmatpush.msra.mxu0 0.0
    %574 = vmatpush.msra.mxu0 0.0
    %575 = vmatpush.msra.mxu0 0.0
    %576 = vmatpush.msra.mxu0 0.0
    %577 = vmatpush.msra.mxu0 0.0
    %578 = vmatpush.msra.mxu0 0.0
    %579 = vmatpush.msra.mxu0 0.0
    %580 = vmatpush.msra.mxu0 0.0
    %581 = vmatpush.msra.mxu0 0.0
    %582 = vmatpush.msra.mxu0 %v542
    %583 = vmatpush.msra.mxu0 %v541
    %584 = vmatmul.f32.gmra.mxu0 %v545
    %v585 = vpop.f32.mrf.mxu0
    %v586 = vadd.f32 0.0, %v585
    %587 = vmatmul.f32.gmra.mxu0 %v548
    %v588 = vpop.f32.mrf.mxu0
    %v589 = vadd.f32 0.0, %v588
    %590 = vmatmul.f32.gmra.mxu0 %v551
    %v591 = vpop.f32.mrf.mxu0
    %v592 = vadd.f32 0.0, %v591
    %593 = vmatmul.f32.gmra.mxu0 %v554
    %v594 = vpop.f32.mrf.mxu0
    %v595 = vadd.f32 0.0, %v594
    %596 = vmatmul.f32.gmra.mxu0 %v557
    %v597 = vpop.f32.mrf.mxu0
    %v598 = vadd.f32 0.0, %v597
    %599 = vmatmul.f32.gmra.mxu0 %v560
    %v600 = vpop.f32.mrf.mxu0
    %v601 = vadd.f32 0.0, %v600
    %602 = vmatmul.f32.gmra.mxu0 %v563
    %v603 = vpop.f32.mrf.mxu0
    %v604 = vadd.f32 0.0, %v603
    %605 = vmatmul.f32.gmra.mxu0 %v566
    %v606 = vpop.f32.mrf.mxu0
    %v607 = vadd.f32 0.0, %v606
    %608 = vdwg.mxu0
    %v610 = vsel %vm543, %v441, 0
    %v613 = vsel %vm543, %v444, 0
    %v616 = vsel %vm543, %v447, 0
    %v619 = vsel %vm543, %v450, 0
    %v622 = vsel %vm543, %v453, 0
    %v625 = vsel %vm543, %v456, 0
    %v628 = vsel %vm543, %v459, 0
    %v631 = vsel %vm543, %v462, 0
    %633 = vmatpush.msra.mxu0 0.0
    %634 = vmatpush.msra.mxu0 0.0
    %635 = vmatpush.msra.mxu0 0.0
    %636 = vmatpush.msra.mxu0 0.0
    %637 = vmatpush.msra.mxu0 0.0
    %638 = vmatpush.msra.mxu0 0.0
    %639 = vmatpush.msra.mxu0 0.0
    %640 = vmatpush.msra.mxu0 0.0
    %641 = vmatpush.msra.mxu0 0.0
    %642 = vmatpush.msra.mxu0 0.0
    %643 = vmatpush.msra.mxu0 0.0
    %644 = vmatpush.msra.mxu0 0.0
    %645 = vmatpush.msra.mxu0 0.0
    %646 = vmatpush.msra.mxu0 0.0
    %647 = vmatpush.msra.mxu0 %v465
    %648 = vmatpush.msra.mxu0 %v464
    %649 = vmatmul.f32.gmra.mxu0 %v610
    %v650 = vpop.f32.mrf.mxu0
    %v651 = vadd.f32 %v586, %v650
    %652 = vmatmul.f32.gmra.mxu0 %v613
    %v653 = vpop.f32.mrf.mxu0
    %v654 = vadd.f32 %v589, %v653
    %655 = vmatmul.f32.gmra.mxu0 %v616
    %v656 = vpop.f32.mrf.mxu0
    %v657 = vadd.f32 %v592, %v656
    %658 = vmatmul.f32.gmra.mxu0 %v619
    %v659 = vpop.f32.mrf.mxu0
    %v660 = vadd.f32 %v595, %v659
    %661 = vmatmul.f32.gmra.mxu0 %v622
    %v662 = vpop.f32.mrf.mxu0
    %v663 = vadd.f32 %v598, %v662
    %664 = vmatmul.f32.gmra.mxu0 %v625
    %v665 = vpop.f32.mrf.mxu0
    %v666 = vadd.f32 %v601, %v665
    %667 = vmatmul.f32.gmra.mxu0 %v628
    %v668 = vpop.f32.mrf.mxu0
    %v669 = vadd.f32 %v604, %v668
    %670 = vmatmul.f32.gmra.mxu0 %v631
    %v671 = vpop.f32.mrf.mxu0
    %v672 = vadd.f32 %v607, %v671
    %673 = vdwg.mxu0
    %s674 = scalar_lea.vmem [#allocation6], 128
    %v675 = vld [vmem:[%s674] sm:$0xff]
    %v676 = vld [vmem:[%s674 + $0x8] sm:$0xff]
    %v677 = vld [vmem:[%s674 + $0x10] sm:$0xff]
    %v678 = vld [vmem:[%s674 + $0x18] sm:$0xff]
    %v679 = vld [vmem:[%s674 + $0x20] sm:$0xff]
    %v680 = vld [vmem:[%s674 + $0x28] sm:$0xff]
    %v681 = vld [vmem:[%s674 + $0x30] sm:$0xff]
    %v682 = vld [vmem:[%s674 + $0x38] sm:$0xff]
    %v684 = vsel %vm398, %v675, 0
    %v687 = vsel %vm398, %v676, 0
    %v690 = vsel %vm398, %v677, 0
    %v693 = vsel %vm398, %v678, 0
    %v696 = vsel %vm398, %v679, 0
    %v699 = vsel %vm398, %v680, 0
    %v702 = vsel %vm398, %v681, 0
    %v705 = vsel %vm398, %v682, 0
    %707 = vmatpush.msra.mxu0 0.0
    %708 = vmatpush.msra.mxu0 0.0
    %709 = vmatpush.msra.mxu0 0.0
    %710 = vmatpush.msra.mxu0 0.0
    %711 = vmatpush.msra.mxu0 0.0
    %712 = vmatpush.msra.mxu0 0.0
    %713 = vmatpush.msra.mxu0 0.0
    %714 = vmatpush.msra.mxu0 0.0
    %715 = vmatpush.msra.mxu0 %v389
    %716 = vmatpush.msra.mxu0 %v388
    %717 = vmatpush.msra.mxu0 %v387
    %718 = vmatpush.msra.mxu0 %v386
    %719 = vmatpush.msra.mxu0 %v385
    %720 = vmatpush.msra.mxu0 %v384
    %721 = vmatpush.msra.mxu0 %v383
    %722 = vmatpush.msra.mxu0 %v382
    %723 = vmatmul.f32.gmra.mxu0 %v684
    %v724 = vpop.f32.mrf.mxu0
    %v725 = vadd.f32 0.0, %v724
    %726 = vmatmul.f32.gmra.mxu0 %v687
    %v727 = vpop.f32.mrf.mxu0
    %v728 = vadd.f32 0.0, %v727
    %729 = vmatmul.f32.gmra.mxu0 %v690
    %v730 = vpop.f32.mrf.mxu0
    %v731 = vadd.f32 0.0, %v730
    %732 = vmatmul.f32.gmra.mxu0 %v693
    %v733 = vpop.f32.mrf.mxu0
    %v734 = vadd.f32 0.0, %v733
    %735 = vmatmul.f32.gmra.mxu0 %v696
    %v736 = vpop.f32.mrf.mxu0
    %v737 = vadd.f32 0.0, %v736
    %738 = vmatmul.f32.gmra.mxu0 %v699
    %v739 = vpop.f32.mrf.mxu0
    %v740 = vadd.f32 0.0, %v739
    %741 = vmatmul.f32.gmra.mxu0 %v702
    %v742 = vpop.f32.mrf.mxu0
    %v743 = vadd.f32 0.0, %v742
    %744 = vmatmul.f32.gmra.mxu0 %v705
    %v745 = vpop.f32.mrf.mxu0
    %v746 = vadd.f32 0.0, %v745
    %747 = vdwg.mxu0
    %s748 = scalar_lea.vmem [#allocation8], 32
    %v749 = vld [vmem:[%s748] sm:$0xff]
    %v750 = vld [vmem:[%s748 + $0x8] sm:$0xff]
    %v752 = vsel %vm543, %v725, 0
    %v755 = vsel %vm543, %v728, 0
    %v758 = vsel %vm543, %v731, 0
    %v761 = vsel %vm543, %v734, 0
    %v764 = vsel %vm543, %v737, 0
    %v767 = vsel %vm543, %v740, 0
    %v770 = vsel %vm543, %v743, 0
    %v773 = vsel %vm543, %v746, 0
    %775 = vmatpush.msra.mxu0 0.0
    %776 = vmatpush.msra.mxu0 0.0
    %777 = vmatpush.msra.mxu0 0.0
    %778 = vmatpush.msra.mxu0 0.0
    %779 = vmatpush.msra.mxu0 0.0
    %780 = vmatpush.msra.mxu0 0.0
    %781 = vmatpush.msra.mxu0 0.0
    %782 = vmatpush.msra.mxu0 0.0
    %783 = vmatpush.msra.mxu0 0.0
    %784 = vmatpush.msra.mxu0 0.0
    %785 = vmatpush.msra.mxu0 0.0
    %786 = vmatpush.msra.mxu0 0.0
    %787 = vmatpush.msra.mxu0 0.0
    %788 = vmatpush.msra.mxu0 0.0
    %789 = vmatpush.msra.mxu0 %v750
    %790 = vmatpush.msra.mxu0 %v749
    %791 = vmatmul.f32.gmra.mxu0 %v752
    %v792 = vpop.f32.mrf.mxu0
    %v793 = vadd.f32 0.0, %v792
    %794 = vmatmul.f32.gmra.mxu0 %v755
    %v795 = vpop.f32.mrf.mxu0
    %v796 = vadd.f32 0.0, %v795
    %797 = vmatmul.f32.gmra.mxu0 %v758
    %v798 = vpop.f32.mrf.mxu0
    %v799 = vadd.f32 0.0, %v798
    %800 = vmatmul.f32.gmra.mxu0 %v761
    %v801 = vpop.f32.mrf.mxu0
    %v802 = vadd.f32 0.0, %v801
    %803 = vmatmul.f32.gmra.mxu0 %v764
    %v804 = vpop.f32.mrf.mxu0
    %v805 = vadd.f32 0.0, %v804
    %806 = vmatmul.f32.gmra.mxu0 %v767
    %v807 = vpop.f32.mrf.mxu0
    %v808 = vadd.f32 0.0, %v807
    %809 = vmatmul.f32.gmra.mxu0 %v770
    %v810 = vpop.f32.mrf.mxu0
    %v811 = vadd.f32 0.0, %v810
    %812 = vmatmul.f32.gmra.mxu0 %v773
    %v813 = vpop.f32.mrf.mxu0
    %v814 = vadd.f32 0.0, %v813
    %815 = vdwg.mxu0
    %v816 = vadd.f32 %v651, %v793
    %v817 = vadd.f32 %v654, %v796
    %v818 = vadd.f32 %v657, %v799
    %v819 = vadd.f32 %v660, %v802
    %v820 = vadd.f32 %v663, %v805
    %v821 = vadd.f32 %v666, %v808
    %v822 = vadd.f32 %v669, %v811
    %v823 = vadd.f32 %v672, %v814
    %v824 = vld [vmem:[#allocation13] sm:$0x1]
    %v826 = vperm.slane %v824, 0
    %v828 = vadd.f32 %v816, %v826
    %v829 = vadd.f32 %v817, %v826
    %v830 = vadd.f32 %v818, %v826
    %v831 = vadd.f32 %v819, %v826
    %v832 = vadd.f32 %v820, %v826
    %v833 = vadd.f32 %v821, %v826
    %v834 = vadd.f32 %v822, %v826
    %v835 = vadd.f32 %v823, %v826
    %v836 = vmax.f32 %v828, 0.0
    %v837 = vmax.f32 %v829, 0.0
    %v838 = vmax.f32 %v830, 0.0
    %v839 = vmax.f32 %v831, 0.0
    %v840 = vmax.f32 %v832, 0.0
    %v841 = vmax.f32 %v833, 0.0
    %v842 = vmax.f32 %v834, 0.0
    %v843 = vmax.f32 %v835, 0.0
    %v844 = vld [vmem:[#allocation28] sm:$0x3]
    %v846 = vsel %vm398, %v844, 0
    %848 = vmatpush.msra.mxu0 0.0
    %849 = vmatpush.msra.mxu0 0.0
    %850 = vmatpush.msra.mxu0 0.0
    %851 = vmatpush.msra.mxu0 0.0
    %852 = vmatpush.msra.mxu0 0.0
    %853 = vmatpush.msra.mxu0 0.0
    %854 = vmatpush.msra.mxu0 0.0
    %855 = vmatpush.msra.mxu0 0.0
    %856 = vmatpush.msra.mxu0 %v843
    %857 = vmatpush.msra.mxu0 %v842
    %858 = vmatpush.msra.mxu0 %v841
    %859 = vmatpush.msra.mxu0 %v840
    %860 = vmatpush.msra.mxu0 %v839
    %861 = vmatpush.msra.mxu0 %v838
    %862 = vmatpush.msra.mxu0 %v837
    %863 = vmatpush.msra.mxu0 %v836
    %864 = vmatmul.f32.gmra.mxu0 %v846
    %v865 = vpop.f32.mrf.mxu0
    %v866 = vadd.f32 0.0, %v865
    %867 = vdwg.mxu0
    %v868 = vmul.f32 %v836, %v836
    %v869 = vmul.f32 %v837, %v837
    %v870 = vmul.f32 %v838, %v838
    %v871 = vmul.f32 %v839, %v839
    %v872 = vmul.f32 %v840, %v840
    %v873 = vmul.f32 %v841, %v841
    %v874 = vmul.f32 %v842, %v842
    %v875 = vmul.f32 %v843, %v843
    %876 = vmatpush.msra.mxu0 0.0
    %877 = vmatpush.msra.mxu0 0.0
    %878 = vmatpush.msra.mxu0 0.0
    %879 = vmatpush.msra.mxu0 0.0
    %880 = vmatpush.msra.mxu0 0.0
    %881 = vmatpush.msra.mxu0 0.0
    %882 = vmatpush.msra.mxu0 0.0
    %883 = vmatpush.msra.mxu0 0.0
    %884 = vmatpush.msra.mxu0 %v875
    %885 = vmatpush.msra.mxu0 %v874
    %886 = vmatpush.msra.mxu0 %v873
    %887 = vmatpush.msra.mxu0 %v872
    %888 = vmatpush.msra.mxu0 %v871
    %889 = vmatpush.msra.mxu0 %v870
    %890 = vmatpush.msra.mxu0 %v869
    %891 = vmatpush.msra.mxu0 %v868
    %892 = vmatmul.f32.gmra.mxu0 %v846
    %v893 = vpop.f32.mrf.mxu0
    %v894 = vadd.f32 0.0, %v893
    %895 = vdwg.mxu0
    %v896 = vld [vmem:[%s14] sm:$0xff]
    %v897 = vld [vmem:[%s14 + $0x8] sm:$0xff]
    %v898 = vld [vmem:[%s14 + $0x10] sm:$0xff]
    %v899 = vld [vmem:[%s14 + $0x18] sm:$0xff]
    %v900 = vld [vmem:[%s14 + $0x20] sm:$0xff]
    %v901 = vld [vmem:[%s14 + $0x28] sm:$0xff]
    %v902 = vld [vmem:[%s14 + $0x30] sm:$0xff]
    %v903 = vld [vmem:[%s14 + $0x38] sm:$0xff]
    %v904 = vld [vmem:[%s14 + $0x40] sm:$0xff]
    %v905 = vld [vmem:[%s14 + $0x48] sm:$0xff]
    %v906 = vld [vmem:[%s14 + $0x50] sm:$0xff]
    %v907 = vld [vmem:[%s14 + $0x58] sm:$0xff]
    %v908 = vld [vmem:[%s14 + $0x60] sm:$0xff]
    %v909 = vld [vmem:[%s14 + $0x68] sm:$0xff]
    %v910 = vld [vmem:[%s14 + $0x70] sm:$0xff]
    %v911 = vld [vmem:[%s14 + $0x78] sm:$0xff]
    %912 = vmatpush.msra.mxu0 %v911
    %913 = vmatpush.msra.mxu0 %v910
    %914 = vmatpush.msra.mxu0 %v909
    %915 = vmatpush.msra.mxu0 %v908
    %916 = vmatpush.msra.mxu0 %v907
    %917 = vmatpush.msra.mxu0 %v906
    %918 = vmatpush.msra.mxu0 %v905
    %919 = vmatpush.msra.mxu0 %v904
    %920 = vmatpush.msra.mxu0 %v903
    %921 = vmatpush.msra.mxu0 %v902
    %922 = vmatpush.msra.mxu0 %v901
    %923 = vmatpush.msra.mxu0 %v900
    %924 = vmatpush.msra.mxu0 %v899
    %925 = vmatpush.msra.mxu0 %v898
    %926 = vmatpush.msra.mxu0 %v897
    %927 = vmatpush.msra.mxu0 %v896
    %928 = vmatmul.f32.gmra.mxu0 %v866
    %v929 = vpop.f32.mrf.mxu0
    %v930 = vadd.f32 0.0, %v929
    %931 = vdwg.mxu0
    %v932 = vmul.f32 %v930, 0.001953125
    %933 = vmatpush.msra.mxu0 %v911
    %934 = vmatpush.msra.mxu0 %v910
    %935 = vmatpush.msra.mxu0 %v909
    %936 = vmatpush.msra.mxu0 %v908
    %937 = vmatpush.msra.mxu0 %v907
    %938 = vmatpush.msra.mxu0 %v906
    %939 = vmatpush.msra.mxu0 %v905
    %940 = vmatpush.msra.mxu0 %v904
    %941 = vmatpush.msra.mxu0 %v903
    %942 = vmatpush.msra.mxu0 %v902
    %943 = vmatpush.msra.mxu0 %v901
    %944 = vmatpush.msra.mxu0 %v900
    %945 = vmatpush.msra.mxu0 %v899
    %946 = vmatpush.msra.mxu0 %v898
    %947 = vmatpush.msra.mxu0 %v897
    %948 = vmatpush.msra.mxu0 %v896
    %949 = vmatmul.f32.gmra.mxu0 %v894
    %v950 = vpop.f32.mrf.mxu0
    %v951 = vadd.f32 0.0, %v950
    %952 = vdwg.mxu0
    %v953 = vmul.f32 %v951, 0.001953125
    %v954 = vmul.f32 %v932, %v932
    %v955 = vsub.f32 %v953, %v954
    %v956 = vmax.f32 %v955, 0.0
    %v957 = vld [vmem:[#allocation17] sm:$0x1]
    %v958 = vadd.f32 %v956, 1e-05
    %v959 = vrsqrt.pop %v958
    %v960 = vmul.f32 %v959, %v958
    %v961 = vmul.f32 %v960, %v959
    %v962 = vmul.f32 0.5, %v961
    %v963 = vsub.f32 1.5, %v962
    %v964 = vmul.f32 %v959, %v963
    %vm965 = vweird.f32 %v958
    %vm966 = vweird.f32 %v959
    %vm967 = vmor %vm965, %vm966
    %v968 = vsel %vm967, %v959, %v964
    %v970 = vperm.slane %v957, 0
    %v972 = vmul.f32 %v970, %v968
    %v973 = vld [vmem:[#allocation19] sm:$0x1]
    %v974 = vmul.f32 %v932, %v972
    %v976 = vperm.slane %v973, 0
    %v978 = vsub.f32 %v976, %v974
    %v979 = vld [vmem:[%s17] sm:$0xff]
    %v980 = vld [vmem:[%s17 + $0x8] sm:$0xff]
    %v981 = vld [vmem:[%s17 + $0x10] sm:$0xff]
    %v982 = vld [vmem:[%s17 + $0x18] sm:$0xff]
    %v983 = vld [vmem:[%s17 + $0x20] sm:$0xff]
    %v984 = vld [vmem:[%s17 + $0x28] sm:$0xff]
    %v985 = vld [vmem:[%s17 + $0x30] sm:$0xff]
    %v986 = vld [vmem:[%s17 + $0x38] sm:$0xff]
    %v987 = vld [vmem:[#allocation26] sm:$0xff]
    %vm988 = vcmask 64512
    %v990 = vsel %vm988, %v972, 0
    %992 = vmatpush.msra.mxu0 0.0
    %993 = vmatpush.msra.mxu0 0.0
    %994 = vmatpush.msra.mxu0 0.0
    %995 = vmatpush.msra.mxu0 0.0
    %996 = vmatpush.msra.mxu0 0.0
    %997 = vmatpush.msra.mxu0 0.0
    %998 = vmatpush.msra.mxu0 0.0
    %999 = vmatpush.msra.mxu0 0.0
    %1000 = vmatpush.msra.mxu0 0.0
    %1001 = vmatpush.msra.mxu0 0.0
    %1002 = vmatpush.msra.mxu0 0.0
    %1003 = vmatpush.msra.mxu0 0.0
    %1004 = vmatpush.msra.mxu0 0.0
    %1005 = vmatpush.msra.mxu0 0.0
    %1006 = vmatpush.msra.mxu0 0.0
    %1007 = vmatpush.msra.mxu0 %v987
    %1008 = vmatmul.f32.gmra.mxu0 %v990
    %v1009 = vpop.f32.mrf.mxu0
    %v1010 = vadd.f32 0.0, %v1009
    %1011 = vdwg.mxu0
    %vm1012 = vcmask 15360
    %v1014 = vsel %vm1012, %v979, 0
    %v1017 = vsel %vm1012, %v980, 0
    %v1020 = vsel %vm1012, %v981, 0
    %v1023 = vsel %vm1012, %v982, 0
    %v1026 = vsel %vm1012, %v983, 0
    %v1029 = vsel %vm1012, %v984, 0
    %v1032 = vsel %vm1012, %v985, 0
    %v1035 = vsel %vm1012, %v986, 0
    %vm1037 = vcmask 1041408
    %v1039 = vsel %vm1037, %v1010, 0
    %1041 = vmatpush.msra.mxu0 0.0
    %1042 = vmatpush.msra.mxu0 0.0
    %1043 = vmatpush.msra.mxu0 0.0
    %1044 = vmatpush.msra.mxu0 0.0
    %1045 = vmatpush.msra.mxu0 0.0
    %1046 = vmatpush.msra.mxu0 0.0
    %1047 = vmatpush.msra.mxu0 0.0
    %1048 = vmatpush.msra.mxu0 0.0
    %1049 = vmatpush.msra.mxu0 0.0
    %1050 = vmatpush.msra.mxu0 0.0
    %1051 = vmatpush.msra.mxu0 0.0
    %1052 = vmatpush.msra.mxu0 0.0
    %1053 = vmatpush.msra.mxu0 0.0
    %1054 = vmatpush.msra.mxu0 0.0
    %1055 = vmatpush.msra.mxu0 0.0
    %1056 = vmatpush.msra.mxu0 %v1039
    %1057 = vmatmul.f32.gmra.mxu0 %v1014
    %v1058 = vpop.f32.mrf.mxu0
    %v1059 = vadd.f32 0.0, %v1058
    %1060 = vmatmul.f32.gmra.mxu0 %v1017
    %v1061 = vpop.f32.mrf.mxu0
    %v1062 = vadd.f32 0.0, %v1061
    %1063 = vmatmul.f32.gmra.mxu0 %v1020
    %v1064 = vpop.f32.mrf.mxu0
    %v1065 = vadd.f32 0.0, %v1064
    %1066 = vmatmul.f32.gmra.mxu0 %v1023
    %v1067 = vpop.f32.mrf.mxu0
    %v1068 = vadd.f32 0.0, %v1067
    %1069 = vmatmul.f32.gmra.mxu0 %v1026
    %v1070 = vpop.f32.mrf.mxu0
    %v1071 = vadd.f32 0.0, %v1070
    %1072 = vmatmul.f32.gmra.mxu0 %v1029
    %v1073 = vpop.f32.mrf.mxu0
    %v1074 = vadd.f32 0.0, %v1073
    %1075 = vmatmul.f32.gmra.mxu0 %v1032
    %v1076 = vpop.f32.mrf.mxu0
    %v1077 = vadd.f32 0.0, %v1076
    %1078 = vmatmul.f32.gmra.mxu0 %v1035
    %v1079 = vpop.f32.mrf.mxu0
    %v1080 = vadd.f32 0.0, %v1079
    %1081 = vdwg.mxu0
    %v1083 = vsel %vm988, %v978, 0
    %1085 = vmatpush.msra.mxu0 0.0
    %1086 = vmatpush.msra.mxu0 0.0
    %1087 = vmatpush.msra.mxu0 0.0
    %1088 = vmatpush.msra.mxu0 0.0
    %1089 = vmatpush.msra.mxu0 0.0
    %1090 = vmatpush.msra.mxu0 0.0
    %1091 = vmatpush.msra.mxu0 0.0
    %1092 = vmatpush.msra.mxu0 0.0
    %1093 = vmatpush.msra.mxu0 0.0
    %1094 = vmatpush.msra.mxu0 0.0
    %1095 = vmatpush.msra.mxu0 0.0
    %1096 = vmatpush.msra.mxu0 0.0
    %1097 = vmatpush.msra.mxu0 0.0
    %1098 = vmatpush.msra.mxu0 0.0
    %1099 = vmatpush.msra.mxu0 0.0
    %1100 = vmatpush.msra.mxu0 %v987
    %1101 = vmatmul.f32.gmra.mxu0 %v1083
    %v1102 = vpop.f32.mrf.mxu0
    %v1103 = vadd.f32 0.0, %v1102
    %1104 = vdwg.mxu0
    %v1106 = vsel %vm1037, %v1103, 0
    %1108 = vmatpush.msra.mxu0 0.0
    %1109 = vmatpush.msra.mxu0 0.0
    %1110 = vmatpush.msra.mxu0 0.0
    %1111 = vmatpush.msra.mxu0 0.0
    %1112 = vmatpush.msra.mxu0 0.0
    %1113 = vmatpush.msra.mxu0 0.0
    %1114 = vmatpush.msra.mxu0 0.0
    %1115 = vmatpush.msra.mxu0 0.0
    %1116 = vmatpush.msra.mxu0 0.0
    %1117 = vmatpush.msra.mxu0 0.0
    %1118 = vmatpush.msra.mxu0 0.0
    %1119 = vmatpush.msra.mxu0 0.0
    %1120 = vmatpush.msra.mxu0 0.0
    %1121 = vmatpush.msra.mxu0 0.0
    %1122 = vmatpush.msra.mxu0 0.0
    %1123 = vmatpush.msra.mxu0 %v1106
    %1124 = vmatmul.f32.gmra.mxu0 %v1014
    %v1125 = vpop.f32.mrf.mxu0
    %v1126 = vadd.f32 0.0, %v1125
    %1127 = vmatmul.f32.gmra.mxu0 %v1017
    %v1128 = vpop.f32.mrf.mxu0
    %v1129 = vadd.f32 0.0, %v1128
    %1130 = vmatmul.f32.gmra.mxu0 %v1020
    %v1131 = vpop.f32.mrf.mxu0
    %v1132 = vadd.f32 0.0, %v1131
    %1133 = vmatmul.f32.gmra.mxu0 %v1023
    %v1134 = vpop.f32.mrf.mxu0
    %v1135 = vadd.f32 0.0, %v1134
    %1136 = vmatmul.f32.gmra.mxu0 %v1026
    %v1137 = vpop.f32.mrf.mxu0
    %v1138 = vadd.f32 0.0, %v1137
    %1139 = vmatmul.f32.gmra.mxu0 %v1029
    %v1140 = vpop.f32.mrf.mxu0
    %v1141 = vadd.f32 0.0, %v1140
    %1142 = vmatmul.f32.gmra.mxu0 %v1032
    %v1143 = vpop.f32.mrf.mxu0
    %v1144 = vadd.f32 0.0, %v1143
    %1145 = vmatmul.f32.gmra.mxu0 %v1035
    %v1146 = vpop.f32.mrf.mxu0
    %v1147 = vadd.f32 0.0, %v1146
    %1148 = vdwg.mxu0
    %v1149 = vmul.f32 %v836, %v1059
    %v1150 = vmul.f32 %v837, %v1062
    %v1151 = vmul.f32 %v838, %v1065
    %v1152 = vmul.f32 %v839, %v1068
    %v1153 = vmul.f32 %v840, %v1071
    %v1154 = vmul.f32 %v841, %v1074
    %v1155 = vmul.f32 %v842, %v1077
    %v1156 = vmul.f32 %v843, %v1080
    %v1157 = vadd.f32 %v1149, %v1126
    %v1158 = vadd.f32 %v1150, %v1129
    %v1159 = vadd.f32 %v1151, %v1132
    %v1160 = vadd.f32 %v1152, %v1135
    %v1161 = vadd.f32 %v1153, %v1138
    %v1162 = vadd.f32 %v1154, %v1141
    %v1163 = vadd.f32 %v1155, %v1144
    %v1164 = vadd.f32 %v1156, %v1147
    %1165 = vmatpush.msra.mxu0 0.0
    %1166 = vmatpush.msra.mxu0 0.0
    %1167 = vmatpush.msra.mxu0 0.0
    %1168 = vmatpush.msra.mxu0 0.0
    %1169 = vmatpush.msra.mxu0 0.0
    %1170 = vmatpush.msra.mxu0 0.0
    %1171 = vmatpush.msra.mxu0 0.0
    %1172 = vmatpush.msra.mxu0 0.0
    %1173 = vmatpush.msra.mxu0 %v1164
    %1174 = vmatpush.msra.mxu0 %v1163
    %1175 = vmatpush.msra.mxu0 %v1162
    %1176 = vmatpush.msra.mxu0 %v1161
    %1177 = vmatpush.msra.mxu0 %v1160
    %1178 = vmatpush.msra.mxu0 %v1159
    %1179 = vmatpush.msra.mxu0 %v1158
    %1180 = vmatpush.msra.mxu0 %v1157
    %1181 = vmatmul.f32.gmra.mxu0 %v400
    %v1182 = vpop.f32.mrf.mxu0
    %v1183 = vadd.f32 0.0, %v1182
    %1184 = vmatmul.f32.gmra.mxu0 %v403
    %v1185 = vpop.f32.mrf.mxu0
    %v1186 = vadd.f32 0.0, %v1185
    %1187 = vmatmul.f32.gmra.mxu0 %v406
    %v1188 = vpop.f32.mrf.mxu0
    %v1189 = vadd.f32 0.0, %v1188
    %1190 = vmatmul.f32.gmra.mxu0 %v409
    %v1191 = vpop.f32.mrf.mxu0
    %v1192 = vadd.f32 0.0, %v1191
    %1193 = vmatmul.f32.gmra.mxu0 %v412
    %v1194 = vpop.f32.mrf.mxu0
    %v1195 = vadd.f32 0.0, %v1194
    %1196 = vmatmul.f32.gmra.mxu0 %v415
    %v1197 = vpop.f32.mrf.mxu0
    %v1198 = vadd.f32 0.0, %v1197
    %1199 = vmatmul.f32.gmra.mxu0 %v418
    %v1200 = vpop.f32.mrf.mxu0
    %v1201 = vadd.f32 0.0, %v1200
    %1202 = vmatmul.f32.gmra.mxu0 %v421
    %v1203 = vpop.f32.mrf.mxu0
    %v1204 = vadd.f32 0.0, %v1203
    %1205 = vdwg.mxu0
    %v1206 = vld [vmem:[#allocation10] sm:$0xff]
    %v1207 = vld [vmem:[#allocation10 + $0x8] sm:$0xff]
    %v1208 = vld [vmem:[#allocation10 + $0x10] sm:$0xff]
    %v1209 = vld [vmem:[#allocation10 + $0x18] sm:$0xff]
    %v1210 = vld [vmem:[#allocation10 + $0x20] sm:$0xff]
    %v1211 = vld [vmem:[#allocation10 + $0x28] sm:$0xff]
    %v1212 = vld [vmem:[#allocation10 + $0x30] sm:$0xff]
    %v1213 = vld [vmem:[#allocation10 + $0x38] sm:$0xff]
    %v1214 = vld [vmem:[#allocation10 + $0x40] sm:$0xff]
    %v1215 = vld [vmem:[#allocation10 + $0x48] sm:$0xff]
    %v1216 = vld [vmem:[#allocation10 + $0x50] sm:$0xff]
    %v1217 = vld [vmem:[#allocation10 + $0x58] sm:$0xff]
    %v1218 = vld [vmem:[#allocation10 + $0x60] sm:$0xff]
    %v1219 = vld [vmem:[#allocation10 + $0x68] sm:$0xff]
    %v1220 = vld [vmem:[#allocation10 + $0x70] sm:$0xff]
    %v1221 = vld [vmem:[#allocation10 + $0x78] sm:$0xff]
    %1222 = vmatpush.msra.mxu0 0.0
    %1223 = vmatpush.msra.mxu0 0.0
    %1224 = vmatpush.msra.mxu0 0.0
    %1225 = vmatpush.msra.mxu0 0.0
    %1226 = vmatpush.msra.mxu0 0.0
    %1227 = vmatpush.msra.mxu0 0.0
    %1228 = vmatpush.msra.mxu0 0.0
    %1229 = vmatpush.msra.mxu0 0.0
    %1230 = vmatpush.msra.mxu0 %v1164
    %1231 = vmatpush.msra.mxu0 %v1163
    %1232 = vmatpush.msra.mxu0 %v1162
    %1233 = vmatpush.msra.mxu0 %v1161
    %1234 = vmatpush.msra.mxu0 %v1160
    %1235 = vmatpush.msra.mxu0 %v1159
    %1236 = vmatpush.msra.mxu0 %v1158
    %1237 = vmatpush.msra.mxu0 %v1157
    %1238 = vmatmul.f32.gmra.mxu0 %v476
    %v1239 = vpop.f32.mrf.mxu0
    %v1240 = vadd.f32 0.0, %v1239
    %1241 = vmatmul.f32.gmra.mxu0 %v479
    %v1242 = vpop.f32.mrf.mxu0
    %v1243 = vadd.f32 0.0, %v1242
    %1244 = vmatmul.f32.gmra.mxu0 %v482
    %v1245 = vpop.f32.mrf.mxu0
    %v1246 = vadd.f32 0.0, %v1245
    %1247 = vmatmul.f32.gmra.mxu0 %v485
    %v1248 = vpop.f32.mrf.mxu0
    %v1249 = vadd.f32 0.0, %v1248
    %1250 = vmatmul.f32.gmra.mxu0 %v488
    %v1251 = vpop.f32.mrf.mxu0
    %v1252 = vadd.f32 0.0, %v1251
    %1253 = vmatmul.f32.gmra.mxu0 %v491
    %v1254 = vpop.f32.mrf.mxu0
    %v1255 = vadd.f32 0.0, %v1254
    %1256 = vmatmul.f32.gmra.mxu0 %v494
    %v1257 = vpop.f32.mrf.mxu0
    %v1258 = vadd.f32 0.0, %v1257
    %1259 = vmatmul.f32.gmra.mxu0 %v497
    %v1260 = vpop.f32.mrf.mxu0
    %v1261 = vadd.f32 0.0, %v1260
    %1262 = vdwg.mxu0
    %s1263 = scalar_lea.vmem [#allocation10], 128
    %v1264 = vld [vmem:[%s1263] sm:$0xff]
    %v1265 = vld [vmem:[%s1263 + $0x8] sm:$0xff]
    %v1266 = vld [vmem:[%s1263 + $0x10] sm:$0xff]
    %v1267 = vld [vmem:[%s1263 + $0x18] sm:$0xff]
    %v1268 = vld [vmem:[%s1263 + $0x20] sm:$0xff]
    %v1269 = vld [vmem:[%s1263 + $0x28] sm:$0xff]
    %v1270 = vld [vmem:[%s1263 + $0x30] sm:$0xff]
    %v1271 = vld [vmem:[%s1263 + $0x38] sm:$0xff]
    %v1272 = vld [vmem:[%s1263 + $0x40] sm:$0xff]
    %v1273 = vld [vmem:[%s1263 + $0x48] sm:$0xff]
    %v1274 = vld [vmem:[%s1263 + $0x50] sm:$0xff]
    %v1275 = vld [vmem:[%s1263 + $0x58] sm:$0xff]
    %v1276 = vld [vmem:[%s1263 + $0x60] sm:$0xff]
    %v1277 = vld [vmem:[%s1263 + $0x68] sm:$0xff]
    %v1278 = vld [vmem:[%s1263 + $0x70] sm:$0xff]
    %v1279 = vld [vmem:[%s1263 + $0x78] sm:$0xff]
    %1280 = vmatpush.msra.mxu0 %v1279
    %1281 = vmatpush.msra.mxu0 %v1278
    %1282 = vmatpush.msra.mxu0 %v1277
    %1283 = vmatpush.msra.mxu0 %v1276
    %1284 = vmatpush.msra.mxu0 %v1275
    %1285 = vmatpush.msra.mxu0 %v1274
    %1286 = vmatpush.msra.mxu0 %v1273
    %1287 = vmatpush.msra.mxu0 %v1272
    %1288 = vmatpush.msra.mxu0 %v1271
    %1289 = vmatpush.msra.mxu0 %v1270
    %1290 = vmatpush.msra.mxu0 %v1269
    %1291 = vmatpush.msra.mxu0 %v1268
    %1292 = vmatpush.msra.mxu0 %v1267
    %1293 = vmatpush.msra.mxu0 %v1266
    %1294 = vmatpush.msra.mxu0 %v1265
    %1295 = vmatpush.msra.mxu0 %v1264
    %1296 = vmatmul.f32.gmra.mxu0 %v1240
    %v1297 = vpop.f32.mrf.mxu0
    %v1298 = vadd.f32 0.0, %v1297
    %1299 = vmatmul.f32.gmra.mxu0 %v1243
    %v1300 = vpop.f32.mrf.mxu0
    %v1301 = vadd.f32 0.0, %v1300
    %1302 = vmatmul.f32.gmra.mxu0 %v1246
    %v1303 = vpop.f32.mrf.mxu0
    %v1304 = vadd.f32 0.0, %v1303
    %1305 = vmatmul.f32.gmra.mxu0 %v1249
    %v1306 = vpop.f32.mrf.mxu0
    %v1307 = vadd.f32 0.0, %v1306
    %1308 = vmatmul.f32.gmra.mxu0 %v1252
    %v1309 = vpop.f32.mrf.mxu0
    %v1310 = vadd.f32 0.0, %v1309
    %1311 = vmatmul.f32.gmra.mxu0 %v1255
    %v1312 = vpop.f32.mrf.mxu0
    %v1313 = vadd.f32 0.0, %v1312
    %1314 = vmatmul.f32.gmra.mxu0 %v1258
    %v1315 = vpop.f32.mrf.mxu0
    %v1316 = vadd.f32 0.0, %v1315
    %1317 = vmatmul.f32.gmra.mxu0 %v1261
    %v1318 = vpop.f32.mrf.mxu0
    %v1319 = vadd.f32 0.0, %v1318
    %1320 = vdwg.mxu0
    %1321 = vmatpush.msra.mxu0 %v1221
    %1322 = vmatpush.msra.mxu0 %v1220
    %1323 = vmatpush.msra.mxu0 %v1219
    %1324 = vmatpush.msra.mxu0 %v1218
    %1325 = vmatpush.msra.mxu0 %v1217
    %1326 = vmatpush.msra.mxu0 %v1216
    %1327 = vmatpush.msra.mxu0 %v1215
    %1328 = vmatpush.msra.mxu0 %v1214
    %1329 = vmatpush.msra.mxu0 %v1213
    %1330 = vmatpush.msra.mxu0 %v1212
    %1331 = vmatpush.msra.mxu0 %v1211
    %1332 = vmatpush.msra.mxu0 %v1210
    %1333 = vmatpush.msra.mxu0 %v1209
    %1334 = vmatpush.msra.mxu0 %v1208
    %1335 = vmatpush.msra.mxu0 %v1207
    %1336 = vmatpush.msra.mxu0 %v1206
    %1337 = vmatmul.f32.gmra.mxu0 %v1183
    %v1338 = vpop.f32.mrf.mxu0
    %v1339 = vadd.f32 %v1298, %v1338
    %1340 = vmatmul.f32.gmra.mxu0 %v1186
    %v1341 = vpop.f32.mrf.mxu0
    %v1342 = vadd.f32 %v1301, %v1341
    %1343 = vmatmul.f32.gmra.mxu0 %v1189
    %v1344 = vpop.f32.mrf.mxu0
    %v1345 = vadd.f32 %v1304, %v1344
    %1346 = vmatmul.f32.gmra.mxu0 %v1192
    %v1347 = vpop.f32.mrf.mxu0
    %v1348 = vadd.f32 %v1307, %v1347
    %1349 = vmatmul.f32.gmra.mxu0 %v1195
    %v1350 = vpop.f32.mrf.mxu0
    %v1351 = vadd.f32 %v1310, %v1350
    %1352 = vmatmul.f32.gmra.mxu0 %v1198
    %v1353 = vpop.f32.mrf.mxu0
    %v1354 = vadd.f32 %v1313, %v1353
    %1355 = vmatmul.f32.gmra.mxu0 %v1201
    %v1356 = vpop.f32.mrf.mxu0
    %v1357 = vadd.f32 %v1316, %v1356
    %1358 = vmatmul.f32.gmra.mxu0 %v1204
    %v1359 = vpop.f32.mrf.mxu0
    %v1360 = vadd.f32 %v1319, %v1359
    %1361 = vdwg.mxu0
    %1362 = vmatpush.msra.mxu0 0.0
    %1363 = vmatpush.msra.mxu0 0.0
    %1364 = vmatpush.msra.mxu0 0.0
    %1365 = vmatpush.msra.mxu0 0.0
    %1366 = vmatpush.msra.mxu0 0.0
    %1367 = vmatpush.msra.mxu0 0.0
    %1368 = vmatpush.msra.mxu0 0.0
    %1369 = vmatpush.msra.mxu0 0.0
    %1370 = vmatpush.msra.mxu0 %v1164
    %1371 = vmatpush.msra.mxu0 %v1163
    %1372 = vmatpush.msra.mxu0 %v1162
    %1373 = vmatpush.msra.mxu0 %v1161
    %1374 = vmatpush.msra.mxu0 %v1160
    %1375 = vmatpush.msra.mxu0 %v1159
    %1376 = vmatpush.msra.mxu0 %v1158
    %1377 = vmatpush.msra.mxu0 %v1157
    %1378 = vmatmul.f32.gmra.mxu0 %v684
    %v1379 = vpop.f32.mrf.mxu0
    %v1380 = vadd.f32 0.0, %v1379
    %1381 = vmatmul.f32.gmra.mxu0 %v687
    %v1382 = vpop.f32.mrf.mxu0
    %v1383 = vadd.f32 0.0, %v1382
    %1384 = vmatmul.f32.gmra.mxu0 %v690
    %v1385 = vpop.f32.mrf.mxu0
    %v1386 = vadd.f32 0.0, %v1385
    %1387 = vmatmul.f32.gmra.mxu0 %v693
    %v1388 = vpop.f32.mrf.mxu0
    %v1389 = vadd.f32 0.0, %v1388
    %1390 = vmatmul.f32.gmra.mxu0 %v696
    %v1391 = vpop.f32.mrf.mxu0
    %v1392 = vadd.f32 0.0, %v1391
    %1393 = vmatmul.f32.gmra.mxu0 %v699
    %v1394 = vpop.f32.mrf.mxu0
    %v1395 = vadd.f32 0.0, %v1394
    %1396 = vmatmul.f32.gmra.mxu0 %v702
    %v1397 = vpop.f32.mrf.mxu0
    %v1398 = vadd.f32 0.0, %v1397
    %1399 = vmatmul.f32.gmra.mxu0 %v705
    %v1400 = vpop.f32.mrf.mxu0
    %v1401 = vadd.f32 0.0, %v1400
    %1402 = vdwg.mxu0
    %s1403 = scalar_lea.vmem [#allocation10], 256
    %v1404 = vld [vmem:[%s1403] sm:$0xff]
    %v1405 = vld [vmem:[%s1403 + $0x8] sm:$0xff]
    %v1406 = vld [vmem:[%s1403 + $0x10] sm:$0xff]
    %v1407 = vld [vmem:[%s1403 + $0x18] sm:$0xff]
    %v1408 = vld [vmem:[%s1403 + $0x20] sm:$0xff]
    %v1409 = vld [vmem:[%s1403 + $0x28] sm:$0xff]
    %v1410 = vld [vmem:[%s1403 + $0x30] sm:$0xff]
    %v1411 = vld [vmem:[%s1403 + $0x38] sm:$0xff]
    %v1412 = vld [vmem:[%s1403 + $0x40] sm:$0xff]
    %v1413 = vld [vmem:[%s1403 + $0x48] sm:$0xff]
    %v1414 = vld [vmem:[%s1403 + $0x50] sm:$0xff]
    %v1415 = vld [vmem:[%s1403 + $0x58] sm:$0xff]
    %v1416 = vld [vmem:[%s1403 + $0x60] sm:$0xff]
    %v1417 = vld [vmem:[%s1403 + $0x68] sm:$0xff]
    %v1418 = vld [vmem:[%s1403 + $0x70] sm:$0xff]
    %v1419 = vld [vmem:[%s1403 + $0x78] sm:$0xff]
    %1420 = vmatpush.msra.mxu0 %v1419
    %1421 = vmatpush.msra.mxu0 %v1418
    %1422 = vmatpush.msra.mxu0 %v1417
    %1423 = vmatpush.msra.mxu0 %v1416
    %1424 = vmatpush.msra.mxu0 %v1415
    %1425 = vmatpush.msra.mxu0 %v1414
    %1426 = vmatpush.msra.mxu0 %v1413
    %1427 = vmatpush.msra.mxu0 %v1412
    %1428 = vmatpush.msra.mxu0 %v1411
    %1429 = vmatpush.msra.mxu0 %v1410
    %1430 = vmatpush.msra.mxu0 %v1409
    %1431 = vmatpush.msra.mxu0 %v1408
    %1432 = vmatpush.msra.mxu0 %v1407
    %1433 = vmatpush.msra.mxu0 %v1406
    %1434 = vmatpush.msra.mxu0 %v1405
    %1435 = vmatpush.msra.mxu0 %v1404
    %1436 = vmatmul.f32.gmra.mxu0 %v1380
    %v1437 = vpop.f32.mrf.mxu0
    %v1438 = vadd.f32 0.0, %v1437
    %1439 = vmatmul.f32.gmra.mxu0 %v1383
    %v1440 = vpop.f32.mrf.mxu0
    %v1441 = vadd.f32 0.0, %v1440
    %1442 = vmatmul.f32.gmra.mxu0 %v1386
    %v1443 = vpop.f32.mrf.mxu0
    %v1444 = vadd.f32 0.0, %v1443
    %1445 = vmatmul.f32.gmra.mxu0 %v1389
    %v1446 = vpop.f32.mrf.mxu0
    %v1447 = vadd.f32 0.0, %v1446
    %1448 = vmatmul.f32.gmra.mxu0 %v1392
    %v1449 = vpop.f32.mrf.mxu0
    %v1450 = vadd.f32 0.0, %v1449
    %1451 = vmatmul.f32.gmra.mxu0 %v1395
    %v1452 = vpop.f32.mrf.mxu0
    %v1453 = vadd.f32 0.0, %v1452
    %1454 = vmatmul.f32.gmra.mxu0 %v1398
    %v1455 = vpop.f32.mrf.mxu0
    %v1456 = vadd.f32 0.0, %v1455
    %1457 = vmatmul.f32.gmra.mxu0 %v1401
    %v1458 = vpop.f32.mrf.mxu0
    %v1459 = vadd.f32 0.0, %v1458
    %1460 = vdwg.mxu0
    %v1461 = vadd.f32 %v1339, %v1438
    %v1462 = vadd.f32 %v1342, %v1441
    %v1463 = vadd.f32 %v1345, %v1444
    %v1464 = vadd.f32 %v1348, %v1447
    %v1465 = vadd.f32 %v1351, %v1450
    %v1466 = vadd.f32 %v1354, %v1453
    %v1467 = vadd.f32 %v1357, %v1456
    %v1468 = vadd.f32 %v1360, %v1459
    %v1469 = vld [vmem:[#allocation14] sm:$0x1]
    %v1471 = vperm.slane %v1469, 0
    %v1473 = vadd.f32 %v1461, %v1471
    %v1474 = vadd.f32 %v1462, %v1471
    %v1475 = vadd.f32 %v1463, %v1471
    %v1476 = vadd.f32 %v1464, %v1471
    %v1477 = vadd.f32 %v1465, %v1471
    %v1478 = vadd.f32 %v1466, %v1471
    %v1479 = vadd.f32 %v1467, %v1471
    %v1480 = vadd.f32 %v1468, %v1471
    %v1481 = vmax.f32 %v1473, 0.0
    %v1482 = vmax.f32 %v1474, 0.0
    %v1483 = vmax.f32 %v1475, 0.0
    %v1484 = vmax.f32 %v1476, 0.0
    %v1485 = vmax.f32 %v1477, 0.0
    %v1486 = vmax.f32 %v1478, 0.0
    %v1487 = vmax.f32 %v1479, 0.0
    %v1488 = vmax.f32 %v1480, 0.0
    %1489 = vmatpush.msra.mxu0 0.0
    %1490 = vmatpush.msra.mxu0 0.0
    %1491 = vmatpush.msra.mxu0 0.0
    %1492 = vmatpush.msra.mxu0 0.0
    %1493 = vmatpush.msra.mxu0 0.0
    %1494 = vmatpush.msra.mxu0 0.0
    %1495 = vmatpush.msra.mxu0 0.0
    %1496 = vmatpush.msra.mxu0 0.0
    %1497 = vmatpush.msra.mxu0 %v1488
    %1498 = vmatpush.msra.mxu0 %v1487
    %1499 = vmatpush.msra.mxu0 %v1486
    %1500 = vmatpush.msra.mxu0 %v1485
    %1501 = vmatpush.msra.mxu0 %v1484
    %1502 = vmatpush.msra.mxu0 %v1483
    %1503 = vmatpush.msra.mxu0 %v1482
    %1504 = vmatpush.msra.mxu0 %v1481
    %1505 = vmatmul.f32.gmra.mxu0 %v846
    %v1506 = vpop.f32.mrf.mxu0
    %v1507 = vadd.f32 0.0, %v1506
    %1508 = vdwg.mxu0
    %v1509 = vmul.f32 %v1481, %v1481
    %v1510 = vmul.f32 %v1482, %v1482
    %v1511 = vmul.f32 %v1483, %v1483
    %v1512 = vmul.f32 %v1484, %v1484
    %v1513 = vmul.f32 %v1485, %v1485
    %v1514 = vmul.f32 %v1486, %v1486
    %v1515 = vmul.f32 %v1487, %v1487
    %v1516 = vmul.f32 %v1488, %v1488
    %1517 = vmatpush.msra.mxu0 0.0
    %1518 = vmatpush.msra.mxu0 0.0
    %1519 = vmatpush.msra.mxu0 0.0
    %1520 = vmatpush.msra.mxu0 0.0
    %1521 = vmatpush.msra.mxu0 0.0
    %1522 = vmatpush.msra.mxu0 0.0
    %1523 = vmatpush.msra.mxu0 0.0
    %1524 = vmatpush.msra.mxu0 0.0
    %1525 = vmatpush.msra.mxu0 %v1516
    %1526 = vmatpush.msra.mxu0 %v1515
    %1527 = vmatpush.msra.mxu0 %v1514
    %1528 = vmatpush.msra.mxu0 %v1513
    %1529 = vmatpush.msra.mxu0 %v1512
    %1530 = vmatpush.msra.mxu0 %v1511
    %1531 = vmatpush.msra.mxu0 %v1510
    %1532 = vmatpush.msra.mxu0 %v1509
    %1533 = vmatmul.f32.gmra.mxu0 %v846
    %v1534 = vpop.f32.mrf.mxu0
    %v1535 = vadd.f32 0.0, %v1534
    %1536 = vdwg.mxu0
    %1537 = vmatpush.msra.mxu0 %v911
    %1538 = vmatpush.msra.mxu0 %v910
    %1539 = vmatpush.msra.mxu0 %v909
    %1540 = vmatpush.msra.mxu0 %v908
    %1541 = vmatpush.msra.mxu0 %v907
    %1542 = vmatpush.msra.mxu0 %v906
    %1543 = vmatpush.msra.mxu0 %v905
    %1544 = vmatpush.msra.mxu0 %v904
    %1545 = vmatpush.msra.mxu0 %v903
    %1546 = vmatpush.msra.mxu0 %v902
    %1547 = vmatpush.msra.mxu0 %v901
    %1548 = vmatpush.msra.mxu0 %v900
    %1549 = vmatpush.msra.mxu0 %v899
    %1550 = vmatpush.msra.mxu0 %v898
    %1551 = vmatpush.msra.mxu0 %v897
    %1552 = vmatpush.msra.mxu0 %v896
    %1553 = vmatmul.f32.gmra.mxu0 %v1507
    %v1554 = vpop.f32.mrf.mxu0
    %v1555 = vadd.f32 0.0, %v1554
    %1556 = vdwg.mxu0
    %v1557 = vmul.f32 %v1555, 0.001953125
    %1558 = vmatpush.msra.mxu0 %v911
    %1559 = vmatpush.msra.mxu0 %v910
    %1560 = vmatpush.msra.mxu0 %v909
    %1561 = vmatpush.msra.mxu0 %v908
    %1562 = vmatpush.msra.mxu0 %v907
    %1563 = vmatpush.msra.mxu0 %v906
    %1564 = vmatpush.msra.mxu0 %v905
    %1565 = vmatpush.msra.mxu0 %v904
    %1566 = vmatpush.msra.mxu0 %v903
    %1567 = vmatpush.msra.mxu0 %v902
    %1568 = vmatpush.msra.mxu0 %v901
    %1569 = vmatpush.msra.mxu0 %v900
    %1570 = vmatpush.msra.mxu0 %v899
    %1571 = vmatpush.msra.mxu0 %v898
    %1572 = vmatpush.msra.mxu0 %v897
    %1573 = vmatpush.msra.mxu0 %v896
    %1574 = vmatmul.f32.gmra.mxu0 %v1535
    %v1575 = vpop.f32.mrf.mxu0
    %v1576 = vadd.f32 0.0, %v1575
    %1577 = vdwg.mxu0
    %v1578 = vmul.f32 %v1576, 0.001953125
    %v1579 = vmul.f32 %v1557, %v1557
    %v1580 = vsub.f32 %v1578, %v1579
    %v1581 = vmax.f32 %v1580, 0.0
    %v1582 = vld [vmem:[#allocation20] sm:$0x1]
    %v1583 = vadd.f32 %v1581, 1e-05
    %v1584 = vrsqrt.pop %v1583
    %v1585 = vmul.f32 %v1584, %v1583
    %v1586 = vmul.f32 %v1585, %v1584
    %v1587 = vmul.f32 0.5, %v1586
    %v1588 = vsub.f32 1.5, %v1587
    %v1589 = vmul.f32 %v1584, %v1588
    %vm1590 = vweird.f32 %v1583
    %vm1591 = vweird.f32 %v1584
    %vm1592 = vmor %vm1590, %vm1591
    %v1593 = vsel %vm1592, %v1584, %v1589
    %v1595 = vperm.slane %v1582, 0
    %v1597 = vmul.f32 %v1595, %v1593
    %v1598 = vld [vmem:[#allocation22] sm:$0x1]
    %v1599 = vmul.f32 %v1557, %v1597
    %v1601 = vperm.slane %v1598, 0
    %v1603 = vsub.f32 %v1601, %v1599
    %v1605 = vsel %vm988, %v1597, 0
    %1607 = vmatpush.msra.mxu0 0.0
    %1608 = vmatpush.msra.mxu0 0.0
    %1609 = vmatpush.msra.mxu0 0.0
    %1610 = vmatpush.msra.mxu0 0.0
    %1611 = vmatpush.msra.mxu0 0.0
    %1612 = vmatpush.msra.mxu0 0.0
    %1613 = vmatpush.msra.mxu0 0.0
    %1614 = vmatpush.msra.mxu0 0.0
    %1615 = vmatpush.msra.mxu0 0.0
    %1616 = vmatpush.msra.mxu0 0.0
    %1617 = vmatpush.msra.mxu0 0.0
    %1618 = vmatpush.msra.mxu0 0.0
    %1619 = vmatpush.msra.mxu0 0.0
    %1620 = vmatpush.msra.mxu0 0.0
    %1621 = vmatpush.msra.mxu0 0.0
    %1622 = vmatpush.msra.mxu0 %v987
    %1623 = vmatmul.f32.gmra.mxu0 %v1605
    %v1624 = vpop.f32.mrf.mxu0
    %v1625 = vadd.f32 0.0, %v1624
    %1626 = vdwg.mxu0
    %v1628 = vsel %vm1037, %v1625, 0
    %1630 = vmatpush.msra.mxu0 0.0
    %1631 = vmatpush.msra.mxu0 0.0
    %1632 = vmatpush.msra.mxu0 0.0
    %1633 = vmatpush.msra.mxu0 0.0
    %1634 = vmatpush.msra.mxu0 0.0
    %1635 = vmatpush.msra.mxu0 0.0
    %1636 = vmatpush.msra.mxu0 0.0
    %1637 = vmatpush.msra.mxu0 0.0
    %1638 = vmatpush.msra.mxu0 0.0
    %1639 = vmatpush.msra.mxu0 0.0
    %1640 = vmatpush.msra.mxu0 0.0
    %1641 = vmatpush.msra.mxu0 0.0
    %1642 = vmatpush.msra.mxu0 0.0
    %1643 = vmatpush.msra.mxu0 0.0
    %1644 = vmatpush.msra.mxu0 0.0
    %1645 = vmatpush.msra.mxu0 %v1628
    %1646 = vmatmul.f32.gmra.mxu0 %v1014
    %v1647 = vpop.f32.mrf.mxu0
    %v1648 = vadd.f32 0.0, %v1647
    %1649 = vmatmul.f32.gmra.mxu0 %v1017
    %v1650 = vpop.f32.mrf.mxu0
    %v1651 = vadd.f32 0.0, %v1650
    %1652 = vmatmul.f32.gmra.mxu0 %v1020
    %v1653 = vpop.f32.mrf.mxu0
    %v1654 = vadd.f32 0.0, %v1653
    %1655 = vmatmul.f32.gmra.mxu0 %v1023
    %v1656 = vpop.f32.mrf.mxu0
    %v1657 = vadd.f32 0.0, %v1656
    %1658 = vmatmul.f32.gmra.mxu0 %v1026
    %v1659 = vpop.f32.mrf.mxu0
    %v1660 = vadd.f32 0.0, %v1659
    %1661 = vmatmul.f32.gmra.mxu0 %v1029
    %v1662 = vpop.f32.mrf.mxu0
    %v1663 = vadd.f32 0.0, %v1662
    %1664 = vmatmul.f32.gmra.mxu0 %v1032
    %v1665 = vpop.f32.mrf.mxu0
    %v1666 = vadd.f32 0.0, %v1665
    %1667 = vmatmul.f32.gmra.mxu0 %v1035
    %v1668 = vpop.f32.mrf.mxu0
    %v1669 = vadd.f32 0.0, %v1668
    %1670 = vdwg.mxu0
    %v1672 = vsel %vm988, %v1603, 0
    %1674 = vmatpush.msra.mxu0 0.0
    %1675 = vmatpush.msra.mxu0 0.0
    %1676 = vmatpush.msra.mxu0 0.0
    %1677 = vmatpush.msra.mxu0 0.0
    %1678 = vmatpush.msra.mxu0 0.0
    %1679 = vmatpush.msra.mxu0 0.0
    %1680 = vmatpush.msra.mxu0 0.0
    %1681 = vmatpush.msra.mxu0 0.0
    %1682 = vmatpush.msra.mxu0 0.0
    %1683 = vmatpush.msra.mxu0 0.0
    %1684 = vmatpush.msra.mxu0 0.0
    %1685 = vmatpush.msra.mxu0 0.0
    %1686 = vmatpush.msra.mxu0 0.0
    %1687 = vmatpush.msra.mxu0 0.0
    %1688 = vmatpush.msra.mxu0 0.0
    %1689 = vmatpush.msra.mxu0 %v987
    %1690 = vmatmul.f32.gmra.mxu0 %v1672
    %v1691 = vpop.f32.mrf.mxu0
    %v1692 = vadd.f32 0.0, %v1691
    %1693 = vdwg.mxu0
    %v1695 = vsel %vm1037, %v1692, 0
    %1697 = vmatpush.msra.mxu0 0.0
    %1698 = vmatpush.msra.mxu0 0.0
    %1699 = vmatpush.msra.mxu0 0.0
    %1700 = vmatpush.msra.mxu0 0.0
    %1701 = vmatpush.msra.mxu0 0.0
    %1702 = vmatpush.msra.mxu0 0.0
    %1703 = vmatpush.msra.mxu0 0.0
    %1704 = vmatpush.msra.mxu0 0.0
    %1705 = vmatpush.msra.mxu0 0.0
    %1706 = vmatpush.msra.mxu0 0.0
    %1707 = vmatpush.msra.mxu0 0.0
    %1708 = vmatpush.msra.mxu0 0.0
    %1709 = vmatpush.msra.mxu0 0.0
    %1710 = vmatpush.msra.mxu0 0.0
    %1711 = vmatpush.msra.mxu0 0.0
    %1712 = vmatpush.msra.mxu0 %v1695
    %1713 = vmatmul.f32.gmra.mxu0 %v1014
    %v1714 = vpop.f32.mrf.mxu0
    %v1715 = vadd.f32 0.0, %v1714
    %1716 = vmatmul.f32.gmra.mxu0 %v1017
    %v1717 = vpop.f32.mrf.mxu0
    %v1718 = vadd.f32 0.0, %v1717
    %1719 = vmatmul.f32.gmra.mxu0 %v1020
    %v1720 = vpop.f32.mrf.mxu0
    %v1721 = vadd.f32 0.0, %v1720
    %1722 = vmatmul.f32.gmra.mxu0 %v1023
    %v1723 = vpop.f32.mrf.mxu0
    %v1724 = vadd.f32 0.0, %v1723
    %1725 = vmatmul.f32.gmra.mxu0 %v1026
    %v1726 = vpop.f32.mrf.mxu0
    %v1727 = vadd.f32 0.0, %v1726
    %1728 = vmatmul.f32.gmra.mxu0 %v1029
    %v1729 = vpop.f32.mrf.mxu0
    %v1730 = vadd.f32 0.0, %v1729
    %1731 = vmatmul.f32.gmra.mxu0 %v1032
    %v1732 = vpop.f32.mrf.mxu0
    %v1733 = vadd.f32 0.0, %v1732
    %1734 = vmatmul.f32.gmra.mxu0 %v1035
    %v1735 = vpop.f32.mrf.mxu0
    %v1736 = vadd.f32 0.0, %v1735
    %1737 = vdwg.mxu0
    %v1738 = vmul.f32 %v1481, %v1648
    %v1739 = vmul.f32 %v1482, %v1651
    %v1740 = vmul.f32 %v1483, %v1654
    %v1741 = vmul.f32 %v1484, %v1657
    %v1742 = vmul.f32 %v1485, %v1660
    %v1743 = vmul.f32 %v1486, %v1663
    %v1744 = vmul.f32 %v1487, %v1666
    %v1745 = vmul.f32 %v1488, %v1669
    %v1746 = vadd.f32 %v1738, %v1715
    %v1747 = vadd.f32 %v1739, %v1718
    %v1748 = vadd.f32 %v1740, %v1721
    %v1749 = vadd.f32 %v1741, %v1724
    %v1750 = vadd.f32 %v1742, %v1727
    %v1751 = vadd.f32 %v1743, %v1730
    %v1752 = vadd.f32 %v1744, %v1733
    %v1753 = vadd.f32 %v1745, %v1736
    %1754 = vmatpush.msra.mxu0 0.0
    %1755 = vmatpush.msra.mxu0 0.0
    %1756 = vmatpush.msra.mxu0 0.0
    %1757 = vmatpush.msra.mxu0 0.0
    %1758 = vmatpush.msra.mxu0 0.0
    %1759 = vmatpush.msra.mxu0 0.0
    %1760 = vmatpush.msra.mxu0 0.0
    %1761 = vmatpush.msra.mxu0 0.0
    %1762 = vmatpush.msra.mxu0 %v1753
    %1763 = vmatpush.msra.mxu0 %v1752
    %1764 = vmatpush.msra.mxu0 %v1751
    %1765 = vmatpush.msra.mxu0 %v1750
    %1766 = vmatpush.msra.mxu0 %v1749
    %1767 = vmatpush.msra.mxu0 %v1748
    %1768 = vmatpush.msra.mxu0 %v1747
    %1769 = vmatpush.msra.mxu0 %v1746
    %1770 = vmatmul.f32.gmra.mxu0 %v400
    %v1771 = vpop.f32.mrf.mxu0
    %v1772 = vadd.f32 0.0, %v1771
    %1773 = vmatmul.f32.gmra.mxu0 %v403
    %v1774 = vpop.f32.mrf.mxu0
    %v1775 = vadd.f32 0.0, %v1774
    %1776 = vmatmul.f32.gmra.mxu0 %v406
    %v1777 = vpop.f32.mrf.mxu0
    %v1778 = vadd.f32 0.0, %v1777
    %1779 = vmatmul.f32.gmra.mxu0 %v409
    %v1780 = vpop.f32.mrf.mxu0
    %v1781 = vadd.f32 0.0, %v1780
    %1782 = vmatmul.f32.gmra.mxu0 %v412
    %v1783 = vpop.f32.mrf.mxu0
    %v1784 = vadd.f32 0.0, %v1783
    %1785 = vmatmul.f32.gmra.mxu0 %v415
    %v1786 = vpop.f32.mrf.mxu0
    %v1787 = vadd.f32 0.0, %v1786
    %1788 = vmatmul.f32.gmra.mxu0 %v418
    %v1789 = vpop.f32.mrf.mxu0
    %v1790 = vadd.f32 0.0, %v1789
    %1791 = vmatmul.f32.gmra.mxu0 %v421
    %v1792 = vpop.f32.mrf.mxu0
    %v1793 = vadd.f32 0.0, %v1792
    %1794 = vdwg.mxu0
    %v1795 = vld [vmem:[#allocation11] sm:$0xff]
    %v1796 = vld [vmem:[#allocation11 + $0x8] sm:$0xff]
    %v1797 = vld [vmem:[#allocation11 + $0x10] sm:$0xff]
    %v1798 = vld [vmem:[#allocation11 + $0x18] sm:$0xff]
    %v1799 = vld [vmem:[#allocation11 + $0x20] sm:$0xff]
    %v1800 = vld [vmem:[#allocation11 + $0x28] sm:$0xff]
    %v1801 = vld [vmem:[#allocation11 + $0x30] sm:$0xff]
    %v1802 = vld [vmem:[#allocation11 + $0x38] sm:$0xff]
    %v1803 = vld [vmem:[#allocation11 + $0x40] sm:$0xff]
    %v1804 = vld [vmem:[#allocation11 + $0x48] sm:$0xff]
    %v1805 = vld [vmem:[#allocation11 + $0x50] sm:$0xff]
    %v1806 = vld [vmem:[#allocation11 + $0x58] sm:$0xff]
    %v1807 = vld [vmem:[#allocation11 + $0x60] sm:$0xff]
    %v1808 = vld [vmem:[#allocation11 + $0x68] sm:$0xff]
    %v1809 = vld [vmem:[#allocation11 + $0x70] sm:$0xff]
    %v1810 = vld [vmem:[#allocation11 + $0x78] sm:$0xff]
    %1811 = vmatpush.msra.mxu0 0.0
    %1812 = vmatpush.msra.mxu0 0.0
    %1813 = vmatpush.msra.mxu0 0.0
    %1814 = vmatpush.msra.mxu0 0.0
    %1815 = vmatpush.msra.mxu0 0.0
    %1816 = vmatpush.msra.mxu0 0.0
    %1817 = vmatpush.msra.mxu0 0.0
    %1818 = vmatpush.msra.mxu0 0.0
    %1819 = vmatpush.msra.mxu0 %v1753
    %1820 = vmatpush.msra.mxu0 %v1752
    %1821 = vmatpush.msra.mxu0 %v1751
    %1822 = vmatpush.msra.mxu0 %v1750
    %1823 = vmatpush.msra.mxu0 %v1749
    %1824 = vmatpush.msra.mxu0 %v1748
    %1825 = vmatpush.msra.mxu0 %v1747
    %1826 = vmatpush.msra.mxu0 %v1746
    %1827 = vmatmul.f32.gmra.mxu0 %v476
    %v1828 = vpop.f32.mrf.mxu0
    %v1829 = vadd.f32 0.0, %v1828
    %1830 = vmatmul.f32.gmra.mxu0 %v479
    %v1831 = vpop.f32.mrf.mxu0
    %v1832 = vadd.f32 0.0, %v1831
    %1833 = vmatmul.f32.gmra.mxu0 %v482
    %v1834 = vpop.f32.mrf.mxu0
    %v1835 = vadd.f32 0.0, %v1834
    %1836 = vmatmul.f32.gmra.mxu0 %v485
    %v1837 = vpop.f32.mrf.mxu0
    %v1838 = vadd.f32 0.0, %v1837
    %1839 = vmatmul.f32.gmra.mxu0 %v488
    %v1840 = vpop.f32.mrf.mxu0
    %v1841 = vadd.f32 0.0, %v1840
    %1842 = vmatmul.f32.gmra.mxu0 %v491
    %v1843 = vpop.f32.mrf.mxu0
    %v1844 = vadd.f32 0.0, %v1843
    %1845 = vmatmul.f32.gmra.mxu0 %v494
    %v1846 = vpop.f32.mrf.mxu0
    %v1847 = vadd.f32 0.0, %v1846
    %1848 = vmatmul.f32.gmra.mxu0 %v497
    %v1849 = vpop.f32.mrf.mxu0
    %v1850 = vadd.f32 0.0, %v1849
    %1851 = vdwg.mxu0
    %s1852 = scalar_lea.vmem [#allocation11], 128
    %v1853 = vld [vmem:[%s1852] sm:$0xff]
    %v1854 = vld [vmem:[%s1852 + $0x8] sm:$0xff]
    %v1855 = vld [vmem:[%s1852 + $0x10] sm:$0xff]
    %v1856 = vld [vmem:[%s1852 + $0x18] sm:$0xff]
    %v1857 = vld [vmem:[%s1852 + $0x20] sm:$0xff]
    %v1858 = vld [vmem:[%s1852 + $0x28] sm:$0xff]
    %v1859 = vld [vmem:[%s1852 + $0x30] sm:$0xff]
    %v1860 = vld [vmem:[%s1852 + $0x38] sm:$0xff]
    %v1861 = vld [vmem:[%s1852 + $0x40] sm:$0xff]
    %v1862 = vld [vmem:[%s1852 + $0x48] sm:$0xff]
    %v1863 = vld [vmem:[%s1852 + $0x50] sm:$0xff]
    %v1864 = vld [vmem:[%s1852 + $0x58] sm:$0xff]
    %v1865 = vld [vmem:[%s1852 + $0x60] sm:$0xff]
    %v1866 = vld [vmem:[%s1852 + $0x68] sm:$0xff]
    %v1867 = vld [vmem:[%s1852 + $0x70] sm:$0xff]
    %v1868 = vld [vmem:[%s1852 + $0x78] sm:$0xff]
    %1869 = vmatpush.msra.mxu0 %v1868
    %1870 = vmatpush.msra.mxu0 %v1867
    %1871 = vmatpush.msra.mxu0 %v1866
    %1872 = vmatpush.msra.mxu0 %v1865
    %1873 = vmatpush.msra.mxu0 %v1864
    %1874 = vmatpush.msra.mxu0 %v1863
    %1875 = vmatpush.msra.mxu0 %v1862
    %1876 = vmatpush.msra.mxu0 %v1861
    %1877 = vmatpush.msra.mxu0 %v1860
    %1878 = vmatpush.msra.mxu0 %v1859
    %1879 = vmatpush.msra.mxu0 %v1858
    %1880 = vmatpush.msra.mxu0 %v1857
    %1881 = vmatpush.msra.mxu0 %v1856
    %1882 = vmatpush.msra.mxu0 %v1855
    %1883 = vmatpush.msra.mxu0 %v1854
    %1884 = vmatpush.msra.mxu0 %v1853
    %1885 = vmatmul.f32.gmra.mxu0 %v1829
    %v1886 = vpop.f32.mrf.mxu0
    %v1887 = vadd.f32 0.0, %v1886
    %1888 = vmatmul.f32.gmra.mxu0 %v1832
    %v1889 = vpop.f32.mrf.mxu0
    %v1890 = vadd.f32 0.0, %v1889
    %1891 = vmatmul.f32.gmra.mxu0 %v1835
    %v1892 = vpop.f32.mrf.mxu0
    %v1893 = vadd.f32 0.0, %v1892
    %1894 = vmatmul.f32.gmra.mxu0 %v1838
    %v1895 = vpop.f32.mrf.mxu0
    %v1896 = vadd.f32 0.0, %v1895
    %1897 = vmatmul.f32.gmra.mxu0 %v1841
    %v1898 = vpop.f32.mrf.mxu0
    %v1899 = vadd.f32 0.0, %v1898
    %1900 = vmatmul.f32.gmra.mxu0 %v1844
    %v1901 = vpop.f32.mrf.mxu0
    %v1902 = vadd.f32 0.0, %v1901
    %1903 = vmatmul.f32.gmra.mxu0 %v1847
    %v1904 = vpop.f32.mrf.mxu0
    %v1905 = vadd.f32 0.0, %v1904
    %1906 = vmatmul.f32.gmra.mxu0 %v1850
    %v1907 = vpop.f32.mrf.mxu0
    %v1908 = vadd.f32 0.0, %v1907
    %1909 = vdwg.mxu0
    %1910 = vmatpush.msra.mxu0 %v1810
    %1911 = vmatpush.msra.mxu0 %v1809
    %1912 = vmatpush.msra.mxu0 %v1808
    %1913 = vmatpush.msra.mxu0 %v1807
    %1914 = vmatpush.msra.mxu0 %v1806
    %1915 = vmatpush.msra.mxu0 %v1805
    %1916 = vmatpush.msra.mxu0 %v1804
    %1917 = vmatpush.msra.mxu0 %v1803
    %1918 = vmatpush.msra.mxu0 %v1802
    %1919 = vmatpush.msra.mxu0 %v1801
    %1920 = vmatpush.msra.mxu0 %v1800
    %1921 = vmatpush.msra.mxu0 %v1799
    %1922 = vmatpush.msra.mxu0 %v1798
    %1923 = vmatpush.msra.mxu0 %v1797
    %1924 = vmatpush.msra.mxu0 %v1796
    %1925 = vmatpush.msra.mxu0 %v1795
    %1926 = vmatmul.f32.gmra.mxu0 %v1772
    %v1927 = vpop.f32.mrf.mxu0
    %v1928 = vadd.f32 %v1887, %v1927
    %1929 = vmatmul.f32.gmra.mxu0 %v1775
    %v1930 = vpop.f32.mrf.mxu0
    %v1931 = vadd.f32 %v1890, %v1930
    %1932 = vmatmul.f32.gmra.mxu0 %v1778
    %v1933 = vpop.f32.mrf.mxu0
    %v1934 = vadd.f32 %v1893, %v1933
    %1935 = vmatmul.f32.gmra.mxu0 %v1781
    %v1936 = vpop.f32.mrf.mxu0
    %v1937 = vadd.f32 %v1896, %v1936
    %1938 = vmatmul.f32.gmra.mxu0 %v1784
    %v1939 = vpop.f32.mrf.mxu0
    %v1940 = vadd.f32 %v1899, %v1939
    %1941 = vmatmul.f32.gmra.mxu0 %v1787
    %v1942 = vpop.f32.mrf.mxu0
    %v1943 = vadd.f32 %v1902, %v1942
    %1944 = vmatmul.f32.gmra.mxu0 %v1790
    %v1945 = vpop.f32.mrf.mxu0
    %v1946 = vadd.f32 %v1905, %v1945
    %1947 = vmatmul.f32.gmra.mxu0 %v1793
    %v1948 = vpop.f32.mrf.mxu0
    %v1949 = vadd.f32 %v1908, %v1948
    %1950 = vdwg.mxu0
    %1951 = vmatpush.msra.mxu0 0.0
    %1952 = vmatpush.msra.mxu0 0.0
    %1953 = vmatpush.msra.mxu0 0.0
    %1954 = vmatpush.msra.mxu0 0.0
    %1955 = vmatpush.msra.mxu0 0.0
    %1956 = vmatpush.msra.mxu0 0.0
    %1957 = vmatpush.msra.mxu0 0.0
    %1958 = vmatpush.msra.mxu0 0.0
    %1959 = vmatpush.msra.mxu0 %v1753
    %1960 = vmatpush.msra.mxu0 %v1752
    %1961 = vmatpush.msra.mxu0 %v1751
    %1962 = vmatpush.msra.mxu0 %v1750
    %1963 = vmatpush.msra.mxu0 %v1749
    %1964 = vmatpush.msra.mxu0 %v1748
    %1965 = vmatpush.msra.mxu0 %v1747
    %1966 = vmatpush.msra.mxu0 %v1746
    %1967 = vmatmul.f32.gmra.mxu0 %v684
    %v1968 = vpop.f32.mrf.mxu0
    %v1969 = vadd.f32 0.0, %v1968
    %1970 = vmatmul.f32.gmra.mxu0 %v687
    %v1971 = vpop.f32.mrf.mxu0
    %v1972 = vadd.f32 0.0, %v1971
    %1973 = vmatmul.f32.gmra.mxu0 %v690
    %v1974 = vpop.f32.mrf.mxu0
    %v1975 = vadd.f32 0.0, %v1974
    %1976 = vmatmul.f32.gmra.mxu0 %v693
    %v1977 = vpop.f32.mrf.mxu0
    %v1978 = vadd.f32 0.0, %v1977
    %1979 = vmatmul.f32.gmra.mxu0 %v696
    %v1980 = vpop.f32.mrf.mxu0
    %v1981 = vadd.f32 0.0, %v1980
    %1982 = vmatmul.f32.gmra.mxu0 %v699
    %v1983 = vpop.f32.mrf.mxu0
    %v1984 = vadd.f32 0.0, %v1983
    %1985 = vmatmul.f32.gmra.mxu0 %v702
    %v1986 = vpop.f32.mrf.mxu0
    %v1987 = vadd.f32 0.0, %v1986
    %1988 = vmatmul.f32.gmra.mxu0 %v705
    %v1989 = vpop.f32.mrf.mxu0
    %v1990 = vadd.f32 0.0, %v1989
    %1991 = vdwg.mxu0
    %s1992 = scalar_lea.vmem [#allocation11], 256
    %v1993 = vld [vmem:[%s1992] sm:$0xff]
    %v1994 = vld [vmem:[%s1992 + $0x8] sm:$0xff]
    %v1995 = vld [vmem:[%s1992 + $0x10] sm:$0xff]
    %v1996 = vld [vmem:[%s1992 + $0x18] sm:$0xff]
    %v1997 = vld [vmem:[%s1992 + $0x20] sm:$0xff]
    %v1998 = vld [vmem:[%s1992 + $0x28] sm:$0xff]
    %v1999 = vld [vmem:[%s1992 + $0x30] sm:$0xff]
    %v2000 = vld [vmem:[%s1992 + $0x38] sm:$0xff]
    %v2001 = vld [vmem:[%s1992 + $0x40] sm:$0xff]
    %v2002 = vld [vmem:[%s1992 + $0x48] sm:$0xff]
    %v2003 = vld [vmem:[%s1992 + $0x50] sm:$0xff]
    %v2004 = vld [vmem:[%s1992 + $0x58] sm:$0xff]
    %v2005 = vld [vmem:[%s1992 + $0x60] sm:$0xff]
    %v2006 = vld [vmem:[%s1992 + $0x68] sm:$0xff]
    %v2007 = vld [vmem:[%s1992 + $0x70] sm:$0xff]
    %v2008 = vld [vmem:[%s1992 + $0x78] sm:$0xff]
    %2009 = vmatpush.msra.mxu0 %v2008
    %2010 = vmatpush.msra.mxu0 %v2007
    %2011 = vmatpush.msra.mxu0 %v2006
    %2012 = vmatpush.msra.mxu0 %v2005
    %2013 = vmatpush.msra.mxu0 %v2004
    %2014 = vmatpush.msra.mxu0 %v2003
    %2015 = vmatpush.msra.mxu0 %v2002
    %2016 = vmatpush.msra.mxu0 %v2001
    %2017 = vmatpush.msra.mxu0 %v2000
    %2018 = vmatpush.msra.mxu0 %v1999
    %2019 = vmatpush.msra.mxu0 %v1998
    %2020 = vmatpush.msra.mxu0 %v1997
    %2021 = vmatpush.msra.mxu0 %v1996
    %2022 = vmatpush.msra.mxu0 %v1995
    %2023 = vmatpush.msra.mxu0 %v1994
    %2024 = vmatpush.msra.mxu0 %v1993
    %2025 = vmatmul.f32.gmra.mxu0 %v1969
    %v2026 = vpop.f32.mrf.mxu0
    %v2027 = vadd.f32 0.0, %v2026
    %2028 = vmatmul.f32.gmra.mxu0 %v1972
    %v2029 = vpop.f32.mrf.mxu0
    %v2030 = vadd.f32 0.0, %v2029
    %2031 = vmatmul.f32.gmra.mxu0 %v1975
    %v2032 = vpop.f32.mrf.mxu0
    %v2033 = vadd.f32 0.0, %v2032
    %2034 = vmatmul.f32.gmra.mxu0 %v1978
    %v2035 = vpop.f32.mrf.mxu0
    %v2036 = vadd.f32 0.0, %v2035
    %2037 = vmatmul.f32.gmra.mxu0 %v1981
    %v2038 = vpop.f32.mrf.mxu0
    %v2039 = vadd.f32 0.0, %v2038
    %2040 = vmatmul.f32.gmra.mxu0 %v1984
    %v2041 = vpop.f32.mrf.mxu0
    %v2042 = vadd.f32 0.0, %v2041
    %2043 = vmatmul.f32.gmra.mxu0 %v1987
    %v2044 = vpop.f32.mrf.mxu0
    %v2045 = vadd.f32 0.0, %v2044
    %2046 = vmatmul.f32.gmra.mxu0 %v1990
    %v2047 = vpop.f32.mrf.mxu0
    %v2048 = vadd.f32 0.0, %v2047
    %2049 = vdwg.mxu0
    %v2050 = vadd.f32 %v1928, %v2027
    %v2051 = vadd.f32 %v1931, %v2030
    %v2052 = vadd.f32 %v1934, %v2033
    %v2053 = vadd.f32 %v1937, %v2036
    %v2054 = vadd.f32 %v1940, %v2039
    %v2055 = vadd.f32 %v1943, %v2042
    %v2056 = vadd.f32 %v1946, %v2045
    %v2057 = vadd.f32 %v1949, %v2048
    %v2058 = vld [vmem:[#allocation16] sm:$0x1]
    %v2060 = vperm.slane %v2058, 0
    %v2062 = vadd.f32 %v2050, %v2060
    %v2063 = vadd.f32 %v2051, %v2060
    %v2064 = vadd.f32 %v2052, %v2060
    %v2065 = vadd.f32 %v2053, %v2060
    %v2066 = vadd.f32 %v2054, %v2060
    %v2067 = vadd.f32 %v2055, %v2060
    %v2068 = vadd.f32 %v2056, %v2060
    %v2069 = vadd.f32 %v2057, %v2060
    %v2070 = vmax.f32 %v2062, 0.0
    %v2071 = vmax.f32 %v2063, 0.0
    %v2072 = vmax.f32 %v2064, 0.0
    %v2073 = vmax.f32 %v2065, 0.0
    %v2074 = vmax.f32 %v2066, 0.0
    %v2075 = vmax.f32 %v2067, 0.0
    %v2076 = vmax.f32 %v2068, 0.0
    %v2077 = vmax.f32 %v2069, 0.0
    %2078 = vmatpush.msra.mxu0 0.0
    %2079 = vmatpush.msra.mxu0 0.0
    %2080 = vmatpush.msra.mxu0 0.0
    %2081 = vmatpush.msra.mxu0 0.0
    %2082 = vmatpush.msra.mxu0 0.0
    %2083 = vmatpush.msra.mxu0 0.0
    %2084 = vmatpush.msra.mxu0 0.0
    %2085 = vmatpush.msra.mxu0 0.0
    %2086 = vmatpush.msra.mxu0 %v2077
    %2087 = vmatpush.msra.mxu0 %v2076
    %2088 = vmatpush.msra.mxu0 %v2075
    %2089 = vmatpush.msra.mxu0 %v2074
    %2090 = vmatpush.msra.mxu0 %v2073
    %2091 = vmatpush.msra.mxu0 %v2072
    %2092 = vmatpush.msra.mxu0 %v2071
    %2093 = vmatpush.msra.mxu0 %v2070
    %2094 = vmatmul.f32.gmra.mxu0 %v846
    %v2095 = vpop.f32.mrf.mxu0
    %v2096 = vadd.f32 0.0, %v2095
    %2097 = vdwg.mxu0
    %v2098 = vmul.f32 %v2070, %v2070
    %v2099 = vmul.f32 %v2071, %v2071
    %v2100 = vmul.f32 %v2072, %v2072
    %v2101 = vmul.f32 %v2073, %v2073
    %v2102 = vmul.f32 %v2074, %v2074
    %v2103 = vmul.f32 %v2075, %v2075
    %v2104 = vmul.f32 %v2076, %v2076
    %v2105 = vmul.f32 %v2077, %v2077
    %2106 = vmatpush.msra.mxu0 0.0
    %2107 = vmatpush.msra.mxu0 0.0
    %2108 = vmatpush.msra.mxu0 0.0
    %2109 = vmatpush.msra.mxu0 0.0
    %2110 = vmatpush.msra.mxu0 0.0
    %2111 = vmatpush.msra.mxu0 0.0
    %2112 = vmatpush.msra.mxu0 0.0
    %2113 = vmatpush.msra.mxu0 0.0
    %2114 = vmatpush.msra.mxu0 %v2105
    %2115 = vmatpush.msra.mxu0 %v2104
    %2116 = vmatpush.msra.mxu0 %v2103
    %2117 = vmatpush.msra.mxu0 %v2102
    %2118 = vmatpush.msra.mxu0 %v2101
    %2119 = vmatpush.msra.mxu0 %v2100
    %2120 = vmatpush.msra.mxu0 %v2099
    %2121 = vmatpush.msra.mxu0 %v2098
    %2122 = vmatmul.f32.gmra.mxu0 %v846
    %v2123 = vpop.f32.mrf.mxu0
    %v2124 = vadd.f32 0.0, %v2123
    %2125 = vdwg.mxu0
    %2126 = vmatpush.msra.mxu0 %v911
    %2127 = vmatpush.msra.mxu0 %v910
    %2128 = vmatpush.msra.mxu0 %v909
    %2129 = vmatpush.msra.mxu0 %v908
    %2130 = vmatpush.msra.mxu0 %v907
    %2131 = vmatpush.msra.mxu0 %v906
    %2132 = vmatpush.msra.mxu0 %v905
    %2133 = vmatpush.msra.mxu0 %v904
    %2134 = vmatpush.msra.mxu0 %v903
    %2135 = vmatpush.msra.mxu0 %v902
    %2136 = vmatpush.msra.mxu0 %v901
    %2137 = vmatpush.msra.mxu0 %v900
    %2138 = vmatpush.msra.mxu0 %v899
    %2139 = vmatpush.msra.mxu0 %v898
    %2140 = vmatpush.msra.mxu0 %v897
    %2141 = vmatpush.msra.mxu0 %v896
    %2142 = vmatmul.f32.gmra.mxu0 %v2096
    %v2143 = vpop.f32.mrf.mxu0
    %v2144 = vadd.f32 0.0, %v2143
    %2145 = vdwg.mxu0
    %v2146 = vmul.f32 %v2144, 0.001953125
    %2147 = vmatpush.msra.mxu0 %v911
    %2148 = vmatpush.msra.mxu0 %v910
    %2149 = vmatpush.msra.mxu0 %v909
    %2150 = vmatpush.msra.mxu0 %v908
    %2151 = vmatpush.msra.mxu0 %v907
    %2152 = vmatpush.msra.mxu0 %v906
    %2153 = vmatpush.msra.mxu0 %v905
    %2154 = vmatpush.msra.mxu0 %v904
    %2155 = vmatpush.msra.mxu0 %v903
    %2156 = vmatpush.msra.mxu0 %v902
    %2157 = vmatpush.msra.mxu0 %v901
    %2158 = vmatpush.msra.mxu0 %v900
    %2159 = vmatpush.msra.mxu0 %v899
    %2160 = vmatpush.msra.mxu0 %v898
    %2161 = vmatpush.msra.mxu0 %v897
    %2162 = vmatpush.msra.mxu0 %v896
    %2163 = vmatmul.f32.gmra.mxu0 %v2124
    %v2164 = vpop.f32.mrf.mxu0
    %v2165 = vadd.f32 0.0, %v2164
    %2166 = vdwg.mxu0
    %v2167 = vmul.f32 %v2165, 0.001953125
    %v2168 = vmul.f32 %v2146, %v2146
    %v2169 = vsub.f32 %v2167, %v2168
    %v2170 = vmax.f32 %v2169, 0.0
    %v2171 = vld [vmem:[#allocation23] sm:$0x1]
    %v2172 = vadd.f32 %v2170, 1e-05
    %v2173 = vrsqrt.pop %v2172
    %v2174 = vmul.f32 %v2173, %v2172
    %v2175 = vmul.f32 %v2174, %v2173
    %v2176 = vmul.f32 0.5, %v2175
    %v2177 = vsub.f32 1.5, %v2176
    %v2178 = vmul.f32 %v2173, %v2177
    %vm2179 = vweird.f32 %v2172
    %vm2180 = vweird.f32 %v2173
    %vm2181 = vmor %vm2179, %vm2180
    %v2182 = vsel %vm2181, %v2173, %v2178
    %v2184 = vperm.slane %v2171, 0
    %v2186 = vmul.f32 %v2184, %v2182
    %v2187 = vld [vmem:[#allocation25] sm:$0x1]
    %v2188 = vmul.f32 %v2146, %v2186
    %v2190 = vperm.slane %v2187, 0
    %v2192 = vsub.f32 %v2190, %v2188
    %v2194 = vsel %vm988, %v2186, 0
    %2196 = vmatpush.msra.mxu0 0.0
    %2197 = vmatpush.msra.mxu0 0.0
    %2198 = vmatpush.msra.mxu0 0.0
    %2199 = vmatpush.msra.mxu0 0.0
    %2200 = vmatpush.msra.mxu0 0.0
    %2201 = vmatpush.msra.mxu0 0.0
    %2202 = vmatpush.msra.mxu0 0.0
    %2203 = vmatpush.msra.mxu0 0.0
    %2204 = vmatpush.msra.mxu0 0.0
    %2205 = vmatpush.msra.mxu0 0.0
    %2206 = vmatpush.msra.mxu0 0.0
    %2207 = vmatpush.msra.mxu0 0.0
    %2208 = vmatpush.msra.mxu0 0.0
    %2209 = vmatpush.msra.mxu0 0.0
    %2210 = vmatpush.msra.mxu0 0.0
    %2211 = vmatpush.msra.mxu0 %v987
    %2212 = vmatmul.f32.gmra.mxu0 %v2194
    %v2213 = vpop.f32.mrf.mxu0
    %v2214 = vadd.f32 0.0, %v2213
    %2215 = vdwg.mxu0
    %v2217 = vsel %vm1037, %v2214, 0
    %2219 = vmatpush.msra.mxu0 0.0
    %2220 = vmatpush.msra.mxu0 0.0
    %2221 = vmatpush.msra.mxu0 0.0
    %2222 = vmatpush.msra.mxu0 0.0
    %2223 = vmatpush.msra.mxu0 0.0
    %2224 = vmatpush.msra.mxu0 0.0
    %2225 = vmatpush.msra.mxu0 0.0
    %2226 = vmatpush.msra.mxu0 0.0
    %2227 = vmatpush.msra.mxu0 0.0
    %2228 = vmatpush.msra.mxu0 0.0
    %2229 = vmatpush.msra.mxu0 0.0
    %2230 = vmatpush.msra.mxu0 0.0
    %2231 = vmatpush.msra.mxu0 0.0
    %2232 = vmatpush.msra.mxu0 0.0
    %2233 = vmatpush.msra.mxu0 0.0
    %2234 = vmatpush.msra.mxu0 %v2217
    %2235 = vmatmul.f32.gmra.mxu0 %v1014
    %v2236 = vpop.f32.mrf.mxu0
    %v2237 = vadd.f32 0.0, %v2236
    %2238 = vmatmul.f32.gmra.mxu0 %v1017
    %v2239 = vpop.f32.mrf.mxu0
    %v2240 = vadd.f32 0.0, %v2239
    %2241 = vmatmul.f32.gmra.mxu0 %v1020
    %v2242 = vpop.f32.mrf.mxu0
    %v2243 = vadd.f32 0.0, %v2242
    %2244 = vmatmul.f32.gmra.mxu0 %v1023
    %v2245 = vpop.f32.mrf.mxu0
    %v2246 = vadd.f32 0.0, %v2245
    %2247 = vmatmul.f32.gmra.mxu0 %v1026
    %v2248 = vpop.f32.mrf.mxu0
    %v2249 = vadd.f32 0.0, %v2248
    %2250 = vmatmul.f32.gmra.mxu0 %v1029
    %v2251 = vpop.f32.mrf.mxu0
    %v2252 = vadd.f32 0.0, %v2251
    %2253 = vmatmul.f32.gmra.mxu0 %v1032
    %v2254 = vpop.f32.mrf.mxu0
    %v2255 = vadd.f32 0.0, %v2254
    %2256 = vmatmul.f32.gmra.mxu0 %v1035
    %v2257 = vpop.f32.mrf.mxu0
    %v2258 = vadd.f32 0.0, %v2257
    %2259 = vdwg.mxu0
    %v2261 = vsel %vm988, %v2192, 0
    %2263 = vmatpush.msra.mxu0 0.0
    %2264 = vmatpush.msra.mxu0 0.0
    %2265 = vmatpush.msra.mxu0 0.0
    %2266 = vmatpush.msra.mxu0 0.0
    %2267 = vmatpush.msra.mxu0 0.0
    %2268 = vmatpush.msra.mxu0 0.0
    %2269 = vmatpush.msra.mxu0 0.0
    %2270 = vmatpush.msra.mxu0 0.0
    %2271 = vmatpush.msra.mxu0 0.0
    %2272 = vmatpush.msra.mxu0 0.0
    %2273 = vmatpush.msra.mxu0 0.0
    %2274 = vmatpush.msra.mxu0 0.0
    %2275 = vmatpush.msra.mxu0 0.0
    %2276 = vmatpush.msra.mxu0 0.0
    %2277 = vmatpush.msra.mxu0 0.0
    %2278 = vmatpush.msra.mxu0 %v987
    %2279 = vmatmul.f32.gmra.mxu0 %v2261
    %v2280 = vpop.f32.mrf.mxu0
    %v2281 = vadd.f32 0.0, %v2280
    %2282 = vdwg.mxu0
    %v2284 = vsel %vm1037, %v2281, 0
    %2286 = vmatpush.msra.mxu0 0.0
    %2287 = vmatpush.msra.mxu0 0.0
    %2288 = vmatpush.msra.mxu0 0.0
    %2289 = vmatpush.msra.mxu0 0.0
    %2290 = vmatpush.msra.mxu0 0.0
    %2291 = vmatpush.msra.mxu0 0.0
    %2292 = vmatpush.msra.mxu0 0.0
    %2293 = vmatpush.msra.mxu0 0.0
    %2294 = vmatpush.msra.mxu0 0.0
    %2295 = vmatpush.msra.mxu0 0.0
    %2296 = vmatpush.msra.mxu0 0.0
    %2297 = vmatpush.msra.mxu0 0.0
    %2298 = vmatpush.msra.mxu0 0.0
    %2299 = vmatpush.msra.mxu0 0.0
    %2300 = vmatpush.msra.mxu0 0.0
    %2301 = vmatpush.msra.mxu0 %v2284
    %2302 = vmatmul.f32.gmra.mxu0 %v1014
    %v2303 = vpop.f32.mrf.mxu0
    %v2304 = vadd.f32 0.0, %v2303
    %2305 = vmatmul.f32.gmra.mxu0 %v1017
    %v2306 = vpop.f32.mrf.mxu0
    %v2307 = vadd.f32 0.0, %v2306
    %2308 = vmatmul.f32.gmra.mxu0 %v1020
    %v2309 = vpop.f32.mrf.mxu0
    %v2310 = vadd.f32 0.0, %v2309
    %2311 = vmatmul.f32.gmra.mxu0 %v1023
    %v2312 = vpop.f32.mrf.mxu0
    %v2313 = vadd.f32 0.0, %v2312
    %2314 = vmatmul.f32.gmra.mxu0 %v1026
    %v2315 = vpop.f32.mrf.mxu0
    %v2316 = vadd.f32 0.0, %v2315
    %2317 = vmatmul.f32.gmra.mxu0 %v1029
    %v2318 = vpop.f32.mrf.mxu0
    %v2319 = vadd.f32 0.0, %v2318
    %2320 = vmatmul.f32.gmra.mxu0 %v1032
    %v2321 = vpop.f32.mrf.mxu0
    %v2322 = vadd.f32 0.0, %v2321
    %2323 = vmatmul.f32.gmra.mxu0 %v1035
    %v2324 = vpop.f32.mrf.mxu0
    %v2325 = vadd.f32 0.0, %v2324
    %2326 = vdwg.mxu0
    %v2327 = vmul.f32 %v2070, %v2237
    %v2328 = vmul.f32 %v2071, %v2240
    %v2329 = vmul.f32 %v2072, %v2243
    %v2330 = vmul.f32 %v2073, %v2246
    %v2331 = vmul.f32 %v2074, %v2249
    %v2332 = vmul.f32 %v2075, %v2252
    %v2333 = vmul.f32 %v2076, %v2255
    %v2334 = vmul.f32 %v2077, %v2258
    %v2335 = vadd.f32 %v2327, %v2304
    %v2336 = vadd.f32 %v2328, %v2307
    %v2337 = vadd.f32 %v2329, %v2310
    %v2338 = vadd.f32 %v2330, %v2313
    %v2339 = vadd.f32 %v2331, %v2316
    %v2340 = vadd.f32 %v2332, %v2319
    %v2341 = vadd.f32 %v2333, %v2322
    %v2342 = vadd.f32 %v2334, %v2325
    %s2343 = smul.u32 4, 16
    %s2344 = smul.u32 %s2343, 16
    %s2345 = smul.u32 %s2344, 4
    %s2346 = sshll.u32 %s2345, 4
    %2347 = dma.done [#allocation5], %s2346
    %v2348 = vld [vmem:[#allocation29] sm:$0xf]
    %v2350 = vsel %vm398, %v2348, 0
    %2352 = vmatpush.msra.mxu0 0.0
    %2353 = vmatpush.msra.mxu0 0.0
    %2354 = vmatpush.msra.mxu0 0.0
    %2355 = vmatpush.msra.mxu0 0.0
    %2356 = vmatpush.msra.mxu0 0.0
    %2357 = vmatpush.msra.mxu0 0.0
    %2358 = vmatpush.msra.mxu0 0.0
    %2359 = vmatpush.msra.mxu0 0.0
    %2360 = vmatpush.msra.mxu0 %v2342
    %2361 = vmatpush.msra.mxu0 %v2341
    %2362 = vmatpush.msra.mxu0 %v2340
    %2363 = vmatpush.msra.mxu0 %v2339
    %2364 = vmatpush.msra.mxu0 %v2338
    %2365 = vmatpush.msra.mxu0 %v2337
    %2366 = vmatpush.msra.mxu0 %v2336
    %2367 = vmatpush.msra.mxu0 %v2335
    %2368 = vmatmul.f32.gmra.mxu0 %v2350
    %v2369 = vpop.f32.mrf.mxu0
    %v2370 = vadd.f32 0.0, %v2369
    %2371 = vdwg.mxu0
    %v2372 = vpack.c.bf16 %v2370, %v2370
    %v2373 = vld [vmem:[#allocation2] sm:$0xff]
    %v2374 = vld [vmem:[#allocation2 + $0x8] sm:$0xff]
    %v2375 = vld [vmem:[#allocation2 + $0x10] sm:$0xff]
    %v2376 = vld [vmem:[#allocation2 + $0x18] sm:$0xff]
    %v2377 = vld [vmem:[#allocation2 + $0x20] sm:$0xff]
    %v2378 = vld [vmem:[#allocation2 + $0x28] sm:$0xff]
    %v2379 = vld [vmem:[#allocation2 + $0x30] sm:$0xff]
    %v2380 = vld [vmem:[#allocation2 + $0x38] sm:$0xff]
    %v2381 = vld [vmem:[#allocation2 + $0x40] sm:$0xff]
    %v2382 = vld [vmem:[#allocation2 + $0x48] sm:$0xff]
    %v2383 = vld [vmem:[#allocation2 + $0x50] sm:$0xff]
    %v2384 = vld [vmem:[#allocation2 + $0x58] sm:$0xff]
    %v2385 = vld [vmem:[#allocation2 + $0x60] sm:$0xff]
    %v2386 = vld [vmem:[#allocation2 + $0x68] sm:$0xff]
    %v2387 = vld [vmem:[#allocation2 + $0x70] sm:$0xff]
    %v2388 = vld [vmem:[#allocation2 + $0x78] sm:$0xff]
    %v2389 = vld [vmem:[#allocation2 + $0x80] sm:$0xff]
    %v2390 = vld [vmem:[#allocation2 + $0x88] sm:$0xff]
    %v2391 = vld [vmem:[#allocation2 + $0x90] sm:$0xff]
    %v2392 = vld [vmem:[#allocation2 + $0x98] sm:$0xff]
    %v2393 = vld [vmem:[#allocation2 + $0xa0] sm:$0xff]
    %v2394 = vld [vmem:[#allocation2 + $0xa8] sm:$0xff]
    %v2395 = vld [vmem:[#allocation2 + $0xb0] sm:$0xff]
    %v2396 = vld [vmem:[#allocation2 + $0xb8] sm:$0xff]
    %v2397 = vld [vmem:[#allocation2 + $0xc0] sm:$0xff]
    %v2398 = vld [vmem:[#allocation2 + $0xc8] sm:$0xff]
    %v2399 = vld [vmem:[#allocation2 + $0xd0] sm:$0xff]
    %v2400 = vld [vmem:[#allocation2 + $0xd8] sm:$0xff]
    %v2401 = vld [vmem:[#allocation2 + $0xe0] sm:$0xff]
    %v2402 = vld [vmem:[#allocation2 + $0xe8] sm:$0xff]
    %v2403 = vld [vmem:[#allocation2 + $0xf0] sm:$0xff]
    %v2404 = vld [vmem:[#allocation2 + $0xf8] sm:$0xff]
    %s2405 = scalar_lea.vmem [#allocation29], 4
    %v2406 = vld [vmem:[%s2405] sm:$0xf]
    %v2408 = vsel %vm398, %v2406, 0
    %2410 = vmatpush.msra.mxu0 0.0
    %2411 = vmatpush.msra.mxu0 0.0
    %2412 = vmatpush.msra.mxu0 0.0
    %2413 = vmatpush.msra.mxu0 0.0
    %2414 = vmatpush.msra.mxu0 0.0
    %2415 = vmatpush.msra.mxu0 0.0
    %2416 = vmatpush.msra.mxu0 0.0
    %2417 = vmatpush.msra.mxu0 0.0
    %2418 = vmatpush.msra.mxu0 %v2342
    %2419 = vmatpush.msra.mxu0 %v2341
    %2420 = vmatpush.msra.mxu0 %v2340
    %2421 = vmatpush.msra.mxu0 %v2339
    %2422 = vmatpush.msra.mxu0 %v2338
    %2423 = vmatpush.msra.mxu0 %v2337
    %2424 = vmatpush.msra.mxu0 %v2336
    %2425 = vmatpush.msra.mxu0 %v2335
    %2426 = vmatmul.f32.gmra.mxu0 %v2408
    %v2427 = vpop.f32.mrf.mxu0
    %v2428 = vadd.f32 0.0, %v2427
    %2429 = vdwg.mxu0
    %v2430 = vpack.c.bf16 %v2428, %v2428
    %s2431 = scalar_lea.vmem [#allocation2], 256
    %v2432 = vld [vmem:[%s2431] sm:$0xff]
    %v2433 = vld [vmem:[%s2431 + $0x8] sm:$0xff]
    %v2434 = vld [vmem:[%s2431 + $0x10] sm:$0xff]
    %v2435 = vld [vmem:[%s2431 + $0x18] sm:$0xff]
    %v2436 = vld [vmem:[%s2431 + $0x20] sm:$0xff]
    %v2437 = vld [vmem:[%s2431 + $0x28] sm:$0xff]
    %v2438 = vld [vmem:[%s2431 + $0x30] sm:$0xff]
    %v2439 = vld [vmem:[%s2431 + $0x38] sm:$0xff]
    %v2440 = vld [vmem:[%s2431 + $0x40] sm:$0xff]
    %v2441 = vld [vmem:[%s2431 + $0x48] sm:$0xff]
    %v2442 = vld [vmem:[%s2431 + $0x50] sm:$0xff]
    %v2443 = vld [vmem:[%s2431 + $0x58] sm:$0xff]
    %v2444 = vld [vmem:[%s2431 + $0x60] sm:$0xff]
    %v2445 = vld [vmem:[%s2431 + $0x68] sm:$0xff]
    %v2446 = vld [vmem:[%s2431 + $0x70] sm:$0xff]
    %v2447 = vld [vmem:[%s2431 + $0x78] sm:$0xff]
    %v2448 = vld [vmem:[%s2431 + $0x80] sm:$0xff]
    %v2449 = vld [vmem:[%s2431 + $0x88] sm:$0xff]
    %v2450 = vld [vmem:[%s2431 + $0x90] sm:$0xff]
    %v2451 = vld [vmem:[%s2431 + $0x98] sm:$0xff]
    %v2452 = vld [vmem:[%s2431 + $0xa0] sm:$0xff]
    %v2453 = vld [vmem:[%s2431 + $0xa8] sm:$0xff]
    %v2454 = vld [vmem:[%s2431 + $0xb0] sm:$0xff]
    %v2455 = vld [vmem:[%s2431 + $0xb8] sm:$0xff]
    %v2456 = vld [vmem:[%s2431 + $0xc0] sm:$0xff]
    %v2457 = vld [vmem:[%s2431 + $0xc8] sm:$0xff]
    %v2458 = vld [vmem:[%s2431 + $0xd0] sm:$0xff]
    %v2459 = vld [vmem:[%s2431 + $0xd8] sm:$0xff]
    %v2460 = vld [vmem:[%s2431 + $0xe0] sm:$0xff]
    %v2461 = vld [vmem:[%s2431 + $0xe8] sm:$0xff]
    %v2462 = vld [vmem:[%s2431 + $0xf0] sm:$0xff]
    %v2463 = vld [vmem:[%s2431 + $0xf8] sm:$0xff]
    %v2496 = vunpack.c.l.b16 %v2432
    %v2497 = vunpack.c.h.b16 %v2432
    %v2498 = vunpack.c.l.b16 %v2433
    %v2499 = vunpack.c.h.b16 %v2433
    %v2500 = vunpack.c.l.b16 %v2434
    %v2501 = vunpack.c.h.b16 %v2434
    %v2502 = vunpack.c.l.b16 %v2435
    %v2503 = vunpack.c.h.b16 %v2435
    %v2504 = vunpack.c.l.b16 %v2436
    %v2505 = vunpack.c.h.b16 %v2436
    %v2506 = vunpack.c.l.b16 %v2437
    %v2507 = vunpack.c.h.b16 %v2437
    %v2508 = vunpack.c.l.b16 %v2438
    %v2509 = vunpack.c.h.b16 %v2438
    %v2510 = vunpack.c.l.b16 %v2439
    %v2511 = vunpack.c.h.b16 %v2439
    %v2512 = vunpack.c.l.b16 %v2440
    %v2513 = vunpack.c.h.b16 %v2440
    %v2514 = vunpack.c.l.b16 %v2441
    %v2515 = vunpack.c.h.b16 %v2441
    %v2516 = vunpack.c.l.b16 %v2442
    %v2517 = vunpack.c.h.b16 %v2442
    %v2518 = vunpack.c.l.b16 %v2443
    %v2519 = vunpack.c.h.b16 %v2443
    %v2520 = vunpack.c.l.b16 %v2444
    %v2521 = vunpack.c.h.b16 %v2444
    %v2522 = vunpack.c.l.b16 %v2445
    %v2523 = vunpack.c.h.b16 %v2445
    %v2524 = vunpack.c.l.b16 %v2446
    %v2525 = vunpack.c.h.b16 %v2446
    %v2526 = vunpack.c.l.b16 %v2447
    %v2527 = vunpack.c.h.b16 %v2447
    %v2528 = vunpack.c.l.b16 %v2448
    %v2529 = vunpack.c.h.b16 %v2448
    %v2530 = vunpack.c.l.b16 %v2449
    %v2531 = vunpack.c.h.b16 %v2449
    %v2532 = vunpack.c.l.b16 %v2450
    %v2533 = vunpack.c.h.b16 %v2450
    %v2534 = vunpack.c.l.b16 %v2451
    %v2535 = vunpack.c.h.b16 %v2451
    %v2536 = vunpack.c.l.b16 %v2452
    %v2537 = vunpack.c.h.b16 %v2452
    %v2538 = vunpack.c.l.b16 %v2453
    %v2539 = vunpack.c.h.b16 %v2453
    %v2540 = vunpack.c.l.b16 %v2454
    %v2541 = vunpack.c.h.b16 %v2454
    %v2542 = vunpack.c.l.b16 %v2455
    %v2543 = vunpack.c.h.b16 %v2455
    %v2544 = vunpack.c.l.b16 %v2456
    %v2545 = vunpack.c.h.b16 %v2456
    %v2546 = vunpack.c.l.b16 %v2457
    %v2547 = vunpack.c.h.b16 %v2457
    %v2548 = vunpack.c.l.b16 %v2458
    %v2549 = vunpack.c.h.b16 %v2458
    %v2550 = vunpack.c.l.b16 %v2459
    %v2551 = vunpack.c.h.b16 %v2459
    %v2552 = vunpack.c.l.b16 %v2460
    %v2553 = vunpack.c.h.b16 %v2460
    %v2554 = vunpack.c.l.b16 %v2461
    %v2555 = vunpack.c.h.b16 %v2461
    %v2556 = vunpack.c.l.b16 %v2462
    %v2557 = vunpack.c.h.b16 %v2462
    %v2558 = vunpack.c.l.b16 %v2463
    %v2559 = vunpack.c.h.b16 %v2463
    %v2560 = vpack.c.b16 %v2500, %v2496
    %v2561 = vpack.c.b16 %v2501, %v2497
    %v2562 = vpack.c.b16 %v2502, %v2498
    %v2563 = vpack.c.b16 %v2503, %v2499
    %v2564 = vpack.c.b16 %v2508, %v2504
    %v2565 = vpack.c.b16 %v2509, %v2505
    %v2566 = vpack.c.b16 %v2510, %v2506
    %v2567 = vpack.c.b16 %v2511, %v2507
    %v2568 = vpack.c.b16 %v2516, %v2512
    %v2569 = vpack.c.b16 %v2517, %v2513
    %v2570 = vpack.c.b16 %v2518, %v2514
    %v2571 = vpack.c.b16 %v2519, %v2515
    %v2572 = vpack.c.b16 %v2524, %v2520
    %v2573 = vpack.c.b16 %v2525, %v2521
    %v2574 = vpack.c.b16 %v2526, %v2522
    %v2575 = vpack.c.b16 %v2527, %v2523
    %v2576 = vpack.c.b16 %v2532, %v2528
    %v2577 = vpack.c.b16 %v2533, %v2529
    %v2578 = vpack.c.b16 %v2534, %v2530
    %v2579 = vpack.c.b16 %v2535, %v2531
    %v2580 = vpack.c.b16 %v2540, %v2536
    %v2581 = vpack.c.b16 %v2541, %v2537
    %v2582 = vpack.c.b16 %v2542, %v2538
    %v2583 = vpack.c.b16 %v2543, %v2539
    %v2584 = vpack.c.b16 %v2548, %v2544
    %v2585 = vpack.c.b16 %v2549, %v2545
    %v2586 = vpack.c.b16 %v2550, %v2546
    %v2587 = vpack.c.b16 %v2551, %v2547
    %v2588 = vpack.c.b16 %v2556, %v2552
    %v2589 = vpack.c.b16 %v2557, %v2553
    %v2590 = vpack.c.b16 %v2558, %v2554
    %v2591 = vpack.c.b16 %v2559, %v2555
    %2624 = vmatpush.bf16.msra.mxu0 %v2588
    %2625 = vmatpush.bf16.msra.mxu0 %v2584
    %2626 = vmatpush.bf16.msra.mxu0 %v2580
    %2627 = vmatpush.bf16.msra.mxu0 %v2576
    %2628 = vmatpush.bf16.msra.mxu0 %v2572
    %2629 = vmatpush.bf16.msra.mxu0 %v2568
    %2630 = vmatpush.bf16.msra.mxu0 %v2564
    %2631 = vmatpush.bf16.msra.mxu0 %v2560
    %2632 = vmatmul.bf16.gmra.mxu0 %v2430
    %v2633 = vpop.f32.mrf.mxu0
    %v2634 = vadd.f32 0.0, %v2633
    %v2635 = vpop.f32.mrf.mxu0
    %2636 = vdwg.mxu0
    %2637 = vmatpush.bf16.msra.mxu0 %v2589
    %2638 = vmatpush.bf16.msra.mxu0 %v2585
    %2639 = vmatpush.bf16.msra.mxu0 %v2581
    %2640 = vmatpush.bf16.msra.mxu0 %v2577
    %2641 = vmatpush.bf16.msra.mxu0 %v2573
    %2642 = vmatpush.bf16.msra.mxu0 %v2569
    %2643 = vmatpush.bf16.msra.mxu0 %v2565
    %2644 = vmatpush.bf16.msra.mxu0 %v2561
    %2645 = vmatmul.bf16.gmra.mxu0 %v2430
    %v2646 = vpop.f32.mrf.mxu0
    %v2647 = vadd.f32 0.0, %v2646
    %v2648 = vpop.f32.mrf.mxu0
    %2649 = vdwg.mxu0
    %2650 = vmatpush.bf16.msra.mxu0 %v2590
    %2651 = vmatpush.bf16.msra.mxu0 %v2586
    %2652 = vmatpush.bf16.msra.mxu0 %v2582
    %2653 = vmatpush.bf16.msra.mxu0 %v2578
    %2654 = vmatpush.bf16.msra.mxu0 %v2574
    %2655 = vmatpush.bf16.msra.mxu0 %v2570
    %2656 = vmatpush.bf16.msra.mxu0 %v2566
    %2657 = vmatpush.bf16.msra.mxu0 %v2562
    %2658 = vmatmul.bf16.gmra.mxu0 %v2430
    %v2659 = vpop.f32.mrf.mxu0
    %v2660 = vadd.f32 0.0, %v2659
    %v2661 = vpop.f32.mrf.mxu0
    %2662 = vdwg.mxu0
    %2663 = vmatpush.bf16.msra.mxu0 %v2591
    %2664 = vmatpush.bf16.msra.mxu0 %v2587
    %2665 = vmatpush.bf16.msra.mxu0 %v2583
    %2666 = vmatpush.bf16.msra.mxu0 %v2579
    %2667 = vmatpush.bf16.msra.mxu0 %v2575
    %2668 = vmatpush.bf16.msra.mxu0 %v2571
    %2669 = vmatpush.bf16.msra.mxu0 %v2567
    %2670 = vmatpush.bf16.msra.mxu0 %v2563
    %2671 = vmatmul.bf16.gmra.mxu0 %v2430
    %v2672 = vpop.f32.mrf.mxu0
    %v2673 = vadd.f32 0.0, %v2672
    %v2674 = vpop.f32.mrf.mxu0
    %2675 = vdwg.mxu0
    %v2708 = vunpack.c.l.b16 %v2373
    %v2709 = vunpack.c.h.b16 %v2373
    %v2710 = vunpack.c.l.b16 %v2374
    %v2711 = vunpack.c.h.b16 %v2374
    %v2712 = vunpack.c.l.b16 %v2375
    %v2713 = vunpack.c.h.b16 %v2375
    %v2714 = vunpack.c.l.b16 %v2376
    %v2715 = vunpack.c.h.b16 %v2376
    %v2716 = vunpack.c.l.b16 %v2377
    %v2717 = vunpack.c.h.b16 %v2377
    %v2718 = vunpack.c.l.b16 %v2378
    %v2719 = vunpack.c.h.b16 %v2378
    %v2720 = vunpack.c.l.b16 %v2379
    %v2721 = vunpack.c.h.b16 %v2379
    %v2722 = vunpack.c.l.b16 %v2380
    %v2723 = vunpack.c.h.b16 %v2380
    %v2724 = vunpack.c.l.b16 %v2381
    %v2725 = vunpack.c.h.b16 %v2381
    %v2726 = vunpack.c.l.b16 %v2382
    %v2727 = vunpack.c.h.b16 %v2382
    %v2728 = vunpack.c.l.b16 %v2383
    %v2729 = vunpack.c.h.b16 %v2383
    %v2730 = vunpack.c.l.b16 %v2384
    %v2731 = vunpack.c.h.b16 %v2384
    %v2732 = vunpack.c.l.b16 %v2385
    %v2733 = vunpack.c.h.b16 %v2385
    %v2734 = vunpack.c.l.b16 %v2386
    %v2735 = vunpack.c.h.b16 %v2386
    %v2736 = vunpack.c.l.b16 %v2387
    %v2737 = vunpack.c.h.b16 %v2387
    %v2738 = vunpack.c.l.b16 %v2388
    %v2739 = vunpack.c.h.b16 %v2388
    %v2740 = vunpack.c.l.b16 %v2389
    %v2741 = vunpack.c.h.b16 %v2389
    %v2742 = vunpack.c.l.b16 %v2390
    %v2743 = vunpack.c.h.b16 %v2390
    %v2744 = vunpack.c.l.b16 %v2391
    %v2745 = vunpack.c.h.b16 %v2391
    %v2746 = vunpack.c.l.b16 %v2392
    %v2747 = vunpack.c.h.b16 %v2392
    %v2748 = vunpack.c.l.b16 %v2393
    %v2749 = vunpack.c.h.b16 %v2393
    %v2750 = vunpack.c.l.b16 %v2394
    %v2751 = vunpack.c.h.b16 %v2394
    %v2752 = vunpack.c.l.b16 %v2395
    %v2753 = vunpack.c.h.b16 %v2395
    %v2754 = vunpack.c.l.b16 %v2396
    %v2755 = vunpack.c.h.b16 %v2396
    %v2756 = vunpack.c.l.b16 %v2397
    %v2757 = vunpack.c.h.b16 %v2397
    %v2758 = vunpack.c.l.b16 %v2398
    %v2759 = vunpack.c.h.b16 %v2398
    %v2760 = vunpack.c.l.b16 %v2399
    %v2761 = vunpack.c.h.b16 %v2399
    %v2762 = vunpack.c.l.b16 %v2400
    %v2763 = vunpack.c.h.b16 %v2400
    %v2764 = vunpack.c.l.b16 %v2401
    %v2765 = vunpack.c.h.b16 %v2401
    %v2766 = vunpack.c.l.b16 %v2402
    %v2767 = vunpack.c.h.b16 %v2402
    %v2768 = vunpack.c.l.b16 %v2403
    %v2769 = vunpack.c.h.b16 %v2403
    %v2770 = vunpack.c.l.b16 %v2404
    %v2771 = vunpack.c.h.b16 %v2404
    %v2772 = vpack.c.b16 %v2712, %v2708
    %v2773 = vpack.c.b16 %v2713, %v2709
    %v2774 = vpack.c.b16 %v2714, %v2710
    %v2775 = vpack.c.b16 %v2715, %v2711
    %v2776 = vpack.c.b16 %v2720, %v2716
    %v2777 = vpack.c.b16 %v2721, %v2717
    %v2778 = vpack.c.b16 %v2722, %v2718
    %v2779 = vpack.c.b16 %v2723, %v2719
    %v2780 = vpack.c.b16 %v2728, %v2724
    %v2781 = vpack.c.b16 %v2729, %v2725
    %v2782 = vpack.c.b16 %v2730, %v2726
    %v2783 = vpack.c.b16 %v2731, %v2727
    %v2784 = vpack.c.b16 %v2736, %v2732
    %v2785 = vpack.c.b16 %v2737, %v2733
    %v2786 = vpack.c.b16 %v2738, %v2734
    %v2787 = vpack.c.b16 %v2739, %v2735
    %v2788 = vpack.c.b16 %v2744, %v2740
    %v2789 = vpack.c.b16 %v2745, %v2741
    %v2790 = vpack.c.b16 %v2746, %v2742
    %v2791 = vpack.c.b16 %v2747, %v2743
    %v2792 = vpack.c.b16 %v2752, %v2748
    %v2793 = vpack.c.b16 %v2753, %v2749
    %v2794 = vpack.c.b16 %v2754, %v2750
    %v2795 = vpack.c.b16 %v2755, %v2751
    %v2796 = vpack.c.b16 %v2760, %v2756
    %v2797 = vpack.c.b16 %v2761, %v2757
    %v2798 = vpack.c.b16 %v2762, %v2758
    %v2799 = vpack.c.b16 %v2763, %v2759
    %v2800 = vpack.c.b16 %v2768, %v2764
    %v2801 = vpack.c.b16 %v2769, %v2765
    %v2802 = vpack.c.b16 %v2770, %v2766
    %v2803 = vpack.c.b16 %v2771, %v2767
    %2836 = vmatpush.bf16.msra.mxu0 %v2800
    %2837 = vmatpush.bf16.msra.mxu0 %v2796
    %2838 = vmatpush.bf16.msra.mxu0 %v2792
    %2839 = vmatpush.bf16.msra.mxu0 %v2788
    %2840 = vmatpush.bf16.msra.mxu0 %v2784
    %2841 = vmatpush.bf16.msra.mxu0 %v2780
    %2842 = vmatpush.bf16.msra.mxu0 %v2776
    %2843 = vmatpush.bf16.msra.mxu0 %v2772
    %2844 = vmatmul.bf16.gmra.mxu0 %v2372
    %v2845 = vpop.f32.mrf.mxu0
    %v2846 = vadd.f32 %v2634, %v2845
    %v2847 = vpop.f32.mrf.mxu0
    %2848 = vdwg.mxu0
    %2849 = vmatpush.bf16.msra.mxu0 %v2801
    %2850 = vmatpush.bf16.msra.mxu0 %v2797
    %2851 = vmatpush.bf16.msra.mxu0 %v2793
    %2852 = vmatpush.bf16.msra.mxu0 %v2789
    %2853 = vmatpush.bf16.msra.mxu0 %v2785
    %2854 = vmatpush.bf16.msra.mxu0 %v2781
    %2855 = vmatpush.bf16.msra.mxu0 %v2777
    %2856 = vmatpush.bf16.msra.mxu0 %v2773
    %2857 = vmatmul.bf16.gmra.mxu0 %v2372
    %v2858 = vpop.f32.mrf.mxu0
    %v2859 = vadd.f32 %v2647, %v2858
    %v2860 = vpop.f32.mrf.mxu0
    %2861 = vdwg.mxu0
    %2862 = vmatpush.bf16.msra.mxu0 %v2802
    %2863 = vmatpush.bf16.msra.mxu0 %v2798
    %2864 = vmatpush.bf16.msra.mxu0 %v2794
    %2865 = vmatpush.bf16.msra.mxu0 %v2790
    %2866 = vmatpush.bf16.msra.mxu0 %v2786
    %2867 = vmatpush.bf16.msra.mxu0 %v2782
    %2868 = vmatpush.bf16.msra.mxu0 %v2778
    %2869 = vmatpush.bf16.msra.mxu0 %v2774
    %2870 = vmatmul.bf16.gmra.mxu0 %v2372
    %v2871 = vpop.f32.mrf.mxu0
    %v2872 = vadd.f32 %v2660, %v2871
    %v2873 = vpop.f32.mrf.mxu0
    %2874 = vdwg.mxu0
    %2875 = vmatpush.bf16.msra.mxu0 %v2803
    %2876 = vmatpush.bf16.msra.mxu0 %v2799
    %2877 = vmatpush.bf16.msra.mxu0 %v2795
    %2878 = vmatpush.bf16.msra.mxu0 %v2791
    %2879 = vmatpush.bf16.msra.mxu0 %v2787
    %2880 = vmatpush.bf16.msra.mxu0 %v2783
    %2881 = vmatpush.bf16.msra.mxu0 %v2779
    %2882 = vmatpush.bf16.msra.mxu0 %v2775
    %2883 = vmatmul.bf16.gmra.mxu0 %v2372
    %v2884 = vpop.f32.mrf.mxu0
    %v2885 = vadd.f32 %v2673, %v2884
    %v2886 = vpop.f32.mrf.mxu0
    %2887 = vdwg.mxu0
    %s2888 = scalar_lea.vmem [#allocation29], 8
    %v2889 = vld [vmem:[%s2888] sm:$0xf]
    %v2891 = vsel %vm398, %v2889, 0
    %2893 = vmatpush.msra.mxu0 0.0
    %2894 = vmatpush.msra.mxu0 0.0
    %2895 = vmatpush.msra.mxu0 0.0
    %2896 = vmatpush.msra.mxu0 0.0
    %2897 = vmatpush.msra.mxu0 0.0
    %2898 = vmatpush.msra.mxu0 0.0
    %2899 = vmatpush.msra.mxu0 0.0
    %2900 = vmatpush.msra.mxu0 0.0
    %2901 = vmatpush.msra.mxu0 %v2342
    %2902 = vmatpush.msra.mxu0 %v2341
    %2903 = vmatpush.msra.mxu0 %v2340
    %2904 = vmatpush.msra.mxu0 %v2339
    %2905 = vmatpush.msra.mxu0 %v2338
    %2906 = vmatpush.msra.mxu0 %v2337
    %2907 = vmatpush.msra.mxu0 %v2336
    %2908 = vmatpush.msra.mxu0 %v2335
    %2909 = vmatmul.f32.gmra.mxu0 %v2891
    %v2910 = vpop.f32.mrf.mxu0
    %v2911 = vadd.f32 0.0, %v2910
    %2912 = vdwg.mxu0
    %v2913 = vpack.c.bf16 %v2911, %v2911
    %s2914 = scalar_lea.vmem [#allocation2], 512
    %v2915 = vld [vmem:[%s2914] sm:$0xff]
    %v2916 = vld [vmem:[%s2914 + $0x8] sm:$0xff]
    %v2917 = vld [vmem:[%s2914 + $0x10] sm:$0xff]
    %v2918 = vld [vmem:[%s2914 + $0x18] sm:$0xff]
    %v2919 = vld [vmem:[%s2914 + $0x20] sm:$0xff]
    %v2920 = vld [vmem:[%s2914 + $0x28] sm:$0xff]
    %v2921 = vld [vmem:[%s2914 + $0x30] sm:$0xff]
    %v2922 = vld [vmem:[%s2914 + $0x38] sm:$0xff]
    %v2923 = vld [vmem:[%s2914 + $0x40] sm:$0xff]
    %v2924 = vld [vmem:[%s2914 + $0x48] sm:$0xff]
    %v2925 = vld [vmem:[%s2914 + $0x50] sm:$0xff]
    %v2926 = vld [vmem:[%s2914 + $0x58] sm:$0xff]
    %v2927 = vld [vmem:[%s2914 + $0x60] sm:$0xff]
    %v2928 = vld [vmem:[%s2914 + $0x68] sm:$0xff]
    %v2929 = vld [vmem:[%s2914 + $0x70] sm:$0xff]
    %v2930 = vld [vmem:[%s2914 + $0x78] sm:$0xff]
    %v2931 = vld [vmem:[%s2914 + $0x80] sm:$0xff]
    %v2932 = vld [vmem:[%s2914 + $0x88] sm:$0xff]
    %v2933 = vld [vmem:[%s2914 + $0x90] sm:$0xff]
    %v2934 = vld [vmem:[%s2914 + $0x98] sm:$0xff]
    %v2935 = vld [vmem:[%s2914 + $0xa0] sm:$0xff]
    %v2936 = vld [vmem:[%s2914 + $0xa8] sm:$0xff]
    %v2937 = vld [vmem:[%s2914 + $0xb0] sm:$0xff]
    %v2938 = vld [vmem:[%s2914 + $0xb8] sm:$0xff]
    %v2939 = vld [vmem:[%s2914 + $0xc0] sm:$0xff]
    %v2940 = vld [vmem:[%s2914 + $0xc8] sm:$0xff]
    %v2941 = vld [vmem:[%s2914 + $0xd0] sm:$0xff]
    %v2942 = vld [vmem:[%s2914 + $0xd8] sm:$0xff]
    %v2943 = vld [vmem:[%s2914 + $0xe0] sm:$0xff]
    %v2944 = vld [vmem:[%s2914 + $0xe8] sm:$0xff]
    %v2945 = vld [vmem:[%s2914 + $0xf0] sm:$0xff]
    %v2946 = vld [vmem:[%s2914 + $0xf8] sm:$0xff]
    %v2979 = vunpack.c.l.b16 %v2915
    %v2980 = vunpack.c.h.b16 %v2915
    %v2981 = vunpack.c.l.b16 %v2916
    %v2982 = vunpack.c.h.b16 %v2916
    %v2983 = vunpack.c.l.b16 %v2917
    %v2984 = vunpack.c.h.b16 %v2917
    %v2985 = vunpack.c.l.b16 %v2918
    %v2986 = vunpack.c.h.b16 %v2918
    %v2987 = vunpack.c.l.b16 %v2919
    %v2988 = vunpack.c.h.b16 %v2919
    %v2989 = vunpack.c.l.b16 %v2920
    %v2990 = vunpack.c.h.b16 %v2920
    %v2991 = vunpack.c.l.b16 %v2921
    %v2992 = vunpack.c.h.b16 %v2921
    %v2993 = vunpack.c.l.b16 %v2922
    %v2994 = vunpack.c.h.b16 %v2922
    %v2995 = vunpack.c.l.b16 %v2923
    %v2996 = vunpack.c.h.b16 %v2923
    %v2997 = vunpack.c.l.b16 %v2924
    %v2998 = vunpack.c.h.b16 %v2924
    %v2999 = vunpack.c.l.b16 %v2925
    %v3000 = vunpack.c.h.b16 %v2925
    %v3001 = vunpack.c.l.b16 %v2926
    %v3002 = vunpack.c.h.b16 %v2926
    %v3003 = vunpack.c.l.b16 %v2927
    %v3004 = vunpack.c.h.b16 %v2927
    %v3005 = vunpack.c.l.b16 %v2928
    %v3006 = vunpack.c.h.b16 %v2928
    %v3007 = vunpack.c.l.b16 %v2929
    %v3008 = vunpack.c.h.b16 %v2929
    %v3009 = vunpack.c.l.b16 %v2930
    %v3010 = vunpack.c.h.b16 %v2930
    %v3011 = vunpack.c.l.b16 %v2931
    %v3012 = vunpack.c.h.b16 %v2931
    %v3013 = vunpack.c.l.b16 %v2932
    %v3014 = vunpack.c.h.b16 %v2932
    %v3015 = vunpack.c.l.b16 %v2933
    %v3016 = vunpack.c.h.b16 %v2933
    %v3017 = vunpack.c.l.b16 %v2934
    %v3018 = vunpack.c.h.b16 %v2934
    %v3019 = vunpack.c.l.b16 %v2935
    %v3020 = vunpack.c.h.b16 %v2935
    %v3021 = vunpack.c.l.b16 %v2936
    %v3022 = vunpack.c.h.b16 %v2936
    %v3023 = vunpack.c.l.b16 %v2937
    %v3024 = vunpack.c.h.b16 %v2937
    %v3025 = vunpack.c.l.b16 %v2938
    %v3026 = vunpack.c.h.b16 %v2938
    %v3027 = vunpack.c.l.b16 %v2939
    %v3028 = vunpack.c.h.b16 %v2939
    %v3029 = vunpack.c.l.b16 %v2940
    %v3030 = vunpack.c.h.b16 %v2940
    %v3031 = vunpack.c.l.b16 %v2941
    %v3032 = vunpack.c.h.b16 %v2941
    %v3033 = vunpack.c.l.b16 %v2942
    %v3034 = vunpack.c.h.b16 %v2942
    %v3035 = vunpack.c.l.b16 %v2943
    %v3036 = vunpack.c.h.b16 %v2943
    %v3037 = vunpack.c.l.b16 %v2944
    %v3038 = vunpack.c.h.b16 %v2944
    %v3039 = vunpack.c.l.b16 %v2945
    %v3040 = vunpack.c.h.b16 %v2945
    %v3041 = vunpack.c.l.b16 %v2946
    %v3042 = vunpack.c.h.b16 %v2946
    %v3043 = vpack.c.b16 %v2983, %v2979
    %v3044 = vpack.c.b16 %v2984, %v2980
    %v3045 = vpack.c.b16 %v2985, %v2981
    %v3046 = vpack.c.b16 %v2986, %v2982
    %v3047 = vpack.c.b16 %v2991, %v2987
    %v3048 = vpack.c.b16 %v2992, %v2988
    %v3049 = vpack.c.b16 %v2993, %v2989
    %v3050 = vpack.c.b16 %v2994, %v2990
    %v3051 = vpack.c.b16 %v2999, %v2995
    %v3052 = vpack.c.b16 %v3000, %v2996
    %v3053 = vpack.c.b16 %v3001, %v2997
    %v3054 = vpack.c.b16 %v3002, %v2998
    %v3055 = vpack.c.b16 %v3007, %v3003
    %v3056 = vpack.c.b16 %v3008, %v3004
    %v3057 = vpack.c.b16 %v3009, %v3005
    %v3058 = vpack.c.b16 %v3010, %v3006
    %v3059 = vpack.c.b16 %v3015, %v3011
    %v3060 = vpack.c.b16 %v3016, %v3012
    %v3061 = vpack.c.b16 %v3017, %v3013
    %v3062 = vpack.c.b16 %v3018, %v3014
    %v3063 = vpack.c.b16 %v3023, %v3019
    %v3064 = vpack.c.b16 %v3024, %v3020
    %v3065 = vpack.c.b16 %v3025, %v3021
    %v3066 = vpack.c.b16 %v3026, %v3022
    %v3067 = vpack.c.b16 %v3031, %v3027
    %v3068 = vpack.c.b16 %v3032, %v3028
    %v3069 = vpack.c.b16 %v3033, %v3029
    %v3070 = vpack.c.b16 %v3034, %v3030
    %v3071 = vpack.c.b16 %v3039, %v3035
    %v3072 = vpack.c.b16 %v3040, %v3036
    %v3073 = vpack.c.b16 %v3041, %v3037
    %v3074 = vpack.c.b16 %v3042, %v3038
    %3107 = vmatpush.bf16.msra.mxu0 %v3071
    %3108 = vmatpush.bf16.msra.mxu0 %v3067
    %3109 = vmatpush.bf16.msra.mxu0 %v3063
    %3110 = vmatpush.bf16.msra.mxu0 %v3059
    %3111 = vmatpush.bf16.msra.mxu0 %v3055
    %3112 = vmatpush.bf16.msra.mxu0 %v3051
    %3113 = vmatpush.bf16.msra.mxu0 %v3047
    %3114 = vmatpush.bf16.msra.mxu0 %v3043
    %3115 = vmatmul.bf16.gmra.mxu0 %v2913
    %v3116 = vpop.f32.mrf.mxu0
    %v3117 = vadd.f32 0.0, %v3116
    %v3118 = vpop.f32.mrf.mxu0
    %3119 = vdwg.mxu0
    %3120 = vmatpush.bf16.msra.mxu0 %v3072
    %3121 = vmatpush.bf16.msra.mxu0 %v3068
    %3122 = vmatpush.bf16.msra.mxu0 %v3064
    %3123 = vmatpush.bf16.msra.mxu0 %v3060
    %3124 = vmatpush.bf16.msra.mxu0 %v3056
    %3125 = vmatpush.bf16.msra.mxu0 %v3052
    %3126 = vmatpush.bf16.msra.mxu0 %v3048
    %3127 = vmatpush.bf16.msra.mxu0 %v3044
    %3128 = vmatmul.bf16.gmra.mxu0 %v2913
    %v3129 = vpop.f32.mrf.mxu0
    %v3130 = vadd.f32 0.0, %v3129
    %v3131 = vpop.f32.mrf.mxu0
    %3132 = vdwg.mxu0
    %3133 = vmatpush.bf16.msra.mxu0 %v3073
    %3134 = vmatpush.bf16.msra.mxu0 %v3069
    %3135 = vmatpush.bf16.msra.mxu0 %v3065
    %3136 = vmatpush.bf16.msra.mxu0 %v3061
    %3137 = vmatpush.bf16.msra.mxu0 %v3057
    %3138 = vmatpush.bf16.msra.mxu0 %v3053
    %3139 = vmatpush.bf16.msra.mxu0 %v3049
    %3140 = vmatpush.bf16.msra.mxu0 %v3045
    %3141 = vmatmul.bf16.gmra.mxu0 %v2913
    %v3142 = vpop.f32.mrf.mxu0
    %v3143 = vadd.f32 0.0, %v3142
    %v3144 = vpop.f32.mrf.mxu0
    %3145 = vdwg.mxu0
    %3146 = vmatpush.bf16.msra.mxu0 %v3074
    %3147 = vmatpush.bf16.msra.mxu0 %v3070
    %3148 = vmatpush.bf16.msra.mxu0 %v3066
    %3149 = vmatpush.bf16.msra.mxu0 %v3062
    %3150 = vmatpush.bf16.msra.mxu0 %v3058
    %3151 = vmatpush.bf16.msra.mxu0 %v3054
    %3152 = vmatpush.bf16.msra.mxu0 %v3050
    %3153 = vmatpush.bf16.msra.mxu0 %v3046
    %3154 = vmatmul.bf16.gmra.mxu0 %v2913
    %v3155 = vpop.f32.mrf.mxu0
    %v3156 = vadd.f32 0.0, %v3155
    %v3157 = vpop.f32.mrf.mxu0
    %3158 = vdwg.mxu0
    %v3159 = vadd.f32 %v2846, %v3117
    %v3160 = vadd.f32 %v2859, %v3130
    %v3161 = vadd.f32 %v2872, %v3143
    %v3162 = vadd.f32 %v2885, %v3156
    %s3163 = scalar_lea.vmem [#allocation29], 12
    %v3164 = vld [vmem:[%s3163] sm:$0xf]
    %v3166 = vsel %vm398, %v3164, 0
    %3168 = vmatpush.msra.mxu0 0.0
    %3169 = vmatpush.msra.mxu0 0.0
    %3170 = vmatpush.msra.mxu0 0.0
    %3171 = vmatpush.msra.mxu0 0.0
    %3172 = vmatpush.msra.mxu0 0.0
    %3173 = vmatpush.msra.mxu0 0.0
    %3174 = vmatpush.msra.mxu0 0.0
    %3175 = vmatpush.msra.mxu0 0.0
    %3176 = vmatpush.msra.mxu0 %v2342
    %3177 = vmatpush.msra.mxu0 %v2341
    %3178 = vmatpush.msra.mxu0 %v2340
    %3179 = vmatpush.msra.mxu0 %v2339
    %3180 = vmatpush.msra.mxu0 %v2338
    %3181 = vmatpush.msra.mxu0 %v2337
    %3182 = vmatpush.msra.mxu0 %v2336
    %3183 = vmatpush.msra.mxu0 %v2335
    %3184 = vmatmul.f32.gmra.mxu0 %v3166
    %v3185 = vpop.f32.mrf.mxu0
    %v3186 = vadd.f32 0.0, %v3185
    %3187 = vdwg.mxu0
    %v3188 = vpack.c.bf16 %v3186, %v3186
    %s3189 = scalar_lea.vmem [#allocation2], 768
    %v3190 = vld [vmem:[%s3189] sm:$0xff]
    %v3191 = vld [vmem:[%s3189 + $0x8] sm:$0xff]
    %v3192 = vld [vmem:[%s3189 + $0x10] sm:$0xff]
    %v3193 = vld [vmem:[%s3189 + $0x18] sm:$0xff]
    %v3194 = vld [vmem:[%s3189 + $0x20] sm:$0xff]
    %v3195 = vld [vmem:[%s3189 + $0x28] sm:$0xff]
    %v3196 = vld [vmem:[%s3189 + $0x30] sm:$0xff]
    %v3197 = vld [vmem:[%s3189 + $0x38] sm:$0xff]
    %v3198 = vld [vmem:[%s3189 + $0x40] sm:$0xff]
    %v3199 = vld [vmem:[%s3189 + $0x48] sm:$0xff]
    %v3200 = vld [vmem:[%s3189 + $0x50] sm:$0xff]
    %v3201 = vld [vmem:[%s3189 + $0x58] sm:$0xff]
    %v3202 = vld [vmem:[%s3189 + $0x60] sm:$0xff]
    %v3203 = vld [vmem:[%s3189 + $0x68] sm:$0xff]
    %v3204 = vld [vmem:[%s3189 + $0x70] sm:$0xff]
    %v3205 = vld [vmem:[%s3189 + $0x78] sm:$0xff]
    %v3206 = vld [vmem:[%s3189 + $0x80] sm:$0xff]
    %v3207 = vld [vmem:[%s3189 + $0x88] sm:$0xff]
    %v3208 = vld [vmem:[%s3189 + $0x90] sm:$0xff]
    %v3209 = vld [vmem:[%s3189 + $0x98] sm:$0xff]
    %v3210 = vld [vmem:[%s3189 + $0xa0] sm:$0xff]
    %v3211 = vld [vmem:[%s3189 + $0xa8] sm:$0xff]
    %v3212 = vld [vmem:[%s3189 + $0xb0] sm:$0xff]
    %v3213 = vld [vmem:[%s3189 + $0xb8] sm:$0xff]
    %v3214 = vld [vmem:[%s3189 + $0xc0] sm:$0xff]
    %v3215 = vld [vmem:[%s3189 + $0xc8] sm:$0xff]
    %v3216 = vld [vmem:[%s3189 + $0xd0] sm:$0xff]
    %v3217 = vld [vmem:[%s3189 + $0xd8] sm:$0xff]
    %v3218 = vld [vmem:[%s3189 + $0xe0] sm:$0xff]
    %v3219 = vld [vmem:[%s3189 + $0xe8] sm:$0xff]
    %v3220 = vld [vmem:[%s3189 + $0xf0] sm:$0xff]
    %v3221 = vld [vmem:[%s3189 + $0xf8] sm:$0xff]
    %v3254 = vunpack.c.l.b16 %v3190
    %v3255 = vunpack.c.h.b16 %v3190
    %v3256 = vunpack.c.l.b16 %v3191
    %v3257 = vunpack.c.h.b16 %v3191
    %v3258 = vunpack.c.l.b16 %v3192
    %v3259 = vunpack.c.h.b16 %v3192
    %v3260 = vunpack.c.l.b16 %v3193
    %v3261 = vunpack.c.h.b16 %v3193
    %v3262 = vunpack.c.l.b16 %v3194
    %v3263 = vunpack.c.h.b16 %v3194
    %v3264 = vunpack.c.l.b16 %v3195
    %v3265 = vunpack.c.h.b16 %v3195
    %v3266 = vunpack.c.l.b16 %v3196
    %v3267 = vunpack.c.h.b16 %v3196
    %v3268 = vunpack.c.l.b16 %v3197
    %v3269 = vunpack.c.h.b16 %v3197
    %v3270 = vunpack.c.l.b16 %v3198
    %v3271 = vunpack.c.h.b16 %v3198
    %v3272 = vunpack.c.l.b16 %v3199
    %v3273 = vunpack.c.h.b16 %v3199
    %v3274 = vunpack.c.l.b16 %v3200
    %v3275 = vunpack.c.h.b16 %v3200
    %v3276 = vunpack.c.l.b16 %v3201
    %v3277 = vunpack.c.h.b16 %v3201
    %v3278 = vunpack.c.l.b16 %v3202
    %v3279 = vunpack.c.h.b16 %v3202
    %v3280 = vunpack.c.l.b16 %v3203
    %v3281 = vunpack.c.h.b16 %v3203
    %v3282 = vunpack.c.l.b16 %v3204
    %v3283 = vunpack.c.h.b16 %v3204
    %v3284 = vunpack.c.l.b16 %v3205
    %v3285 = vunpack.c.h.b16 %v3205
    %v3286 = vunpack.c.l.b16 %v3206
    %v3287 = vunpack.c.h.b16 %v3206
    %v3288 = vunpack.c.l.b16 %v3207
    %v3289 = vunpack.c.h.b16 %v3207
    %v3290 = vunpack.c.l.b16 %v3208
    %v3291 = vunpack.c.h.b16 %v3208
    %v3292 = vunpack.c.l.b16 %v3209
    %v3293 = vunpack.c.h.b16 %v3209
    %v3294 = vunpack.c.l.b16 %v3210
    %v3295 = vunpack.c.h.b16 %v3210
    %v3296 = vunpack.c.l.b16 %v3211
    %v3297 = vunpack.c.h.b16 %v3211
    %v3298 = vunpack.c.l.b16 %v3212
    %v3299 = vunpack.c.h.b16 %v3212
    %v3300 = vunpack.c.l.b16 %v3213
    %v3301 = vunpack.c.h.b16 %v3213
    %v3302 = vunpack.c.l.b16 %v3214
    %v3303 = vunpack.c.h.b16 %v3214
    %v3304 = vunpack.c.l.b16 %v3215
    %v3305 = vunpack.c.h.b16 %v3215
    %v3306 = vunpack.c.l.b16 %v3216
    %v3307 = vunpack.c.h.b16 %v3216
    %v3308 = vunpack.c.l.b16 %v3217
    %v3309 = vunpack.c.h.b16 %v3217
    %v3310 = vunpack.c.l.b16 %v3218
    %v3311 = vunpack.c.h.b16 %v3218
    %v3312 = vunpack.c.l.b16 %v3219
    %v3313 = vunpack.c.h.b16 %v3219
    %v3314 = vunpack.c.l.b16 %v3220
    %v3315 = vunpack.c.h.b16 %v3220
    %v3316 = vunpack.c.l.b16 %v3221
    %v3317 = vunpack.c.h.b16 %v3221
    %v3318 = vpack.c.b16 %v3258, %v3254
    %v3319 = vpack.c.b16 %v3259, %v3255
    %v3320 = vpack.c.b16 %v3260, %v3256
    %v3321 = vpack.c.b16 %v3261, %v3257
    %v3322 = vpack.c.b16 %v3266, %v3262
    %v3323 = vpack.c.b16 %v3267, %v3263
    %v3324 = vpack.c.b16 %v3268, %v3264
    %v3325 = vpack.c.b16 %v3269, %v3265
    %v3326 = vpack.c.b16 %v3274, %v3270
    %v3327 = vpack.c.b16 %v3275, %v3271
    %v3328 = vpack.c.b16 %v3276, %v3272
    %v3329 = vpack.c.b16 %v3277, %v3273
    %v3330 = vpack.c.b16 %v3282, %v3278
    %v3331 = vpack.c.b16 %v3283, %v3279
    %v3332 = vpack.c.b16 %v3284, %v3280
    %v3333 = vpack.c.b16 %v3285, %v3281
    %v3334 = vpack.c.b16 %v3290, %v3286
    %v3335 = vpack.c.b16 %v3291, %v3287
    %v3336 = vpack.c.b16 %v3292, %v3288
    %v3337 = vpack.c.b16 %v3293, %v3289
    %v3338 = vpack.c.b16 %v3298, %v3294
    %v3339 = vpack.c.b16 %v3299, %v3295
    %v3340 = vpack.c.b16 %v3300, %v3296
    %v3341 = vpack.c.b16 %v3301, %v3297
    %v3342 = vpack.c.b16 %v3306, %v3302
    %v3343 = vpack.c.b16 %v3307, %v3303
    %v3344 = vpack.c.b16 %v3308, %v3304
    %v3345 = vpack.c.b16 %v3309, %v3305
    %v3346 = vpack.c.b16 %v3314, %v3310
    %v3347 = vpack.c.b16 %v3315, %v3311
    %v3348 = vpack.c.b16 %v3316, %v3312
    %v3349 = vpack.c.b16 %v3317, %v3313
    %3382 = vmatpush.bf16.msra.mxu0 %v3346
    %3383 = vmatpush.bf16.msra.mxu0 %v3342
    %3384 = vmatpush.bf16.msra.mxu0 %v3338
    %3385 = vmatpush.bf16.msra.mxu0 %v3334
    %3386 = vmatpush.bf16.msra.mxu0 %v3330
    %3387 = vmatpush.bf16.msra.mxu0 %v3326
    %3388 = vmatpush.bf16.msra.mxu0 %v3322
    %3389 = vmatpush.bf16.msra.mxu0 %v3318
    %3390 = vmatmul.bf16.gmra.mxu0 %v3188
    %v3391 = vpop.f32.mrf.mxu0
    %v3392 = vadd.f32 0.0, %v3391
    %v3393 = vpop.f32.mrf.mxu0
    %3394 = vdwg.mxu0
    %3395 = vmatpush.bf16.msra.mxu0 %v3347
    %3396 = vmatpush.bf16.msra.mxu0 %v3343
    %3397 = vmatpush.bf16.msra.mxu0 %v3339
    %3398 = vmatpush.bf16.msra.mxu0 %v3335
    %3399 = vmatpush.bf16.msra.mxu0 %v3331
    %3400 = vmatpush.bf16.msra.mxu0 %v3327
    %3401 = vmatpush.bf16.msra.mxu0 %v3323
    %3402 = vmatpush.bf16.msra.mxu0 %v3319
    %3403 = vmatmul.bf16.gmra.mxu0 %v3188
    %v3404 = vpop.f32.mrf.mxu0
    %v3405 = vadd.f32 0.0, %v3404
    %v3406 = vpop.f32.mrf.mxu0
    %3407 = vdwg.mxu0
    %3408 = vmatpush.bf16.msra.mxu0 %v3348
    %3409 = vmatpush.bf16.msra.mxu0 %v3344
    %3410 = vmatpush.bf16.msra.mxu0 %v3340
    %3411 = vmatpush.bf16.msra.mxu0 %v3336
    %3412 = vmatpush.bf16.msra.mxu0 %v3332
    %3413 = vmatpush.bf16.msra.mxu0 %v3328
    %3414 = vmatpush.bf16.msra.mxu0 %v3324
    %3415 = vmatpush.bf16.msra.mxu0 %v3320
    %3416 = vmatmul.bf16.gmra.mxu0 %v3188
    %v3417 = vpop.f32.mrf.mxu0
    %v3418 = vadd.f32 0.0, %v3417
    %v3419 = vpop.f32.mrf.mxu0
    %3420 = vdwg.mxu0
    %3421 = vmatpush.bf16.msra.mxu0 %v3349
    %3422 = vmatpush.bf16.msra.mxu0 %v3345
    %3423 = vmatpush.bf16.msra.mxu0 %v3341
    %3424 = vmatpush.bf16.msra.mxu0 %v3337
    %3425 = vmatpush.bf16.msra.mxu0 %v3333
    %3426 = vmatpush.bf16.msra.mxu0 %v3329
    %3427 = vmatpush.bf16.msra.mxu0 %v3325
    %3428 = vmatpush.bf16.msra.mxu0 %v3321
    %3429 = vmatmul.bf16.gmra.mxu0 %v3188
    %v3430 = vpop.f32.mrf.mxu0
    %v3431 = vadd.f32 0.0, %v3430
    %v3432 = vpop.f32.mrf.mxu0
    %3433 = vdwg.mxu0
    %v3434 = vadd.f32 %v3159, %v3392
    %v3435 = vadd.f32 %v3160, %v3405
    %v3436 = vadd.f32 %v3161, %v3418
    %v3437 = vadd.f32 %v3162, %v3431
    %s3438 = scalar_lea.vmem [#allocation29], 16
    %v3439 = vld [vmem:[%s3438] sm:$0xf]
    %v3441 = vsel %vm398, %v3439, 0
    %3443 = vmatpush.msra.mxu0 0.0
    %3444 = vmatpush.msra.mxu0 0.0
    %3445 = vmatpush.msra.mxu0 0.0
    %3446 = vmatpush.msra.mxu0 0.0
    %3447 = vmatpush.msra.mxu0 0.0
    %3448 = vmatpush.msra.mxu0 0.0
    %3449 = vmatpush.msra.mxu0 0.0
    %3450 = vmatpush.msra.mxu0 0.0
    %3451 = vmatpush.msra.mxu0 %v2342
    %3452 = vmatpush.msra.mxu0 %v2341
    %3453 = vmatpush.msra.mxu0 %v2340
    %3454 = vmatpush.msra.mxu0 %v2339
    %3455 = vmatpush.msra.mxu0 %v2338
    %3456 = vmatpush.msra.mxu0 %v2337
    %3457 = vmatpush.msra.mxu0 %v2336
    %3458 = vmatpush.msra.mxu0 %v2335
    %3459 = vmatmul.f32.gmra.mxu0 %v3441
    %v3460 = vpop.f32.mrf.mxu0
    %v3461 = vadd.f32 0.0, %v3460
    %3462 = vdwg.mxu0
    %v3463 = vpack.c.bf16 %v3461, %v3461
    %s3464 = scalar_lea.vmem [#allocation2], 1024
    %v3465 = vld [vmem:[%s3464] sm:$0xff]
    %v3466 = vld [vmem:[%s3464 + $0x8] sm:$0xff]
    %v3467 = vld [vmem:[%s3464 + $0x10] sm:$0xff]
    %v3468 = vld [vmem:[%s3464 + $0x18] sm:$0xff]
    %v3469 = vld [vmem:[%s3464 + $0x20] sm:$0xff]
    %v3470 = vld [vmem:[%s3464 + $0x28] sm:$0xff]
    %v3471 = vld [vmem:[%s3464 + $0x30] sm:$0xff]
    %v3472 = vld [vmem:[%s3464 + $0x38] sm:$0xff]
    %v3473 = vld [vmem:[%s3464 + $0x40] sm:$0xff]
    %v3474 = vld [vmem:[%s3464 + $0x48] sm:$0xff]
    %v3475 = vld [vmem:[%s3464 + $0x50] sm:$0xff]
    %v3476 = vld [vmem:[%s3464 + $0x58] sm:$0xff]
    %v3477 = vld [vmem:[%s3464 + $0x60] sm:$0xff]
    %v3478 = vld [vmem:[%s3464 + $0x68] sm:$0xff]
    %v3479 = vld [vmem:[%s3464 + $0x70] sm:$0xff]
    %v3480 = vld [vmem:[%s3464 + $0x78] sm:$0xff]
    %v3481 = vld [vmem:[%s3464 + $0x80] sm:$0xff]
    %v3482 = vld [vmem:[%s3464 + $0x88] sm:$0xff]
    %v3483 = vld [vmem:[%s3464 + $0x90] sm:$0xff]
    %v3484 = vld [vmem:[%s3464 + $0x98] sm:$0xff]
    %v3485 = vld [vmem:[%s3464 + $0xa0] sm:$0xff]
    %v3486 = vld [vmem:[%s3464 + $0xa8] sm:$0xff]
    %v3487 = vld [vmem:[%s3464 + $0xb0] sm:$0xff]
    %v3488 = vld [vmem:[%s3464 + $0xb8] sm:$0xff]
    %v3489 = vld [vmem:[%s3464 + $0xc0] sm:$0xff]
    %v3490 = vld [vmem:[%s3464 + $0xc8] sm:$0xff]
    %v3491 = vld [vmem:[%s3464 + $0xd0] sm:$0xff]
    %v3492 = vld [vmem:[%s3464 + $0xd8] sm:$0xff]
    %v3493 = vld [vmem:[%s3464 + $0xe0] sm:$0xff]
    %v3494 = vld [vmem:[%s3464 + $0xe8] sm:$0xff]
    %v3495 = vld [vmem:[%s3464 + $0xf0] sm:$0xff]
    %v3496 = vld [vmem:[%s3464 + $0xf8] sm:$0xff]
    %v3529 = vunpack.c.l.b16 %v3465
    %v3530 = vunpack.c.h.b16 %v3465
    %v3531 = vunpack.c.l.b16 %v3466
    %v3532 = vunpack.c.h.b16 %v3466
    %v3533 = vunpack.c.l.b16 %v3467
    %v3534 = vunpack.c.h.b16 %v3467
    %v3535 = vunpack.c.l.b16 %v3468
    %v3536 = vunpack.c.h.b16 %v3468
    %v3537 = vunpack.c.l.b16 %v3469
    %v3538 = vunpack.c.h.b16 %v3469
    %v3539 = vunpack.c.l.b16 %v3470
    %v3540 = vunpack.c.h.b16 %v3470
    %v3541 = vunpack.c.l.b16 %v3471
    %v3542 = vunpack.c.h.b16 %v3471
    %v3543 = vunpack.c.l.b16 %v3472
    %v3544 = vunpack.c.h.b16 %v3472
    %v3545 = vunpack.c.l.b16 %v3473
    %v3546 = vunpack.c.h.b16 %v3473
    %v3547 = vunpack.c.l.b16 %v3474
    %v3548 = vunpack.c.h.b16 %v3474
    %v3549 = vunpack.c.l.b16 %v3475
    %v3550 = vunpack.c.h.b16 %v3475
    %v3551 = vunpack.c.l.b16 %v3476
    %v3552 = vunpack.c.h.b16 %v3476
    %v3553 = vunpack.c.l.b16 %v3477
    %v3554 = vunpack.c.h.b16 %v3477
    %v3555 = vunpack.c.l.b16 %v3478
    %v3556 = vunpack.c.h.b16 %v3478
    %v3557 = vunpack.c.l.b16 %v3479
    %v3558 = vunpack.c.h.b16 %v3479
    %v3559 = vunpack.c.l.b16 %v3480
    %v3560 = vunpack.c.h.b16 %v3480
    %v3561 = vunpack.c.l.b16 %v3481
    %v3562 = vunpack.c.h.b16 %v3481
    %v3563 = vunpack.c.l.b16 %v3482
    %v3564 = vunpack.c.h.b16 %v3482
    %v3565 = vunpack.c.l.b16 %v3483
    %v3566 = vunpack.c.h.b16 %v3483
    %v3567 = vunpack.c.l.b16 %v3484
    %v3568 = vunpack.c.h.b16 %v3484
    %v3569 = vunpack.c.l.b16 %v3485
    %v3570 = vunpack.c.h.b16 %v3485
    %v3571 = vunpack.c.l.b16 %v3486
    %v3572 = vunpack.c.h.b16 %v3486
    %v3573 = vunpack.c.l.b16 %v3487
    %v3574 = vunpack.c.h.b16 %v3487
    %v3575 = vunpack.c.l.b16 %v3488
    %v3576 = vunpack.c.h.b16 %v3488
    %v3577 = vunpack.c.l.b16 %v3489
    %v3578 = vunpack.c.h.b16 %v3489
    %v3579 = vunpack.c.l.b16 %v3490
    %v3580 = vunpack.c.h.b16 %v3490
    %v3581 = vunpack.c.l.b16 %v3491
    %v3582 = vunpack.c.h.b16 %v3491
    %v3583 = vunpack.c.l.b16 %v3492
    %v3584 = vunpack.c.h.b16 %v3492
    %v3585 = vunpack.c.l.b16 %v3493
    %v3586 = vunpack.c.h.b16 %v3493
    %v3587 = vunpack.c.l.b16 %v3494
    %v3588 = vunpack.c.h.b16 %v3494
    %v3589 = vunpack.c.l.b16 %v3495
    %v3590 = vunpack.c.h.b16 %v3495
    %v3591 = vunpack.c.l.b16 %v3496
    %v3592 = vunpack.c.h.b16 %v3496
    %v3593 = vpack.c.b16 %v3533, %v3529
    %v3594 = vpack.c.b16 %v3534, %v3530
    %v3595 = vpack.c.b16 %v3535, %v3531
    %v3596 = vpack.c.b16 %v3536, %v3532
    %v3597 = vpack.c.b16 %v3541, %v3537
    %v3598 = vpack.c.b16 %v3542, %v3538
    %v3599 = vpack.c.b16 %v3543, %v3539
    %v3600 = vpack.c.b16 %v3544, %v3540
    %v3601 = vpack.c.b16 %v3549, %v3545
    %v3602 = vpack.c.b16 %v3550, %v3546
    %v3603 = vpack.c.b16 %v3551, %v3547
    %v3604 = vpack.c.b16 %v3552, %v3548
    %v3605 = vpack.c.b16 %v3557, %v3553
    %v3606 = vpack.c.b16 %v3558, %v3554
    %v3607 = vpack.c.b16 %v3559, %v3555
    %v3608 = vpack.c.b16 %v3560, %v3556
    %v3609 = vpack.c.b16 %v3565, %v3561
    %v3610 = vpack.c.b16 %v3566, %v3562
    %v3611 = vpack.c.b16 %v3567, %v3563
    %v3612 = vpack.c.b16 %v3568, %v3564
    %v3613 = vpack.c.b16 %v3573, %v3569
    %v3614 = vpack.c.b16 %v3574, %v3570
    %v3615 = vpack.c.b16 %v3575, %v3571
    %v3616 = vpack.c.b16 %v3576, %v3572
    %v3617 = vpack.c.b16 %v3581, %v3577
    %v3618 = vpack.c.b16 %v3582, %v3578
    %v3619 = vpack.c.b16 %v3583, %v3579
    %v3620 = vpack.c.b16 %v3584, %v3580
    %v3621 = vpack.c.b16 %v3589, %v3585
    %v3622 = vpack.c.b16 %v3590, %v3586
    %v3623 = vpack.c.b16 %v3591, %v3587
    %v3624 = vpack.c.b16 %v3592, %v3588
    %3657 = vmatpush.bf16.msra.mxu0 %v3621
    %3658 = vmatpush.bf16.msra.mxu0 %v3617
    %3659 = vmatpush.bf16.msra.mxu0 %v3613
    %3660 = vmatpush.bf16.msra.mxu0 %v3609
    %3661 = vmatpush.bf16.msra.mxu0 %v3605
    %3662 = vmatpush.bf16.msra.mxu0 %v3601
    %3663 = vmatpush.bf16.msra.mxu0 %v3597
    %3664 = vmatpush.bf16.msra.mxu0 %v3593
    %3665 = vmatmul.bf16.gmra.mxu0 %v3463
    %v3666 = vpop.f32.mrf.mxu0
    %v3667 = vadd.f32 0.0, %v3666
    %v3668 = vpop.f32.mrf.mxu0
    %3669 = vdwg.mxu0
    %3670 = vmatpush.bf16.msra.mxu0 %v3622
    %3671 = vmatpush.bf16.msra.mxu0 %v3618
    %3672 = vmatpush.bf16.msra.mxu0 %v3614
    %3673 = vmatpush.bf16.msra.mxu0 %v3610
    %3674 = vmatpush.bf16.msra.mxu0 %v3606
    %3675 = vmatpush.bf16.msra.mxu0 %v3602
    %3676 = vmatpush.bf16.msra.mxu0 %v3598
    %3677 = vmatpush.bf16.msra.mxu0 %v3594
    %3678 = vmatmul.bf16.gmra.mxu0 %v3463
    %v3679 = vpop.f32.mrf.mxu0
    %v3680 = vadd.f32 0.0, %v3679
    %v3681 = vpop.f32.mrf.mxu0
    %3682 = vdwg.mxu0
    %3683 = vmatpush.bf16.msra.mxu0 %v3623
    %3684 = vmatpush.bf16.msra.mxu0 %v3619
    %3685 = vmatpush.bf16.msra.mxu0 %v3615
    %3686 = vmatpush.bf16.msra.mxu0 %v3611
    %3687 = vmatpush.bf16.msra.mxu0 %v3607
    %3688 = vmatpush.bf16.msra.mxu0 %v3603
    %3689 = vmatpush.bf16.msra.mxu0 %v3599
    %3690 = vmatpush.bf16.msra.mxu0 %v3595
    %3691 = vmatmul.bf16.gmra.mxu0 %v3463
    %v3692 = vpop.f32.mrf.mxu0
    %v3693 = vadd.f32 0.0, %v3692
    %v3694 = vpop.f32.mrf.mxu0
    %3695 = vdwg.mxu0
    %3696 = vmatpush.bf16.msra.mxu0 %v3624
    %3697 = vmatpush.bf16.msra.mxu0 %v3620
    %3698 = vmatpush.bf16.msra.mxu0 %v3616
    %3699 = vmatpush.bf16.msra.mxu0 %v3612
    %3700 = vmatpush.bf16.msra.mxu0 %v3608
    %3701 = vmatpush.bf16.msra.mxu0 %v3604
    %3702 = vmatpush.bf16.msra.mxu0 %v3600
    %3703 = vmatpush.bf16.msra.mxu0 %v3596
    %3704 = vmatmul.bf16.gmra.mxu0 %v3463
    %v3705 = vpop.f32.mrf.mxu0
    %v3706 = vadd.f32 0.0, %v3705
    %v3707 = vpop.f32.mrf.mxu0
    %3708 = vdwg.mxu0
    %v3709 = vadd.f32 %v3434, %v3667
    %v3710 = vadd.f32 %v3435, %v3680
    %v3711 = vadd.f32 %v3436, %v3693
    %v3712 = vadd.f32 %v3437, %v3706
    %s3713 = scalar_lea.vmem [#allocation29], 20
    %v3714 = vld [vmem:[%s3713] sm:$0xf]
    %v3716 = vsel %vm398, %v3714, 0
    %3718 = vmatpush.msra.mxu0 0.0
    %3719 = vmatpush.msra.mxu0 0.0
    %3720 = vmatpush.msra.mxu0 0.0
    %3721 = vmatpush.msra.mxu0 0.0
    %3722 = vmatpush.msra.mxu0 0.0
    %3723 = vmatpush.msra.mxu0 0.0
    %3724 = vmatpush.msra.mxu0 0.0
    %3725 = vmatpush.msra.mxu0 0.0
    %3726 = vmatpush.msra.mxu0 %v2342
    %3727 = vmatpush.msra.mxu0 %v2341
    %3728 = vmatpush.msra.mxu0 %v2340
    %3729 = vmatpush.msra.mxu0 %v2339
    %3730 = vmatpush.msra.mxu0 %v2338
    %3731 = vmatpush.msra.mxu0 %v2337
    %3732 = vmatpush.msra.mxu0 %v2336
    %3733 = vmatpush.msra.mxu0 %v2335
    %3734 = vmatmul.f32.gmra.mxu0 %v3716
    %v3735 = vpop.f32.mrf.mxu0
    %v3736 = vadd.f32 0.0, %v3735
    %3737 = vdwg.mxu0
    %v3738 = vpack.c.bf16 %v3736, %v3736
    %s3739 = scalar_lea.vmem [#allocation2], 1280
    %v3740 = vld [vmem:[%s3739] sm:$0xff]
    %v3741 = vld [vmem:[%s3739 + $0x8] sm:$0xff]
    %v3742 = vld [vmem:[%s3739 + $0x10] sm:$0xff]
    %v3743 = vld [vmem:[%s3739 + $0x18] sm:$0xff]
    %v3744 = vld [vmem:[%s3739 + $0x20] sm:$0xff]
    %v3745 = vld [vmem:[%s3739 + $0x28] sm:$0xff]
    %v3746 = vld [vmem:[%s3739 + $0x30] sm:$0xff]
    %v3747 = vld [vmem:[%s3739 + $0x38] sm:$0xff]
    %v3748 = vld [vmem:[%s3739 + $0x40] sm:$0xff]
    %v3749 = vld [vmem:[%s3739 + $0x48] sm:$0xff]
    %v3750 = vld [vmem:[%s3739 + $0x50] sm:$0xff]
    %v3751 = vld [vmem:[%s3739 + $0x58] sm:$0xff]
    %v3752 = vld [vmem:[%s3739 + $0x60] sm:$0xff]
    %v3753 = vld [vmem:[%s3739 + $0x68] sm:$0xff]
    %v3754 = vld [vmem:[%s3739 + $0x70] sm:$0xff]
    %v3755 = vld [vmem:[%s3739 + $0x78] sm:$0xff]
    %v3756 = vld [vmem:[%s3739 + $0x80] sm:$0xff]
    %v3757 = vld [vmem:[%s3739 + $0x88] sm:$0xff]
    %v3758 = vld [vmem:[%s3739 + $0x90] sm:$0xff]
    %v3759 = vld [vmem:[%s3739 + $0x98] sm:$0xff]
    %v3760 = vld [vmem:[%s3739 + $0xa0] sm:$0xff]
    %v3761 = vld [vmem:[%s3739 + $0xa8] sm:$0xff]
    %v3762 = vld [vmem:[%s3739 + $0xb0] sm:$0xff]
    %v3763 = vld [vmem:[%s3739 + $0xb8] sm:$0xff]
    %v3764 = vld [vmem:[%s3739 + $0xc0] sm:$0xff]
    %v3765 = vld [vmem:[%s3739 + $0xc8] sm:$0xff]
    %v3766 = vld [vmem:[%s3739 + $0xd0] sm:$0xff]
    %v3767 = vld [vmem:[%s3739 + $0xd8] sm:$0xff]
    %v3768 = vld [vmem:[%s3739 + $0xe0] sm:$0xff]
    %v3769 = vld [vmem:[%s3739 + $0xe8] sm:$0xff]
    %v3770 = vld [vmem:[%s3739 + $0xf0] sm:$0xff]
    %v3771 = vld [vmem:[%s3739 + $0xf8] sm:$0xff]
    %v3804 = vunpack.c.l.b16 %v3740
    %v3805 = vunpack.c.h.b16 %v3740
    %v3806 = vunpack.c.l.b16 %v3741
    %v3807 = vunpack.c.h.b16 %v3741
    %v3808 = vunpack.c.l.b16 %v3742
    %v3809 = vunpack.c.h.b16 %v3742
    %v3810 = vunpack.c.l.b16 %v3743
    %v3811 = vunpack.c.h.b16 %v3743
    %v3812 = vunpack.c.l.b16 %v3744
    %v3813 = vunpack.c.h.b16 %v3744
    %v3814 = vunpack.c.l.b16 %v3745
    %v3815 = vunpack.c.h.b16 %v3745
    %v3816 = vunpack.c.l.b16 %v3746
    %v3817 = vunpack.c.h.b16 %v3746
    %v3818 = vunpack.c.l.b16 %v3747
    %v3819 = vunpack.c.h.b16 %v3747
    %v3820 = vunpack.c.l.b16 %v3748
    %v3821 = vunpack.c.h.b16 %v3748
    %v3822 = vunpack.c.l.b16 %v3749
    %v3823 = vunpack.c.h.b16 %v3749
    %v3824 = vunpack.c.l.b16 %v3750
    %v3825 = vunpack.c.h.b16 %v3750
    %v3826 = vunpack.c.l.b16 %v3751
    %v3827 = vunpack.c.h.b16 %v3751
    %v3828 = vunpack.c.l.b16 %v3752
    %v3829 = vunpack.c.h.b16 %v3752
    %v3830 = vunpack.c.l.b16 %v3753
    %v3831 = vunpack.c.h.b16 %v3753
    %v3832 = vunpack.c.l.b16 %v3754
    %v3833 = vunpack.c.h.b16 %v3754
    %v3834 = vunpack.c.l.b16 %v3755
    %v3835 = vunpack.c.h.b16 %v3755
    %v3836 = vunpack.c.l.b16 %v3756
    %v3837 = vunpack.c.h.b16 %v3756
    %v3838 = vunpack.c.l.b16 %v3757
    %v3839 = vunpack.c.h.b16 %v3757
    %v3840 = vunpack.c.l.b16 %v3758
    %v3841 = vunpack.c.h.b16 %v3758
    %v3842 = vunpack.c.l.b16 %v3759
    %v3843 = vunpack.c.h.b16 %v3759
    %v3844 = vunpack.c.l.b16 %v3760
    %v3845 = vunpack.c.h.b16 %v3760
    %v3846 = vunpack.c.l.b16 %v3761
    %v3847 = vunpack.c.h.b16 %v3761
    %v3848 = vunpack.c.l.b16 %v3762
    %v3849 = vunpack.c.h.b16 %v3762
    %v3850 = vunpack.c.l.b16 %v3763
    %v3851 = vunpack.c.h.b16 %v3763
    %v3852 = vunpack.c.l.b16 %v3764
    %v3853 = vunpack.c.h.b16 %v3764
    %v3854 = vunpack.c.l.b16 %v3765
    %v3855 = vunpack.c.h.b16 %v3765
    %v3856 = vunpack.c.l.b16 %v3766
    %v3857 = vunpack.c.h.b16 %v3766
    %v3858 = vunpack.c.l.b16 %v3767
    %v3859 = vunpack.c.h.b16 %v3767
    %v3860 = vunpack.c.l.b16 %v3768
    %v3861 = vunpack.c.h.b16 %v3768
    %v3862 = vunpack.c.l.b16 %v3769
    %v3863 = vunpack.c.h.b16 %v3769
    %v3864 = vunpack.c.l.b16 %v3770
    %v3865 = vunpack.c.h.b16 %v3770
    %v3866 = vunpack.c.l.b16 %v3771
    %v3867 = vunpack.c.h.b16 %v3771
    %v3868 = vpack.c.b16 %v3808, %v3804
    %v3869 = vpack.c.b16 %v3809, %v3805
    %v3870 = vpack.c.b16 %v3810, %v3806
    %v3871 = vpack.c.b16 %v3811, %v3807
    %v3872 = vpack.c.b16 %v3816, %v3812
    %v3873 = vpack.c.b16 %v3817, %v3813
    %v3874 = vpack.c.b16 %v3818, %v3814
    %v3875 = vpack.c.b16 %v3819, %v3815
    %v3876 = vpack.c.b16 %v3824, %v3820
    %v3877 = vpack.c.b16 %v3825, %v3821
    %v3878 = vpack.c.b16 %v3826, %v3822
    %v3879 = vpack.c.b16 %v3827, %v3823
    %v3880 = vpack.c.b16 %v3832, %v3828
    %v3881 = vpack.c.b16 %v3833, %v3829
    %v3882 = vpack.c.b16 %v3834, %v3830
    %v3883 = vpack.c.b16 %v3835, %v3831
    %v3884 = vpack.c.b16 %v3840, %v3836
    %v3885 = vpack.c.b16 %v3841, %v3837
    %v3886 = vpack.c.b16 %v3842, %v3838
    %v3887 = vpack.c.b16 %v3843, %v3839
    %v3888 = vpack.c.b16 %v3848, %v3844
    %v3889 = vpack.c.b16 %v3849, %v3845
    %v3890 = vpack.c.b16 %v3850, %v3846
    %v3891 = vpack.c.b16 %v3851, %v3847
    %v3892 = vpack.c.b16 %v3856, %v3852
    %v3893 = vpack.c.b16 %v3857, %v3853
    %v3894 = vpack.c.b16 %v3858, %v3854
    %v3895 = vpack.c.b16 %v3859, %v3855
    %v3896 = vpack.c.b16 %v3864, %v3860
    %v3897 = vpack.c.b16 %v3865, %v3861
    %v3898 = vpack.c.b16 %v3866, %v3862
    %v3899 = vpack.c.b16 %v3867, %v3863
    %3932 = vmatpush.bf16.msra.mxu0 %v3896
    %3933 = vmatpush.bf16.msra.mxu0 %v3892
    %3934 = vmatpush.bf16.msra.mxu0 %v3888
    %3935 = vmatpush.bf16.msra.mxu0 %v3884
    %3936 = vmatpush.bf16.msra.mxu0 %v3880
    %3937 = vmatpush.bf16.msra.mxu0 %v3876
    %3938 = vmatpush.bf16.msra.mxu0 %v3872
    %3939 = vmatpush.bf16.msra.mxu0 %v3868
    %3940 = vmatmul.bf16.gmra.mxu0 %v3738
    %v3941 = vpop.f32.mrf.mxu0
    %v3942 = vadd.f32 0.0, %v3941
    %v3943 = vpop.f32.mrf.mxu0
    %3944 = vdwg.mxu0
    %3945 = vmatpush.bf16.msra.mxu0 %v3897
    %3946 = vmatpush.bf16.msra.mxu0 %v3893
    %3947 = vmatpush.bf16.msra.mxu0 %v3889
    %3948 = vmatpush.bf16.msra.mxu0 %v3885
    %3949 = vmatpush.bf16.msra.mxu0 %v3881
    %3950 = vmatpush.bf16.msra.mxu0 %v3877
    %3951 = vmatpush.bf16.msra.mxu0 %v3873
    %3952 = vmatpush.bf16.msra.mxu0 %v3869
    %3953 = vmatmul.bf16.gmra.mxu0 %v3738
    %v3954 = vpop.f32.mrf.mxu0
    %v3955 = vadd.f32 0.0, %v3954
    %v3956 = vpop.f32.mrf.mxu0
    %3957 = vdwg.mxu0
    %3958 = vmatpush.bf16.msra.mxu0 %v3898
    %3959 = vmatpush.bf16.msra.mxu0 %v3894
    %3960 = vmatpush.bf16.msra.mxu0 %v3890
    %3961 = vmatpush.bf16.msra.mxu0 %v3886
    %3962 = vmatpush.bf16.msra.mxu0 %v3882
    %3963 = vmatpush.bf16.msra.mxu0 %v3878
    %3964 = vmatpush.bf16.msra.mxu0 %v3874
    %3965 = vmatpush.bf16.msra.mxu0 %v3870
    %3966 = vmatmul.bf16.gmra.mxu0 %v3738
    %v3967 = vpop.f32.mrf.mxu0
    %v3968 = vadd.f32 0.0, %v3967
    %v3969 = vpop.f32.mrf.mxu0
    %3970 = vdwg.mxu0
    %3971 = vmatpush.bf16.msra.mxu0 %v3899
    %3972 = vmatpush.bf16.msra.mxu0 %v3895
    %3973 = vmatpush.bf16.msra.mxu0 %v3891
    %3974 = vmatpush.bf16.msra.mxu0 %v3887
    %3975 = vmatpush.bf16.msra.mxu0 %v3883
    %3976 = vmatpush.bf16.msra.mxu0 %v3879
    %3977 = vmatpush.bf16.msra.mxu0 %v3875
    %3978 = vmatpush.bf16.msra.mxu0 %v3871
    %3979 = vmatmul.bf16.gmra.mxu0 %v3738
    %v3980 = vpop.f32.mrf.mxu0
    %v3981 = vadd.f32 0.0, %v3980
    %v3982 = vpop.f32.mrf.mxu0
    %3983 = vdwg.mxu0
    %v3984 = vadd.f32 %v3709, %v3942
    %v3985 = vadd.f32 %v3710, %v3955
    %v3986 = vadd.f32 %v3711, %v3968
    %v3987 = vadd.f32 %v3712, %v3981
    %s3988 = scalar_lea.vmem [#allocation29], 24
    %v3989 = vld [vmem:[%s3988] sm:$0xf]
    %v3991 = vsel %vm398, %v3989, 0
    %3993 = vmatpush.msra.mxu0 0.0
    %3994 = vmatpush.msra.mxu0 0.0
    %3995 = vmatpush.msra.mxu0 0.0
    %3996 = vmatpush.msra.mxu0 0.0
    %3997 = vmatpush.msra.mxu0 0.0
    %3998 = vmatpush.msra.mxu0 0.0
    %3999 = vmatpush.msra.mxu0 0.0
    %4000 = vmatpush.msra.mxu0 0.0
    %4001 = vmatpush.msra.mxu0 %v2342
    %4002 = vmatpush.msra.mxu0 %v2341
    %4003 = vmatpush.msra.mxu0 %v2340
    %4004 = vmatpush.msra.mxu0 %v2339
    %4005 = vmatpush.msra.mxu0 %v2338
    %4006 = vmatpush.msra.mxu0 %v2337
    %4007 = vmatpush.msra.mxu0 %v2336
    %4008 = vmatpush.msra.mxu0 %v2335
    %4009 = vmatmul.f32.gmra.mxu0 %v3991
    %v4010 = vpop.f32.mrf.mxu0
    %v4011 = vadd.f32 0.0, %v4010
    %4012 = vdwg.mxu0
    %v4013 = vpack.c.bf16 %v4011, %v4011
    %s4014 = scalar_lea.vmem [#allocation2], 1536
    %v4015 = vld [vmem:[%s4014] sm:$0xff]
    %v4016 = vld [vmem:[%s4014 + $0x8] sm:$0xff]
    %v4017 = vld [vmem:[%s4014 + $0x10] sm:$0xff]
    %v4018 = vld [vmem:[%s4014 + $0x18] sm:$0xff]
    %v4019 = vld [vmem:[%s4014 + $0x20] sm:$0xff]
    %v4020 = vld [vmem:[%s4014 + $0x28] sm:$0xff]
    %v4021 = vld [vmem:[%s4014 + $0x30] sm:$0xff]
    %v4022 = vld [vmem:[%s4014 + $0x38] sm:$0xff]
    %v4023 = vld [vmem:[%s4014 + $0x40] sm:$0xff]
    %v4024 = vld [vmem:[%s4014 + $0x48] sm:$0xff]
    %v4025 = vld [vmem:[%s4014 + $0x50] sm:$0xff]
    %v4026 = vld [vmem:[%s4014 + $0x58] sm:$0xff]
    %v4027 = vld [vmem:[%s4014 + $0x60] sm:$0xff]
    %v4028 = vld [vmem:[%s4014 + $0x68] sm:$0xff]
    %v4029 = vld [vmem:[%s4014 + $0x70] sm:$0xff]
    %v4030 = vld [vmem:[%s4014 + $0x78] sm:$0xff]
    %v4031 = vld [vmem:[%s4014 + $0x80] sm:$0xff]
    %v4032 = vld [vmem:[%s4014 + $0x88] sm:$0xff]
    %v4033 = vld [vmem:[%s4014 + $0x90] sm:$0xff]
    %v4034 = vld [vmem:[%s4014 + $0x98] sm:$0xff]
    %v4035 = vld [vmem:[%s4014 + $0xa0] sm:$0xff]
    %v4036 = vld [vmem:[%s4014 + $0xa8] sm:$0xff]
    %v4037 = vld [vmem:[%s4014 + $0xb0] sm:$0xff]
    %v4038 = vld [vmem:[%s4014 + $0xb8] sm:$0xff]
    %v4039 = vld [vmem:[%s4014 + $0xc0] sm:$0xff]
    %v4040 = vld [vmem:[%s4014 + $0xc8] sm:$0xff]
    %v4041 = vld [vmem:[%s4014 + $0xd0] sm:$0xff]
    %v4042 = vld [vmem:[%s4014 + $0xd8] sm:$0xff]
    %v4043 = vld [vmem:[%s4014 + $0xe0] sm:$0xff]
    %v4044 = vld [vmem:[%s4014 + $0xe8] sm:$0xff]
    %v4045 = vld [vmem:[%s4014 + $0xf0] sm:$0xff]
    %v4046 = vld [vmem:[%s4014 + $0xf8] sm:$0xff]
    %v4079 = vunpack.c.l.b16 %v4015
    %v4080 = vunpack.c.h.b16 %v4015
    %v4081 = vunpack.c.l.b16 %v4016
    %v4082 = vunpack.c.h.b16 %v4016
    %v4083 = vunpack.c.l.b16 %v4017
    %v4084 = vunpack.c.h.b16 %v4017
    %v4085 = vunpack.c.l.b16 %v4018
    %v4086 = vunpack.c.h.b16 %v4018
    %v4087 = vunpack.c.l.b16 %v4019
    %v4088 = vunpack.c.h.b16 %v4019
    %v4089 = vunpack.c.l.b16 %v4020
    %v4090 = vunpack.c.h.b16 %v4020
    %v4091 = vunpack.c.l.b16 %v4021
    %v4092 = vunpack.c.h.b16 %v4021
    %v4093 = vunpack.c.l.b16 %v4022
    %v4094 = vunpack.c.h.b16 %v4022
    %v4095 = vunpack.c.l.b16 %v4023
    %v4096 = vunpack.c.h.b16 %v4023
    %v4097 = vunpack.c.l.b16 %v4024
    %v4098 = vunpack.c.h.b16 %v4024
    %v4099 = vunpack.c.l.b16 %v4025
    %v4100 = vunpack.c.h.b16 %v4025
    %v4101 = vunpack.c.l.b16 %v4026
    %v4102 = vunpack.c.h.b16 %v4026
    %v4103 = vunpack.c.l.b16 %v4027
    %v4104 = vunpack.c.h.b16 %v4027
    %v4105 = vunpack.c.l.b16 %v4028
    %v4106 = vunpack.c.h.b16 %v4028
    %v4107 = vunpack.c.l.b16 %v4029
    %v4108 = vunpack.c.h.b16 %v4029
    %v4109 = vunpack.c.l.b16 %v4030
    %v4110 = vunpack.c.h.b16 %v4030
    %v4111 = vunpack.c.l.b16 %v4031
    %v4112 = vunpack.c.h.b16 %v4031
    %v4113 = vunpack.c.l.b16 %v4032
    %v4114 = vunpack.c.h.b16 %v4032
    %v4115 = vunpack.c.l.b16 %v4033
    %v4116 = vunpack.c.h.b16 %v4033
    %v4117 = vunpack.c.l.b16 %v4034
    %v4118 = vunpack.c.h.b16 %v4034
    %v4119 = vunpack.c.l.b16 %v4035
    %v4120 = vunpack.c.h.b16 %v4035
    %v4121 = vunpack.c.l.b16 %v4036
    %v4122 = vunpack.c.h.b16 %v4036
    %v4123 = vunpack.c.l.b16 %v4037
    %v4124 = vunpack.c.h.b16 %v4037
    %v4125 = vunpack.c.l.b16 %v4038
    %v4126 = vunpack.c.h.b16 %v4038
    %v4127 = vunpack.c.l.b16 %v4039
    %v4128 = vunpack.c.h.b16 %v4039
    %v4129 = vunpack.c.l.b16 %v4040
    %v4130 = vunpack.c.h.b16 %v4040
    %v4131 = vunpack.c.l.b16 %v4041
    %v4132 = vunpack.c.h.b16 %v4041
    %v4133 = vunpack.c.l.b16 %v4042
    %v4134 = vunpack.c.h.b16 %v4042
    %v4135 = vunpack.c.l.b16 %v4043
    %v4136 = vunpack.c.h.b16 %v4043
    %v4137 = vunpack.c.l.b16 %v4044
    %v4138 = vunpack.c.h.b16 %v4044
    %v4139 = vunpack.c.l.b16 %v4045
    %v4140 = vunpack.c.h.b16 %v4045
    %v4141 = vunpack.c.l.b16 %v4046
    %v4142 = vunpack.c.h.b16 %v4046
    %v4143 = vpack.c.b16 %v4083, %v4079
    %v4144 = vpack.c.b16 %v4084, %v4080
    %v4145 = vpack.c.b16 %v4085, %v4081
    %v4146 = vpack.c.b16 %v4086, %v4082
    %v4147 = vpack.c.b16 %v4091, %v4087
    %v4148 = vpack.c.b16 %v4092, %v4088
    %v4149 = vpack.c.b16 %v4093, %v4089
    %v4150 = vpack.c.b16 %v4094, %v4090
    %v4151 = vpack.c.b16 %v4099, %v4095
    %v4152 = vpack.c.b16 %v4100, %v4096
    %v4153 = vpack.c.b16 %v4101, %v4097
    %v4154 = vpack.c.b16 %v4102, %v4098
    %v4155 = vpack.c.b16 %v4107, %v4103
    %v4156 = vpack.c.b16 %v4108, %v4104
    %v4157 = vpack.c.b16 %v4109, %v4105
    %v4158 = vpack.c.b16 %v4110, %v4106
    %v4159 = vpack.c.b16 %v4115, %v4111
    %v4160 = vpack.c.b16 %v4116, %v4112
    %v4161 = vpack.c.b16 %v4117, %v4113
    %v4162 = vpack.c.b16 %v4118, %v4114
    %v4163 = vpack.c.b16 %v4123, %v4119
    %v4164 = vpack.c.b16 %v4124, %v4120
    %v4165 = vpack.c.b16 %v4125, %v4121
    %v4166 = vpack.c.b16 %v4126, %v4122
    %v4167 = vpack.c.b16 %v4131, %v4127
    %v4168 = vpack.c.b16 %v4132, %v4128
    %v4169 = vpack.c.b16 %v4133, %v4129
    %v4170 = vpack.c.b16 %v4134, %v4130
    %v4171 = vpack.c.b16 %v4139, %v4135
    %v4172 = vpack.c.b16 %v4140, %v4136
    %v4173 = vpack.c.b16 %v4141, %v4137
    %v4174 = vpack.c.b16 %v4142, %v4138
    %4207 = vmatpush.bf16.msra.mxu0 %v4171
    %4208 = vmatpush.bf16.msra.mxu0 %v4167
    %4209 = vmatpush.bf16.msra.mxu0 %v4163
    %4210 = vmatpush.bf16.msra.mxu0 %v4159
    %4211 = vmatpush.bf16.msra.mxu0 %v4155
    %4212 = vmatpush.bf16.msra.mxu0 %v4151
    %4213 = vmatpush.bf16.msra.mxu0 %v4147
    %4214 = vmatpush.bf16.msra.mxu0 %v4143
    %4215 = vmatmul.bf16.gmra.mxu0 %v4013
    %v4216 = vpop.f32.mrf.mxu0
    %v4217 = vadd.f32 0.0, %v4216
    %v4218 = vpop.f32.mrf.mxu0
    %4219 = vdwg.mxu0
    %4220 = vmatpush.bf16.msra.mxu0 %v4172
    %4221 = vmatpush.bf16.msra.mxu0 %v4168
    %4222 = vmatpush.bf16.msra.mxu0 %v4164
    %4223 = vmatpush.bf16.msra.mxu0 %v4160
    %4224 = vmatpush.bf16.msra.mxu0 %v4156
    %4225 = vmatpush.bf16.msra.mxu0 %v4152
    %4226 = vmatpush.bf16.msra.mxu0 %v4148
    %4227 = vmatpush.bf16.msra.mxu0 %v4144
    %4228 = vmatmul.bf16.gmra.mxu0 %v4013
    %v4229 = vpop.f32.mrf.mxu0
    %v4230 = vadd.f32 0.0, %v4229
    %v4231 = vpop.f32.mrf.mxu0
    %4232 = vdwg.mxu0
    %4233 = vmatpush.bf16.msra.mxu0 %v4173
    %4234 = vmatpush.bf16.msra.mxu0 %v4169
    %4235 = vmatpush.bf16.msra.mxu0 %v4165
    %4236 = vmatpush.bf16.msra.mxu0 %v4161
    %4237 = vmatpush.bf16.msra.mxu0 %v4157
    %4238 = vmatpush.bf16.msra.mxu0 %v4153
    %4239 = vmatpush.bf16.msra.mxu0 %v4149
    %4240 = vmatpush.bf16.msra.mxu0 %v4145
    %4241 = vmatmul.bf16.gmra.mxu0 %v4013
    %v4242 = vpop.f32.mrf.mxu0
    %v4243 = vadd.f32 0.0, %v4242
    %v4244 = vpop.f32.mrf.mxu0
    %4245 = vdwg.mxu0
    %4246 = vmatpush.bf16.msra.mxu0 %v4174
    %4247 = vmatpush.bf16.msra.mxu0 %v4170
    %4248 = vmatpush.bf16.msra.mxu0 %v4166
    %4249 = vmatpush.bf16.msra.mxu0 %v4162
    %4250 = vmatpush.bf16.msra.mxu0 %v4158
    %4251 = vmatpush.bf16.msra.mxu0 %v4154
    %4252 = vmatpush.bf16.msra.mxu0 %v4150
    %4253 = vmatpush.bf16.msra.mxu0 %v4146
    %4254 = vmatmul.bf16.gmra.mxu0 %v4013
    %v4255 = vpop.f32.mrf.mxu0
    %v4256 = vadd.f32 0.0, %v4255
    %v4257 = vpop.f32.mrf.mxu0
    %4258 = vdwg.mxu0
    %v4259 = vadd.f32 %v3984, %v4217
    %v4260 = vadd.f32 %v3985, %v4230
    %v4261 = vadd.f32 %v3986, %v4243
    %v4262 = vadd.f32 %v3987, %v4256
    %s4263 = scalar_lea.vmem [#allocation29], 28
    %v4264 = vld [vmem:[%s4263] sm:$0xf]
    %v4266 = vsel %vm398, %v4264, 0
    %4268 = vmatpush.msra.mxu0 0.0
    %4269 = vmatpush.msra.mxu0 0.0
    %4270 = vmatpush.msra.mxu0 0.0
    %4271 = vmatpush.msra.mxu0 0.0
    %4272 = vmatpush.msra.mxu0 0.0
    %4273 = vmatpush.msra.mxu0 0.0
    %4274 = vmatpush.msra.mxu0 0.0
    %4275 = vmatpush.msra.mxu0 0.0
    %4276 = vmatpush.msra.mxu0 %v2342
    %4277 = vmatpush.msra.mxu0 %v2341
    %4278 = vmatpush.msra.mxu0 %v2340
    %4279 = vmatpush.msra.mxu0 %v2339
    %4280 = vmatpush.msra.mxu0 %v2338
    %4281 = vmatpush.msra.mxu0 %v2337
    %4282 = vmatpush.msra.mxu0 %v2336
    %4283 = vmatpush.msra.mxu0 %v2335
    %4284 = vmatmul.f32.gmra.mxu0 %v4266
    %v4285 = vpop.f32.mrf.mxu0
    %v4286 = vadd.f32 0.0, %v4285
    %4287 = vdwg.mxu0
    %v4288 = vpack.c.bf16 %v4286, %v4286
    %s4289 = scalar_lea.vmem [#allocation2], 1792
    %v4290 = vld [vmem:[%s4289] sm:$0xff]
    %v4291 = vld [vmem:[%s4289 + $0x8] sm:$0xff]
    %v4292 = vld [vmem:[%s4289 + $0x10] sm:$0xff]
    %v4293 = vld [vmem:[%s4289 + $0x18] sm:$0xff]
    %v4294 = vld [vmem:[%s4289 + $0x20] sm:$0xff]
    %v4295 = vld [vmem:[%s4289 + $0x28] sm:$0xff]
    %v4296 = vld [vmem:[%s4289 + $0x30] sm:$0xff]
    %v4297 = vld [vmem:[%s4289 + $0x38] sm:$0xff]
    %v4298 = vld [vmem:[%s4289 + $0x40] sm:$0xff]
    %v4299 = vld [vmem:[%s4289 + $0x48] sm:$0xff]
    %v4300 = vld [vmem:[%s4289 + $0x50] sm:$0xff]
    %v4301 = vld [vmem:[%s4289 + $0x58] sm:$0xff]
    %v4302 = vld [vmem:[%s4289 + $0x60] sm:$0xff]
    %v4303 = vld [vmem:[%s4289 + $0x68] sm:$0xff]
    %v4304 = vld [vmem:[%s4289 + $0x70] sm:$0xff]
    %v4305 = vld [vmem:[%s4289 + $0x78] sm:$0xff]
    %v4306 = vld [vmem:[%s4289 + $0x80] sm:$0xff]
    %v4307 = vld [vmem:[%s4289 + $0x88] sm:$0xff]
    %v4308 = vld [vmem:[%s4289 + $0x90] sm:$0xff]
    %v4309 = vld [vmem:[%s4289 + $0x98] sm:$0xff]
    %v4310 = vld [vmem:[%s4289 + $0xa0] sm:$0xff]
    %v4311 = vld [vmem:[%s4289 + $0xa8] sm:$0xff]
    %v4312 = vld [vmem:[%s4289 + $0xb0] sm:$0xff]
    %v4313 = vld [vmem:[%s4289 + $0xb8] sm:$0xff]
    %v4314 = vld [vmem:[%s4289 + $0xc0] sm:$0xff]
    %v4315 = vld [vmem:[%s4289 + $0xc8] sm:$0xff]
    %v4316 = vld [vmem:[%s4289 + $0xd0] sm:$0xff]
    %v4317 = vld [vmem:[%s4289 + $0xd8] sm:$0xff]
    %v4318 = vld [vmem:[%s4289 + $0xe0] sm:$0xff]
    %v4319 = vld [vmem:[%s4289 + $0xe8] sm:$0xff]
    %v4320 = vld [vmem:[%s4289 + $0xf0] sm:$0xff]
    %v4321 = vld [vmem:[%s4289 + $0xf8] sm:$0xff]
    %v4354 = vunpack.c.l.b16 %v4290
    %v4355 = vunpack.c.h.b16 %v4290
    %v4356 = vunpack.c.l.b16 %v4291
    %v4357 = vunpack.c.h.b16 %v4291
    %v4358 = vunpack.c.l.b16 %v4292
    %v4359 = vunpack.c.h.b16 %v4292
    %v4360 = vunpack.c.l.b16 %v4293
    %v4361 = vunpack.c.h.b16 %v4293
    %v4362 = vunpack.c.l.b16 %v4294
    %v4363 = vunpack.c.h.b16 %v4294
    %v4364 = vunpack.c.l.b16 %v4295
    %v4365 = vunpack.c.h.b16 %v4295
    %v4366 = vunpack.c.l.b16 %v4296
    %v4367 = vunpack.c.h.b16 %v4296
    %v4368 = vunpack.c.l.b16 %v4297
    %v4369 = vunpack.c.h.b16 %v4297
    %v4370 = vunpack.c.l.b16 %v4298
    %v4371 = vunpack.c.h.b16 %v4298
    %v4372 = vunpack.c.l.b16 %v4299
    %v4373 = vunpack.c.h.b16 %v4299
    %v4374 = vunpack.c.l.b16 %v4300
    %v4375 = vunpack.c.h.b16 %v4300
    %v4376 = vunpack.c.l.b16 %v4301
    %v4377 = vunpack.c.h.b16 %v4301
    %v4378 = vunpack.c.l.b16 %v4302
    %v4379 = vunpack.c.h.b16 %v4302
    %v4380 = vunpack.c.l.b16 %v4303
    %v4381 = vunpack.c.h.b16 %v4303
    %v4382 = vunpack.c.l.b16 %v4304
    %v4383 = vunpack.c.h.b16 %v4304
    %v4384 = vunpack.c.l.b16 %v4305
    %v4385 = vunpack.c.h.b16 %v4305
    %v4386 = vunpack.c.l.b16 %v4306
    %v4387 = vunpack.c.h.b16 %v4306
    %v4388 = vunpack.c.l.b16 %v4307
    %v4389 = vunpack.c.h.b16 %v4307
    %v4390 = vunpack.c.l.b16 %v4308
    %v4391 = vunpack.c.h.b16 %v4308
    %v4392 = vunpack.c.l.b16 %v4309
    %v4393 = vunpack.c.h.b16 %v4309
    %v4394 = vunpack.c.l.b16 %v4310
    %v4395 = vunpack.c.h.b16 %v4310
    %v4396 = vunpack.c.l.b16 %v4311
    %v4397 = vunpack.c.h.b16 %v4311
    %v4398 = vunpack.c.l.b16 %v4312
    %v4399 = vunpack.c.h.b16 %v4312
    %v4400 = vunpack.c.l.b16 %v4313
    %v4401 = vunpack.c.h.b16 %v4313
    %v4402 = vunpack.c.l.b16 %v4314
    %v4403 = vunpack.c.h.b16 %v4314
    %v4404 = vunpack.c.l.b16 %v4315
    %v4405 = vunpack.c.h.b16 %v4315
    %v4406 = vunpack.c.l.b16 %v4316
    %v4407 = vunpack.c.h.b16 %v4316
    %v4408 = vunpack.c.l.b16 %v4317
    %v4409 = vunpack.c.h.b16 %v4317
    %v4410 = vunpack.c.l.b16 %v4318
    %v4411 = vunpack.c.h.b16 %v4318
    %v4412 = vunpack.c.l.b16 %v4319
    %v4413 = vunpack.c.h.b16 %v4319
    %v4414 = vunpack.c.l.b16 %v4320
    %v4415 = vunpack.c.h.b16 %v4320
    %v4416 = vunpack.c.l.b16 %v4321
    %v4417 = vunpack.c.h.b16 %v4321
    %v4418 = vpack.c.b16 %v4358, %v4354
    %v4419 = vpack.c.b16 %v4359, %v4355
    %v4420 = vpack.c.b16 %v4360, %v4356
    %v4421 = vpack.c.b16 %v4361, %v4357
    %v4422 = vpack.c.b16 %v4366, %v4362
    %v4423 = vpack.c.b16 %v4367, %v4363
    %v4424 = vpack.c.b16 %v4368, %v4364
    %v4425 = vpack.c.b16 %v4369, %v4365
    %v4426 = vpack.c.b16 %v4374, %v4370
    %v4427 = vpack.c.b16 %v4375, %v4371
    %v4428 = vpack.c.b16 %v4376, %v4372
    %v4429 = vpack.c.b16 %v4377, %v4373
    %v4430 = vpack.c.b16 %v4382, %v4378
    %v4431 = vpack.c.b16 %v4383, %v4379
    %v4432 = vpack.c.b16 %v4384, %v4380
    %v4433 = vpack.c.b16 %v4385, %v4381
    %v4434 = vpack.c.b16 %v4390, %v4386
    %v4435 = vpack.c.b16 %v4391, %v4387
    %v4436 = vpack.c.b16 %v4392, %v4388
    %v4437 = vpack.c.b16 %v4393, %v4389
    %v4438 = vpack.c.b16 %v4398, %v4394
    %v4439 = vpack.c.b16 %v4399, %v4395
    %v4440 = vpack.c.b16 %v4400, %v4396
    %v4441 = vpack.c.b16 %v4401, %v4397
    %v4442 = vpack.c.b16 %v4406, %v4402
    %v4443 = vpack.c.b16 %v4407, %v4403
    %v4444 = vpack.c.b16 %v4408, %v4404
    %v4445 = vpack.c.b16 %v4409, %v4405
    %v4446 = vpack.c.b16 %v4414, %v4410
    %v4447 = vpack.c.b16 %v4415, %v4411
    %v4448 = vpack.c.b16 %v4416, %v4412
    %v4449 = vpack.c.b16 %v4417, %v4413
    %4482 = vmatpush.bf16.msra.mxu0 %v4446
    %4483 = vmatpush.bf16.msra.mxu0 %v4442
    %4484 = vmatpush.bf16.msra.mxu0 %v4438
    %4485 = vmatpush.bf16.msra.mxu0 %v4434
    %4486 = vmatpush.bf16.msra.mxu0 %v4430
    %4487 = vmatpush.bf16.msra.mxu0 %v4426
    %4488 = vmatpush.bf16.msra.mxu0 %v4422
    %4489 = vmatpush.bf16.msra.mxu0 %v4418
    %4490 = vmatmul.bf16.gmra.mxu0 %v4288
    %v4491 = vpop.f32.mrf.mxu0
    %v4492 = vadd.f32 0.0, %v4491
    %v4493 = vpop.f32.mrf.mxu0
    %4494 = vdwg.mxu0
    %4495 = vmatpush.bf16.msra.mxu0 %v4447
    %4496 = vmatpush.bf16.msra.mxu0 %v4443
    %4497 = vmatpush.bf16.msra.mxu0 %v4439
    %4498 = vmatpush.bf16.msra.mxu0 %v4435
    %4499 = vmatpush.bf16.msra.mxu0 %v4431
    %4500 = vmatpush.bf16.msra.mxu0 %v4427
    %4501 = vmatpush.bf16.msra.mxu0 %v4423
    %4502 = vmatpush.bf16.msra.mxu0 %v4419
    %4503 = vmatmul.bf16.gmra.mxu0 %v4288
    %v4504 = vpop.f32.mrf.mxu0
    %v4505 = vadd.f32 0.0, %v4504
    %v4506 = vpop.f32.mrf.mxu0
    %4507 = vdwg.mxu0
    %4508 = vmatpush.bf16.msra.mxu0 %v4448
    %4509 = vmatpush.bf16.msra.mxu0 %v4444
    %4510 = vmatpush.bf16.msra.mxu0 %v4440
    %4511 = vmatpush.bf16.msra.mxu0 %v4436
    %4512 = vmatpush.bf16.msra.mxu0 %v4432
    %4513 = vmatpush.bf16.msra.mxu0 %v4428
    %4514 = vmatpush.bf16.msra.mxu0 %v4424
    %4515 = vmatpush.bf16.msra.mxu0 %v4420
    %4516 = vmatmul.bf16.gmra.mxu0 %v4288
    %v4517 = vpop.f32.mrf.mxu0
    %v4518 = vadd.f32 0.0, %v4517
    %v4519 = vpop.f32.mrf.mxu0
    %4520 = vdwg.mxu0
    %4521 = vmatpush.bf16.msra.mxu0 %v4449
    %4522 = vmatpush.bf16.msra.mxu0 %v4445
    %4523 = vmatpush.bf16.msra.mxu0 %v4441
    %4524 = vmatpush.bf16.msra.mxu0 %v4437
    %4525 = vmatpush.bf16.msra.mxu0 %v4433
    %4526 = vmatpush.bf16.msra.mxu0 %v4429
    %4527 = vmatpush.bf16.msra.mxu0 %v4425
    %4528 = vmatpush.bf16.msra.mxu0 %v4421
    %4529 = vmatmul.bf16.gmra.mxu0 %v4288
    %v4530 = vpop.f32.mrf.mxu0
    %v4531 = vadd.f32 0.0, %v4530
    %v4532 = vpop.f32.mrf.mxu0
    %4533 = vdwg.mxu0
    %v4534 = vadd.f32 %v4259, %v4492
    %v4535 = vadd.f32 %v4260, %v4505
    %v4536 = vadd.f32 %v4261, %v4518
    %v4537 = vadd.f32 %v4262, %v4531
    %s4538 = scalar_lea.vmem [#allocation29], 32
    %v4539 = vld [vmem:[%s4538] sm:$0xf]
    %v4541 = vsel %vm398, %v4539, 0
    %4543 = vmatpush.msra.mxu0 0.0
    %4544 = vmatpush.msra.mxu0 0.0
    %4545 = vmatpush.msra.mxu0 0.0
    %4546 = vmatpush.msra.mxu0 0.0
    %4547 = vmatpush.msra.mxu0 0.0
    %4548 = vmatpush.msra.mxu0 0.0
    %4549 = vmatpush.msra.mxu0 0.0
    %4550 = vmatpush.msra.mxu0 0.0
    %4551 = vmatpush.msra.mxu0 %v2342
    %4552 = vmatpush.msra.mxu0 %v2341
    %4553 = vmatpush.msra.mxu0 %v2340
    %4554 = vmatpush.msra.mxu0 %v2339
    %4555 = vmatpush.msra.mxu0 %v2338
    %4556 = vmatpush.msra.mxu0 %v2337
    %4557 = vmatpush.msra.mxu0 %v2336
    %4558 = vmatpush.msra.mxu0 %v2335
    %4559 = vmatmul.f32.gmra.mxu0 %v4541
    %v4560 = vpop.f32.mrf.mxu0
    %v4561 = vadd.f32 0.0, %v4560
    %4562 = vdwg.mxu0
    %v4563 = vpack.c.bf16 %v4561, %v4561
    %s4564 = scalar_lea.vmem [#allocation2], 2048
    %v4565 = vld [vmem:[%s4564] sm:$0xff]
    %v4566 = vld [vmem:[%s4564 + $0x8] sm:$0xff]
    %v4567 = vld [vmem:[%s4564 + $0x10] sm:$0xff]
    %v4568 = vld [vmem:[%s4564 + $0x18] sm:$0xff]
    %v4569 = vld [vmem:[%s4564 + $0x20] sm:$0xff]
    %v4570 = vld [vmem:[%s4564 + $0x28] sm:$0xff]
    %v4571 = vld [vmem:[%s4564 + $0x30] sm:$0xff]
    %v4572 = vld [vmem:[%s4564 + $0x38] sm:$0xff]
    %v4573 = vld [vmem:[%s4564 + $0x40] sm:$0xff]
    %v4574 = vld [vmem:[%s4564 + $0x48] sm:$0xff]
    %v4575 = vld [vmem:[%s4564 + $0x50] sm:$0xff]
    %v4576 = vld [vmem:[%s4564 + $0x58] sm:$0xff]
    %v4577 = vld [vmem:[%s4564 + $0x60] sm:$0xff]
    %v4578 = vld [vmem:[%s4564 + $0x68] sm:$0xff]
    %v4579 = vld [vmem:[%s4564 + $0x70] sm:$0xff]
    %v4580 = vld [vmem:[%s4564 + $0x78] sm:$0xff]
    %v4581 = vld [vmem:[%s4564 + $0x80] sm:$0xff]
    %v4582 = vld [vmem:[%s4564 + $0x88] sm:$0xff]
    %v4583 = vld [vmem:[%s4564 + $0x90] sm:$0xff]
    %v4584 = vld [vmem:[%s4564 + $0x98] sm:$0xff]
    %v4585 = vld [vmem:[%s4564 + $0xa0] sm:$0xff]
    %v4586 = vld [vmem:[%s4564 + $0xa8] sm:$0xff]
    %v4587 = vld [vmem:[%s4564 + $0xb0] sm:$0xff]
    %v4588 = vld [vmem:[%s4564 + $0xb8] sm:$0xff]
    %v4589 = vld [vmem:[%s4564 + $0xc0] sm:$0xff]
    %v4590 = vld [vmem:[%s4564 + $0xc8] sm:$0xff]
    %v4591 = vld [vmem:[%s4564 + $0xd0] sm:$0xff]
    %v4592 = vld [vmem:[%s4564 + $0xd8] sm:$0xff]
    %v4593 = vld [vmem:[%s4564 + $0xe0] sm:$0xff]
    %v4594 = vld [vmem:[%s4564 + $0xe8] sm:$0xff]
    %v4595 = vld [vmem:[%s4564 + $0xf0] sm:$0xff]
    %v4596 = vld [vmem:[%s4564 + $0xf8] sm:$0xff]
    %v4629 = vunpack.c.l.b16 %v4565
    %v4630 = vunpack.c.h.b16 %v4565
    %v4631 = vunpack.c.l.b16 %v4566
    %v4632 = vunpack.c.h.b16 %v4566
    %v4633 = vunpack.c.l.b16 %v4567
    %v4634 = vunpack.c.h.b16 %v4567
    %v4635 = vunpack.c.l.b16 %v4568
    %v4636 = vunpack.c.h.b16 %v4568
    %v4637 = vunpack.c.l.b16 %v4569
    %v4638 = vunpack.c.h.b16 %v4569
    %v4639 = vunpack.c.l.b16 %v4570
    %v4640 = vunpack.c.h.b16 %v4570
    %v4641 = vunpack.c.l.b16 %v4571
    %v4642 = vunpack.c.h.b16 %v4571
    %v4643 = vunpack.c.l.b16 %v4572
    %v4644 = vunpack.c.h.b16 %v4572
    %v4645 = vunpack.c.l.b16 %v4573
    %v4646 = vunpack.c.h.b16 %v4573
    %v4647 = vunpack.c.l.b16 %v4574
    %v4648 = vunpack.c.h.b16 %v4574
    %v4649 = vunpack.c.l.b16 %v4575
    %v4650 = vunpack.c.h.b16 %v4575
    %v4651 = vunpack.c.l.b16 %v4576
    %v4652 = vunpack.c.h.b16 %v4576
    %v4653 = vunpack.c.l.b16 %v4577
    %v4654 = vunpack.c.h.b16 %v4577
    %v4655 = vunpack.c.l.b16 %v4578
    %v4656 = vunpack.c.h.b16 %v4578
    %v4657 = vunpack.c.l.b16 %v4579
    %v4658 = vunpack.c.h.b16 %v4579
    %v4659 = vunpack.c.l.b16 %v4580
    %v4660 = vunpack.c.h.b16 %v4580
    %v4661 = vunpack.c.l.b16 %v4581
    %v4662 = vunpack.c.h.b16 %v4581
    %v4663 = vunpack.c.l.b16 %v4582
    %v4664 = vunpack.c.h.b16 %v4582
    %v4665 = vunpack.c.l.b16 %v4583
    %v4666 = vunpack.c.h.b16 %v4583
    %v4667 = vunpack.c.l.b16 %v4584
    %v4668 = vunpack.c.h.b16 %v4584
    %v4669 = vunpack.c.l.b16 %v4585
    %v4670 = vunpack.c.h.b16 %v4585
    %v4671 = vunpack.c.l.b16 %v4586
    %v4672 = vunpack.c.h.b16 %v4586
    %v4673 = vunpack.c.l.b16 %v4587
    %v4674 = vunpack.c.h.b16 %v4587
    %v4675 = vunpack.c.l.b16 %v4588
    %v4676 = vunpack.c.h.b16 %v4588
    %v4677 = vunpack.c.l.b16 %v4589
    %v4678 = vunpack.c.h.b16 %v4589
    %v4679 = vunpack.c.l.b16 %v4590
    %v4680 = vunpack.c.h.b16 %v4590
    %v4681 = vunpack.c.l.b16 %v4591
    %v4682 = vunpack.c.h.b16 %v4591
    %v4683 = vunpack.c.l.b16 %v4592
    %v4684 = vunpack.c.h.b16 %v4592
    %v4685 = vunpack.c.l.b16 %v4593
    %v4686 = vunpack.c.h.b16 %v4593
    %v4687 = vunpack.c.l.b16 %v4594
    %v4688 = vunpack.c.h.b16 %v4594
    %v4689 = vunpack.c.l.b16 %v4595
    %v4690 = vunpack.c.h.b16 %v4595
    %v4691 = vunpack.c.l.b16 %v4596
    %v4692 = vunpack.c.h.b16 %v4596
    %v4693 = vpack.c.b16 %v4633, %v4629
    %v4694 = vpack.c.b16 %v4634, %v4630
    %v4695 = vpack.c.b16 %v4635, %v4631
    %v4696 = vpack.c.b16 %v4636, %v4632
    %v4697 = vpack.c.b16 %v4641, %v4637
    %v4698 = vpack.c.b16 %v4642, %v4638
    %v4699 = vpack.c.b16 %v4643, %v4639
    %v4700 = vpack.c.b16 %v4644, %v4640
    %v4701 = vpack.c.b16 %v4649, %v4645
    %v4702 = vpack.c.b16 %v4650, %v4646
    %v4703 = vpack.c.b16 %v4651, %v4647
    %v4704 = vpack.c.b16 %v4652, %v4648
    %v4705 = vpack.c.b16 %v4657, %v4653
    %v4706 = vpack.c.b16 %v4658, %v4654
    %v4707 = vpack.c.b16 %v4659, %v4655
    %v4708 = vpack.c.b16 %v4660, %v4656
    %v4709 = vpack.c.b16 %v4665, %v4661
    %v4710 = vpack.c.b16 %v4666, %v4662
    %v4711 = vpack.c.b16 %v4667, %v4663
    %v4712 = vpack.c.b16 %v4668, %v4664
    %v4713 = vpack.c.b16 %v4673, %v4669
    %v4714 = vpack.c.b16 %v4674, %v4670
    %v4715 = vpack.c.b16 %v4675, %v4671
    %v4716 = vpack.c.b16 %v4676, %v4672
    %v4717 = vpack.c.b16 %v4681, %v4677
    %v4718 = vpack.c.b16 %v4682, %v4678
    %v4719 = vpack.c.b16 %v4683, %v4679
    %v4720 = vpack.c.b16 %v4684, %v4680
    %v4721 = vpack.c.b16 %v4689, %v4685
    %v4722 = vpack.c.b16 %v4690, %v4686
    %v4723 = vpack.c.b16 %v4691, %v4687
    %v4724 = vpack.c.b16 %v4692, %v4688
    %4757 = vmatpush.bf16.msra.mxu0 %v4721
    %4758 = vmatpush.bf16.msra.mxu0 %v4717
    %4759 = vmatpush.bf16.msra.mxu0 %v4713
    %4760 = vmatpush.bf16.msra.mxu0 %v4709
    %4761 = vmatpush.bf16.msra.mxu0 %v4705
    %4762 = vmatpush.bf16.msra.mxu0 %v4701
    %4763 = vmatpush.bf16.msra.mxu0 %v4697
    %4764 = vmatpush.bf16.msra.mxu0 %v4693
    %4765 = vmatmul.bf16.gmra.mxu0 %v4563
    %v4766 = vpop.f32.mrf.mxu0
    %v4767 = vadd.f32 0.0, %v4766
    %v4768 = vpop.f32.mrf.mxu0
    %4769 = vdwg.mxu0
    %4770 = vmatpush.bf16.msra.mxu0 %v4722
    %4771 = vmatpush.bf16.msra.mxu0 %v4718
    %4772 = vmatpush.bf16.msra.mxu0 %v4714
    %4773 = vmatpush.bf16.msra.mxu0 %v4710
    %4774 = vmatpush.bf16.msra.mxu0 %v4706
    %4775 = vmatpush.bf16.msra.mxu0 %v4702
    %4776 = vmatpush.bf16.msra.mxu0 %v4698
    %4777 = vmatpush.bf16.msra.mxu0 %v4694
    %4778 = vmatmul.bf16.gmra.mxu0 %v4563
    %v4779 = vpop.f32.mrf.mxu0
    %v4780 = vadd.f32 0.0, %v4779
    %v4781 = vpop.f32.mrf.mxu0
    %4782 = vdwg.mxu0
    %4783 = vmatpush.bf16.msra.mxu0 %v4723
    %4784 = vmatpush.bf16.msra.mxu0 %v4719
    %4785 = vmatpush.bf16.msra.mxu0 %v4715
    %4786 = vmatpush.bf16.msra.mxu0 %v4711
    %4787 = vmatpush.bf16.msra.mxu0 %v4707
    %4788 = vmatpush.bf16.msra.mxu0 %v4703
    %4789 = vmatpush.bf16.msra.mxu0 %v4699
    %4790 = vmatpush.bf16.msra.mxu0 %v4695
    %4791 = vmatmul.bf16.gmra.mxu0 %v4563
    %v4792 = vpop.f32.mrf.mxu0
    %v4793 = vadd.f32 0.0, %v4792
    %v4794 = vpop.f32.mrf.mxu0
    %4795 = vdwg.mxu0
    %4796 = vmatpush.bf16.msra.mxu0 %v4724
    %4797 = vmatpush.bf16.msra.mxu0 %v4720
    %4798 = vmatpush.bf16.msra.mxu0 %v4716
    %4799 = vmatpush.bf16.msra.mxu0 %v4712
    %4800 = vmatpush.bf16.msra.mxu0 %v4708
    %4801 = vmatpush.bf16.msra.mxu0 %v4704
    %4802 = vmatpush.bf16.msra.mxu0 %v4700
    %4803 = vmatpush.bf16.msra.mxu0 %v4696
    %4804 = vmatmul.bf16.gmra.mxu0 %v4563
    %v4805 = vpop.f32.mrf.mxu0
    %v4806 = vadd.f32 0.0, %v4805
    %v4807 = vpop.f32.mrf.mxu0
    %4808 = vdwg.mxu0
    %v4809 = vadd.f32 %v4534, %v4767
    %v4810 = vadd.f32 %v4535, %v4780
    %v4811 = vadd.f32 %v4536, %v4793
    %v4812 = vadd.f32 %v4537, %v4806
    %s4813 = scalar_lea.vmem [#allocation29], 36
    %v4814 = vld [vmem:[%s4813] sm:$0xf]
    %v4816 = vsel %vm398, %v4814, 0
    %4818 = vmatpush.msra.mxu0 0.0
    %4819 = vmatpush.msra.mxu0 0.0
    %4820 = vmatpush.msra.mxu0 0.0
    %4821 = vmatpush.msra.mxu0 0.0
    %4822 = vmatpush.msra.mxu0 0.0
    %4823 = vmatpush.msra.mxu0 0.0
    %4824 = vmatpush.msra.mxu0 0.0
    %4825 = vmatpush.msra.mxu0 0.0
    %4826 = vmatpush.msra.mxu0 %v2342
    %4827 = vmatpush.msra.mxu0 %v2341
    %4828 = vmatpush.msra.mxu0 %v2340
    %4829 = vmatpush.msra.mxu0 %v2339
    %4830 = vmatpush.msra.mxu0 %v2338
    %4831 = vmatpush.msra.mxu0 %v2337
    %4832 = vmatpush.msra.mxu0 %v2336
    %4833 = vmatpush.msra.mxu0 %v2335
    %4834 = vmatmul.f32.gmra.mxu0 %v4816
    %v4835 = vpop.f32.mrf.mxu0
    %v4836 = vadd.f32 0.0, %v4835
    %4837 = vdwg.mxu0
    %v4838 = vpack.c.bf16 %v4836, %v4836
    %s4839 = scalar_lea.vmem [#allocation2], 2304
    %v4840 = vld [vmem:[%s4839] sm:$0xff]
    %v4841 = vld [vmem:[%s4839 + $0x8] sm:$0xff]
    %v4842 = vld [vmem:[%s4839 + $0x10] sm:$0xff]
    %v4843 = vld [vmem:[%s4839 + $0x18] sm:$0xff]
    %v4844 = vld [vmem:[%s4839 + $0x20] sm:$0xff]
    %v4845 = vld [vmem:[%s4839 + $0x28] sm:$0xff]
    %v4846 = vld [vmem:[%s4839 + $0x30] sm:$0xff]
    %v4847 = vld [vmem:[%s4839 + $0x38] sm:$0xff]
    %v4848 = vld [vmem:[%s4839 + $0x40] sm:$0xff]
    %v4849 = vld [vmem:[%s4839 + $0x48] sm:$0xff]
    %v4850 = vld [vmem:[%s4839 + $0x50] sm:$0xff]
    %v4851 = vld [vmem:[%s4839 + $0x58] sm:$0xff]
    %v4852 = vld [vmem:[%s4839 + $0x60] sm:$0xff]
    %v4853 = vld [vmem:[%s4839 + $0x68] sm:$0xff]
    %v4854 = vld [vmem:[%s4839 + $0x70] sm:$0xff]
    %v4855 = vld [vmem:[%s4839 + $0x78] sm:$0xff]
    %v4856 = vld [vmem:[%s4839 + $0x80] sm:$0xff]
    %v4857 = vld [vmem:[%s4839 + $0x88] sm:$0xff]
    %v4858 = vld [vmem:[%s4839 + $0x90] sm:$0xff]
    %v4859 = vld [vmem:[%s4839 + $0x98] sm:$0xff]
    %v4860 = vld [vmem:[%s4839 + $0xa0] sm:$0xff]
    %v4861 = vld [vmem:[%s4839 + $0xa8] sm:$0xff]
    %v4862 = vld [vmem:[%s4839 + $0xb0] sm:$0xff]
    %v4863 = vld [vmem:[%s4839 + $0xb8] sm:$0xff]
    %v4864 = vld [vmem:[%s4839 + $0xc0] sm:$0xff]
    %v4865 = vld [vmem:[%s4839 + $0xc8] sm:$0xff]
    %v4866 = vld [vmem:[%s4839 + $0xd0] sm:$0xff]
    %v4867 = vld [vmem:[%s4839 + $0xd8] sm:$0xff]
    %v4868 = vld [vmem:[%s4839 + $0xe0] sm:$0xff]
    %v4869 = vld [vmem:[%s4839 + $0xe8] sm:$0xff]
    %v4870 = vld [vmem:[%s4839 + $0xf0] sm:$0xff]
    %v4871 = vld [vmem:[%s4839 + $0xf8] sm:$0xff]
    %v4904 = vunpack.c.l.b16 %v4840
    %v4905 = vunpack.c.h.b16 %v4840
    %v4906 = vunpack.c.l.b16 %v4841
    %v4907 = vunpack.c.h.b16 %v4841
    %v4908 = vunpack.c.l.b16 %v4842
    %v4909 = vunpack.c.h.b16 %v4842
    %v4910 = vunpack.c.l.b16 %v4843
    %v4911 = vunpack.c.h.b16 %v4843
    %v4912 = vunpack.c.l.b16 %v4844
    %v4913 = vunpack.c.h.b16 %v4844
    %v4914 = vunpack.c.l.b16 %v4845
    %v4915 = vunpack.c.h.b16 %v4845
    %v4916 = vunpack.c.l.b16 %v4846
    %v4917 = vunpack.c.h.b16 %v4846
    %v4918 = vunpack.c.l.b16 %v4847
    %v4919 = vunpack.c.h.b16 %v4847
    %v4920 = vunpack.c.l.b16 %v4848
    %v4921 = vunpack.c.h.b16 %v4848
    %v4922 = vunpack.c.l.b16 %v4849
    %v4923 = vunpack.c.h.b16 %v4849
    %v4924 = vunpack.c.l.b16 %v4850
    %v4925 = vunpack.c.h.b16 %v4850
    %v4926 = vunpack.c.l.b16 %v4851
    %v4927 = vunpack.c.h.b16 %v4851
    %v4928 = vunpack.c.l.b16 %v4852
    %v4929 = vunpack.c.h.b16 %v4852
    %v4930 = vunpack.c.l.b16 %v4853
    %v4931 = vunpack.c.h.b16 %v4853
    %v4932 = vunpack.c.l.b16 %v4854
    %v4933 = vunpack.c.h.b16 %v4854
    %v4934 = vunpack.c.l.b16 %v4855
    %v4935 = vunpack.c.h.b16 %v4855
    %v4936 = vunpack.c.l.b16 %v4856
    %v4937 = vunpack.c.h.b16 %v4856
    %v4938 = vunpack.c.l.b16 %v4857
    %v4939 = vunpack.c.h.b16 %v4857
    %v4940 = vunpack.c.l.b16 %v4858
    %v4941 = vunpack.c.h.b16 %v4858
    %v4942 = vunpack.c.l.b16 %v4859
    %v4943 = vunpack.c.h.b16 %v4859
    %v4944 = vunpack.c.l.b16 %v4860
    %v4945 = vunpack.c.h.b16 %v4860
    %v4946 = vunpack.c.l.b16 %v4861
    %v4947 = vunpack.c.h.b16 %v4861
    %v4948 = vunpack.c.l.b16 %v4862
    %v4949 = vunpack.c.h.b16 %v4862
    %v4950 = vunpack.c.l.b16 %v4863
    %v4951 = vunpack.c.h.b16 %v4863
    %v4952 = vunpack.c.l.b16 %v4864
    %v4953 = vunpack.c.h.b16 %v4864
    %v4954 = vunpack.c.l.b16 %v4865
    %v4955 = vunpack.c.h.b16 %v4865
    %v4956 = vunpack.c.l.b16 %v4866
    %v4957 = vunpack.c.h.b16 %v4866
    %v4958 = vunpack.c.l.b16 %v4867
    %v4959 = vunpack.c.h.b16 %v4867
    %v4960 = vunpack.c.l.b16 %v4868
    %v4961 = vunpack.c.h.b16 %v4868
    %v4962 = vunpack.c.l.b16 %v4869
    %v4963 = vunpack.c.h.b16 %v4869
    %v4964 = vunpack.c.l.b16 %v4870
    %v4965 = vunpack.c.h.b16 %v4870
    %v4966 = vunpack.c.l.b16 %v4871
    %v4967 = vunpack.c.h.b16 %v4871
    %v4968 = vpack.c.b16 %v4908, %v4904
    %v4969 = vpack.c.b16 %v4909, %v4905
    %v4970 = vpack.c.b16 %v4910, %v4906
    %v4971 = vpack.c.b16 %v4911, %v4907
    %v4972 = vpack.c.b16 %v4916, %v4912
    %v4973 = vpack.c.b16 %v4917, %v4913
    %v4974 = vpack.c.b16 %v4918, %v4914
    %v4975 = vpack.c.b16 %v4919, %v4915
    %v4976 = vpack.c.b16 %v4924, %v4920
    %v4977 = vpack.c.b16 %v4925, %v4921
    %v4978 = vpack.c.b16 %v4926, %v4922
    %v4979 = vpack.c.b16 %v4927, %v4923
    %v4980 = vpack.c.b16 %v4932, %v4928
    %v4981 = vpack.c.b16 %v4933, %v4929
    %v4982 = vpack.c.b16 %v4934, %v4930
    %v4983 = vpack.c.b16 %v4935, %v4931
    %v4984 = vpack.c.b16 %v4940, %v4936
    %v4985 = vpack.c.b16 %v4941, %v4937
    %v4986 = vpack.c.b16 %v4942, %v4938
    %v4987 = vpack.c.b16 %v4943, %v4939
    %v4988 = vpack.c.b16 %v4948, %v4944
    %v4989 = vpack.c.b16 %v4949, %v4945
    %v4990 = vpack.c.b16 %v4950, %v4946
    %v4991 = vpack.c.b16 %v4951, %v4947
    %v4992 = vpack.c.b16 %v4956, %v4952
    %v4993 = vpack.c.b16 %v4957, %v4953
    %v4994 = vpack.c.b16 %v4958, %v4954
    %v4995 = vpack.c.b16 %v4959, %v4955
    %v4996 = vpack.c.b16 %v4964, %v4960
    %v4997 = vpack.c.b16 %v4965, %v4961
    %v4998 = vpack.c.b16 %v4966, %v4962
    %v4999 = vpack.c.b16 %v4967, %v4963
    %5032 = vmatpush.bf16.msra.mxu0 %v4996
    %5033 = vmatpush.bf16.msra.mxu0 %v4992
    %5034 = vmatpush.bf16.msra.mxu0 %v4988
    %5035 = vmatpush.bf16.msra.mxu0 %v4984
    %5036 = vmatpush.bf16.msra.mxu0 %v4980
    %5037 = vmatpush.bf16.msra.mxu0 %v4976
    %5038 = vmatpush.bf16.msra.mxu0 %v4972
    %5039 = vmatpush.bf16.msra.mxu0 %v4968
    %5040 = vmatmul.bf16.gmra.mxu0 %v4838
    %v5041 = vpop.f32.mrf.mxu0
    %v5042 = vadd.f32 0.0, %v5041
    %v5043 = vpop.f32.mrf.mxu0
    %5044 = vdwg.mxu0
    %5045 = vmatpush.bf16.msra.mxu0 %v4997
    %5046 = vmatpush.bf16.msra.mxu0 %v4993
    %5047 = vmatpush.bf16.msra.mxu0 %v4989
    %5048 = vmatpush.bf16.msra.mxu0 %v4985
    %5049 = vmatpush.bf16.msra.mxu0 %v4981
    %5050 = vmatpush.bf16.msra.mxu0 %v4977
    %5051 = vmatpush.bf16.msra.mxu0 %v4973
    %5052 = vmatpush.bf16.msra.mxu0 %v4969
    %5053 = vmatmul.bf16.gmra.mxu0 %v4838
    %v5054 = vpop.f32.mrf.mxu0
    %v5055 = vadd.f32 0.0, %v5054
    %v5056 = vpop.f32.mrf.mxu0
    %5057 = vdwg.mxu0
    %5058 = vmatpush.bf16.msra.mxu0 %v4998
    %5059 = vmatpush.bf16.msra.mxu0 %v4994
    %5060 = vmatpush.bf16.msra.mxu0 %v4990
    %5061 = vmatpush.bf16.msra.mxu0 %v4986
    %5062 = vmatpush.bf16.msra.mxu0 %v4982
    %5063 = vmatpush.bf16.msra.mxu0 %v4978
    %5064 = vmatpush.bf16.msra.mxu0 %v4974
    %5065 = vmatpush.bf16.msra.mxu0 %v4970
    %5066 = vmatmul.bf16.gmra.mxu0 %v4838
    %v5067 = vpop.f32.mrf.mxu0
    %v5068 = vadd.f32 0.0, %v5067
    %v5069 = vpop.f32.mrf.mxu0
    %5070 = vdwg.mxu0
    %5071 = vmatpush.bf16.msra.mxu0 %v4999
    %5072 = vmatpush.bf16.msra.mxu0 %v4995
    %5073 = vmatpush.bf16.msra.mxu0 %v4991
    %5074 = vmatpush.bf16.msra.mxu0 %v4987
    %5075 = vmatpush.bf16.msra.mxu0 %v4983
    %5076 = vmatpush.bf16.msra.mxu0 %v4979
    %5077 = vmatpush.bf16.msra.mxu0 %v4975
    %5078 = vmatpush.bf16.msra.mxu0 %v4971
    %5079 = vmatmul.bf16.gmra.mxu0 %v4838
    %v5080 = vpop.f32.mrf.mxu0
    %v5081 = vadd.f32 0.0, %v5080
    %v5082 = vpop.f32.mrf.mxu0
    %5083 = vdwg.mxu0
    %v5084 = vadd.f32 %v4809, %v5042
    %v5085 = vadd.f32 %v4810, %v5055
    %v5086 = vadd.f32 %v4811, %v5068
    %v5087 = vadd.f32 %v4812, %v5081
    %s5088 = scalar_lea.vmem [#allocation29], 40
    %v5089 = vld [vmem:[%s5088] sm:$0xf]
    %v5091 = vsel %vm398, %v5089, 0
    %5093 = vmatpush.msra.mxu0 0.0
    %5094 = vmatpush.msra.mxu0 0.0
    %5095 = vmatpush.msra.mxu0 0.0
    %5096 = vmatpush.msra.mxu0 0.0
    %5097 = vmatpush.msra.mxu0 0.0
    %5098 = vmatpush.msra.mxu0 0.0
    %5099 = vmatpush.msra.mxu0 0.0
    %5100 = vmatpush.msra.mxu0 0.0
    %5101 = vmatpush.msra.mxu0 %v2342
    %5102 = vmatpush.msra.mxu0 %v2341
    %5103 = vmatpush.msra.mxu0 %v2340
    %5104 = vmatpush.msra.mxu0 %v2339
    %5105 = vmatpush.msra.mxu0 %v2338
    %5106 = vmatpush.msra.mxu0 %v2337
    %5107 = vmatpush.msra.mxu0 %v2336
    %5108 = vmatpush.msra.mxu0 %v2335
    %5109 = vmatmul.f32.gmra.mxu0 %v5091
    %v5110 = vpop.f32.mrf.mxu0
    %v5111 = vadd.f32 0.0, %v5110
    %5112 = vdwg.mxu0
    %v5113 = vpack.c.bf16 %v5111, %v5111
    %s5114 = scalar_lea.vmem [#allocation2], 2560
    %v5115 = vld [vmem:[%s5114] sm:$0xff]
    %v5116 = vld [vmem:[%s5114 + $0x8] sm:$0xff]
    %v5117 = vld [vmem:[%s5114 + $0x10] sm:$0xff]
    %v5118 = vld [vmem:[%s5114 + $0x18] sm:$0xff]
    %v5119 = vld [vmem:[%s5114 + $0x20] sm:$0xff]
    %v5120 = vld [vmem:[%s5114 + $0x28] sm:$0xff]
    %v5121 = vld [vmem:[%s5114 + $0x30] sm:$0xff]
    %v5122 = vld [vmem:[%s5114 + $0x38] sm:$0xff]
    %v5123 = vld [vmem:[%s5114 + $0x40] sm:$0xff]
    %v5124 = vld [vmem:[%s5114 + $0x48] sm:$0xff]
    %v5125 = vld [vmem:[%s5114 + $0x50] sm:$0xff]
    %v5126 = vld [vmem:[%s5114 + $0x58] sm:$0xff]
    %v5127 = vld [vmem:[%s5114 + $0x60] sm:$0xff]
    %v5128 = vld [vmem:[%s5114 + $0x68] sm:$0xff]
    %v5129 = vld [vmem:[%s5114 + $0x70] sm:$0xff]
    %v5130 = vld [vmem:[%s5114 + $0x78] sm:$0xff]
    %v5131 = vld [vmem:[%s5114 + $0x80] sm:$0xff]
    %v5132 = vld [vmem:[%s5114 + $0x88] sm:$0xff]
    %v5133 = vld [vmem:[%s5114 + $0x90] sm:$0xff]
    %v5134 = vld [vmem:[%s5114 + $0x98] sm:$0xff]
    %v5135 = vld [vmem:[%s5114 + $0xa0] sm:$0xff]
    %v5136 = vld [vmem:[%s5114 + $0xa8] sm:$0xff]
    %v5137 = vld [vmem:[%s5114 + $0xb0] sm:$0xff]
    %v5138 = vld [vmem:[%s5114 + $0xb8] sm:$0xff]
    %v5139 = vld [vmem:[%s5114 + $0xc0] sm:$0xff]
    %v5140 = vld [vmem:[%s5114 + $0xc8] sm:$0xff]
    %v5141 = vld [vmem:[%s5114 + $0xd0] sm:$0xff]
    %v5142 = vld [vmem:[%s5114 + $0xd8] sm:$0xff]
    %v5143 = vld [vmem:[%s5114 + $0xe0] sm:$0xff]
    %v5144 = vld [vmem:[%s5114 + $0xe8] sm:$0xff]
    %v5145 = vld [vmem:[%s5114 + $0xf0] sm:$0xff]
    %v5146 = vld [vmem:[%s5114 + $0xf8] sm:$0xff]
    %v5179 = vunpack.c.l.b16 %v5115
    %v5180 = vunpack.c.h.b16 %v5115
    %v5181 = vunpack.c.l.b16 %v5116
    %v5182 = vunpack.c.h.b16 %v5116
    %v5183 = vunpack.c.l.b16 %v5117
    %v5184 = vunpack.c.h.b16 %v5117
    %v5185 = vunpack.c.l.b16 %v5118
    %v5186 = vunpack.c.h.b16 %v5118
    %v5187 = vunpack.c.l.b16 %v5119
    %v5188 = vunpack.c.h.b16 %v5119
    %v5189 = vunpack.c.l.b16 %v5120
    %v5190 = vunpack.c.h.b16 %v5120
    %v5191 = vunpack.c.l.b16 %v5121
    %v5192 = vunpack.c.h.b16 %v5121
    %v5193 = vunpack.c.l.b16 %v5122
    %v5194 = vunpack.c.h.b16 %v5122
    %v5195 = vunpack.c.l.b16 %v5123
    %v5196 = vunpack.c.h.b16 %v5123
    %v5197 = vunpack.c.l.b16 %v5124
    %v5198 = vunpack.c.h.b16 %v5124
    %v5199 = vunpack.c.l.b16 %v5125
    %v5200 = vunpack.c.h.b16 %v5125
    %v5201 = vunpack.c.l.b16 %v5126
    %v5202 = vunpack.c.h.b16 %v5126
    %v5203 = vunpack.c.l.b16 %v5127
    %v5204 = vunpack.c.h.b16 %v5127
    %v5205 = vunpack.c.l.b16 %v5128
    %v5206 = vunpack.c.h.b16 %v5128
    %v5207 = vunpack.c.l.b16 %v5129
    %v5208 = vunpack.c.h.b16 %v5129
    %v5209 = vunpack.c.l.b16 %v5130
    %v5210 = vunpack.c.h.b16 %v5130
    %v5211 = vunpack.c.l.b16 %v5131
    %v5212 = vunpack.c.h.b16 %v5131
    %v5213 = vunpack.c.l.b16 %v5132
    %v5214 = vunpack.c.h.b16 %v5132
    %v5215 = vunpack.c.l.b16 %v5133
    %v5216 = vunpack.c.h.b16 %v5133
    %v5217 = vunpack.c.l.b16 %v5134
    %v5218 = vunpack.c.h.b16 %v5134
    %v5219 = vunpack.c.l.b16 %v5135
    %v5220 = vunpack.c.h.b16 %v5135
    %v5221 = vunpack.c.l.b16 %v5136
    %v5222 = vunpack.c.h.b16 %v5136
    %v5223 = vunpack.c.l.b16 %v5137
    %v5224 = vunpack.c.h.b16 %v5137
    %v5225 = vunpack.c.l.b16 %v5138
    %v5226 = vunpack.c.h.b16 %v5138
    %v5227 = vunpack.c.l.b16 %v5139
    %v5228 = vunpack.c.h.b16 %v5139
    %v5229 = vunpack.c.l.b16 %v5140
    %v5230 = vunpack.c.h.b16 %v5140
    %v5231 = vunpack.c.l.b16 %v5141
    %v5232 = vunpack.c.h.b16 %v5141
    %v5233 = vunpack.c.l.b16 %v5142
    %v5234 = vunpack.c.h.b16 %v5142
    %v5235 = vunpack.c.l.b16 %v5143
    %v5236 = vunpack.c.h.b16 %v5143
    %v5237 = vunpack.c.l.b16 %v5144
    %v5238 = vunpack.c.h.b16 %v5144
    %v5239 = vunpack.c.l.b16 %v5145
    %v5240 = vunpack.c.h.b16 %v5145
    %v5241 = vunpack.c.l.b16 %v5146
    %v5242 = vunpack.c.h.b16 %v5146
    %v5243 = vpack.c.b16 %v5183, %v5179
    %v5244 = vpack.c.b16 %v5184, %v5180
    %v5245 = vpack.c.b16 %v5185, %v5181
    %v5246 = vpack.c.b16 %v5186, %v5182
    %v5247 = vpack.c.b16 %v5191, %v5187
    %v5248 = vpack.c.b16 %v5192, %v5188
    %v5249 = vpack.c.b16 %v5193, %v5189
    %v5250 = vpack.c.b16 %v5194, %v5190
    %v5251 = vpack.c.b16 %v5199, %v5195
    %v5252 = vpack.c.b16 %v5200, %v5196
    %v5253 = vpack.c.b16 %v5201, %v5197
    %v5254 = vpack.c.b16 %v5202, %v5198
    %v5255 = vpack.c.b16 %v5207, %v5203
    %v5256 = vpack.c.b16 %v5208, %v5204
    %v5257 = vpack.c.b16 %v5209, %v5205
    %v5258 = vpack.c.b16 %v5210, %v5206
    %v5259 = vpack.c.b16 %v5215, %v5211
    %v5260 = vpack.c.b16 %v5216, %v5212
    %v5261 = vpack.c.b16 %v5217, %v5213
    %v5262 = vpack.c.b16 %v5218, %v5214
    %v5263 = vpack.c.b16 %v5223, %v5219
    %v5264 = vpack.c.b16 %v5224, %v5220
    %v5265 = vpack.c.b16 %v5225, %v5221
    %v5266 = vpack.c.b16 %v5226, %v5222
    %v5267 = vpack.c.b16 %v5231, %v5227
    %v5268 = vpack.c.b16 %v5232, %v5228
    %v5269 = vpack.c.b16 %v5233, %v5229
    %v5270 = vpack.c.b16 %v5234, %v5230
    %v5271 = vpack.c.b16 %v5239, %v5235
    %v5272 = vpack.c.b16 %v5240, %v5236
    %v5273 = vpack.c.b16 %v5241, %v5237
    %v5274 = vpack.c.b16 %v5242, %v5238
    %5307 = vmatpush.bf16.msra.mxu0 %v5271
    %5308 = vmatpush.bf16.msra.mxu0 %v5267
    %5309 = vmatpush.bf16.msra.mxu0 %v5263
    %5310 = vmatpush.bf16.msra.mxu0 %v5259
    %5311 = vmatpush.bf16.msra.mxu0 %v5255
    %5312 = vmatpush.bf16.msra.mxu0 %v5251
    %5313 = vmatpush.bf16.msra.mxu0 %v5247
    %5314 = vmatpush.bf16.msra.mxu0 %v5243
    %5315 = vmatmul.bf16.gmra.mxu0 %v5113
    %v5316 = vpop.f32.mrf.mxu0
    %v5317 = vadd.f32 0.0, %v5316
    %v5318 = vpop.f32.mrf.mxu0
    %5319 = vdwg.mxu0
    %5320 = vmatpush.bf16.msra.mxu0 %v5272
    %5321 = vmatpush.bf16.msra.mxu0 %v5268
    %5322 = vmatpush.bf16.msra.mxu0 %v5264
    %5323 = vmatpush.bf16.msra.mxu0 %v5260
    %5324 = vmatpush.bf16.msra.mxu0 %v5256
    %5325 = vmatpush.bf16.msra.mxu0 %v5252
    %5326 = vmatpush.bf16.msra.mxu0 %v5248
    %5327 = vmatpush.bf16.msra.mxu0 %v5244
    %5328 = vmatmul.bf16.gmra.mxu0 %v5113
    %v5329 = vpop.f32.mrf.mxu0
    %v5330 = vadd.f32 0.0, %v5329
    %v5331 = vpop.f32.mrf.mxu0
    %5332 = vdwg.mxu0
    %5333 = vmatpush.bf16.msra.mxu0 %v5273
    %5334 = vmatpush.bf16.msra.mxu0 %v5269
    %5335 = vmatpush.bf16.msra.mxu0 %v5265
    %5336 = vmatpush.bf16.msra.mxu0 %v5261
    %5337 = vmatpush.bf16.msra.mxu0 %v5257
    %5338 = vmatpush.bf16.msra.mxu0 %v5253
    %5339 = vmatpush.bf16.msra.mxu0 %v5249
    %5340 = vmatpush.bf16.msra.mxu0 %v5245
    %5341 = vmatmul.bf16.gmra.mxu0 %v5113
    %v5342 = vpop.f32.mrf.mxu0
    %v5343 = vadd.f32 0.0, %v5342
    %v5344 = vpop.f32.mrf.mxu0
    %5345 = vdwg.mxu0
    %5346 = vmatpush.bf16.msra.mxu0 %v5274
    %5347 = vmatpush.bf16.msra.mxu0 %v5270
    %5348 = vmatpush.bf16.msra.mxu0 %v5266
    %5349 = vmatpush.bf16.msra.mxu0 %v5262
    %5350 = vmatpush.bf16.msra.mxu0 %v5258
    %5351 = vmatpush.bf16.msra.mxu0 %v5254
    %5352 = vmatpush.bf16.msra.mxu0 %v5250
    %5353 = vmatpush.bf16.msra.mxu0 %v5246
    %5354 = vmatmul.bf16.gmra.mxu0 %v5113
    %v5355 = vpop.f32.mrf.mxu0
    %v5356 = vadd.f32 0.0, %v5355
    %v5357 = vpop.f32.mrf.mxu0
    %5358 = vdwg.mxu0
    %v5359 = vadd.f32 %v5084, %v5317
    %v5360 = vadd.f32 %v5085, %v5330
    %v5361 = vadd.f32 %v5086, %v5343
    %v5362 = vadd.f32 %v5087, %v5356
    %s5363 = scalar_lea.vmem [#allocation29], 44
    %v5364 = vld [vmem:[%s5363] sm:$0xf]
    %v5366 = vsel %vm398, %v5364, 0
    %5368 = vmatpush.msra.mxu0 0.0
    %5369 = vmatpush.msra.mxu0 0.0
    %5370 = vmatpush.msra.mxu0 0.0
    %5371 = vmatpush.msra.mxu0 0.0
    %5372 = vmatpush.msra.mxu0 0.0
    %5373 = vmatpush.msra.mxu0 0.0
    %5374 = vmatpush.msra.mxu0 0.0
    %5375 = vmatpush.msra.mxu0 0.0
    %5376 = vmatpush.msra.mxu0 %v2342
    %5377 = vmatpush.msra.mxu0 %v2341
    %5378 = vmatpush.msra.mxu0 %v2340
    %5379 = vmatpush.msra.mxu0 %v2339
    %5380 = vmatpush.msra.mxu0 %v2338
    %5381 = vmatpush.msra.mxu0 %v2337
    %5382 = vmatpush.msra.mxu0 %v2336
    %5383 = vmatpush.msra.mxu0 %v2335
    %5384 = vmatmul.f32.gmra.mxu0 %v5366
    %v5385 = vpop.f32.mrf.mxu0
    %v5386 = vadd.f32 0.0, %v5385
    %5387 = vdwg.mxu0
    %v5388 = vpack.c.bf16 %v5386, %v5386
    %s5389 = scalar_lea.vmem [#allocation2], 2816
    %v5390 = vld [vmem:[%s5389] sm:$0xff]
    %v5391 = vld [vmem:[%s5389 + $0x8] sm:$0xff]
    %v5392 = vld [vmem:[%s5389 + $0x10] sm:$0xff]
    %v5393 = vld [vmem:[%s5389 + $0x18] sm:$0xff]
    %v5394 = vld [vmem:[%s5389 + $0x20] sm:$0xff]
    %v5395 = vld [vmem:[%s5389 + $0x28] sm:$0xff]
    %v5396 = vld [vmem:[%s5389 + $0x30] sm:$0xff]
    %v5397 = vld [vmem:[%s5389 + $0x38] sm:$0xff]
    %v5398 = vld [vmem:[%s5389 + $0x40] sm:$0xff]
    %v5399 = vld [vmem:[%s5389 + $0x48] sm:$0xff]
    %v5400 = vld [vmem:[%s5389 + $0x50] sm:$0xff]
    %v5401 = vld [vmem:[%s5389 + $0x58] sm:$0xff]
    %v5402 = vld [vmem:[%s5389 + $0x60] sm:$0xff]
    %v5403 = vld [vmem:[%s5389 + $0x68] sm:$0xff]
    %v5404 = vld [vmem:[%s5389 + $0x70] sm:$0xff]
    %v5405 = vld [vmem:[%s5389 + $0x78] sm:$0xff]
    %v5406 = vld [vmem:[%s5389 + $0x80] sm:$0xff]
    %v5407 = vld [vmem:[%s5389 + $0x88] sm:$0xff]
    %v5408 = vld [vmem:[%s5389 + $0x90] sm:$0xff]
    %v5409 = vld [vmem:[%s5389 + $0x98] sm:$0xff]
    %v5410 = vld [vmem:[%s5389 + $0xa0] sm:$0xff]
    %v5411 = vld [vmem:[%s5389 + $0xa8] sm:$0xff]
    %v5412 = vld [vmem:[%s5389 + $0xb0] sm:$0xff]
    %v5413 = vld [vmem:[%s5389 + $0xb8] sm:$0xff]
    %v5414 = vld [vmem:[%s5389 + $0xc0] sm:$0xff]
    %v5415 = vld [vmem:[%s5389 + $0xc8] sm:$0xff]
    %v5416 = vld [vmem:[%s5389 + $0xd0] sm:$0xff]
    %v5417 = vld [vmem:[%s5389 + $0xd8] sm:$0xff]
    %v5418 = vld [vmem:[%s5389 + $0xe0] sm:$0xff]
    %v5419 = vld [vmem:[%s5389 + $0xe8] sm:$0xff]
    %v5420 = vld [vmem:[%s5389 + $0xf0] sm:$0xff]
    %v5421 = vld [vmem:[%s5389 + $0xf8] sm:$0xff]
    %v5454 = vunpack.c.l.b16 %v5390
    %v5455 = vunpack.c.h.b16 %v5390
    %v5456 = vunpack.c.l.b16 %v5391
    %v5457 = vunpack.c.h.b16 %v5391
    %v5458 = vunpack.c.l.b16 %v5392
    %v5459 = vunpack.c.h.b16 %v5392
    %v5460 = vunpack.c.l.b16 %v5393
    %v5461 = vunpack.c.h.b16 %v5393
    %v5462 = vunpack.c.l.b16 %v5394
    %v5463 = vunpack.c.h.b16 %v5394
    %v5464 = vunpack.c.l.b16 %v5395
    %v5465 = vunpack.c.h.b16 %v5395
    %v5466 = vunpack.c.l.b16 %v5396
    %v5467 = vunpack.c.h.b16 %v5396
    %v5468 = vunpack.c.l.b16 %v5397
    %v5469 = vunpack.c.h.b16 %v5397
    %v5470 = vunpack.c.l.b16 %v5398
    %v5471 = vunpack.c.h.b16 %v5398
    %v5472 = vunpack.c.l.b16 %v5399
    %v5473 = vunpack.c.h.b16 %v5399
    %v5474 = vunpack.c.l.b16 %v5400
    %v5475 = vunpack.c.h.b16 %v5400
    %v5476 = vunpack.c.l.b16 %v5401
    %v5477 = vunpack.c.h.b16 %v5401
    %v5478 = vunpack.c.l.b16 %v5402
    %v5479 = vunpack.c.h.b16 %v5402
    %v5480 = vunpack.c.l.b16 %v5403
    %v5481 = vunpack.c.h.b16 %v5403
    %v5482 = vunpack.c.l.b16 %v5404
    %v5483 = vunpack.c.h.b16 %v5404
    %v5484 = vunpack.c.l.b16 %v5405
    %v5485 = vunpack.c.h.b16 %v5405
    %v5486 = vunpack.c.l.b16 %v5406
    %v5487 = vunpack.c.h.b16 %v5406
    %v5488 = vunpack.c.l.b16 %v5407
    %v5489 = vunpack.c.h.b16 %v5407
    %v5490 = vunpack.c.l.b16 %v5408
    %v5491 = vunpack.c.h.b16 %v5408
    %v5492 = vunpack.c.l.b16 %v5409
    %v5493 = vunpack.c.h.b16 %v5409
    %v5494 = vunpack.c.l.b16 %v5410
    %v5495 = vunpack.c.h.b16 %v5410
    %v5496 = vunpack.c.l.b16 %v5411
    %v5497 = vunpack.c.h.b16 %v5411
    %v5498 = vunpack.c.l.b16 %v5412
    %v5499 = vunpack.c.h.b16 %v5412
    %v5500 = vunpack.c.l.b16 %v5413
    %v5501 = vunpack.c.h.b16 %v5413
    %v5502 = vunpack.c.l.b16 %v5414
    %v5503 = vunpack.c.h.b16 %v5414
    %v5504 = vunpack.c.l.b16 %v5415
    %v5505 = vunpack.c.h.b16 %v5415
    %v5506 = vunpack.c.l.b16 %v5416
    %v5507 = vunpack.c.h.b16 %v5416
    %v5508 = vunpack.c.l.b16 %v5417
    %v5509 = vunpack.c.h.b16 %v5417
    %v5510 = vunpack.c.l.b16 %v5418
    %v5511 = vunpack.c.h.b16 %v5418
    %v5512 = vunpack.c.l.b16 %v5419
    %v5513 = vunpack.c.h.b16 %v5419
    %v5514 = vunpack.c.l.b16 %v5420
    %v5515 = vunpack.c.h.b16 %v5420
    %v5516 = vunpack.c.l.b16 %v5421
    %v5517 = vunpack.c.h.b16 %v5421
    %v5518 = vpack.c.b16 %v5458, %v5454
    %v5519 = vpack.c.b16 %v5459, %v5455
    %v5520 = vpack.c.b16 %v5460, %v5456
    %v5521 = vpack.c.b16 %v5461, %v5457
    %v5522 = vpack.c.b16 %v5466, %v5462
    %v5523 = vpack.c.b16 %v5467, %v5463
    %v5524 = vpack.c.b16 %v5468, %v5464
    %v5525 = vpack.c.b16 %v5469, %v5465
    %v5526 = vpack.c.b16 %v5474, %v5470
    %v5527 = vpack.c.b16 %v5475, %v5471
    %v5528 = vpack.c.b16 %v5476, %v5472
    %v5529 = vpack.c.b16 %v5477, %v5473
    %v5530 = vpack.c.b16 %v5482, %v5478
    %v5531 = vpack.c.b16 %v5483, %v5479
    %v5532 = vpack.c.b16 %v5484, %v5480
    %v5533 = vpack.c.b16 %v5485, %v5481
    %v5534 = vpack.c.b16 %v5490, %v5486
    %v5535 = vpack.c.b16 %v5491, %v5487
    %v5536 = vpack.c.b16 %v5492, %v5488
    %v5537 = vpack.c.b16 %v5493, %v5489
    %v5538 = vpack.c.b16 %v5498, %v5494
    %v5539 = vpack.c.b16 %v5499, %v5495
    %v5540 = vpack.c.b16 %v5500, %v5496
    %v5541 = vpack.c.b16 %v5501, %v5497
    %v5542 = vpack.c.b16 %v5506, %v5502
    %v5543 = vpack.c.b16 %v5507, %v5503
    %v5544 = vpack.c.b16 %v5508, %v5504
    %v5545 = vpack.c.b16 %v5509, %v5505
    %v5546 = vpack.c.b16 %v5514, %v5510
    %v5547 = vpack.c.b16 %v5515, %v5511
    %v5548 = vpack.c.b16 %v5516, %v5512
    %v5549 = vpack.c.b16 %v5517, %v5513
    %5582 = vmatpush.bf16.msra.mxu0 %v5546
    %5583 = vmatpush.bf16.msra.mxu0 %v5542
    %5584 = vmatpush.bf16.msra.mxu0 %v5538
    %5585 = vmatpush.bf16.msra.mxu0 %v5534
    %5586 = vmatpush.bf16.msra.mxu0 %v5530
    %5587 = vmatpush.bf16.msra.mxu0 %v5526
    %5588 = vmatpush.bf16.msra.mxu0 %v5522
    %5589 = vmatpush.bf16.msra.mxu0 %v5518
    %5590 = vmatmul.bf16.gmra.mxu0 %v5388
    %v5591 = vpop.f32.mrf.mxu0
    %v5592 = vadd.f32 0.0, %v5591
    %v5593 = vpop.f32.mrf.mxu0
    %5594 = vdwg.mxu0
    %5595 = vmatpush.bf16.msra.mxu0 %v5547
    %5596 = vmatpush.bf16.msra.mxu0 %v5543
    %5597 = vmatpush.bf16.msra.mxu0 %v5539
    %5598 = vmatpush.bf16.msra.mxu0 %v5535
    %5599 = vmatpush.bf16.msra.mxu0 %v5531
    %5600 = vmatpush.bf16.msra.mxu0 %v5527
    %5601 = vmatpush.bf16.msra.mxu0 %v5523
    %5602 = vmatpush.bf16.msra.mxu0 %v5519
    %5603 = vmatmul.bf16.gmra.mxu0 %v5388
    %v5604 = vpop.f32.mrf.mxu0
    %v5605 = vadd.f32 0.0, %v5604
    %v5606 = vpop.f32.mrf.mxu0
    %5607 = vdwg.mxu0
    %5608 = vmatpush.bf16.msra.mxu0 %v5548
    %5609 = vmatpush.bf16.msra.mxu0 %v5544
    %5610 = vmatpush.bf16.msra.mxu0 %v5540
    %5611 = vmatpush.bf16.msra.mxu0 %v5536
    %5612 = vmatpush.bf16.msra.mxu0 %v5532
    %5613 = vmatpush.bf16.msra.mxu0 %v5528
    %5614 = vmatpush.bf16.msra.mxu0 %v5524
    %5615 = vmatpush.bf16.msra.mxu0 %v5520
    %5616 = vmatmul.bf16.gmra.mxu0 %v5388
    %v5617 = vpop.f32.mrf.mxu0
    %v5618 = vadd.f32 0.0, %v5617
    %v5619 = vpop.f32.mrf.mxu0
    %5620 = vdwg.mxu0
    %5621 = vmatpush.bf16.msra.mxu0 %v5549
    %5622 = vmatpush.bf16.msra.mxu0 %v5545
    %5623 = vmatpush.bf16.msra.mxu0 %v5541
    %5624 = vmatpush.bf16.msra.mxu0 %v5537
    %5625 = vmatpush.bf16.msra.mxu0 %v5533
    %5626 = vmatpush.bf16.msra.mxu0 %v5529
    %5627 = vmatpush.bf16.msra.mxu0 %v5525
    %5628 = vmatpush.bf16.msra.mxu0 %v5521
    %5629 = vmatmul.bf16.gmra.mxu0 %v5388
    %v5630 = vpop.f32.mrf.mxu0
    %v5631 = vadd.f32 0.0, %v5630
    %v5632 = vpop.f32.mrf.mxu0
    %5633 = vdwg.mxu0
    %v5634 = vadd.f32 %v5359, %v5592
    %v5635 = vadd.f32 %v5360, %v5605
    %v5636 = vadd.f32 %v5361, %v5618
    %v5637 = vadd.f32 %v5362, %v5631
    %s5638 = scalar_lea.vmem [#allocation29], 48
    %v5639 = vld [vmem:[%s5638] sm:$0xf]
    %v5641 = vsel %vm398, %v5639, 0
    %5643 = vmatpush.msra.mxu0 0.0
    %5644 = vmatpush.msra.mxu0 0.0
    %5645 = vmatpush.msra.mxu0 0.0
    %5646 = vmatpush.msra.mxu0 0.0
    %5647 = vmatpush.msra.mxu0 0.0
    %5648 = vmatpush.msra.mxu0 0.0
    %5649 = vmatpush.msra.mxu0 0.0
    %5650 = vmatpush.msra.mxu0 0.0
    %5651 = vmatpush.msra.mxu0 %v2342
    %5652 = vmatpush.msra.mxu0 %v2341
    %5653 = vmatpush.msra.mxu0 %v2340
    %5654 = vmatpush.msra.mxu0 %v2339
    %5655 = vmatpush.msra.mxu0 %v2338
    %5656 = vmatpush.msra.mxu0 %v2337
    %5657 = vmatpush.msra.mxu0 %v2336
    %5658 = vmatpush.msra.mxu0 %v2335
    %5659 = vmatmul.f32.gmra.mxu0 %v5641
    %v5660 = vpop.f32.mrf.mxu0
    %v5661 = vadd.f32 0.0, %v5660
    %5662 = vdwg.mxu0
    %v5663 = vpack.c.bf16 %v5661, %v5661
    %s5664 = scalar_lea.vmem [#allocation2], 3072
    %v5665 = vld [vmem:[%s5664] sm:$0xff]
    %v5666 = vld [vmem:[%s5664 + $0x8] sm:$0xff]
    %v5667 = vld [vmem:[%s5664 + $0x10] sm:$0xff]
    %v5668 = vld [vmem:[%s5664 + $0x18] sm:$0xff]
    %v5669 = vld [vmem:[%s5664 + $0x20] sm:$0xff]
    %v5670 = vld [vmem:[%s5664 + $0x28] sm:$0xff]
    %v5671 = vld [vmem:[%s5664 + $0x30] sm:$0xff]
    %v5672 = vld [vmem:[%s5664 + $0x38] sm:$0xff]
    %v5673 = vld [vmem:[%s5664 + $0x40] sm:$0xff]
    %v5674 = vld [vmem:[%s5664 + $0x48] sm:$0xff]
    %v5675 = vld [vmem:[%s5664 + $0x50] sm:$0xff]
    %v5676 = vld [vmem:[%s5664 + $0x58] sm:$0xff]
    %v5677 = vld [vmem:[%s5664 + $0x60] sm:$0xff]
    %v5678 = vld [vmem:[%s5664 + $0x68] sm:$0xff]
    %v5679 = vld [vmem:[%s5664 + $0x70] sm:$0xff]
    %v5680 = vld [vmem:[%s5664 + $0x78] sm:$0xff]
    %v5681 = vld [vmem:[%s5664 + $0x80] sm:$0xff]
    %v5682 = vld [vmem:[%s5664 + $0x88] sm:$0xff]
    %v5683 = vld [vmem:[%s5664 + $0x90] sm:$0xff]
    %v5684 = vld [vmem:[%s5664 + $0x98] sm:$0xff]
    %v5685 = vld [vmem:[%s5664 + $0xa0] sm:$0xff]
    %v5686 = vld [vmem:[%s5664 + $0xa8] sm:$0xff]
    %v5687 = vld [vmem:[%s5664 + $0xb0] sm:$0xff]
    %v5688 = vld [vmem:[%s5664 + $0xb8] sm:$0xff]
    %v5689 = vld [vmem:[%s5664 + $0xc0] sm:$0xff]
    %v5690 = vld [vmem:[%s5664 + $0xc8] sm:$0xff]
    %v5691 = vld [vmem:[%s5664 + $0xd0] sm:$0xff]
    %v5692 = vld [vmem:[%s5664 + $0xd8] sm:$0xff]
    %v5693 = vld [vmem:[%s5664 + $0xe0] sm:$0xff]
    %v5694 = vld [vmem:[%s5664 + $0xe8] sm:$0xff]
    %v5695 = vld [vmem:[%s5664 + $0xf0] sm:$0xff]
    %v5696 = vld [vmem:[%s5664 + $0xf8] sm:$0xff]
    %v5729 = vunpack.c.l.b16 %v5665
    %v5730 = vunpack.c.h.b16 %v5665
    %v5731 = vunpack.c.l.b16 %v5666
    %v5732 = vunpack.c.h.b16 %v5666
    %v5733 = vunpack.c.l.b16 %v5667
    %v5734 = vunpack.c.h.b16 %v5667
    %v5735 = vunpack.c.l.b16 %v5668
    %v5736 = vunpack.c.h.b16 %v5668
    %v5737 = vunpack.c.l.b16 %v5669
    %v5738 = vunpack.c.h.b16 %v5669
    %v5739 = vunpack.c.l.b16 %v5670
    %v5740 = vunpack.c.h.b16 %v5670
    %v5741 = vunpack.c.l.b16 %v5671
    %v5742 = vunpack.c.h.b16 %v5671
    %v5743 = vunpack.c.l.b16 %v5672
    %v5744 = vunpack.c.h.b16 %v5672
    %v5745 = vunpack.c.l.b16 %v5673
    %v5746 = vunpack.c.h.b16 %v5673
    %v5747 = vunpack.c.l.b16 %v5674
    %v5748 = vunpack.c.h.b16 %v5674
    %v5749 = vunpack.c.l.b16 %v5675
    %v5750 = vunpack.c.h.b16 %v5675
    %v5751 = vunpack.c.l.b16 %v5676
    %v5752 = vunpack.c.h.b16 %v5676
    %v5753 = vunpack.c.l.b16 %v5677
    %v5754 = vunpack.c.h.b16 %v5677
    %v5755 = vunpack.c.l.b16 %v5678
    %v5756 = vunpack.c.h.b16 %v5678
    %v5757 = vunpack.c.l.b16 %v5679
    %v5758 = vunpack.c.h.b16 %v5679
    %v5759 = vunpack.c.l.b16 %v5680
    %v5760 = vunpack.c.h.b16 %v5680
    %v5761 = vunpack.c.l.b16 %v5681
    %v5762 = vunpack.c.h.b16 %v5681
    %v5763 = vunpack.c.l.b16 %v5682
    %v5764 = vunpack.c.h.b16 %v5682
    %v5765 = vunpack.c.l.b16 %v5683
    %v5766 = vunpack.c.h.b16 %v5683
    %v5767 = vunpack.c.l.b16 %v5684
    %v5768 = vunpack.c.h.b16 %v5684
    %v5769 = vunpack.c.l.b16 %v5685
    %v5770 = vunpack.c.h.b16 %v5685
    %v5771 = vunpack.c.l.b16 %v5686
    %v5772 = vunpack.c.h.b16 %v5686
    %v5773 = vunpack.c.l.b16 %v5687
    %v5774 = vunpack.c.h.b16 %v5687
    %v5775 = vunpack.c.l.b16 %v5688
    %v5776 = vunpack.c.h.b16 %v5688
    %v5777 = vunpack.c.l.b16 %v5689
    %v5778 = vunpack.c.h.b16 %v5689
    %v5779 = vunpack.c.l.b16 %v5690
    %v5780 = vunpack.c.h.b16 %v5690
    %v5781 = vunpack.c.l.b16 %v5691
    %v5782 = vunpack.c.h.b16 %v5691
    %v5783 = vunpack.c.l.b16 %v5692
    %v5784 = vunpack.c.h.b16 %v5692
    %v5785 = vunpack.c.l.b16 %v5693
    %v5786 = vunpack.c.h.b16 %v5693
    %v5787 = vunpack.c.l.b16 %v5694
    %v5788 = vunpack.c.h.b16 %v5694
    %v5789 = vunpack.c.l.b16 %v5695
    %v5790 = vunpack.c.h.b16 %v5695
    %v5791 = vunpack.c.l.b16 %v5696
    %v5792 = vunpack.c.h.b16 %v5696
    %v5793 = vpack.c.b16 %v5733, %v5729
    %v5794 = vpack.c.b16 %v5734, %v5730
    %v5795 = vpack.c.b16 %v5735, %v5731
    %v5796 = vpack.c.b16 %v5736, %v5732
    %v5797 = vpack.c.b16 %v5741, %v5737
    %v5798 = vpack.c.b16 %v5742, %v5738
    %v5799 = vpack.c.b16 %v5743, %v5739
    %v5800 = vpack.c.b16 %v5744, %v5740
    %v5801 = vpack.c.b16 %v5749, %v5745
    %v5802 = vpack.c.b16 %v5750, %v5746
    %v5803 = vpack.c.b16 %v5751, %v5747
    %v5804 = vpack.c.b16 %v5752, %v5748
    %v5805 = vpack.c.b16 %v5757, %v5753
    %v5806 = vpack.c.b16 %v5758, %v5754
    %v5807 = vpack.c.b16 %v5759, %v5755
    %v5808 = vpack.c.b16 %v5760, %v5756
    %v5809 = vpack.c.b16 %v5765, %v5761
    %v5810 = vpack.c.b16 %v5766, %v5762
    %v5811 = vpack.c.b16 %v5767, %v5763
    %v5812 = vpack.c.b16 %v5768, %v5764
    %v5813 = vpack.c.b16 %v5773, %v5769
    %v5814 = vpack.c.b16 %v5774, %v5770
    %v5815 = vpack.c.b16 %v5775, %v5771
    %v5816 = vpack.c.b16 %v5776, %v5772
    %v5817 = vpack.c.b16 %v5781, %v5777
    %v5818 = vpack.c.b16 %v5782, %v5778
    %v5819 = vpack.c.b16 %v5783, %v5779
    %v5820 = vpack.c.b16 %v5784, %v5780
    %v5821 = vpack.c.b16 %v5789, %v5785
    %v5822 = vpack.c.b16 %v5790, %v5786
    %v5823 = vpack.c.b16 %v5791, %v5787
    %v5824 = vpack.c.b16 %v5792, %v5788
    %5857 = vmatpush.bf16.msra.mxu0 %v5821
    %5858 = vmatpush.bf16.msra.mxu0 %v5817
    %5859 = vmatpush.bf16.msra.mxu0 %v5813
    %5860 = vmatpush.bf16.msra.mxu0 %v5809
    %5861 = vmatpush.bf16.msra.mxu0 %v5805
    %5862 = vmatpush.bf16.msra.mxu0 %v5801
    %5863 = vmatpush.bf16.msra.mxu0 %v5797
    %5864 = vmatpush.bf16.msra.mxu0 %v5793
    %5865 = vmatmul.bf16.gmra.mxu0 %v5663
    %v5866 = vpop.f32.mrf.mxu0
    %v5867 = vadd.f32 0.0, %v5866
    %v5868 = vpop.f32.mrf.mxu0
    %5869 = vdwg.mxu0
    %5870 = vmatpush.bf16.msra.mxu0 %v5822
    %5871 = vmatpush.bf16.msra.mxu0 %v5818
    %5872 = vmatpush.bf16.msra.mxu0 %v5814
    %5873 = vmatpush.bf16.msra.mxu0 %v5810
    %5874 = vmatpush.bf16.msra.mxu0 %v5806
    %5875 = vmatpush.bf16.msra.mxu0 %v5802
    %5876 = vmatpush.bf16.msra.mxu0 %v5798
    %5877 = vmatpush.bf16.msra.mxu0 %v5794
    %5878 = vmatmul.bf16.gmra.mxu0 %v5663
    %v5879 = vpop.f32.mrf.mxu0
    %v5880 = vadd.f32 0.0, %v5879
    %v5881 = vpop.f32.mrf.mxu0
    %5882 = vdwg.mxu0
    %5883 = vmatpush.bf16.msra.mxu0 %v5823
    %5884 = vmatpush.bf16.msra.mxu0 %v5819
    %5885 = vmatpush.bf16.msra.mxu0 %v5815
    %5886 = vmatpush.bf16.msra.mxu0 %v5811
    %5887 = vmatpush.bf16.msra.mxu0 %v5807
    %5888 = vmatpush.bf16.msra.mxu0 %v5803
    %5889 = vmatpush.bf16.msra.mxu0 %v5799
    %5890 = vmatpush.bf16.msra.mxu0 %v5795
    %5891 = vmatmul.bf16.gmra.mxu0 %v5663
    %v5892 = vpop.f32.mrf.mxu0
    %v5893 = vadd.f32 0.0, %v5892
    %v5894 = vpop.f32.mrf.mxu0
    %5895 = vdwg.mxu0
    %5896 = vmatpush.bf16.msra.mxu0 %v5824
    %5897 = vmatpush.bf16.msra.mxu0 %v5820
    %5898 = vmatpush.bf16.msra.mxu0 %v5816
    %5899 = vmatpush.bf16.msra.mxu0 %v5812
    %5900 = vmatpush.bf16.msra.mxu0 %v5808
    %5901 = vmatpush.bf16.msra.mxu0 %v5804
    %5902 = vmatpush.bf16.msra.mxu0 %v5800
    %5903 = vmatpush.bf16.msra.mxu0 %v5796
    %5904 = vmatmul.bf16.gmra.mxu0 %v5663
    %v5905 = vpop.f32.mrf.mxu0
    %v5906 = vadd.f32 0.0, %v5905
    %v5907 = vpop.f32.mrf.mxu0
    %5908 = vdwg.mxu0
    %v5909 = vadd.f32 %v5634, %v5867
    %v5910 = vadd.f32 %v5635, %v5880
    %v5911 = vadd.f32 %v5636, %v5893
    %v5912 = vadd.f32 %v5637, %v5906
    %s5913 = scalar_lea.vmem [#allocation29], 52
    %v5914 = vld [vmem:[%s5913] sm:$0xf]
    %v5916 = vsel %vm398, %v5914, 0
    %5918 = vmatpush.msra.mxu0 0.0
    %5919 = vmatpush.msra.mxu0 0.0
    %5920 = vmatpush.msra.mxu0 0.0
    %5921 = vmatpush.msra.mxu0 0.0
    %5922 = vmatpush.msra.mxu0 0.0
    %5923 = vmatpush.msra.mxu0 0.0
    %5924 = vmatpush.msra.mxu0 0.0
    %5925 = vmatpush.msra.mxu0 0.0
    %5926 = vmatpush.msra.mxu0 %v2342
    %5927 = vmatpush.msra.mxu0 %v2341
    %5928 = vmatpush.msra.mxu0 %v2340
    %5929 = vmatpush.msra.mxu0 %v2339
    %5930 = vmatpush.msra.mxu0 %v2338
    %5931 = vmatpush.msra.mxu0 %v2337
    %5932 = vmatpush.msra.mxu0 %v2336
    %5933 = vmatpush.msra.mxu0 %v2335
    %5934 = vmatmul.f32.gmra.mxu0 %v5916
    %v5935 = vpop.f32.mrf.mxu0
    %v5936 = vadd.f32 0.0, %v5935
    %5937 = vdwg.mxu0
    %v5938 = vpack.c.bf16 %v5936, %v5936
    %s5939 = scalar_lea.vmem [#allocation2], 3328
    %v5940 = vld [vmem:[%s5939] sm:$0xff]
    %v5941 = vld [vmem:[%s5939 + $0x8] sm:$0xff]
    %v5942 = vld [vmem:[%s5939 + $0x10] sm:$0xff]
    %v5943 = vld [vmem:[%s5939 + $0x18] sm:$0xff]
    %v5944 = vld [vmem:[%s5939 + $0x20] sm:$0xff]
    %v5945 = vld [vmem:[%s5939 + $0x28] sm:$0xff]
    %v5946 = vld [vmem:[%s5939 + $0x30] sm:$0xff]
    %v5947 = vld [vmem:[%s5939 + $0x38] sm:$0xff]
    %v5948 = vld [vmem:[%s5939 + $0x40] sm:$0xff]
    %v5949 = vld [vmem:[%s5939 + $0x48] sm:$0xff]
    %v5950 = vld [vmem:[%s5939 + $0x50] sm:$0xff]
    %v5951 = vld [vmem:[%s5939 + $0x58] sm:$0xff]
    %v5952 = vld [vmem:[%s5939 + $0x60] sm:$0xff]
    %v5953 = vld [vmem:[%s5939 + $0x68] sm:$0xff]
    %v5954 = vld [vmem:[%s5939 + $0x70] sm:$0xff]
    %v5955 = vld [vmem:[%s5939 + $0x78] sm:$0xff]
    %v5956 = vld [vmem:[%s5939 + $0x80] sm:$0xff]
    %v5957 = vld [vmem:[%s5939 + $0x88] sm:$0xff]
    %v5958 = vld [vmem:[%s5939 + $0x90] sm:$0xff]
    %v5959 = vld [vmem:[%s5939 + $0x98] sm:$0xff]
    %v5960 = vld [vmem:[%s5939 + $0xa0] sm:$0xff]
    %v5961 = vld [vmem:[%s5939 + $0xa8] sm:$0xff]
    %v5962 = vld [vmem:[%s5939 + $0xb0] sm:$0xff]
    %v5963 = vld [vmem:[%s5939 + $0xb8] sm:$0xff]
    %v5964 = vld [vmem:[%s5939 + $0xc0] sm:$0xff]
    %v5965 = vld [vmem:[%s5939 + $0xc8] sm:$0xff]
    %v5966 = vld [vmem:[%s5939 + $0xd0] sm:$0xff]
    %v5967 = vld [vmem:[%s5939 + $0xd8] sm:$0xff]
    %v5968 = vld [vmem:[%s5939 + $0xe0] sm:$0xff]
    %v5969 = vld [vmem:[%s5939 + $0xe8] sm:$0xff]
    %v5970 = vld [vmem:[%s5939 + $0xf0] sm:$0xff]
    %v5971 = vld [vmem:[%s5939 + $0xf8] sm:$0xff]
    %v6004 = vunpack.c.l.b16 %v5940
    %v6005 = vunpack.c.h.b16 %v5940
    %v6006 = vunpack.c.l.b16 %v5941
    %v6007 = vunpack.c.h.b16 %v5941
    %v6008 = vunpack.c.l.b16 %v5942
    %v6009 = vunpack.c.h.b16 %v5942
    %v6010 = vunpack.c.l.b16 %v5943
    %v6011 = vunpack.c.h.b16 %v5943
    %v6012 = vunpack.c.l.b16 %v5944
    %v6013 = vunpack.c.h.b16 %v5944
    %v6014 = vunpack.c.l.b16 %v5945
    %v6015 = vunpack.c.h.b16 %v5945
    %v6016 = vunpack.c.l.b16 %v5946
    %v6017 = vunpack.c.h.b16 %v5946
    %v6018 = vunpack.c.l.b16 %v5947
    %v6019 = vunpack.c.h.b16 %v5947
    %v6020 = vunpack.c.l.b16 %v5948
    %v6021 = vunpack.c.h.b16 %v5948
    %v6022 = vunpack.c.l.b16 %v5949
    %v6023 = vunpack.c.h.b16 %v5949
    %v6024 = vunpack.c.l.b16 %v5950
    %v6025 = vunpack.c.h.b16 %v5950
    %v6026 = vunpack.c.l.b16 %v5951
    %v6027 = vunpack.c.h.b16 %v5951
    %v6028 = vunpack.c.l.b16 %v5952
    %v6029 = vunpack.c.h.b16 %v5952
    %v6030 = vunpack.c.l.b16 %v5953
    %v6031 = vunpack.c.h.b16 %v5953
    %v6032 = vunpack.c.l.b16 %v5954
    %v6033 = vunpack.c.h.b16 %v5954
    %v6034 = vunpack.c.l.b16 %v5955
    %v6035 = vunpack.c.h.b16 %v5955
    %v6036 = vunpack.c.l.b16 %v5956
    %v6037 = vunpack.c.h.b16 %v5956
    %v6038 = vunpack.c.l.b16 %v5957
    %v6039 = vunpack.c.h.b16 %v5957
    %v6040 = vunpack.c.l.b16 %v5958
    %v6041 = vunpack.c.h.b16 %v5958
    %v6042 = vunpack.c.l.b16 %v5959
    %v6043 = vunpack.c.h.b16 %v5959
    %v6044 = vunpack.c.l.b16 %v5960
    %v6045 = vunpack.c.h.b16 %v5960
    %v6046 = vunpack.c.l.b16 %v5961
    %v6047 = vunpack.c.h.b16 %v5961
    %v6048 = vunpack.c.l.b16 %v5962
    %v6049 = vunpack.c.h.b16 %v5962
    %v6050 = vunpack.c.l.b16 %v5963
    %v6051 = vunpack.c.h.b16 %v5963
    %v6052 = vunpack.c.l.b16 %v5964
    %v6053 = vunpack.c.h.b16 %v5964
    %v6054 = vunpack.c.l.b16 %v5965
    %v6055 = vunpack.c.h.b16 %v5965
    %v6056 = vunpack.c.l.b16 %v5966
    %v6057 = vunpack.c.h.b16 %v5966
    %v6058 = vunpack.c.l.b16 %v5967
    %v6059 = vunpack.c.h.b16 %v5967
    %v6060 = vunpack.c.l.b16 %v5968
    %v6061 = vunpack.c.h.b16 %v5968
    %v6062 = vunpack.c.l.b16 %v5969
    %v6063 = vunpack.c.h.b16 %v5969
    %v6064 = vunpack.c.l.b16 %v5970
    %v6065 = vunpack.c.h.b16 %v5970
    %v6066 = vunpack.c.l.b16 %v5971
    %v6067 = vunpack.c.h.b16 %v5971
    %v6068 = vpack.c.b16 %v6008, %v6004
    %v6069 = vpack.c.b16 %v6009, %v6005
    %v6070 = vpack.c.b16 %v6010, %v6006
    %v6071 = vpack.c.b16 %v6011, %v6007
    %v6072 = vpack.c.b16 %v6016, %v6012
    %v6073 = vpack.c.b16 %v6017, %v6013
    %v6074 = vpack.c.b16 %v6018, %v6014
    %v6075 = vpack.c.b16 %v6019, %v6015
    %v6076 = vpack.c.b16 %v6024, %v6020
    %v6077 = vpack.c.b16 %v6025, %v6021
    %v6078 = vpack.c.b16 %v6026, %v6022
    %v6079 = vpack.c.b16 %v6027, %v6023
    %v6080 = vpack.c.b16 %v6032, %v6028
    %v6081 = vpack.c.b16 %v6033, %v6029
    %v6082 = vpack.c.b16 %v6034, %v6030
    %v6083 = vpack.c.b16 %v6035, %v6031
    %v6084 = vpack.c.b16 %v6040, %v6036
    %v6085 = vpack.c.b16 %v6041, %v6037
    %v6086 = vpack.c.b16 %v6042, %v6038
    %v6087 = vpack.c.b16 %v6043, %v6039
    %v6088 = vpack.c.b16 %v6048, %v6044
    %v6089 = vpack.c.b16 %v6049, %v6045
    %v6090 = vpack.c.b16 %v6050, %v6046
    %v6091 = vpack.c.b16 %v6051, %v6047
    %v6092 = vpack.c.b16 %v6056, %v6052
    %v6093 = vpack.c.b16 %v6057, %v6053
    %v6094 = vpack.c.b16 %v6058, %v6054
    %v6095 = vpack.c.b16 %v6059, %v6055
    %v6096 = vpack.c.b16 %v6064, %v6060
    %v6097 = vpack.c.b16 %v6065, %v6061
    %v6098 = vpack.c.b16 %v6066, %v6062
    %v6099 = vpack.c.b16 %v6067, %v6063
    %6132 = vmatpush.bf16.msra.mxu0 %v6096
    %6133 = vmatpush.bf16.msra.mxu0 %v6092
    %6134 = vmatpush.bf16.msra.mxu0 %v6088
    %6135 = vmatpush.bf16.msra.mxu0 %v6084
    %6136 = vmatpush.bf16.msra.mxu0 %v6080
    %6137 = vmatpush.bf16.msra.mxu0 %v6076
    %6138 = vmatpush.bf16.msra.mxu0 %v6072
    %6139 = vmatpush.bf16.msra.mxu0 %v6068
    %6140 = vmatmul.bf16.gmra.mxu0 %v5938
    %v6141 = vpop.f32.mrf.mxu0
    %v6142 = vadd.f32 0.0, %v6141
    %v6143 = vpop.f32.mrf.mxu0
    %6144 = vdwg.mxu0
    %6145 = vmatpush.bf16.msra.mxu0 %v6097
    %6146 = vmatpush.bf16.msra.mxu0 %v6093
    %6147 = vmatpush.bf16.msra.mxu0 %v6089
    %6148 = vmatpush.bf16.msra.mxu0 %v6085
    %6149 = vmatpush.bf16.msra.mxu0 %v6081
    %6150 = vmatpush.bf16.msra.mxu0 %v6077
    %6151 = vmatpush.bf16.msra.mxu0 %v6073
    %6152 = vmatpush.bf16.msra.mxu0 %v6069
    %6153 = vmatmul.bf16.gmra.mxu0 %v5938
    %v6154 = vpop.f32.mrf.mxu0
    %v6155 = vadd.f32 0.0, %v6154
    %v6156 = vpop.f32.mrf.mxu0
    %6157 = vdwg.mxu0
    %6158 = vmatpush.bf16.msra.mxu0 %v6098
    %6159 = vmatpush.bf16.msra.mxu0 %v6094
    %6160 = vmatpush.bf16.msra.mxu0 %v6090
    %6161 = vmatpush.bf16.msra.mxu0 %v6086
    %6162 = vmatpush.bf16.msra.mxu0 %v6082
    %6163 = vmatpush.bf16.msra.mxu0 %v6078
    %6164 = vmatpush.bf16.msra.mxu0 %v6074
    %6165 = vmatpush.bf16.msra.mxu0 %v6070
    %6166 = vmatmul.bf16.gmra.mxu0 %v5938
    %v6167 = vpop.f32.mrf.mxu0
    %v6168 = vadd.f32 0.0, %v6167
    %v6169 = vpop.f32.mrf.mxu0
    %6170 = vdwg.mxu0
    %6171 = vmatpush.bf16.msra.mxu0 %v6099
    %6172 = vmatpush.bf16.msra.mxu0 %v6095
    %6173 = vmatpush.bf16.msra.mxu0 %v6091
    %6174 = vmatpush.bf16.msra.mxu0 %v6087
    %6175 = vmatpush.bf16.msra.mxu0 %v6083
    %6176 = vmatpush.bf16.msra.mxu0 %v6079
    %6177 = vmatpush.bf16.msra.mxu0 %v6075
    %6178 = vmatpush.bf16.msra.mxu0 %v6071
    %6179 = vmatmul.bf16.gmra.mxu0 %v5938
    %v6180 = vpop.f32.mrf.mxu0
    %v6181 = vadd.f32 0.0, %v6180
    %v6182 = vpop.f32.mrf.mxu0
    %6183 = vdwg.mxu0
    %v6184 = vadd.f32 %v5909, %v6142
    %v6185 = vadd.f32 %v5910, %v6155
    %v6186 = vadd.f32 %v5911, %v6168
    %v6187 = vadd.f32 %v5912, %v6181
    %s6188 = scalar_lea.vmem [#allocation29], 56
    %v6189 = vld [vmem:[%s6188] sm:$0xf]
    %v6191 = vsel %vm398, %v6189, 0
    %6193 = vmatpush.msra.mxu0 0.0
    %6194 = vmatpush.msra.mxu0 0.0
    %6195 = vmatpush.msra.mxu0 0.0
    %6196 = vmatpush.msra.mxu0 0.0
    %6197 = vmatpush.msra.mxu0 0.0
    %6198 = vmatpush.msra.mxu0 0.0
    %6199 = vmatpush.msra.mxu0 0.0
    %6200 = vmatpush.msra.mxu0 0.0
    %6201 = vmatpush.msra.mxu0 %v2342
    %6202 = vmatpush.msra.mxu0 %v2341
    %6203 = vmatpush.msra.mxu0 %v2340
    %6204 = vmatpush.msra.mxu0 %v2339
    %6205 = vmatpush.msra.mxu0 %v2338
    %6206 = vmatpush.msra.mxu0 %v2337
    %6207 = vmatpush.msra.mxu0 %v2336
    %6208 = vmatpush.msra.mxu0 %v2335
    %6209 = vmatmul.f32.gmra.mxu0 %v6191
    %v6210 = vpop.f32.mrf.mxu0
    %v6211 = vadd.f32 0.0, %v6210
    %6212 = vdwg.mxu0
    %v6213 = vpack.c.bf16 %v6211, %v6211
    %s6214 = scalar_lea.vmem [#allocation2], 3584
    %v6215 = vld [vmem:[%s6214] sm:$0xff]
    %v6216 = vld [vmem:[%s6214 + $0x8] sm:$0xff]
    %v6217 = vld [vmem:[%s6214 + $0x10] sm:$0xff]
    %v6218 = vld [vmem:[%s6214 + $0x18] sm:$0xff]
    %v6219 = vld [vmem:[%s6214 + $0x20] sm:$0xff]
    %v6220 = vld [vmem:[%s6214 + $0x28] sm:$0xff]
    %v6221 = vld [vmem:[%s6214 + $0x30] sm:$0xff]
    %v6222 = vld [vmem:[%s6214 + $0x38] sm:$0xff]
    %v6223 = vld [vmem:[%s6214 + $0x40] sm:$0xff]
    %v6224 = vld [vmem:[%s6214 + $0x48] sm:$0xff]
    %v6225 = vld [vmem:[%s6214 + $0x50] sm:$0xff]
    %v6226 = vld [vmem:[%s6214 + $0x58] sm:$0xff]
    %v6227 = vld [vmem:[%s6214 + $0x60] sm:$0xff]
    %v6228 = vld [vmem:[%s6214 + $0x68] sm:$0xff]
    %v6229 = vld [vmem:[%s6214 + $0x70] sm:$0xff]
    %v6230 = vld [vmem:[%s6214 + $0x78] sm:$0xff]
    %v6231 = vld [vmem:[%s6214 + $0x80] sm:$0xff]
    %v6232 = vld [vmem:[%s6214 + $0x88] sm:$0xff]
    %v6233 = vld [vmem:[%s6214 + $0x90] sm:$0xff]
    %v6234 = vld [vmem:[%s6214 + $0x98] sm:$0xff]
    %v6235 = vld [vmem:[%s6214 + $0xa0] sm:$0xff]
    %v6236 = vld [vmem:[%s6214 + $0xa8] sm:$0xff]
    %v6237 = vld [vmem:[%s6214 + $0xb0] sm:$0xff]
    %v6238 = vld [vmem:[%s6214 + $0xb8] sm:$0xff]
    %v6239 = vld [vmem:[%s6214 + $0xc0] sm:$0xff]
    %v6240 = vld [vmem:[%s6214 + $0xc8] sm:$0xff]
    %v6241 = vld [vmem:[%s6214 + $0xd0] sm:$0xff]
    %v6242 = vld [vmem:[%s6214 + $0xd8] sm:$0xff]
    %v6243 = vld [vmem:[%s6214 + $0xe0] sm:$0xff]
    %v6244 = vld [vmem:[%s6214 + $0xe8] sm:$0xff]
    %v6245 = vld [vmem:[%s6214 + $0xf0] sm:$0xff]
    %v6246 = vld [vmem:[%s6214 + $0xf8] sm:$0xff]
    %v6279 = vunpack.c.l.b16 %v6215
    %v6280 = vunpack.c.h.b16 %v6215
    %v6281 = vunpack.c.l.b16 %v6216
    %v6282 = vunpack.c.h.b16 %v6216
    %v6283 = vunpack.c.l.b16 %v6217
    %v6284 = vunpack.c.h.b16 %v6217
    %v6285 = vunpack.c.l.b16 %v6218
    %v6286 = vunpack.c.h.b16 %v6218
    %v6287 = vunpack.c.l.b16 %v6219
    %v6288 = vunpack.c.h.b16 %v6219
    %v6289 = vunpack.c.l.b16 %v6220
    %v6290 = vunpack.c.h.b16 %v6220
    %v6291 = vunpack.c.l.b16 %v6221
    %v6292 = vunpack.c.h.b16 %v6221
    %v6293 = vunpack.c.l.b16 %v6222
    %v6294 = vunpack.c.h.b16 %v6222
    %v6295 = vunpack.c.l.b16 %v6223
    %v6296 = vunpack.c.h.b16 %v6223
    %v6297 = vunpack.c.l.b16 %v6224
    %v6298 = vunpack.c.h.b16 %v6224
    %v6299 = vunpack.c.l.b16 %v6225
    %v6300 = vunpack.c.h.b16 %v6225
    %v6301 = vunpack.c.l.b16 %v6226
    %v6302 = vunpack.c.h.b16 %v6226
    %v6303 = vunpack.c.l.b16 %v6227
    %v6304 = vunpack.c.h.b16 %v6227
    %v6305 = vunpack.c.l.b16 %v6228
    %v6306 = vunpack.c.h.b16 %v6228
    %v6307 = vunpack.c.l.b16 %v6229
    %v6308 = vunpack.c.h.b16 %v6229
    %v6309 = vunpack.c.l.b16 %v6230
    %v6310 = vunpack.c.h.b16 %v6230
    %v6311 = vunpack.c.l.b16 %v6231
    %v6312 = vunpack.c.h.b16 %v6231
    %v6313 = vunpack.c.l.b16 %v6232
    %v6314 = vunpack.c.h.b16 %v6232
    %v6315 = vunpack.c.l.b16 %v6233
    %v6316 = vunpack.c.h.b16 %v6233
    %v6317 = vunpack.c.l.b16 %v6234
    %v6318 = vunpack.c.h.b16 %v6234
    %v6319 = vunpack.c.l.b16 %v6235
    %v6320 = vunpack.c.h.b16 %v6235
    %v6321 = vunpack.c.l.b16 %v6236
    %v6322 = vunpack.c.h.b16 %v6236
    %v6323 = vunpack.c.l.b16 %v6237
    %v6324 = vunpack.c.h.b16 %v6237
    %v6325 = vunpack.c.l.b16 %v6238
    %v6326 = vunpack.c.h.b16 %v6238
    %v6327 = vunpack.c.l.b16 %v6239
    %v6328 = vunpack.c.h.b16 %v6239
    %v6329 = vunpack.c.l.b16 %v6240
    %v6330 = vunpack.c.h.b16 %v6240
    %v6331 = vunpack.c.l.b16 %v6241
    %v6332 = vunpack.c.h.b16 %v6241
    %v6333 = vunpack.c.l.b16 %v6242
    %v6334 = vunpack.c.h.b16 %v6242
    %v6335 = vunpack.c.l.b16 %v6243
    %v6336 = vunpack.c.h.b16 %v6243
    %v6337 = vunpack.c.l.b16 %v6244
    %v6338 = vunpack.c.h.b16 %v6244
    %v6339 = vunpack.c.l.b16 %v6245
    %v6340 = vunpack.c.h.b16 %v6245
    %v6341 = vunpack.c.l.b16 %v6246
    %v6342 = vunpack.c.h.b16 %v6246
    %v6343 = vpack.c.b16 %v6283, %v6279
    %v6344 = vpack.c.b16 %v6284, %v6280
    %v6345 = vpack.c.b16 %v6285, %v6281
    %v6346 = vpack.c.b16 %v6286, %v6282
    %v6347 = vpack.c.b16 %v6291, %v6287
    %v6348 = vpack.c.b16 %v6292, %v6288
    %v6349 = vpack.c.b16 %v6293, %v6289
    %v6350 = vpack.c.b16 %v6294, %v6290
    %v6351 = vpack.c.b16 %v6299, %v6295
    %v6352 = vpack.c.b16 %v6300, %v6296
    %v6353 = vpack.c.b16 %v6301, %v6297
    %v6354 = vpack.c.b16 %v6302, %v6298
    %v6355 = vpack.c.b16 %v6307, %v6303
    %v6356 = vpack.c.b16 %v6308, %v6304
    %v6357 = vpack.c.b16 %v6309, %v6305
    %v6358 = vpack.c.b16 %v6310, %v6306
    %v6359 = vpack.c.b16 %v6315, %v6311
    %v6360 = vpack.c.b16 %v6316, %v6312
    %v6361 = vpack.c.b16 %v6317, %v6313
    %v6362 = vpack.c.b16 %v6318, %v6314
    %v6363 = vpack.c.b16 %v6323, %v6319
    %v6364 = vpack.c.b16 %v6324, %v6320
    %v6365 = vpack.c.b16 %v6325, %v6321
    %v6366 = vpack.c.b16 %v6326, %v6322
    %v6367 = vpack.c.b16 %v6331, %v6327
    %v6368 = vpack.c.b16 %v6332, %v6328
    %v6369 = vpack.c.b16 %v6333, %v6329
    %v6370 = vpack.c.b16 %v6334, %v6330
    %v6371 = vpack.c.b16 %v6339, %v6335
    %v6372 = vpack.c.b16 %v6340, %v6336
    %v6373 = vpack.c.b16 %v6341, %v6337
    %v6374 = vpack.c.b16 %v6342, %v6338
    %6407 = vmatpush.bf16.msra.mxu0 %v6371
    %6408 = vmatpush.bf16.msra.mxu0 %v6367
    %6409 = vmatpush.bf16.msra.mxu0 %v6363
    %6410 = vmatpush.bf16.msra.mxu0 %v6359
    %6411 = vmatpush.bf16.msra.mxu0 %v6355
    %6412 = vmatpush.bf16.msra.mxu0 %v6351
    %6413 = vmatpush.bf16.msra.mxu0 %v6347
    %6414 = vmatpush.bf16.msra.mxu0 %v6343
    %6415 = vmatmul.bf16.gmra.mxu0 %v6213
    %v6416 = vpop.f32.mrf.mxu0
    %v6417 = vadd.f32 0.0, %v6416
    %v6418 = vpop.f32.mrf.mxu0
    %6419 = vdwg.mxu0
    %6420 = vmatpush.bf16.msra.mxu0 %v6372
    %6421 = vmatpush.bf16.msra.mxu0 %v6368
    %6422 = vmatpush.bf16.msra.mxu0 %v6364
    %6423 = vmatpush.bf16.msra.mxu0 %v6360
    %6424 = vmatpush.bf16.msra.mxu0 %v6356
    %6425 = vmatpush.bf16.msra.mxu0 %v6352
    %6426 = vmatpush.bf16.msra.mxu0 %v6348
    %6427 = vmatpush.bf16.msra.mxu0 %v6344
    %6428 = vmatmul.bf16.gmra.mxu0 %v6213
    %v6429 = vpop.f32.mrf.mxu0
    %v6430 = vadd.f32 0.0, %v6429
    %v6431 = vpop.f32.mrf.mxu0
    %6432 = vdwg.mxu0
    %6433 = vmatpush.bf16.msra.mxu0 %v6373
    %6434 = vmatpush.bf16.msra.mxu0 %v6369
    %6435 = vmatpush.bf16.msra.mxu0 %v6365
    %6436 = vmatpush.bf16.msra.mxu0 %v6361
    %6437 = vmatpush.bf16.msra.mxu0 %v6357
    %6438 = vmatpush.bf16.msra.mxu0 %v6353
    %6439 = vmatpush.bf16.msra.mxu0 %v6349
    %6440 = vmatpush.bf16.msra.mxu0 %v6345
    %6441 = vmatmul.bf16.gmra.mxu0 %v6213
    %v6442 = vpop.f32.mrf.mxu0
    %v6443 = vadd.f32 0.0, %v6442
    %v6444 = vpop.f32.mrf.mxu0
    %6445 = vdwg.mxu0
    %6446 = vmatpush.bf16.msra.mxu0 %v6374
    %6447 = vmatpush.bf16.msra.mxu0 %v6370
    %6448 = vmatpush.bf16.msra.mxu0 %v6366
    %6449 = vmatpush.bf16.msra.mxu0 %v6362
    %6450 = vmatpush.bf16.msra.mxu0 %v6358
    %6451 = vmatpush.bf16.msra.mxu0 %v6354
    %6452 = vmatpush.bf16.msra.mxu0 %v6350
    %6453 = vmatpush.bf16.msra.mxu0 %v6346
    %6454 = vmatmul.bf16.gmra.mxu0 %v6213
    %v6455 = vpop.f32.mrf.mxu0
    %v6456 = vadd.f32 0.0, %v6455
    %v6457 = vpop.f32.mrf.mxu0
    %6458 = vdwg.mxu0
    %v6459 = vadd.f32 %v6184, %v6417
    %v6460 = vadd.f32 %v6185, %v6430
    %v6461 = vadd.f32 %v6186, %v6443
    %v6462 = vadd.f32 %v6187, %v6456
    %s6463 = scalar_lea.vmem [#allocation29], 60
    %v6464 = vld [vmem:[%s6463] sm:$0xf]
    %v6466 = vsel %vm398, %v6464, 0
    %6468 = vmatpush.msra.mxu0 0.0
    %6469 = vmatpush.msra.mxu0 0.0
    %6470 = vmatpush.msra.mxu0 0.0
    %6471 = vmatpush.msra.mxu0 0.0
    %6472 = vmatpush.msra.mxu0 0.0
    %6473 = vmatpush.msra.mxu0 0.0
    %6474 = vmatpush.msra.mxu0 0.0
    %6475 = vmatpush.msra.mxu0 0.0
    %6476 = vmatpush.msra.mxu0 %v2342
    %6477 = vmatpush.msra.mxu0 %v2341
    %6478 = vmatpush.msra.mxu0 %v2340
    %6479 = vmatpush.msra.mxu0 %v2339
    %6480 = vmatpush.msra.mxu0 %v2338
    %6481 = vmatpush.msra.mxu0 %v2337
    %6482 = vmatpush.msra.mxu0 %v2336
    %6483 = vmatpush.msra.mxu0 %v2335
    %6484 = vmatmul.f32.gmra.mxu0 %v6466
    %v6485 = vpop.f32.mrf.mxu0
    %v6486 = vadd.f32 0.0, %v6485
    %6487 = vdwg.mxu0
    %v6488 = vpack.c.bf16 %v6486, %v6486
    %s6489 = scalar_lea.vmem [#allocation2], 3840
    %v6490 = vld [vmem:[%s6489] sm:$0xff]
    %v6491 = vld [vmem:[%s6489 + $0x8] sm:$0xff]
    %v6492 = vld [vmem:[%s6489 + $0x10] sm:$0xff]
    %v6493 = vld [vmem:[%s6489 + $0x18] sm:$0xff]
    %v6494 = vld [vmem:[%s6489 + $0x20] sm:$0xff]
    %v6495 = vld [vmem:[%s6489 + $0x28] sm:$0xff]
    %v6496 = vld [vmem:[%s6489 + $0x30] sm:$0xff]
    %v6497 = vld [vmem:[%s6489 + $0x38] sm:$0xff]
    %v6498 = vld [vmem:[%s6489 + $0x40] sm:$0xff]
    %v6499 = vld [vmem:[%s6489 + $0x48] sm:$0xff]
    %v6500 = vld [vmem:[%s6489 + $0x50] sm:$0xff]
    %v6501 = vld [vmem:[%s6489 + $0x58] sm:$0xff]
    %v6502 = vld [vmem:[%s6489 + $0x60] sm:$0xff]
    %v6503 = vld [vmem:[%s6489 + $0x68] sm:$0xff]
    %v6504 = vld [vmem:[%s6489 + $0x70] sm:$0xff]
    %v6505 = vld [vmem:[%s6489 + $0x78] sm:$0xff]
    %v6506 = vld [vmem:[%s6489 + $0x80] sm:$0xff]
    %v6507 = vld [vmem:[%s6489 + $0x88] sm:$0xff]
    %v6508 = vld [vmem:[%s6489 + $0x90] sm:$0xff]
    %v6509 = vld [vmem:[%s6489 + $0x98] sm:$0xff]
    %v6510 = vld [vmem:[%s6489 + $0xa0] sm:$0xff]
    %v6511 = vld [vmem:[%s6489 + $0xa8] sm:$0xff]
    %v6512 = vld [vmem:[%s6489 + $0xb0] sm:$0xff]
    %v6513 = vld [vmem:[%s6489 + $0xb8] sm:$0xff]
    %v6514 = vld [vmem:[%s6489 + $0xc0] sm:$0xff]
    %v6515 = vld [vmem:[%s6489 + $0xc8] sm:$0xff]
    %v6516 = vld [vmem:[%s6489 + $0xd0] sm:$0xff]
    %v6517 = vld [vmem:[%s6489 + $0xd8] sm:$0xff]
    %v6518 = vld [vmem:[%s6489 + $0xe0] sm:$0xff]
    %v6519 = vld [vmem:[%s6489 + $0xe8] sm:$0xff]
    %v6520 = vld [vmem:[%s6489 + $0xf0] sm:$0xff]
    %v6521 = vld [vmem:[%s6489 + $0xf8] sm:$0xff]
    %v6554 = vunpack.c.l.b16 %v6490
    %v6555 = vunpack.c.h.b16 %v6490
    %v6556 = vunpack.c.l.b16 %v6491
    %v6557 = vunpack.c.h.b16 %v6491
    %v6558 = vunpack.c.l.b16 %v6492
    %v6559 = vunpack.c.h.b16 %v6492
    %v6560 = vunpack.c.l.b16 %v6493
    %v6561 = vunpack.c.h.b16 %v6493
    %v6562 = vunpack.c.l.b16 %v6494
    %v6563 = vunpack.c.h.b16 %v6494
    %v6564 = vunpack.c.l.b16 %v6495
    %v6565 = vunpack.c.h.b16 %v6495
    %v6566 = vunpack.c.l.b16 %v6496
    %v6567 = vunpack.c.h.b16 %v6496
    %v6568 = vunpack.c.l.b16 %v6497
    %v6569 = vunpack.c.h.b16 %v6497
    %v6570 = vunpack.c.l.b16 %v6498
    %v6571 = vunpack.c.h.b16 %v6498
    %v6572 = vunpack.c.l.b16 %v6499
    %v6573 = vunpack.c.h.b16 %v6499
    %v6574 = vunpack.c.l.b16 %v6500
    %v6575 = vunpack.c.h.b16 %v6500
    %v6576 = vunpack.c.l.b16 %v6501
    %v6577 = vunpack.c.h.b16 %v6501
    %v6578 = vunpack.c.l.b16 %v6502
    %v6579 = vunpack.c.h.b16 %v6502
    %v6580 = vunpack.c.l.b16 %v6503
    %v6581 = vunpack.c.h.b16 %v6503
    %v6582 = vunpack.c.l.b16 %v6504
    %v6583 = vunpack.c.h.b16 %v6504
    %v6584 = vunpack.c.l.b16 %v6505
    %v6585 = vunpack.c.h.b16 %v6505
    %v6586 = vunpack.c.l.b16 %v6506
    %v6587 = vunpack.c.h.b16 %v6506
    %v6588 = vunpack.c.l.b16 %v6507
    %v6589 = vunpack.c.h.b16 %v6507
    %v6590 = vunpack.c.l.b16 %v6508
    %v6591 = vunpack.c.h.b16 %v6508
    %v6592 = vunpack.c.l.b16 %v6509
    %v6593 = vunpack.c.h.b16 %v6509
    %v6594 = vunpack.c.l.b16 %v6510
    %v6595 = vunpack.c.h.b16 %v6510
    %v6596 = vunpack.c.l.b16 %v6511
    %v6597 = vunpack.c.h.b16 %v6511
    %v6598 = vunpack.c.l.b16 %v6512
    %v6599 = vunpack.c.h.b16 %v6512
    %v6600 = vunpack.c.l.b16 %v6513
    %v6601 = vunpack.c.h.b16 %v6513
    %v6602 = vunpack.c.l.b16 %v6514
    %v6603 = vunpack.c.h.b16 %v6514
    %v6604 = vunpack.c.l.b16 %v6515
    %v6605 = vunpack.c.h.b16 %v6515
    %v6606 = vunpack.c.l.b16 %v6516
    %v6607 = vunpack.c.h.b16 %v6516
    %v6608 = vunpack.c.l.b16 %v6517
    %v6609 = vunpack.c.h.b16 %v6517
    %v6610 = vunpack.c.l.b16 %v6518
    %v6611 = vunpack.c.h.b16 %v6518
    %v6612 = vunpack.c.l.b16 %v6519
    %v6613 = vunpack.c.h.b16 %v6519
    %v6614 = vunpack.c.l.b16 %v6520
    %v6615 = vunpack.c.h.b16 %v6520
    %v6616 = vunpack.c.l.b16 %v6521
    %v6617 = vunpack.c.h.b16 %v6521
    %v6618 = vpack.c.b16 %v6558, %v6554
    %v6619 = vpack.c.b16 %v6559, %v6555
    %v6620 = vpack.c.b16 %v6560, %v6556
    %v6621 = vpack.c.b16 %v6561, %v6557
    %v6622 = vpack.c.b16 %v6566, %v6562
    %v6623 = vpack.c.b16 %v6567, %v6563
    %v6624 = vpack.c.b16 %v6568, %v6564
    %v6625 = vpack.c.b16 %v6569, %v6565
    %v6626 = vpack.c.b16 %v6574, %v6570
    %v6627 = vpack.c.b16 %v6575, %v6571
    %v6628 = vpack.c.b16 %v6576, %v6572
    %v6629 = vpack.c.b16 %v6577, %v6573
    %v6630 = vpack.c.b16 %v6582, %v6578
    %v6631 = vpack.c.b16 %v6583, %v6579
    %v6632 = vpack.c.b16 %v6584, %v6580
    %v6633 = vpack.c.b16 %v6585, %v6581
    %v6634 = vpack.c.b16 %v6590, %v6586
    %v6635 = vpack.c.b16 %v6591, %v6587
    %v6636 = vpack.c.b16 %v6592, %v6588
    %v6637 = vpack.c.b16 %v6593, %v6589
    %v6638 = vpack.c.b16 %v6598, %v6594
    %v6639 = vpack.c.b16 %v6599, %v6595
    %v6640 = vpack.c.b16 %v6600, %v6596
    %v6641 = vpack.c.b16 %v6601, %v6597
    %v6642 = vpack.c.b16 %v6606, %v6602
    %v6643 = vpack.c.b16 %v6607, %v6603
    %v6644 = vpack.c.b16 %v6608, %v6604
    %v6645 = vpack.c.b16 %v6609, %v6605
    %v6646 = vpack.c.b16 %v6614, %v6610
    %v6647 = vpack.c.b16 %v6615, %v6611
    %v6648 = vpack.c.b16 %v6616, %v6612
    %v6649 = vpack.c.b16 %v6617, %v6613
    %6682 = vmatpush.bf16.msra.mxu0 %v6646
    %6683 = vmatpush.bf16.msra.mxu0 %v6642
    %6684 = vmatpush.bf16.msra.mxu0 %v6638
    %6685 = vmatpush.bf16.msra.mxu0 %v6634
    %6686 = vmatpush.bf16.msra.mxu0 %v6630
    %6687 = vmatpush.bf16.msra.mxu0 %v6626
    %6688 = vmatpush.bf16.msra.mxu0 %v6622
    %6689 = vmatpush.bf16.msra.mxu0 %v6618
    %6690 = vmatmul.bf16.gmra.mxu0 %v6488
    %v6691 = vpop.f32.mrf.mxu0
    %v6692 = vadd.f32 0.0, %v6691
    %v6693 = vpop.f32.mrf.mxu0
    %6694 = vdwg.mxu0
    %6695 = vmatpush.bf16.msra.mxu0 %v6647
    %6696 = vmatpush.bf16.msra.mxu0 %v6643
    %6697 = vmatpush.bf16.msra.mxu0 %v6639
    %6698 = vmatpush.bf16.msra.mxu0 %v6635
    %6699 = vmatpush.bf16.msra.mxu0 %v6631
    %6700 = vmatpush.bf16.msra.mxu0 %v6627
    %6701 = vmatpush.bf16.msra.mxu0 %v6623
    %6702 = vmatpush.bf16.msra.mxu0 %v6619
    %6703 = vmatmul.bf16.gmra.mxu0 %v6488
    %v6704 = vpop.f32.mrf.mxu0
    %v6705 = vadd.f32 0.0, %v6704
    %v6706 = vpop.f32.mrf.mxu0
    %6707 = vdwg.mxu0
    %6708 = vmatpush.bf16.msra.mxu0 %v6648
    %6709 = vmatpush.bf16.msra.mxu0 %v6644
    %6710 = vmatpush.bf16.msra.mxu0 %v6640
    %6711 = vmatpush.bf16.msra.mxu0 %v6636
    %6712 = vmatpush.bf16.msra.mxu0 %v6632
    %6713 = vmatpush.bf16.msra.mxu0 %v6628
    %6714 = vmatpush.bf16.msra.mxu0 %v6624
    %6715 = vmatpush.bf16.msra.mxu0 %v6620
    %6716 = vmatmul.bf16.gmra.mxu0 %v6488
    %v6717 = vpop.f32.mrf.mxu0
    %v6718 = vadd.f32 0.0, %v6717
    %v6719 = vpop.f32.mrf.mxu0
    %6720 = vdwg.mxu0
    %6721 = vmatpush.bf16.msra.mxu0 %v6649
    %6722 = vmatpush.bf16.msra.mxu0 %v6645
    %6723 = vmatpush.bf16.msra.mxu0 %v6641
    %6724 = vmatpush.bf16.msra.mxu0 %v6637
    %6725 = vmatpush.bf16.msra.mxu0 %v6633
    %6726 = vmatpush.bf16.msra.mxu0 %v6629
    %6727 = vmatpush.bf16.msra.mxu0 %v6625
    %6728 = vmatpush.bf16.msra.mxu0 %v6621
    %6729 = vmatmul.bf16.gmra.mxu0 %v6488
    %v6730 = vpop.f32.mrf.mxu0
    %v6731 = vadd.f32 0.0, %v6730
    %v6732 = vpop.f32.mrf.mxu0
    %6733 = vdwg.mxu0
    %v6734 = vadd.f32 %v6459, %v6692
    %v6735 = vadd.f32 %v6460, %v6705
    %v6736 = vadd.f32 %v6461, %v6718
    %v6737 = vadd.f32 %v6462, %v6731
    %v6738 = vld [vmem:[#allocation31] sm:$0xf]
    %v6740 = vperm.slane %v6738, 0
    %v6741 = vperm.slane %v6738, 1
    %v6742 = vperm.slane %v6738, 2
    %v6743 = vperm.slane %v6738, 3
    %v6748 = vadd.f32 %v6734, %v6740
    %v6749 = vadd.f32 %v6735, %v6741
    %v6750 = vadd.f32 %v6736, %v6742
    %v6751 = vadd.f32 %v6737, %v6743
    %v6752 = vmax.f32 %v6748, 0.0
    %v6753 = vmax.f32 %v6749, 0.0
    %v6754 = vmax.f32 %v6750, 0.0
    %v6755 = vmax.f32 %v6751, 0.0
    %s6756 = smul.u32 4, 64
    %s6757 = smul.u32 %s6756, 4
    %s6758 = sshll.u32 %s6757, 4
    %6759 = dma.done %s354, %s6758
    %v6760 = vpack.c.bf16 %v6752, %v6752
    %v6761 = vpack.c.bf16 %v6753, %v6753
    %v6762 = vpack.c.bf16 %v6754, %v6754
    %v6763 = vpack.c.bf16 %v6755, %v6755
    %v6764 = vld [vmem:[#allocation3] sm:$0xff]
    %v6765 = vld [vmem:[#allocation3 + $0x8] sm:$0xff]
    %v6766 = vld [vmem:[#allocation3 + $0x10] sm:$0xff]
    %v6767 = vld [vmem:[#allocation3 + $0x18] sm:$0xff]
    %v6768 = vld [vmem:[#allocation3 + $0x20] sm:$0xff]
    %v6769 = vld [vmem:[#allocation3 + $0x28] sm:$0xff]
    %v6770 = vld [vmem:[#allocation3 + $0x30] sm:$0xff]
    %v6771 = vld [vmem:[#allocation3 + $0x38] sm:$0xff]
    %v6772 = vld [vmem:[#allocation3 + $0x40] sm:$0xff]
    %v6773 = vld [vmem:[#allocation3 + $0x48] sm:$0xff]
    %v6774 = vld [vmem:[#allocation3 + $0x50] sm:$0xff]
    %v6775 = vld [vmem:[#allocation3 + $0x58] sm:$0xff]
    %v6776 = vld [vmem:[#allocation3 + $0x60] sm:$0xff]
    %v6777 = vld [vmem:[#allocation3 + $0x68] sm:$0xff]
    %v6778 = vld [vmem:[#allocation3 + $0x70] sm:$0xff]
    %v6779 = vld [vmem:[#allocation3 + $0x78] sm:$0xff]
    %v6780 = vld [vmem:[#allocation3 + $0x80] sm:$0xff]
    %v6781 = vld [vmem:[#allocation3 + $0x88] sm:$0xff]
    %v6782 = vld [vmem:[#allocation3 + $0x90] sm:$0xff]
    %v6783 = vld [vmem:[#allocation3 + $0x98] sm:$0xff]
    %v6784 = vld [vmem:[#allocation3 + $0xa0] sm:$0xff]
    %v6785 = vld [vmem:[#allocation3 + $0xa8] sm:$0xff]
    %v6786 = vld [vmem:[#allocation3 + $0xb0] sm:$0xff]
    %v6787 = vld [vmem:[#allocation3 + $0xb8] sm:$0xff]
    %v6788 = vld [vmem:[#allocation3 + $0xc0] sm:$0xff]
    %v6789 = vld [vmem:[#allocation3 + $0xc8] sm:$0xff]
    %v6790 = vld [vmem:[#allocation3 + $0xd0] sm:$0xff]
    %v6791 = vld [vmem:[#allocation3 + $0xd8] sm:$0xff]
    %v6792 = vld [vmem:[#allocation3 + $0xe0] sm:$0xff]
    %v6793 = vld [vmem:[#allocation3 + $0xe8] sm:$0xff]
    %v6794 = vld [vmem:[#allocation3 + $0xf0] sm:$0xff]
    %v6795 = vld [vmem:[#allocation3 + $0xf8] sm:$0xff]
    %v6796 = vld [vmem:[#allocation3 + $0x100] sm:$0xff]
    %v6797 = vld [vmem:[#allocation3 + $0x108] sm:$0xff]
    %v6798 = vld [vmem:[#allocation3 + $0x110] sm:$0xff]
    %v6799 = vld [vmem:[#allocation3 + $0x118] sm:$0xff]
    %v6800 = vld [vmem:[#allocation3 + $0x120] sm:$0xff]
    %v6801 = vld [vmem:[#allocation3 + $0x128] sm:$0xff]
    %v6802 = vld [vmem:[#allocation3 + $0x130] sm:$0xff]
    %v6803 = vld [vmem:[#allocation3 + $0x138] sm:$0xff]
    %v6804 = vld [vmem:[#allocation3 + $0x140] sm:$0xff]
    %v6805 = vld [vmem:[#allocation3 + $0x148] sm:$0xff]
    %v6806 = vld [vmem:[#allocation3 + $0x150] sm:$0xff]
    %v6807 = vld [vmem:[#allocation3 + $0x158] sm:$0xff]
    %v6808 = vld [vmem:[#allocation3 + $0x160] sm:$0xff]
    %v6809 = vld [vmem:[#allocation3 + $0x168] sm:$0xff]
    %v6810 = vld [vmem:[#allocation3 + $0x170] sm:$0xff]
    %v6811 = vld [vmem:[#allocation3 + $0x178] sm:$0xff]
    %v6812 = vld [vmem:[#allocation3 + $0x180] sm:$0xff]
    %v6813 = vld [vmem:[#allocation3 + $0x188] sm:$0xff]
    %v6814 = vld [vmem:[#allocation3 + $0x190] sm:$0xff]
    %v6815 = vld [vmem:[#allocation3 + $0x198] sm:$0xff]
    %v6816 = vld [vmem:[#allocation3 + $0x1a0] sm:$0xff]
    %v6817 = vld [vmem:[#allocation3 + $0x1a8] sm:$0xff]
    %v6818 = vld [vmem:[#allocation3 + $0x1b0] sm:$0xff]
    %v6819 = vld [vmem:[#allocation3 + $0x1b8] sm:$0xff]
    %v6820 = vld [vmem:[#allocation3 + $0x1c0] sm:$0xff]
    %v6821 = vld [vmem:[#allocation3 + $0x1c8] sm:$0xff]
    %v6822 = vld [vmem:[#allocation3 + $0x1d0] sm:$0xff]
    %v6823 = vld [vmem:[#allocation3 + $0x1d8] sm:$0xff]
    %v6824 = vld [vmem:[#allocation3 + $0x1e0] sm:$0xff]
    %v6825 = vld [vmem:[#allocation3 + $0x1e8] sm:$0xff]
    %v6826 = vld [vmem:[#allocation3 + $0x1f0] sm:$0xff]
    %v6827 = vld [vmem:[#allocation3 + $0x1f8] sm:$0xff]
    %v6828 = vld [vmem:[#allocation3 + $0x200] sm:$0xff]
    %v6829 = vld [vmem:[#allocation3 + $0x208] sm:$0xff]
    %v6830 = vld [vmem:[#allocation3 + $0x210] sm:$0xff]
    %v6831 = vld [vmem:[#allocation3 + $0x218] sm:$0xff]
    %v6832 = vld [vmem:[#allocation3 + $0x220] sm:$0xff]
    %v6833 = vld [vmem:[#allocation3 + $0x228] sm:$0xff]
    %v6834 = vld [vmem:[#allocation3 + $0x230] sm:$0xff]
    %v6835 = vld [vmem:[#allocation3 + $0x238] sm:$0xff]
    %v6836 = vld [vmem:[#allocation3 + $0x240] sm:$0xff]
    %v6837 = vld [vmem:[#allocation3 + $0x248] sm:$0xff]
    %v6838 = vld [vmem:[#allocation3 + $0x250] sm:$0xff]
    %v6839 = vld [vmem:[#allocation3 + $0x258] sm:$0xff]
    %v6840 = vld [vmem:[#allocation3 + $0x260] sm:$0xff]
    %v6841 = vld [vmem:[#allocation3 + $0x268] sm:$0xff]
    %v6842 = vld [vmem:[#allocation3 + $0x270] sm:$0xff]
    %v6843 = vld [vmem:[#allocation3 + $0x278] sm:$0xff]
    %v6844 = vld [vmem:[#allocation3 + $0x280] sm:$0xff]
    %v6845 = vld [vmem:[#allocation3 + $0x288] sm:$0xff]
    %v6846 = vld [vmem:[#allocation3 + $0x290] sm:$0xff]
    %v6847 = vld [vmem:[#allocation3 + $0x298] sm:$0xff]
    %v6848 = vld [vmem:[#allocation3 + $0x2a0] sm:$0xff]
    %v6849 = vld [vmem:[#allocation3 + $0x2a8] sm:$0xff]
    %v6850 = vld [vmem:[#allocation3 + $0x2b0] sm:$0xff]
    %v6851 = vld [vmem:[#allocation3 + $0x2b8] sm:$0xff]
    %v6852 = vld [vmem:[#allocation3 + $0x2c0] sm:$0xff]
    %v6853 = vld [vmem:[#allocation3 + $0x2c8] sm:$0xff]
    %v6854 = vld [vmem:[#allocation3 + $0x2d0] sm:$0xff]
    %v6855 = vld [vmem:[#allocation3 + $0x2d8] sm:$0xff]
    %v6856 = vld [vmem:[#allocation3 + $0x2e0] sm:$0xff]
    %v6857 = vld [vmem:[#allocation3 + $0x2e8] sm:$0xff]
    %v6858 = vld [vmem:[#allocation3 + $0x2f0] sm:$0xff]
    %v6859 = vld [vmem:[#allocation3 + $0x2f8] sm:$0xff]
    %v6860 = vld [vmem:[#allocation3 + $0x300] sm:$0xff]
    %v6861 = vld [vmem:[#allocation3 + $0x308] sm:$0xff]
    %v6862 = vld [vmem:[#allocation3 + $0x310] sm:$0xff]
    %v6863 = vld [vmem:[#allocation3 + $0x318] sm:$0xff]
    %v6864 = vld [vmem:[#allocation3 + $0x320] sm:$0xff]
    %v6865 = vld [vmem:[#allocation3 + $0x328] sm:$0xff]
    %v6866 = vld [vmem:[#allocation3 + $0x330] sm:$0xff]
    %v6867 = vld [vmem:[#allocation3 + $0x338] sm:$0xff]
    %v6868 = vld [vmem:[#allocation3 + $0x340] sm:$0xff]
    %v6869 = vld [vmem:[#allocation3 + $0x348] sm:$0xff]
    %v6870 = vld [vmem:[#allocation3 + $0x350] sm:$0xff]
    %v6871 = vld [vmem:[#allocation3 + $0x358] sm:$0xff]
    %v6872 = vld [vmem:[#allocation3 + $0x360] sm:$0xff]
    %v6873 = vld [vmem:[#allocation3 + $0x368] sm:$0xff]
    %v6874 = vld [vmem:[#allocation3 + $0x370] sm:$0xff]
    %v6875 = vld [vmem:[#allocation3 + $0x378] sm:$0xff]
    %v6876 = vld [vmem:[#allocation3 + $0x380] sm:$0xff]
    %v6877 = vld [vmem:[#allocation3 + $0x388] sm:$0xff]
    %v6878 = vld [vmem:[#allocation3 + $0x390] sm:$0xff]
    %v6879 = vld [vmem:[#allocation3 + $0x398] sm:$0xff]
    %v6880 = vld [vmem:[#allocation3 + $0x3a0] sm:$0xff]
    %v6881 = vld [vmem:[#allocation3 + $0x3a8] sm:$0xff]
    %v6882 = vld [vmem:[#allocation3 + $0x3b0] sm:$0xff]
    %v6883 = vld [vmem:[#allocation3 + $0x3b8] sm:$0xff]
    %v6884 = vld [vmem:[#allocation3 + $0x3c0] sm:$0xff]
    %v6885 = vld [vmem:[#allocation3 + $0x3c8] sm:$0xff]
    %v6886 = vld [vmem:[#allocation3 + $0x3d0] sm:$0xff]
    %v6887 = vld [vmem:[#allocation3 + $0x3d8] sm:$0xff]
    %v6888 = vld [vmem:[#allocation3 + $0x3e0] sm:$0xff]
    %v6889 = vld [vmem:[#allocation3 + $0x3e8] sm:$0xff]
    %v6890 = vld [vmem:[#allocation3 + $0x3f0] sm:$0xff]
    %v6891 = vld [vmem:[#allocation3 + $0x3f8] sm:$0xff]
    %v6892 = vld [vmem:[#allocation32] sm:$0xf]
    %v6894 = vperm.slane %v6892, 0
    %v6895 = vperm.slane %v6892, 1
    %v6896 = vperm.slane %v6892, 2
    %v6897 = vperm.slane %v6892, 3
    %v7030 = vunpack.c.l.b16 %v6764
    %v7031 = vunpack.c.h.b16 %v6764
    %v7032 = vunpack.c.l.b16 %v6765
    %v7033 = vunpack.c.h.b16 %v6765
    %v7034 = vunpack.c.l.b16 %v6766
    %v7035 = vunpack.c.h.b16 %v6766
    %v7036 = vunpack.c.l.b16 %v6767
    %v7037 = vunpack.c.h.b16 %v6767
    %v7038 = vunpack.c.l.b16 %v6768
    %v7039 = vunpack.c.h.b16 %v6768
    %v7040 = vunpack.c.l.b16 %v6769
    %v7041 = vunpack.c.h.b16 %v6769
    %v7042 = vunpack.c.l.b16 %v6770
    %v7043 = vunpack.c.h.b16 %v6770
    %v7044 = vunpack.c.l.b16 %v6771
    %v7045 = vunpack.c.h.b16 %v6771
    %v7046 = vunpack.c.l.b16 %v6772
    %v7047 = vunpack.c.h.b16 %v6772
    %v7048 = vunpack.c.l.b16 %v6773
    %v7049 = vunpack.c.h.b16 %v6773
    %v7050 = vunpack.c.l.b16 %v6774
    %v7051 = vunpack.c.h.b16 %v6774
    %v7052 = vunpack.c.l.b16 %v6775
    %v7053 = vunpack.c.h.b16 %v6775
    %v7054 = vunpack.c.l.b16 %v6776
    %v7055 = vunpack.c.h.b16 %v6776
    %v7056 = vunpack.c.l.b16 %v6777
    %v7057 = vunpack.c.h.b16 %v6777
    %v7058 = vunpack.c.l.b16 %v6778
    %v7059 = vunpack.c.h.b16 %v6778
    %v7060 = vunpack.c.l.b16 %v6779
    %v7061 = vunpack.c.h.b16 %v6779
    %v7062 = vunpack.c.l.b16 %v6780
    %v7063 = vunpack.c.h.b16 %v6780
    %v7064 = vunpack.c.l.b16 %v6781
    %v7065 = vunpack.c.h.b16 %v6781
    %v7066 = vunpack.c.l.b16 %v6782
    %v7067 = vunpack.c.h.b16 %v6782
    %v7068 = vunpack.c.l.b16 %v6783
    %v7069 = vunpack.c.h.b16 %v6783
    %v7070 = vunpack.c.l.b16 %v6784
    %v7071 = vunpack.c.h.b16 %v6784
    %v7072 = vunpack.c.l.b16 %v6785
    %v7073 = vunpack.c.h.b16 %v6785
    %v7074 = vunpack.c.l.b16 %v6786
    %v7075 = vunpack.c.h.b16 %v6786
    %v7076 = vunpack.c.l.b16 %v6787
    %v7077 = vunpack.c.h.b16 %v6787
    %v7078 = vunpack.c.l.b16 %v6788
    %v7079 = vunpack.c.h.b16 %v6788
    %v7080 = vunpack.c.l.b16 %v6789
    %v7081 = vunpack.c.h.b16 %v6789
    %v7082 = vunpack.c.l.b16 %v6790
    %v7083 = vunpack.c.h.b16 %v6790
    %v7084 = vunpack.c.l.b16 %v6791
    %v7085 = vunpack.c.h.b16 %v6791
    %v7086 = vunpack.c.l.b16 %v6792
    %v7087 = vunpack.c.h.b16 %v6792
    %v7088 = vunpack.c.l.b16 %v6793
    %v7089 = vunpack.c.h.b16 %v6793
    %v7090 = vunpack.c.l.b16 %v6794
    %v7091 = vunpack.c.h.b16 %v6794
    %v7092 = vunpack.c.l.b16 %v6795
    %v7093 = vunpack.c.h.b16 %v6795
    %v7094 = vunpack.c.l.b16 %v6796
    %v7095 = vunpack.c.h.b16 %v6796
    %v7096 = vunpack.c.l.b16 %v6797
    %v7097 = vunpack.c.h.b16 %v6797
    %v7098 = vunpack.c.l.b16 %v6798
    %v7099 = vunpack.c.h.b16 %v6798
    %v7100 = vunpack.c.l.b16 %v6799
    %v7101 = vunpack.c.h.b16 %v6799
    %v7102 = vunpack.c.l.b16 %v6800
    %v7103 = vunpack.c.h.b16 %v6800
    %v7104 = vunpack.c.l.b16 %v6801
    %v7105 = vunpack.c.h.b16 %v6801
    %v7106 = vunpack.c.l.b16 %v6802
    %v7107 = vunpack.c.h.b16 %v6802
    %v7108 = vunpack.c.l.b16 %v6803
    %v7109 = vunpack.c.h.b16 %v6803
    %v7110 = vunpack.c.l.b16 %v6804
    %v7111 = vunpack.c.h.b16 %v6804
    %v7112 = vunpack.c.l.b16 %v6805
    %v7113 = vunpack.c.h.b16 %v6805
    %v7114 = vunpack.c.l.b16 %v6806
    %v7115 = vunpack.c.h.b16 %v6806
    %v7116 = vunpack.c.l.b16 %v6807
    %v7117 = vunpack.c.h.b16 %v6807
    %v7118 = vunpack.c.l.b16 %v6808
    %v7119 = vunpack.c.h.b16 %v6808
    %v7120 = vunpack.c.l.b16 %v6809
    %v7121 = vunpack.c.h.b16 %v6809
    %v7122 = vunpack.c.l.b16 %v6810
    %v7123 = vunpack.c.h.b16 %v6810
    %v7124 = vunpack.c.l.b16 %v6811
    %v7125 = vunpack.c.h.b16 %v6811
    %v7126 = vunpack.c.l.b16 %v6812
    %v7127 = vunpack.c.h.b16 %v6812
    %v7128 = vunpack.c.l.b16 %v6813
    %v7129 = vunpack.c.h.b16 %v6813
    %v7130 = vunpack.c.l.b16 %v6814
    %v7131 = vunpack.c.h.b16 %v6814
    %v7132 = vunpack.c.l.b16 %v6815
    %v7133 = vunpack.c.h.b16 %v6815
    %v7134 = vunpack.c.l.b16 %v6816
    %v7135 = vunpack.c.h.b16 %v6816
    %v7136 = vunpack.c.l.b16 %v6817
    %v7137 = vunpack.c.h.b16 %v6817
    %v7138 = vunpack.c.l.b16 %v6818
    %v7139 = vunpack.c.h.b16 %v6818
    %v7140 = vunpack.c.l.b16 %v6819
    %v7141 = vunpack.c.h.b16 %v6819
    %v7142 = vunpack.c.l.b16 %v6820
    %v7143 = vunpack.c.h.b16 %v6820
    %v7144 = vunpack.c.l.b16 %v6821
    %v7145 = vunpack.c.h.b16 %v6821
    %v7146 = vunpack.c.l.b16 %v6822
    %v7147 = vunpack.c.h.b16 %v6822
    %v7148 = vunpack.c.l.b16 %v6823
    %v7149 = vunpack.c.h.b16 %v6823
    %v7150 = vunpack.c.l.b16 %v6824
    %v7151 = vunpack.c.h.b16 %v6824
    %v7152 = vunpack.c.l.b16 %v6825
    %v7153 = vunpack.c.h.b16 %v6825
    %v7154 = vunpack.c.l.b16 %v6826
    %v7155 = vunpack.c.h.b16 %v6826
    %v7156 = vunpack.c.l.b16 %v6827
    %v7157 = vunpack.c.h.b16 %v6827
    %v7158 = vunpack.c.l.b16 %v6828
    %v7159 = vunpack.c.h.b16 %v6828
    %v7160 = vunpack.c.l.b16 %v6829
    %v7161 = vunpack.c.h.b16 %v6829
    %v7162 = vunpack.c.l.b16 %v6830
    %v7163 = vunpack.c.h.b16 %v6830
    %v7164 = vunpack.c.l.b16 %v6831
    %v7165 = vunpack.c.h.b16 %v6831
    %v7166 = vunpack.c.l.b16 %v6832
    %v7167 = vunpack.c.h.b16 %v6832
    %v7168 = vunpack.c.l.b16 %v6833
    %v7169 = vunpack.c.h.b16 %v6833
    %v7170 = vunpack.c.l.b16 %v6834
    %v7171 = vunpack.c.h.b16 %v6834
    %v7172 = vunpack.c.l.b16 %v6835
    %v7173 = vunpack.c.h.b16 %v6835
    %v7174 = vunpack.c.l.b16 %v6836
    %v7175 = vunpack.c.h.b16 %v6836
    %v7176 = vunpack.c.l.b16 %v6837
    %v7177 = vunpack.c.h.b16 %v6837
    %v7178 = vunpack.c.l.b16 %v6838
    %v7179 = vunpack.c.h.b16 %v6838
    %v7180 = vunpack.c.l.b16 %v6839
    %v7181 = vunpack.c.h.b16 %v6839
    %v7182 = vunpack.c.l.b16 %v6840
    %v7183 = vunpack.c.h.b16 %v6840
    %v7184 = vunpack.c.l.b16 %v6841
    %v7185 = vunpack.c.h.b16 %v6841
    %v7186 = vunpack.c.l.b16 %v6842
    %v7187 = vunpack.c.h.b16 %v6842
    %v7188 = vunpack.c.l.b16 %v6843
    %v7189 = vunpack.c.h.b16 %v6843
    %v7190 = vunpack.c.l.b16 %v6844
    %v7191 = vunpack.c.h.b16 %v6844
    %v7192 = vunpack.c.l.b16 %v6845
    %v7193 = vunpack.c.h.b16 %v6845
    %v7194 = vunpack.c.l.b16 %v6846
    %v7195 = vunpack.c.h.b16 %v6846
    %v7196 = vunpack.c.l.b16 %v6847
    %v7197 = vunpack.c.h.b16 %v6847
    %v7198 = vunpack.c.l.b16 %v6848
    %v7199 = vunpack.c.h.b16 %v6848
    %v7200 = vunpack.c.l.b16 %v6849
    %v7201 = vunpack.c.h.b16 %v6849
    %v7202 = vunpack.c.l.b16 %v6850
    %v7203 = vunpack.c.h.b16 %v6850
    %v7204 = vunpack.c.l.b16 %v6851
    %v7205 = vunpack.c.h.b16 %v6851
    %v7206 = vunpack.c.l.b16 %v6852
    %v7207 = vunpack.c.h.b16 %v6852
    %v7208 = vunpack.c.l.b16 %v6853
    %v7209 = vunpack.c.h.b16 %v6853
    %v7210 = vunpack.c.l.b16 %v6854
    %v7211 = vunpack.c.h.b16 %v6854
    %v7212 = vunpack.c.l.b16 %v6855
    %v7213 = vunpack.c.h.b16 %v6855
    %v7214 = vunpack.c.l.b16 %v6856
    %v7215 = vunpack.c.h.b16 %v6856
    %v7216 = vunpack.c.l.b16 %v6857
    %v7217 = vunpack.c.h.b16 %v6857
    %v7218 = vunpack.c.l.b16 %v6858
    %v7219 = vunpack.c.h.b16 %v6858
    %v7220 = vunpack.c.l.b16 %v6859
    %v7221 = vunpack.c.h.b16 %v6859
    %v7222 = vunpack.c.l.b16 %v6860
    %v7223 = vunpack.c.h.b16 %v6860
    %v7224 = vunpack.c.l.b16 %v6861
    %v7225 = vunpack.c.h.b16 %v6861
    %v7226 = vunpack.c.l.b16 %v6862
    %v7227 = vunpack.c.h.b16 %v6862
    %v7228 = vunpack.c.l.b16 %v6863
    %v7229 = vunpack.c.h.b16 %v6863
    %v7230 = vunpack.c.l.b16 %v6864
    %v7231 = vunpack.c.h.b16 %v6864
    %v7232 = vunpack.c.l.b16 %v6865
    %v7233 = vunpack.c.h.b16 %v6865
    %v7234 = vunpack.c.l.b16 %v6866
    %v7235 = vunpack.c.h.b16 %v6866
    %v7236 = vunpack.c.l.b16 %v6867
    %v7237 = vunpack.c.h.b16 %v6867
    %v7238 = vunpack.c.l.b16 %v6868
    %v7239 = vunpack.c.h.b16 %v6868
    %v7240 = vunpack.c.l.b16 %v6869
    %v7241 = vunpack.c.h.b16 %v6869
    %v7242 = vunpack.c.l.b16 %v6870
    %v7243 = vunpack.c.h.b16 %v6870
    %v7244 = vunpack.c.l.b16 %v6871
    %v7245 = vunpack.c.h.b16 %v6871
    %v7246 = vunpack.c.l.b16 %v6872
    %v7247 = vunpack.c.h.b16 %v6872
    %v7248 = vunpack.c.l.b16 %v6873
    %v7249 = vunpack.c.h.b16 %v6873
    %v7250 = vunpack.c.l.b16 %v6874
    %v7251 = vunpack.c.h.b16 %v6874
    %v7252 = vunpack.c.l.b16 %v6875
    %v7253 = vunpack.c.h.b16 %v6875
    %v7254 = vunpack.c.l.b16 %v6876
    %v7255 = vunpack.c.h.b16 %v6876
    %v7256 = vunpack.c.l.b16 %v6877
    %v7257 = vunpack.c.h.b16 %v6877
    %v7258 = vunpack.c.l.b16 %v6878
    %v7259 = vunpack.c.h.b16 %v6878
    %v7260 = vunpack.c.l.b16 %v6879
    %v7261 = vunpack.c.h.b16 %v6879
    %v7262 = vunpack.c.l.b16 %v6880
    %v7263 = vunpack.c.h.b16 %v6880
    %v7264 = vunpack.c.l.b16 %v6881
    %v7265 = vunpack.c.h.b16 %v6881
    %v7266 = vunpack.c.l.b16 %v6882
    %v7267 = vunpack.c.h.b16 %v6882
    %v7268 = vunpack.c.l.b16 %v6883
    %v7269 = vunpack.c.h.b16 %v6883
    %v7270 = vunpack.c.l.b16 %v6884
    %v7271 = vunpack.c.h.b16 %v6884
    %v7272 = vunpack.c.l.b16 %v6885
    %v7273 = vunpack.c.h.b16 %v6885
    %v7274 = vunpack.c.l.b16 %v6886
    %v7275 = vunpack.c.h.b16 %v6886
    %v7276 = vunpack.c.l.b16 %v6887
    %v7277 = vunpack.c.h.b16 %v6887
    %v7278 = vunpack.c.l.b16 %v6888
    %v7279 = vunpack.c.h.b16 %v6888
    %v7280 = vunpack.c.l.b16 %v6889
    %v7281 = vunpack.c.h.b16 %v6889
    %v7282 = vunpack.c.l.b16 %v6890
    %v7283 = vunpack.c.h.b16 %v6890
    %v7284 = vunpack.c.l.b16 %v6891
    %v7285 = vunpack.c.h.b16 %v6891
    %v7286 = vpack.c.b16 %v7034, %v7030
    %v7287 = vpack.c.b16 %v7035, %v7031
    %v7288 = vpack.c.b16 %v7036, %v7032
    %v7289 = vpack.c.b16 %v7037, %v7033
    %v7290 = vpack.c.b16 %v7042, %v7038
    %v7291 = vpack.c.b16 %v7043, %v7039
    %v7292 = vpack.c.b16 %v7044, %v7040
    %v7293 = vpack.c.b16 %v7045, %v7041
    %v7294 = vpack.c.b16 %v7050, %v7046
    %v7295 = vpack.c.b16 %v7051, %v7047
    %v7296 = vpack.c.b16 %v7052, %v7048
    %v7297 = vpack.c.b16 %v7053, %v7049
    %v7298 = vpack.c.b16 %v7058, %v7054
    %v7299 = vpack.c.b16 %v7059, %v7055
    %v7300 = vpack.c.b16 %v7060, %v7056
    %v7301 = vpack.c.b16 %v7061, %v7057
    %v7302 = vpack.c.b16 %v7066, %v7062
    %v7303 = vpack.c.b16 %v7067, %v7063
    %v7304 = vpack.c.b16 %v7068, %v7064
    %v7305 = vpack.c.b16 %v7069, %v7065
    %v7306 = vpack.c.b16 %v7074, %v7070
    %v7307 = vpack.c.b16 %v7075, %v7071
    %v7308 = vpack.c.b16 %v7076, %v7072
    %v7309 = vpack.c.b16 %v7077, %v7073
    %v7310 = vpack.c.b16 %v7082, %v7078
    %v7311 = vpack.c.b16 %v7083, %v7079
    %v7312 = vpack.c.b16 %v7084, %v7080
    %v7313 = vpack.c.b16 %v7085, %v7081
    %v7314 = vpack.c.b16 %v7090, %v7086
    %v7315 = vpack.c.b16 %v7091, %v7087
    %v7316 = vpack.c.b16 %v7092, %v7088
    %v7317 = vpack.c.b16 %v7093, %v7089
    %v7318 = vpack.c.b16 %v7098, %v7094
    %v7319 = vpack.c.b16 %v7099, %v7095
    %v7320 = vpack.c.b16 %v7100, %v7096
    %v7321 = vpack.c.b16 %v7101, %v7097
    %v7322 = vpack.c.b16 %v7106, %v7102
    %v7323 = vpack.c.b16 %v7107, %v7103
    %v7324 = vpack.c.b16 %v7108, %v7104
    %v7325 = vpack.c.b16 %v7109, %v7105
    %v7326 = vpack.c.b16 %v7114, %v7110
    %v7327 = vpack.c.b16 %v7115, %v7111
    %v7328 = vpack.c.b16 %v7116, %v7112
    %v7329 = vpack.c.b16 %v7117, %v7113
    %v7330 = vpack.c.b16 %v7122, %v7118
    %v7331 = vpack.c.b16 %v7123, %v7119
    %v7332 = vpack.c.b16 %v7124, %v7120
    %v7333 = vpack.c.b16 %v7125, %v7121
    %v7334 = vpack.c.b16 %v7130, %v7126
    %v7335 = vpack.c.b16 %v7131, %v7127
    %v7336 = vpack.c.b16 %v7132, %v7128
    %v7337 = vpack.c.b16 %v7133, %v7129
    %v7338 = vpack.c.b16 %v7138, %v7134
    %v7339 = vpack.c.b16 %v7139, %v7135
    %v7340 = vpack.c.b16 %v7140, %v7136
    %v7341 = vpack.c.b16 %v7141, %v7137
    %v7342 = vpack.c.b16 %v7146, %v7142
    %v7343 = vpack.c.b16 %v7147, %v7143
    %v7344 = vpack.c.b16 %v7148, %v7144
    %v7345 = vpack.c.b16 %v7149, %v7145
    %v7346 = vpack.c.b16 %v7154, %v7150
    %v7347 = vpack.c.b16 %v7155, %v7151
    %v7348 = vpack.c.b16 %v7156, %v7152
    %v7349 = vpack.c.b16 %v7157, %v7153
    %v7350 = vpack.c.b16 %v7162, %v7158
    %v7351 = vpack.c.b16 %v7163, %v7159
    %v7352 = vpack.c.b16 %v7164, %v7160
    %v7353 = vpack.c.b16 %v7165, %v7161
    %v7354 = vpack.c.b16 %v7170, %v7166
    %v7355 = vpack.c.b16 %v7171, %v7167
    %v7356 = vpack.c.b16 %v7172, %v7168
    %v7357 = vpack.c.b16 %v7173, %v7169
    %v7358 = vpack.c.b16 %v7178, %v7174
    %v7359 = vpack.c.b16 %v7179, %v7175
    %v7360 = vpack.c.b16 %v7180, %v7176
    %v7361 = vpack.c.b16 %v7181, %v7177
    %v7362 = vpack.c.b16 %v7186, %v7182
    %v7363 = vpack.c.b16 %v7187, %v7183
    %v7364 = vpack.c.b16 %v7188, %v7184
    %v7365 = vpack.c.b16 %v7189, %v7185
    %v7366 = vpack.c.b16 %v7194, %v7190
    %v7367 = vpack.c.b16 %v7195, %v7191
    %v7368 = vpack.c.b16 %v7196, %v7192
    %v7369 = vpack.c.b16 %v7197, %v7193
    %v7370 = vpack.c.b16 %v7202, %v7198
    %v7371 = vpack.c.b16 %v7203, %v7199
    %v7372 = vpack.c.b16 %v7204, %v7200
    %v7373 = vpack.c.b16 %v7205, %v7201
    %v7374 = vpack.c.b16 %v7210, %v7206
    %v7375 = vpack.c.b16 %v7211, %v7207
    %v7376 = vpack.c.b16 %v7212, %v7208
    %v7377 = vpack.c.b16 %v7213, %v7209
    %v7378 = vpack.c.b16 %v7218, %v7214
    %v7379 = vpack.c.b16 %v7219, %v7215
    %v7380 = vpack.c.b16 %v7220, %v7216
    %v7381 = vpack.c.b16 %v7221, %v7217
    %v7382 = vpack.c.b16 %v7226, %v7222
    %v7383 = vpack.c.b16 %v7227, %v7223
    %v7384 = vpack.c.b16 %v7228, %v7224
    %v7385 = vpack.c.b16 %v7229, %v7225
    %v7386 = vpack.c.b16 %v7234, %v7230
    %v7387 = vpack.c.b16 %v7235, %v7231
    %v7388 = vpack.c.b16 %v7236, %v7232
    %v7389 = vpack.c.b16 %v7237, %v7233
    %v7390 = vpack.c.b16 %v7242, %v7238
    %v7391 = vpack.c.b16 %v7243, %v7239
    %v7392 = vpack.c.b16 %v7244, %v7240
    %v7393 = vpack.c.b16 %v7245, %v7241
    %v7394 = vpack.c.b16 %v7250, %v7246
    %v7395 = vpack.c.b16 %v7251, %v7247
    %v7396 = vpack.c.b16 %v7252, %v7248
    %v7397 = vpack.c.b16 %v7253, %v7249
    %v7398 = vpack.c.b16 %v7258, %v7254
    %v7399 = vpack.c.b16 %v7259, %v7255
    %v7400 = vpack.c.b16 %v7260, %v7256
    %v7401 = vpack.c.b16 %v7261, %v7257
    %v7402 = vpack.c.b16 %v7266, %v7262
    %v7403 = vpack.c.b16 %v7267, %v7263
    %v7404 = vpack.c.b16 %v7268, %v7264
    %v7405 = vpack.c.b16 %v7269, %v7265
    %v7406 = vpack.c.b16 %v7274, %v7270
    %v7407 = vpack.c.b16 %v7275, %v7271
    %v7408 = vpack.c.b16 %v7276, %v7272
    %v7409 = vpack.c.b16 %v7277, %v7273
    %v7410 = vpack.c.b16 %v7282, %v7278
    %v7411 = vpack.c.b16 %v7283, %v7279
    %v7412 = vpack.c.b16 %v7284, %v7280
    %v7413 = vpack.c.b16 %v7285, %v7281
    %7542 = vmatpush.bf16.msra.mxu0 %v7314
    %7543 = vmatpush.bf16.msra.mxu0 %v7310
    %7544 = vmatpush.bf16.msra.mxu0 %v7306
    %7545 = vmatpush.bf16.msra.mxu0 %v7302
    %7546 = vmatpush.bf16.msra.mxu0 %v7298
    %7547 = vmatpush.bf16.msra.mxu0 %v7294
    %7548 = vmatpush.bf16.msra.mxu0 %v7290
    %7549 = vmatpush.bf16.msra.mxu0 %v7286
    %7550 = vmatmul.bf16.gmra.mxu0 %v6760
    %v7551 = vpop.f32.mrf.mxu0
    %v7552 = vadd.f32 %v6894, %v7551
    %v7553 = vpop.f32.mrf.mxu0
    %7554 = vdwg.mxu0
    %7555 = vmatpush.bf16.msra.mxu0 %v7346
    %7556 = vmatpush.bf16.msra.mxu0 %v7342
    %7557 = vmatpush.bf16.msra.mxu0 %v7338
    %7558 = vmatpush.bf16.msra.mxu0 %v7334
    %7559 = vmatpush.bf16.msra.mxu0 %v7330
    %7560 = vmatpush.bf16.msra.mxu0 %v7326
    %7561 = vmatpush.bf16.msra.mxu0 %v7322
    %7562 = vmatpush.bf16.msra.mxu0 %v7318
    %7563 = vmatmul.bf16.gmra.mxu0 %v6761
    %v7564 = vpop.f32.mrf.mxu0
    %v7565 = vadd.f32 %v7552, %v7564
    %v7566 = vpop.f32.mrf.mxu0
    %7567 = vdwg.mxu0
    %7568 = vmatpush.bf16.msra.mxu0 %v7378
    %7569 = vmatpush.bf16.msra.mxu0 %v7374
    %7570 = vmatpush.bf16.msra.mxu0 %v7370
    %7571 = vmatpush.bf16.msra.mxu0 %v7366
    %7572 = vmatpush.bf16.msra.mxu0 %v7362
    %7573 = vmatpush.bf16.msra.mxu0 %v7358
    %7574 = vmatpush.bf16.msra.mxu0 %v7354
    %7575 = vmatpush.bf16.msra.mxu0 %v7350
    %7576 = vmatmul.bf16.gmra.mxu0 %v6762
    %v7577 = vpop.f32.mrf.mxu0
    %v7578 = vadd.f32 %v7565, %v7577
    %v7579 = vpop.f32.mrf.mxu0
    %7580 = vdwg.mxu0
    %7581 = vmatpush.bf16.msra.mxu0 %v7410
    %7582 = vmatpush.bf16.msra.mxu0 %v7406
    %7583 = vmatpush.bf16.msra.mxu0 %v7402
    %7584 = vmatpush.bf16.msra.mxu0 %v7398
    %7585 = vmatpush.bf16.msra.mxu0 %v7394
    %7586 = vmatpush.bf16.msra.mxu0 %v7390
    %7587 = vmatpush.bf16.msra.mxu0 %v7386
    %7588 = vmatpush.bf16.msra.mxu0 %v7382
    %7589 = vmatmul.bf16.gmra.mxu0 %v6763
    %v7590 = vpop.f32.mrf.mxu0
    %v7591 = vadd.f32 %v7578, %v7590
    %v7592 = vpop.f32.mrf.mxu0
    %7593 = vdwg.mxu0
    %7594 = vmatpush.bf16.msra.mxu0 %v7315
    %7595 = vmatpush.bf16.msra.mxu0 %v7311
    %7596 = vmatpush.bf16.msra.mxu0 %v7307
    %7597 = vmatpush.bf16.msra.mxu0 %v7303
    %7598 = vmatpush.bf16.msra.mxu0 %v7299
    %7599 = vmatpush.bf16.msra.mxu0 %v7295
    %7600 = vmatpush.bf16.msra.mxu0 %v7291
    %7601 = vmatpush.bf16.msra.mxu0 %v7287
    %7602 = vmatmul.bf16.gmra.mxu0 %v6760
    %v7603 = vpop.f32.mrf.mxu0
    %v7604 = vadd.f32 %v6895, %v7603
    %v7605 = vpop.f32.mrf.mxu0
    %7606 = vdwg.mxu0
    %7607 = vmatpush.bf16.msra.mxu0 %v7347
    %7608 = vmatpush.bf16.msra.mxu0 %v7343
    %7609 = vmatpush.bf16.msra.mxu0 %v7339
    %7610 = vmatpush.bf16.msra.mxu0 %v7335
    %7611 = vmatpush.bf16.msra.mxu0 %v7331
    %7612 = vmatpush.bf16.msra.mxu0 %v7327
    %7613 = vmatpush.bf16.msra.mxu0 %v7323
    %7614 = vmatpush.bf16.msra.mxu0 %v7319
    %7615 = vmatmul.bf16.gmra.mxu0 %v6761
    %v7616 = vpop.f32.mrf.mxu0
    %v7617 = vadd.f32 %v7604, %v7616
    %v7618 = vpop.f32.mrf.mxu0
    %7619 = vdwg.mxu0
    %7620 = vmatpush.bf16.msra.mxu0 %v7379
    %7621 = vmatpush.bf16.msra.mxu0 %v7375
    %7622 = vmatpush.bf16.msra.mxu0 %v7371
    %7623 = vmatpush.bf16.msra.mxu0 %v7367
    %7624 = vmatpush.bf16.msra.mxu0 %v7363
    %7625 = vmatpush.bf16.msra.mxu0 %v7359
    %7626 = vmatpush.bf16.msra.mxu0 %v7355
    %7627 = vmatpush.bf16.msra.mxu0 %v7351
    %7628 = vmatmul.bf16.gmra.mxu0 %v6762
    %v7629 = vpop.f32.mrf.mxu0
    %v7630 = vadd.f32 %v7617, %v7629
    %v7631 = vpop.f32.mrf.mxu0
    %7632 = vdwg.mxu0
    %7633 = vmatpush.bf16.msra.mxu0 %v7411
    %7634 = vmatpush.bf16.msra.mxu0 %v7407
    %7635 = vmatpush.bf16.msra.mxu0 %v7403
    %7636 = vmatpush.bf16.msra.mxu0 %v7399
    %7637 = vmatpush.bf16.msra.mxu0 %v7395
    %7638 = vmatpush.bf16.msra.mxu0 %v7391
    %7639 = vmatpush.bf16.msra.mxu0 %v7387
    %7640 = vmatpush.bf16.msra.mxu0 %v7383
    %7641 = vmatmul.bf16.gmra.mxu0 %v6763
    %v7642 = vpop.f32.mrf.mxu0
    %v7643 = vadd.f32 %v7630, %v7642
    %v7644 = vpop.f32.mrf.mxu0
    %7645 = vdwg.mxu0
    %7646 = vmatpush.bf16.msra.mxu0 %v7316
    %7647 = vmatpush.bf16.msra.mxu0 %v7312
    %7648 = vmatpush.bf16.msra.mxu0 %v7308
    %7649 = vmatpush.bf16.msra.mxu0 %v7304
    %7650 = vmatpush.bf16.msra.mxu0 %v7300
    %7651 = vmatpush.bf16.msra.mxu0 %v7296
    %7652 = vmatpush.bf16.msra.mxu0 %v7292
    %7653 = vmatpush.bf16.msra.mxu0 %v7288
    %7654 = vmatmul.bf16.gmra.mxu0 %v6760
    %v7655 = vpop.f32.mrf.mxu0
    %v7656 = vadd.f32 %v6896, %v7655
    %v7657 = vpop.f32.mrf.mxu0
    %7658 = vdwg.mxu0
    %7659 = vmatpush.bf16.msra.mxu0 %v7348
    %7660 = vmatpush.bf16.msra.mxu0 %v7344
    %7661 = vmatpush.bf16.msra.mxu0 %v7340
    %7662 = vmatpush.bf16.msra.mxu0 %v7336
    %7663 = vmatpush.bf16.msra.mxu0 %v7332
    %7664 = vmatpush.bf16.msra.mxu0 %v7328
    %7665 = vmatpush.bf16.msra.mxu0 %v7324
    %7666 = vmatpush.bf16.msra.mxu0 %v7320
    %7667 = vmatmul.bf16.gmra.mxu0 %v6761
    %v7668 = vpop.f32.mrf.mxu0
    %v7669 = vadd.f32 %v7656, %v7668
    %v7670 = vpop.f32.mrf.mxu0
    %7671 = vdwg.mxu0
    %7672 = vmatpush.bf16.msra.mxu0 %v7380
    %7673 = vmatpush.bf16.msra.mxu0 %v7376
    %7674 = vmatpush.bf16.msra.mxu0 %v7372
    %7675 = vmatpush.bf16.msra.mxu0 %v7368
    %7676 = vmatpush.bf16.msra.mxu0 %v7364
    %7677 = vmatpush.bf16.msra.mxu0 %v7360
    %7678 = vmatpush.bf16.msra.mxu0 %v7356
    %7679 = vmatpush.bf16.msra.mxu0 %v7352
    %7680 = vmatmul.bf16.gmra.mxu0 %v6762
    %v7681 = vpop.f32.mrf.mxu0
    %v7682 = vadd.f32 %v7669, %v7681
    %v7683 = vpop.f32.mrf.mxu0
    %7684 = vdwg.mxu0
    %7685 = vmatpush.bf16.msra.mxu0 %v7412
    %7686 = vmatpush.bf16.msra.mxu0 %v7408
    %7687 = vmatpush.bf16.msra.mxu0 %v7404
    %7688 = vmatpush.bf16.msra.mxu0 %v7400
    %7689 = vmatpush.bf16.msra.mxu0 %v7396
    %7690 = vmatpush.bf16.msra.mxu0 %v7392
    %7691 = vmatpush.bf16.msra.mxu0 %v7388
    %7692 = vmatpush.bf16.msra.mxu0 %v7384
    %7693 = vmatmul.bf16.gmra.mxu0 %v6763
    %v7694 = vpop.f32.mrf.mxu0
    %v7695 = vadd.f32 %v7682, %v7694
    %v7696 = vpop.f32.mrf.mxu0
    %7697 = vdwg.mxu0
    %7698 = vmatpush.bf16.msra.mxu0 %v7317
    %7699 = vmatpush.bf16.msra.mxu0 %v7313
    %7700 = vmatpush.bf16.msra.mxu0 %v7309
    %7701 = vmatpush.bf16.msra.mxu0 %v7305
    %7702 = vmatpush.bf16.msra.mxu0 %v7301
    %7703 = vmatpush.bf16.msra.mxu0 %v7297
    %7704 = vmatpush.bf16.msra.mxu0 %v7293
    %7705 = vmatpush.bf16.msra.mxu0 %v7289
    %7706 = vmatmul.bf16.gmra.mxu0 %v6760
    %v7707 = vpop.f32.mrf.mxu0
    %v7708 = vadd.f32 %v6897, %v7707
    %v7709 = vpop.f32.mrf.mxu0
    %7710 = vdwg.mxu0
    %7711 = vmatpush.bf16.msra.mxu0 %v7349
    %7712 = vmatpush.bf16.msra.mxu0 %v7345
    %7713 = vmatpush.bf16.msra.mxu0 %v7341
    %7714 = vmatpush.bf16.msra.mxu0 %v7337
    %7715 = vmatpush.bf16.msra.mxu0 %v7333
    %7716 = vmatpush.bf16.msra.mxu0 %v7329
    %7717 = vmatpush.bf16.msra.mxu0 %v7325
    %7718 = vmatpush.bf16.msra.mxu0 %v7321
    %7719 = vmatmul.bf16.gmra.mxu0 %v6761
    %v7720 = vpop.f32.mrf.mxu0
    %v7721 = vadd.f32 %v7708, %v7720
    %v7722 = vpop.f32.mrf.mxu0
    %7723 = vdwg.mxu0
    %7724 = vmatpush.bf16.msra.mxu0 %v7381
    %7725 = vmatpush.bf16.msra.mxu0 %v7377
    %7726 = vmatpush.bf16.msra.mxu0 %v7373
    %7727 = vmatpush.bf16.msra.mxu0 %v7369
    %7728 = vmatpush.bf16.msra.mxu0 %v7365
    %7729 = vmatpush.bf16.msra.mxu0 %v7361
    %7730 = vmatpush.bf16.msra.mxu0 %v7357
    %7731 = vmatpush.bf16.msra.mxu0 %v7353
    %7732 = vmatmul.bf16.gmra.mxu0 %v6762
    %v7733 = vpop.f32.mrf.mxu0
    %v7734 = vadd.f32 %v7721, %v7733
    %v7735 = vpop.f32.mrf.mxu0
    %7736 = vdwg.mxu0
    %7737 = vmatpush.bf16.msra.mxu0 %v7413
    %7738 = vmatpush.bf16.msra.mxu0 %v7409
    %7739 = vmatpush.bf16.msra.mxu0 %v7405
    %7740 = vmatpush.bf16.msra.mxu0 %v7401
    %7741 = vmatpush.bf16.msra.mxu0 %v7397
    %7742 = vmatpush.bf16.msra.mxu0 %v7393
    %7743 = vmatpush.bf16.msra.mxu0 %v7389
    %7744 = vmatpush.bf16.msra.mxu0 %v7385
    %7745 = vmatmul.bf16.gmra.mxu0 %v6763
    %v7746 = vpop.f32.mrf.mxu0
    %v7747 = vadd.f32 %v7734, %v7746
    %v7748 = vpop.f32.mrf.mxu0
    %7749 = vdwg.mxu0
    %v7750 = vmax.f32 %v7591, 0.0
    %v7751 = vmax.f32 %v7643, 0.0
    %v7752 = vmax.f32 %v7695, 0.0
    %v7753 = vmax.f32 %v7747, 0.0
    %s7754 = smul.u32 %s6756, 1
    %s7755 = sshll.u32 %s7754, 4
    %7756 = dma.done %s368, %s7755
    %v7757 = vpack.c.bf16 %v7750, %v7750
    %v7758 = vpack.c.bf16 %v7751, %v7751
    %v7759 = vpack.c.bf16 %v7752, %v7752
    %v7760 = vpack.c.bf16 %v7753, %v7753
    %v7761 = vld [vmem:[#allocation4] sm:$0xf]
    %v7762 = vld [vmem:[#allocation4 + $0x4] sm:$0xf]
    %v7763 = vld [vmem:[#allocation4 + $0x8] sm:$0xf]
    %v7764 = vld [vmem:[#allocation4 + $0xc] sm:$0xf]
    %v7765 = vld [vmem:[#allocation4 + $0x10] sm:$0xf]
    %v7766 = vld [vmem:[#allocation4 + $0x14] sm:$0xf]
    %v7767 = vld [vmem:[#allocation4 + $0x18] sm:$0xf]
    %v7768 = vld [vmem:[#allocation4 + $0x1c] sm:$0xf]
    %v7769 = vld [vmem:[#allocation4 + $0x20] sm:$0xf]
    %v7770 = vld [vmem:[#allocation4 + $0x24] sm:$0xf]
    %v7771 = vld [vmem:[#allocation4 + $0x28] sm:$0xf]
    %v7772 = vld [vmem:[#allocation4 + $0x2c] sm:$0xf]
    %v7773 = vld [vmem:[#allocation4 + $0x30] sm:$0xf]
    %v7774 = vld [vmem:[#allocation4 + $0x34] sm:$0xf]
    %v7775 = vld [vmem:[#allocation4 + $0x38] sm:$0xf]
    %v7776 = vld [vmem:[#allocation4 + $0x3c] sm:$0xf]
    %v7777 = vld [vmem:[#allocation4 + $0x40] sm:$0xf]
    %v7778 = vld [vmem:[#allocation4 + $0x44] sm:$0xf]
    %v7779 = vld [vmem:[#allocation4 + $0x48] sm:$0xf]
    %v7780 = vld [vmem:[#allocation4 + $0x4c] sm:$0xf]
    %v7781 = vld [vmem:[#allocation4 + $0x50] sm:$0xf]
    %v7782 = vld [vmem:[#allocation4 + $0x54] sm:$0xf]
    %v7783 = vld [vmem:[#allocation4 + $0x58] sm:$0xf]
    %v7784 = vld [vmem:[#allocation4 + $0x5c] sm:$0xf]
    %v7785 = vld [vmem:[#allocation4 + $0x60] sm:$0xf]
    %v7786 = vld [vmem:[#allocation4 + $0x64] sm:$0xf]
    %v7787 = vld [vmem:[#allocation4 + $0x68] sm:$0xf]
    %v7788 = vld [vmem:[#allocation4 + $0x6c] sm:$0xf]
    %v7789 = vld [vmem:[#allocation4 + $0x70] sm:$0xf]
    %v7790 = vld [vmem:[#allocation4 + $0x74] sm:$0xf]
    %v7791 = vld [vmem:[#allocation4 + $0x78] sm:$0xf]
    %v7792 = vld [vmem:[#allocation4 + $0x7c] sm:$0xf]
    %v7793 = vld [vmem:[#allocation4 + $0x80] sm:$0xf]
    %v7794 = vld [vmem:[#allocation4 + $0x84] sm:$0xf]
    %v7795 = vld [vmem:[#allocation4 + $0x88] sm:$0xf]
    %v7796 = vld [vmem:[#allocation4 + $0x8c] sm:$0xf]
    %v7797 = vld [vmem:[#allocation4 + $0x90] sm:$0xf]
    %v7798 = vld [vmem:[#allocation4 + $0x94] sm:$0xf]
    %v7799 = vld [vmem:[#allocation4 + $0x98] sm:$0xf]
    %v7800 = vld [vmem:[#allocation4 + $0x9c] sm:$0xf]
    %v7801 = vld [vmem:[#allocation4 + $0xa0] sm:$0xf]
    %v7802 = vld [vmem:[#allocation4 + $0xa4] sm:$0xf]
    %v7803 = vld [vmem:[#allocation4 + $0xa8] sm:$0xf]
    %v7804 = vld [vmem:[#allocation4 + $0xac] sm:$0xf]
    %v7805 = vld [vmem:[#allocation4 + $0xb0] sm:$0xf]
    %v7806 = vld [vmem:[#allocation4 + $0xb4] sm:$0xf]
    %v7807 = vld [vmem:[#allocation4 + $0xb8] sm:$0xf]
    %v7808 = vld [vmem:[#allocation4 + $0xbc] sm:$0xf]
    %v7809 = vld [vmem:[#allocation4 + $0xc0] sm:$0xf]
    %v7810 = vld [vmem:[#allocation4 + $0xc4] sm:$0xf]
    %v7811 = vld [vmem:[#allocation4 + $0xc8] sm:$0xf]
    %v7812 = vld [vmem:[#allocation4 + $0xcc] sm:$0xf]
    %v7813 = vld [vmem:[#allocation4 + $0xd0] sm:$0xf]
    %v7814 = vld [vmem:[#allocation4 + $0xd4] sm:$0xf]
    %v7815 = vld [vmem:[#allocation4 + $0xd8] sm:$0xf]
    %v7816 = vld [vmem:[#allocation4 + $0xdc] sm:$0xf]
    %v7817 = vld [vmem:[#allocation4 + $0xe0] sm:$0xf]
    %v7818 = vld [vmem:[#allocation4 + $0xe4] sm:$0xf]
    %v7819 = vld [vmem:[#allocation4 + $0xe8] sm:$0xf]
    %v7820 = vld [vmem:[#allocation4 + $0xec] sm:$0xf]
    %v7821 = vld [vmem:[#allocation4 + $0xf0] sm:$0xf]
    %v7822 = vld [vmem:[#allocation4 + $0xf4] sm:$0xf]
    %v7823 = vld [vmem:[#allocation4 + $0xf8] sm:$0xf]
    %v7824 = vld [vmem:[#allocation4 + $0xfc] sm:$0xf]
    %v7825 = vld [vmem:[#allocation34] sm:$0x1]
    %v7827 = vperm.slane %v7825, 0
    %v7893 = vunpack.c.l.b16 %v7761
    %v7894 = vunpack.c.l.b16 %v7762
    %v7895 = vunpack.c.l.b16 %v7763
    %v7896 = vunpack.c.l.b16 %v7764
    %v7897 = vunpack.c.l.b16 %v7765
    %v7898 = vunpack.c.l.b16 %v7766
    %v7899 = vunpack.c.l.b16 %v7767
    %v7900 = vunpack.c.l.b16 %v7768
    %v7901 = vunpack.c.l.b16 %v7769
    %v7902 = vunpack.c.l.b16 %v7770
    %v7903 = vunpack.c.l.b16 %v7771
    %v7904 = vunpack.c.l.b16 %v7772
    %v7905 = vunpack.c.l.b16 %v7773
    %v7906 = vunpack.c.l.b16 %v7774
    %v7907 = vunpack.c.l.b16 %v7775
    %v7908 = vunpack.c.l.b16 %v7776
    %v7909 = vunpack.c.l.b16 %v7777
    %v7910 = vunpack.c.l.b16 %v7778
    %v7911 = vunpack.c.l.b16 %v7779
    %v7912 = vunpack.c.l.b16 %v7780
    %v7913 = vunpack.c.l.b16 %v7781
    %v7914 = vunpack.c.l.b16 %v7782
    %v7915 = vunpack.c.l.b16 %v7783
    %v7916 = vunpack.c.l.b16 %v7784
    %v7917 = vunpack.c.l.b16 %v7785
    %v7918 = vunpack.c.l.b16 %v7786
    %v7919 = vunpack.c.l.b16 %v7787
    %v7920 = vunpack.c.l.b16 %v7788
    %v7921 = vunpack.c.l.b16 %v7789
    %v7922 = vunpack.c.l.b16 %v7790
    %v7923 = vunpack.c.l.b16 %v7791
    %v7924 = vunpack.c.l.b16 %v7792
    %v7925 = vunpack.c.l.b16 %v7793
    %v7926 = vunpack.c.l.b16 %v7794
    %v7927 = vunpack.c.l.b16 %v7795
    %v7928 = vunpack.c.l.b16 %v7796
    %v7929 = vunpack.c.l.b16 %v7797
    %v7930 = vunpack.c.l.b16 %v7798
    %v7931 = vunpack.c.l.b16 %v7799
    %v7932 = vunpack.c.l.b16 %v7800
    %v7933 = vunpack.c.l.b16 %v7801
    %v7934 = vunpack.c.l.b16 %v7802
    %v7935 = vunpack.c.l.b16 %v7803
    %v7936 = vunpack.c.l.b16 %v7804
    %v7937 = vunpack.c.l.b16 %v7805
    %v7938 = vunpack.c.l.b16 %v7806
    %v7939 = vunpack.c.l.b16 %v7807
    %v7940 = vunpack.c.l.b16 %v7808
    %v7941 = vunpack.c.l.b16 %v7809
    %v7942 = vunpack.c.l.b16 %v7810
    %v7943 = vunpack.c.l.b16 %v7811
    %v7944 = vunpack.c.l.b16 %v7812
    %v7945 = vunpack.c.l.b16 %v7813
    %v7946 = vunpack.c.l.b16 %v7814
    %v7947 = vunpack.c.l.b16 %v7815
    %v7948 = vunpack.c.l.b16 %v7816
    %v7949 = vunpack.c.l.b16 %v7817
    %v7950 = vunpack.c.l.b16 %v7818
    %v7951 = vunpack.c.l.b16 %v7819
    %v7952 = vunpack.c.l.b16 %v7820
    %v7953 = vunpack.c.l.b16 %v7821
    %v7954 = vunpack.c.l.b16 %v7822
    %v7955 = vunpack.c.l.b16 %v7823
    %v7956 = vunpack.c.l.b16 %v7824
    %v7957 = vpack.c.b16 %v7894, %v7893
    %v7958 = vpack.c.b16 %v7896, %v7895
    %v7959 = vpack.c.b16 %v7898, %v7897
    %v7960 = vpack.c.b16 %v7900, %v7899
    %v7961 = vpack.c.b16 %v7902, %v7901
    %v7962 = vpack.c.b16 %v7904, %v7903
    %v7963 = vpack.c.b16 %v7906, %v7905
    %v7964 = vpack.c.b16 %v7908, %v7907
    %v7965 = vpack.c.b16 %v7910, %v7909
    %v7966 = vpack.c.b16 %v7912, %v7911
    %v7967 = vpack.c.b16 %v7914, %v7913
    %v7968 = vpack.c.b16 %v7916, %v7915
    %v7969 = vpack.c.b16 %v7918, %v7917
    %v7970 = vpack.c.b16 %v7920, %v7919
    %v7971 = vpack.c.b16 %v7922, %v7921
    %v7972 = vpack.c.b16 %v7924, %v7923
    %v7973 = vpack.c.b16 %v7926, %v7925
    %v7974 = vpack.c.b16 %v7928, %v7927
    %v7975 = vpack.c.b16 %v7930, %v7929
    %v7976 = vpack.c.b16 %v7932, %v7931
    %v7977 = vpack.c.b16 %v7934, %v7933
    %v7978 = vpack.c.b16 %v7936, %v7935
    %v7979 = vpack.c.b16 %v7938, %v7937
    %v7980 = vpack.c.b16 %v7940, %v7939
    %v7981 = vpack.c.b16 %v7942, %v7941
    %v7982 = vpack.c.b16 %v7944, %v7943
    %v7983 = vpack.c.b16 %v7946, %v7945
    %v7984 = vpack.c.b16 %v7948, %v7947
    %v7985 = vpack.c.b16 %v7950, %v7949
    %v7986 = vpack.c.b16 %v7952, %v7951
    %v7987 = vpack.c.b16 %v7954, %v7953
    %v7988 = vpack.c.b16 %v7956, %v7955
    %8021 = vmatpush.bf16.msra.mxu0 %v7964
    %8022 = vmatpush.bf16.msra.mxu0 %v7963
    %8023 = vmatpush.bf16.msra.mxu0 %v7962
    %8024 = vmatpush.bf16.msra.mxu0 %v7961
    %8025 = vmatpush.bf16.msra.mxu0 %v7960
    %8026 = vmatpush.bf16.msra.mxu0 %v7959
    %8027 = vmatpush.bf16.msra.mxu0 %v7958
    %8028 = vmatpush.bf16.msra.mxu0 %v7957
    %8029 = vmatmul.bf16.gmra.mxu0 %v7757
    %v8030 = vpop.f32.mrf.mxu0
    %v8031 = vadd.f32 %v7827, %v8030
    %v8032 = vpop.f32.mrf.mxu0
    %8033 = vdwg.mxu0
    %8034 = vmatpush.bf16.msra.mxu0 %v7972
    %8035 = vmatpush.bf16.msra.mxu0 %v7971
    %8036 = vmatpush.bf16.msra.mxu0 %v7970
    %8037 = vmatpush.bf16.msra.mxu0 %v7969
    %8038 = vmatpush.bf16.msra.mxu0 %v7968
    %8039 = vmatpush.bf16.msra.mxu0 %v7967
    %8040 = vmatpush.bf16.msra.mxu0 %v7966
    %8041 = vmatpush.bf16.msra.mxu0 %v7965
    %8042 = vmatmul.bf16.gmra.mxu0 %v7758
    %v8043 = vpop.f32.mrf.mxu0
    %v8044 = vadd.f32 %v8031, %v8043
    %v8045 = vpop.f32.mrf.mxu0
    %8046 = vdwg.mxu0
    %8047 = vmatpush.bf16.msra.mxu0 %v7980
    %8048 = vmatpush.bf16.msra.mxu0 %v7979
    %8049 = vmatpush.bf16.msra.mxu0 %v7978
    %8050 = vmatpush.bf16.msra.mxu0 %v7977
    %8051 = vmatpush.bf16.msra.mxu0 %v7976
    %8052 = vmatpush.bf16.msra.mxu0 %v7975
    %8053 = vmatpush.bf16.msra.mxu0 %v7974
    %8054 = vmatpush.bf16.msra.mxu0 %v7973
    %8055 = vmatmul.bf16.gmra.mxu0 %v7759
    %v8056 = vpop.f32.mrf.mxu0
    %v8057 = vadd.f32 %v8044, %v8056
    %v8058 = vpop.f32.mrf.mxu0
    %8059 = vdwg.mxu0
    %8060 = vmatpush.bf16.msra.mxu0 %v7988
    %8061 = vmatpush.bf16.msra.mxu0 %v7987
    %8062 = vmatpush.bf16.msra.mxu0 %v7986
    %8063 = vmatpush.bf16.msra.mxu0 %v7985
    %8064 = vmatpush.bf16.msra.mxu0 %v7984
    %8065 = vmatpush.bf16.msra.mxu0 %v7983
    %8066 = vmatpush.bf16.msra.mxu0 %v7982
    %8067 = vmatpush.bf16.msra.mxu0 %v7981
    %8068 = vmatmul.bf16.gmra.mxu0 %v7760
    %v8069 = vpop.f32.mrf.mxu0
    %v8070 = vadd.f32 %v8057, %v8069
    %v8071 = vpop.f32.mrf.mxu0
    %8072 = vdwg.mxu0
    %8073 = vst [vmem:[%s25] sm:$0xf] %v8070
    // Predicated region
    $region178: #{siamese_forward.1} parent=1 // pred_check
      _
    $region179: #{siamese_forward.1} parent=1 // pred_check_branch
      %8075 = sbr.rel (0) target = $region181
    $region180: #{siamese_forward.1} parent=1 // pred_region
      _
    $region181: #{siamese_forward.1} parent=1 // pred_fallthru
      _
    // Predicated region
    $region182: #{siamese_forward.1} parent=1 // pred_check
      _
    $region183: #{siamese_forward.1} parent=1 // pred_check_branch
      %8077 = sbr.rel (0) target = $region185
    $region184: #{siamese_forward.1} parent=1 // pred_region
      _
    $region185: #{siamese_forward.1} parent=1 // pred_fallthru
      _
    %8078 = vsyncpa [#allocation7], 1
    %8079 = vsyncpa [#allocation9], 1
    %8080 = vsyncpa [#allocation12], 1
    %8081 = vsyncpa [#allocation15], 1
    %8082 = vsyncpa [#allocation18], 1
    %8083 = vsyncpa [#allocation21], 1
    %8084 = vsyncpa [#allocation24], 1
    %8085 = vsyncpa [#allocation27], 1
    %8086 = vsyncpa [#allocation30], 1
    %8087 = vsyncpa [#allocation33], 1
  %8088 = vsyncmov [#allocation5]
  %s8089 = vpop.sfrf %8088
  %p8090 = scmp.eq.s32.totalorder %s8089, 0
  %p8091 = pneg %p8090
  %8093 = shalt.err (%p8091)
  %s8094 = scalar_lea.sflag [#allocation5], 1
  %8095 = vsyncmov %s8094
  %s8096 = vpop.sfrf %8095
  %p8097 = scmp.eq.s32.totalorder %s8096, 0
  %p8098 = pneg %p8097
  %8100 = shalt.err (%p8098)
  %s8101 = scalar_lea.sflag [#allocation5], 2
  %8102 = vsyncmov %s8101
  %s8103 = vpop.sfrf %8102
  %p8104 = scmp.eq.s32.totalorder %s8103, 0
  %p8105 = pneg %p8104
  %8107 = shalt.err (%p8105)

</llo_original>
